<compile_context>
chip_gen: v7x
topology: tpu7x:2x2x1
jax: 0.10.0
libtpu: 0.0.40
codegen_flags: <defaults>
</compile_context>

<pallas_src>
import functools

import jax
import jax.numpy as jnp
import numpy as np
from jax.experimental import pallas as pl
from jax.experimental.pallas import tpu as pltpu


_VMEM = pl.BlockSpec(memory_space=pltpu.MemorySpace.VMEM)
_SMEM = pl.BlockSpec(memory_space=pltpu.MemorySpace.SMEM)


# --------------------------------------------------------------------------
# Kernels 1 & 3: fused dense-chain kernel (encoder+latents / project+decoder)
# --------------------------------------------------------------------------

def _chain_kernel(*refs, plan, final_act):
    """Chain of dense(+bias) and BatchNorm+ReLU stages, fully VMEM resident.

    refs = (x, <operands consumed in `plan` order>..., out).
    plan items:
      ("dense",)     -> consumes (W, b)          : h = h @ W + b   (f32 accum)
      ("bn_relu", n) -> consumes (g, beta, R, Rt): training-mode BN + ReLU;
                        per-channel batch stats via the constant one-hot
                        reduce matrix R (S*C, C) and its transpose, so no
                        in-kernel reshape is needed.
    """
    out_ref = refs[-1]
    ins = refs[:-1]
    h = ins[0][...].astype(jnp.float32)
    idx = 1
    for op in plan:
        if op[0] == "dense":
            w_ref, b_ref = ins[idx], ins[idx + 1]
            idx += 2
            h = jnp.dot(h.astype(w_ref.dtype), w_ref[...],
                        preferred_element_type=jnp.float32) + b_ref[...]
        else:                                            # ("bn_relu", n)
            n = op[1]
            g_ref, beta_ref, r_ref, rt_ref = ins[idx:idx + 4]
            idx += 4
            s1 = jnp.dot(jnp.sum(h, axis=0, keepdims=True), r_ref[...],
                         preferred_element_type=jnp.float32)
            s2 = jnp.dot(jnp.sum(h * h, axis=0, keepdims=True), r_ref[...],
                         preferred_element_type=jnp.float32)
            mean = s1 * (1.0 / n)
            var = s2 * (1.0 / n) - mean * mean           # biased, as in torch BN
            scale_c = g_ref[...] * jax.lax.rsqrt(var + 1e-5)
            shift_c = beta_ref[...] - mean * scale_c
            scale = jnp.dot(scale_c, rt_ref[...], preferred_element_type=jnp.float32)
            shift = jnp.dot(shift_c, rt_ref[...], preferred_element_type=jnp.float32)
            h = jnp.maximum(h * scale + shift, 0.0)
    if final_act == "sigmoid":
        h = jax.nn.sigmoid(h)
    out_ref[...] = h.astype(out_ref.dtype)


def run_chain(x, operands, plan, final_act, out_dim):
    B = x.shape[0]
    return pl.pallas_call(
        functools.partial(_chain_kernel, plan=plan, final_act=final_act),
        out_shape=jax.ShapeDtypeStruct((B, out_dim), jnp.float32),
        in_specs=[_VMEM] * (1 + len(operands)),
        out_specs=_VMEM,
    )(x, *operands)


# --------------------------------------------------------------------------
# Kernel 2: RP placement + projected_var = RP @ RP^T + z = mean + tril(V) @ eps
# --------------------------------------------------------------------------

def _rp_var_z_kernel(pr_ref, tri_ref, lamda_ref, mean_ref, eps_ref,
                     var_ref, z_ref, *, d):
    B, Z = lamda_ref.shape
    row = jax.lax.broadcasted_iota(jnp.int32, (Z, Z), 0)
    col = jax.lax.broadcasted_iota(jnp.int32, (Z, Z), 1)
    eye = (row == col).astype(jnp.float32)
    lamda = lamda_ref[...]

    rp_list = []
    for b in range(B):                                   # B is small & static
        p = pr_ref[b]                                    # scalar from SMEM
        placed = jnp.zeros((Z, Z), jnp.float32)
        for i in range(d):
            for j in range(d):
                m = jnp.logical_and(row == p + i, col == p + j)
                placed = placed + tri_ref[b, i * d + j] * m.astype(jnp.float32)
        rp_list.append(placed + eye * lamda[b:b + 1, :])  # += lamda on diagonal
    rp = jnp.stack(rp_list, axis=0)                      # (B, Z, Z)

    v = jnp.einsum("bij,bkj->bik", rp, rp,
                   preferred_element_type=jnp.float32)   # RP @ RP^T
    var_ref[...] = v
    tril = jnp.where((col <= row)[None, :, :], v, 0.0)   # torch.tril(var, 0)
    z_ref[...] = mean_ref[...] + jnp.sum(tril * eps_ref[...][:, None, :], axis=-1)


def rp_var_and_z(Pr, lower_tri, lamda, mean, eps, *, z_size, d):
    B = lamda.shape[0]
    tri_flat = lower_tri.reshape(B, d * d).astype(jnp.float32)
    return pl.pallas_call(
        functools.partial(_rp_var_z_kernel, d=d),
        out_shape=(jax.ShapeDtypeStruct((B, z_size, z_size), jnp.float32),
                   jax.ShapeDtypeStruct((B, z_size), jnp.float32)),
        in_specs=[_SMEM, _SMEM, _VMEM, _VMEM, _VMEM],
        out_specs=(_VMEM, _VMEM),
    )(Pr.astype(jnp.int32), tri_flat, lamda.astype(jnp.float32),
      mean.astype(jnp.float32), eps.reshape(1, z_size).astype(jnp.float32))


# --------------------------------------------------------------------------
# One-time parameter preparation (dense conv/deconv matrices, perms, BN mats)
# --------------------------------------------------------------------------

def _conv_dense(w, Hin, Win):
    # w: (Cout, Cin, 3, 3), stride 2, pad 1 -> (Hin*Win*Cin, Hout*Wout*Cout),
    # NHWC-flat on both sides.
    Cout, Cin, KH, KW = w.shape
    Hout = (Hin + 2 - KH) // 2 + 1
    Wout = (Win + 2 - KW) // 2 + 1
    ho, wo, i, j, ci, co = np.meshgrid(
        np.arange(Hout), np.arange(Wout), np.arange(KH), np.arange(KW),
        np.arange(Cin), np.arange(Cout), indexing="ij")
    hi = 2 * ho + i - 1
    wi = 2 * wo + j - 1
    valid = (hi >= 0) & (hi < Hin) & (wi >= 0) & (wi < Win)
    rows = ((hi * Win + wi) * Cin + ci)[valid]
    cols = ((ho * Wout + wo) * Cout + co)[valid]
    vals = w[co[valid], ci[valid], i[valid], j[valid]]
    dense = jnp.zeros((Hin * Win * Cin, Hout * Wout * Cout), jnp.float32)
    return dense.at[rows, cols].add(vals)


def _deconv_dense(w, Hin, Win):
    # w: (Cin, Cout, 4, 4), ConvTranspose2d stride 2, pad 1 ->
    # (Hin*Win*Cin, Hout*Wout*Cout), NHWC-flat.  ho = 2*hi + kh - 1.
    Cin, Cout, KH, KW = w.shape
    Hout, Wout = 2 * Hin, 2 * Win
    hi, wi, kh, kw, ci, co = np.meshgrid(
        np.arange(Hin), np.arange(Win), np.arange(KH), np.arange(KW),
        np.arange(Cin), np.arange(Cout), indexing="ij")
    ho = 2 * hi + kh - 1
    wo = 2 * wi + kw - 1
    valid = (ho >= 0) & (ho < Hout) & (wo >= 0) & (wo < Wout)
    rows = ((hi * Win + wi) * Cin + ci)[valid]
    cols = ((ho * Wout + wo) * Cout + co)[valid]
    vals = w[ci[valid], co[valid], kh[valid], kw[valid]]
    dense = jnp.zeros((Hin * Win * Cin, Hout * Wout * Cout), jnp.float32)
    return dense.at[rows, cols].add(vals)


def _bn_mats(S, C):
    # One-hot reduce matrix for a (S*C,)-flattened (channel-innermost) layout.
    R = np.zeros((S * C, C), np.float32)
    R[np.arange(S * C), np.tile(np.arange(C), S)] = 1.0
    return jnp.asarray(R), jnp.asarray(R.T)


def prepare_params(params, image_size, channel_num, kernel_num, z_size):
    del channel_num  # implicit in weight shapes
    kn = kernel_num
    fs = image_size // 8
    s1, s2, s3 = image_size // 2, image_size // 4, image_size // 8

    we1 = _conv_dense(params["enc1_w"], image_size, image_size)
    we2 = _conv_dense(params["enc2_w"], s1, s1)
    we3 = _conv_dense(params["enc3_w"], s2, s2)
    r1, r1t = _bn_mats(s1 * s1, kn // 4)
    r2, r2t = _bn_mats(s2 * s2, kn // 2)

    # PyTorch flattens encoded in (C, H, W) order; our kernels use (H, W, C).
    hh, ww, cc = np.meshgrid(np.arange(fs), np.arange(fs), np.arange(kn),
                             indexing="ij")
    perm = (cc * fs * fs + hh * fs + ww).reshape(-1)

    w_lat = jnp.concatenate([params["q_mean_w"].T, params["q_logvar_w"].T,
                             params["q_corr_w"].T, params["lamda_w"].T],
                            axis=1)[perm, :]
    b_lat = jnp.concatenate([params["q_mean_b"], params["q_logvar_b"],
                             params["q_corr_b"], params["lamda_b"]]).reshape(1, -1)
    w_proj = params["project_w"].T[:, perm]
    b_proj = params["project_b"][perm].reshape(1, -1)

    wd1 = _deconv_dense(params["dec1_w"], fs, fs)
    wd2 = _deconv_dense(params["dec2_w"], 2 * fs, 2 * fs)
    wd3 = _deconv_dense(params["dec3_w"], 4 * fs, 4 * fs)
    rd1, rd1t = _bn_mats((2 * fs) ** 2, kn // 2)
    rd2, rd2t = _bn_mats((4 * fs) ** 2, kn // 4)

    def row(v):
        return v.astype(jnp.float32).reshape(1, -1)

    def tile_bias(b, S):
        return jnp.tile(b, S).astype(jnp.float32).reshape(1, -1)

    return dict(
        we1=we1.astype(jnp.bfloat16), be1=tile_bias(params["enc1_b"], s1 * s1),
        g1=row(params["enc1_g"]), bt1=row(params["enc1_beta"]), r1=r1, r1t=r1t,
        we2=we2.astype(jnp.bfloat16), be2=tile_bias(params["enc2_b"], s2 * s2),
        g2=row(params["enc2_g"]), bt2=row(params["enc2_beta"]), r2=r2, r2t=r2t,
        we3=we3.astype(jnp.bfloat16), be3=tile_bias(params["enc3_b"], s3 * s3),
        wlat=w_lat.astype(jnp.float32), blat=b_lat.astype(jnp.float32),
        wproj=w_proj.astype(jnp.float32), bproj=b_proj.astype(jnp.float32),
        wd1=wd1.astype(jnp.bfloat16), bd1=tile_bias(params["dec1_b"], (2 * fs) ** 2),
        gd1=row(params["dec1_g"]), btd1=row(params["dec1_beta"]), rd1=rd1, rd1t=rd1t,
        wd2=wd2.astype(jnp.bfloat16), bd2=tile_bias(params["dec2_b"], (4 * fs) ** 2),
        gd2=row(params["dec2_g"]), btd2=row(params["dec2_beta"]), rd2=rd2, rd2t=rd2t,
        wd3=wd3.astype(jnp.bfloat16), bd3=tile_bias(params["dec3_b"], (8 * fs) ** 2),
    )


# --------------------------------------------------------------------------
# Parameters (deterministic init) and forward pass
# --------------------------------------------------------------------------

def init_params(key, image_size, channel_num, kernel_num, z_size):
    cov_space = z_size // 10
    feature_size = image_size // 8
    feature_volume = kernel_num * feature_size ** 2
    corr_size = cov_space * (cov_space - 1) // 2
    ks = jax.random.split(key, 12)
    kn = kernel_num

    def conv_w(k, cout, cin, kh, kw):
        return jax.random.normal(k, (cout, cin, kh, kw), jnp.float32) / np.sqrt(cin * kh * kw)

    def deconv_w(k, cin, cout, kh, kw):
        return jax.random.normal(k, (cin, cout, kh, kw), jnp.float32) / np.sqrt(cin * kh * kw)

    def lin_w(k, out, inn):
        return jax.random.normal(k, (out, inn), jnp.float32) / np.sqrt(inn)

    return {
        "enc1_w": conv_w(ks[0], kn // 4, channel_num, 3, 3), "enc1_b": jnp.zeros((kn // 4,)),
        "enc1_g": jnp.ones((kn // 4,)), "enc1_beta": jnp.zeros((kn // 4,)),
        "enc2_w": conv_w(ks[1], kn // 2, kn // 4, 3, 3), "enc2_b": jnp.zeros((kn // 2,)),
        "enc2_g": jnp.ones((kn // 2,)), "enc2_beta": jnp.zeros((kn // 2,)),
        "enc3_w": conv_w(ks[2], kn, kn // 2, 3, 3), "enc3_b": jnp.zeros((kn,)),
        "q_mean_w": lin_w(ks[3], z_size, feature_volume), "q_mean_b": jnp.zeros((z_size,)),
        "q_logvar_w": lin_w(ks[4], cov_space, feature_volume), "q_logvar_b": jnp.zeros((cov_space,)),
        "q_corr_w": lin_w(ks[5], corr_size, feature_volume), "q_corr_b": jnp.zeros((corr_size,)),
        "lamda_w": lin_w(ks[6], z_size, feature_volume), "lamda_b": jnp.zeros((z_size,)),
        "project_w": lin_w(ks[7], feature_volume, z_size), "project_b": jnp.zeros((feature_volume,)),
        "dec1_w": deconv_w(ks[8], kn, kn // 2, 4, 4), "dec1_b": jnp.zeros((kn // 2,)),
        "dec1_g": jnp.ones((kn // 2,)), "dec1_beta": jnp.zeros((kn // 2,)),
        "dec2_w": deconv_w(ks[9], kn // 2, kn // 4, 4, 4), "dec2_b": jnp.zeros((kn // 4,)),
        "dec2_g": jnp.ones((kn // 4,)), "dec2_beta": jnp.zeros((kn // 4,)),
        "dec3_w": deconv_w(ks[10], kn // 4, channel_num, 4, 4), "dec3_b": jnp.zeros((channel_num,)),
    }


def vae_forward(prep, x, Pr, eps, *, image_size, channel_num, kernel_num, z_size):
    cov = z_size // 10
    corr_size = cov * (cov - 1) // 2
    B = x.shape[0]
    s1, s2, s3 = image_size // 2, image_size // 4, image_size // 8

    # NCHW (PyTorch I/O) -> NHWC-flat once at the boundary.
    x_flat = x.transpose(0, 2, 3, 1).reshape(B, -1)

    # ---- kernel 1: encoder + fused latent heads
    enc_plan = (("dense",), ("bn_relu", float(B * s1 * s1)),
                ("dense",), ("bn_relu", float(B * s2 * s2)),
                ("dense",), ("dense",))
    enc_ops = [prep["we1"], prep["be1"], prep["g1"], prep["bt1"], prep["r1"], prep["r1t"],
               prep["we2"], prep["be2"], prep["g2"], prep["bt2"], prep["r2"], prep["r2t"],
               prep["we3"], prep["be3"], prep["wlat"], prep["blat"]]
    n_lat = 2 * z_size + cov + corr_size
    lat = run_chain(x_flat, enc_ops, enc_plan, "none", n_lat)

    o0, o1, o2 = z_size, z_size + cov, z_size + cov + corr_size
    mean = lat[:, :o0]
    log_var = lat[:, o0:o1]
    corr = lat[:, o1:o2]
    lamda = lat[:, o2:]

    # ---- lower_tri_cov (tiny; returned output, stays in plain JAX)
    d = cov
    std = jnp.exp(0.5 * log_var)
    var_matrix = std[:, :, None] * std[:, None, :]
    tr, tc = np.tril_indices(d, k=-1)
    rho = jnp.zeros((B, d, d), jnp.float32).at[:, tr, tc].set(corr)
    # NB: the reference adds 1e-6 to EVERY entry (not just the diagonal).
    lower_tri = var_matrix * rho + std[:, :, None] * jnp.eye(d, dtype=jnp.float32) + 1e-6

    # ---- kernel 2: RP placement + RP@RP^T + z
    # TODO(synk): torch.randn inside z_RP replaced by a deterministic eps input
    # (reference also uses a single (z_size,) draw shared across the batch).
    projected_var, z = rp_var_and_z(Pr, lower_tri, lamda, mean, eps,
                                    z_size=z_size, d=d)

    # ---- kernel 3: projection + decoder + sigmoid
    dec_plan = (("dense",), ("dense",), ("bn_relu", float(B * (2 * s3) ** 2)),
                ("dense",), ("bn_relu", float(B * (4 * s3) ** 2)),
                ("dense",))
    dec_ops = [prep["wproj"], prep["bproj"],
               prep["wd1"], prep["bd1"], prep["gd1"], prep["btd1"], prep["rd1"], prep["rd1t"],
               prep["wd2"], prep["bd2"], prep["gd2"], prep["btd2"], prep["rd2"], prep["rd2t"],
               prep["wd3"], prep["bd3"]]
    x_rec_flat = run_chain(z, dec_ops, dec_plan, "sigmoid",
                           image_size * image_size * channel_num)
    x_reconstructed = x_rec_flat.reshape(B, image_size, image_size,
                                         channel_num).transpose(0, 3, 1, 2)

    return (mean, lower_tri, projected_var), x_reconstructed


# --------------------------------------------------------------------------

if __name__ == "__main__":
    image_size, channel_num, kernel_num, z_size = 16, 4, 32, 32
    B = 2

    key = jax.random.PRNGKey(0)
    kx, kp, ke = jax.random.split(key, 3)
    x = jax.random.uniform(kx, (B, channel_num, image_size, image_size), jnp.float32)
    Pr = jnp.array([5, 20], dtype=jnp.int32)       # block starts; Pr + cov_space <= z_size
    eps = jax.random.normal(ke, (z_size,), jnp.float32)

    params = init_params(kp, image_size, channel_num, kernel_num, z_size)
    prep = prepare_params(params, image_size, channel_num, kernel_num, z_size)

    fwd = jax.jit(functools.partial(
        vae_forward, image_size=image_size, channel_num=channel_num,
        kernel_num=kernel_num, z_size=z_size))

    (mean, lower_tri, projected_var), x_rec = fwd(prep, x, Pr, eps)
    jax.block_until_ready(x_rec)

    assert mean.shape == (B, z_size)
    assert lower_tri.shape == (B, z_size // 10, z_size // 10)
    assert projected_var.shape == (B, z_size, z_size)
    assert x_rec.shape == (B, channel_num, image_size, image_size)
    assert bool(jnp.all(jnp.isfinite(x_rec)))
    assert bool(jnp.all((x_rec >= 0.0) & (x_rec <= 1.0)))

    print("KERNEL_OK")
</pallas_src>

<mosaic_0001>
module attributes {stable_mosaic.version = 11 : i64} {
  func.func @_chain_kernel(%arg0: memref<2x1024xf32, #tpu.memory_space<vmem>>, %arg1: memref<1024x512xbf16, #tpu.memory_space<vmem>>, %arg2: memref<1x512xf32, #tpu.memory_space<vmem>>, %arg3: memref<1x8xf32, #tpu.memory_space<vmem>>, %arg4: memref<1x8xf32, #tpu.memory_space<vmem>>, %arg5: memref<512x8xf32, #tpu.memory_space<vmem>>, %arg6: memref<8x512xf32, #tpu.memory_space<vmem>>, %arg7: memref<512x256xbf16, #tpu.memory_space<vmem>>, %arg8: memref<1x256xf32, #tpu.memory_space<vmem>>, %arg9: memref<1x16xf32, #tpu.memory_space<vmem>>, %arg10: memref<1x16xf32, #tpu.memory_space<vmem>>, %arg11: memref<256x16xf32, #tpu.memory_space<vmem>>, %arg12: memref<16x256xf32, #tpu.memory_space<vmem>>, %arg13: memref<256x128xbf16, #tpu.memory_space<vmem>>, %arg14: memref<1x128xf32, #tpu.memory_space<vmem>>, %arg15: memref<128x70xf32, #tpu.memory_space<vmem>>, %arg16: memref<1x70xf32, #tpu.memory_space<vmem>>, %arg17: memref<2x70xf32, #tpu.memory_space<vmem>>) attributes {dimension_semantics = [], scalar_prefetch = 0 : i64, scratch_operands = 0 : i64, tpu.core_type = #tpu.core_type<tc>} {
    %c0 = arith.constant 0 : index
    %c0_0 = arith.constant 0 : index
    %0 = vector.load %arg0[%c0, %c0_0] : memref<2x1024xf32, #tpu.memory_space<vmem>>, vector<2x1024xf32>
    %1 = arith.truncf %0 : vector<2x1024xf32> to vector<2x1024xbf16>
    %c0_1 = arith.constant 0 : index
    %c0_2 = arith.constant 0 : index
    %2 = vector.load %arg1[%c0_1, %c0_2] : memref<1024x512xbf16, #tpu.memory_space<vmem>>, vector<1024x512xbf16>
    %cst = arith.constant dense<0.000000e+00> : vector<2x512xf32>
    %3 = tpu.matmul %1, %2, %cst {dimension_numbers = #tpu.dot_dimension_numbers<[1], [0], [0], [1], [0, 0, 1, 1], [], []>} : vector<2x1024xbf16>, vector<1024x512xbf16>, vector<2x512xf32> -> vector<2x512xf32>
    %c0_3 = arith.constant 0 : index
    %c0_4 = arith.constant 0 : index
    %4 = vector.load %arg2[%c0_3, %c0_4] : memref<1x512xf32, #tpu.memory_space<vmem>>, vector<1x512xf32>
    %5 = vector.broadcast %4 : vector<1x512xf32> to vector<2x512xf32>
    %6 = arith.addf %3, %5 : vector<2x512xf32>
    %cst_5 = arith.constant dense<0.000000e+00> : vector<512xf32>
    %7 = vector.multi_reduction <add>, %6, %cst_5 [0] : vector<2x512xf32> to vector<512xf32>
    %8 = vector.shape_cast %7 : vector<512xf32> to vector<1x512xf32>
    %c0_6 = arith.constant 0 : index
    %c0_7 = arith.constant 0 : index
    %9 = vector.load %arg5[%c0_6, %c0_7] : memref<512x8xf32, #tpu.memory_space<vmem>>, vector<512x8xf32>
    %cst_8 = arith.constant dense<0.000000e+00> : vector<1x8xf32>
    %10 = tpu.matmul %8, %9, %cst_8 {dimension_numbers = #tpu.dot_dimension_numbers<[1], [0], [0], [1], [0, 0, 1, 1], [], []>} : vector<1x512xf32>, vector<512x8xf32>, vector<1x8xf32> -> vector<1x8xf32>
    %11 = arith.mulf %6, %6 : vector<2x512xf32>
    %cst_9 = arith.constant dense<0.000000e+00> : vector<512xf32>
    %12 = vector.multi_reduction <add>, %11, %cst_9 [0] : vector<2x512xf32> to vector<512xf32>
    %13 = vector.shape_cast %12 : vector<512xf32> to vector<1x512xf32>
    %c0_10 = arith.constant 0 : index
    %c0_11 = arith.constant 0 : index
    %14 = vector.load %arg5[%c0_10, %c0_11] : memref<512x8xf32, #tpu.memory_space<vmem>>, vector<512x8xf32>
    %cst_12 = arith.constant dense<0.000000e+00> : vector<1x8xf32>
    %15 = tpu.matmul %13, %14, %cst_12 {dimension_numbers = #tpu.dot_dimension_numbers<[1], [0], [0], [1], [0, 0, 1, 1], [], []>} : vector<1x512xf32>, vector<512x8xf32>, vector<1x8xf32> -> vector<1x8xf32>
    %cst_13 = arith.constant 7.812500e-03 : f32
    %16 = vector.broadcast %cst_13 : f32 to vector<1x8xf32>
    %17 = arith.mulf %10, %16 : vector<1x8xf32>
    %cst_14 = arith.constant 7.812500e-03 : f32
    %18 = vector.broadcast %cst_14 : f32 to vector<1x8xf32>
    %19 = arith.mulf %15, %18 : vector<1x8xf32>
    %20 = arith.mulf %17, %17 : vector<1x8xf32>
    %21 = arith.subf %19, %20 : vector<1x8xf32>
    %c0_15 = arith.constant 0 : index
    %c0_16 = arith.constant 0 : index
    %22 = vector.load %arg3[%c0_15, %c0_16] : memref<1x8xf32, #tpu.memory_space<vmem>>, vector<1x8xf32>
    %cst_17 = arith.constant 9.99999974E-6 : f32
    %23 = vector.broadcast %cst_17 : f32 to vector<1x8xf32>
    %24 = arith.addf %21, %23 : vector<1x8xf32>
    %25 = math.rsqrt %24 : vector<1x8xf32>
    %26 = arith.mulf %22, %25 : vector<1x8xf32>
    %c0_18 = arith.constant 0 : index
    %c0_19 = arith.constant 0 : index
    %27 = vector.load %arg4[%c0_18, %c0_19] : memref<1x8xf32, #tpu.memory_space<vmem>>, vector<1x8xf32>
    %28 = arith.mulf %17, %26 : vector<1x8xf32>
    %29 = arith.subf %27, %28 : vector<1x8xf32>
    %c0_20 = arith.constant 0 : index
    %c0_21 = arith.constant 0 : index
    %30 = vector.load %arg6[%c0_20, %c0_21] : memref<8x512xf32, #tpu.memory_space<vmem>>, vector<8x512xf32>
    %cst_22 = arith.constant dense<0.000000e+00> : vector<1x512xf32>
    %31 = tpu.matmul %26, %30, %cst_22 {dimension_numbers = #tpu.dot_dimension_numbers<[1], [0], [0], [1], [0, 0, 1, 1], [], []>} : vector<1x8xf32>, vector<8x512xf32>, vector<1x512xf32> -> vector<1x512xf32>
    %c0_23 = arith.constant 0 : index
    %c0_24 = arith.constant 0 : index
    %32 = vector.load %arg6[%c0_23, %c0_24] : memref<8x512xf32, #tpu.memory_space<vmem>>, vector<8x512xf32>
    %cst_25 = arith.constant dense<0.000000e+00> : vector<1x512xf32>
    %33 = tpu.matmul %29, %32, %cst_25 {dimension_numbers = #tpu.dot_dimension_numbers<[1], [0], [0], [1], [0, 0, 1, 1], [], []>} : vector<1x8xf32>, vector<8x512xf32>, vector<1x512xf32> -> vector<1x512xf32>
    %34 = vector.broadcast %31 : vector<1x512xf32> to vector<2x512xf32>
    %35 = arith.mulf %6, %34 : vector<2x512xf32>
    %36 = vector.broadcast %33 : vector<1x512xf32> to vector<2x512xf32>
    %37 = arith.addf %35, %36 : vector<2x512xf32>
    %cst_26 = arith.constant 0.000000e+00 : f32
    %38 = vector.broadcast %cst_26 : f32 to vector<2x512xf32>
    %39 = arith.maximumf %37, %38 : vector<2x512xf32>
    %40 = arith.truncf %39 : vector<2x512xf32> to vector<2x512xbf16>
    %c0_27 = arith.constant 0 : index
    %c0_28 = arith.constant 0 : index
    %41 = vector.load %arg7[%c0_27, %c0_28] : memref<512x256xbf16, #tpu.memory_space<vmem>>, vector<512x256xbf16>
    %cst_29 = arith.constant dense<0.000000e+00> : vector<2x256xf32>
    %42 = tpu.matmul %40, %41, %cst_29 {dimension_numbers = #tpu.dot_dimension_numbers<[1], [0], [0], [1], [0, 0, 1, 1], [], []>} : vector<2x512xbf16>, vector<512x256xbf16>, vector<2x256xf32> -> vector<2x256xf32>
    %c0_30 = arith.constant 0 : index
    %c0_31 = arith.constant 0 : index
    %43 = vector.load %arg8[%c0_30, %c0_31] : memref<1x256xf32, #tpu.memory_space<vmem>>, vector<1x256xf32>
    %44 = vector.broadcast %43 : vector<1x256xf32> to vector<2x256xf32>
    %45 = arith.addf %42, %44 : vector<2x256xf32>
    %cst_32 = arith.constant dense<0.000000e+00> : vector<256xf32>
    %46 = vector.multi_reduction <add>, %45, %cst_32 [0] : vector<2x256xf32> to vector<256xf32>
    %47 = vector.shape_cast %46 : vector<256xf32> to vector<1x256xf32>
    %c0_33 = arith.constant 0 : index
    %c0_34 = arith.constant 0 : index
    %48 = vector.load %arg11[%c0_33, %c0_34] : memref<256x16xf32, #tpu.memory_space<vmem>>, vector<256x16xf32>
    %cst_35 = arith.constant dense<0.000000e+00> : vector<1x16xf32>
    %49 = tpu.matmul %47, %48, %cst_35 {dimension_numbers = #tpu.dot_dimension_numbers<[1], [0], [0], [1], [0, 0, 1, 1], [], []>} : vector<1x256xf32>, vector<256x16xf32>, vector<1x16xf32> -> vector<1x16xf32>
    %50 = arith.mulf %45, %45 : vector<2x256xf32>
    %cst_36 = arith.constant dense<0.000000e+00> : vector<256xf32>
    %51 = vector.multi_reduction <add>, %50, %cst_36 [0] : vector<2x256xf32> to vector<256xf32>
    %52 = vector.shape_cast %51 : vector<256xf32> to vector<1x256xf32>
    %c0_37 = arith.constant 0 : index
    %c0_38 = arith.constant 0 : index
    %53 = vector.load %arg11[%c0_37, %c0_38] : memref<256x16xf32, #tpu.memory_space<vmem>>, vector<256x16xf32>
    %cst_39 = arith.constant dense<0.000000e+00> : vector<1x16xf32>
    %54 = tpu.matmul %52, %53, %cst_39 {dimension_numbers = #tpu.dot_dimension_numbers<[1], [0], [0], [1], [0, 0, 1, 1], [], []>} : vector<1x256xf32>, vector<256x16xf32>, vector<1x16xf32> -> vector<1x16xf32>
    %cst_40 = arith.constant 3.125000e-02 : f32
    %55 = vector.broadcast %cst_40 : f32 to vector<1x16xf32>
    %56 = arith.mulf %49, %55 : vector<1x16xf32>
    %cst_41 = arith.constant 3.125000e-02 : f32
    %57 = vector.broadcast %cst_41 : f32 to vector<1x16xf32>
    %58 = arith.mulf %54, %57 : vector<1x16xf32>
    %59 = arith.mulf %56, %56 : vector<1x16xf32>
    %60 = arith.subf %58, %59 : vector<1x16xf32>
    %c0_42 = arith.constant 0 : index
    %c0_43 = arith.constant 0 : index
    %61 = vector.load %arg9[%c0_42, %c0_43] : memref<1x16xf32, #tpu.memory_space<vmem>>, vector<1x16xf32>
    %cst_44 = arith.constant 9.99999974E-6 : f32
    %62 = vector.broadcast %cst_44 : f32 to vector<1x16xf32>
    %63 = arith.addf %60, %62 : vector<1x16xf32>
    %64 = math.rsqrt %63 : vector<1x16xf32>
    %65 = arith.mulf %61, %64 : vector<1x16xf32>
    %c0_45 = arith.constant 0 : index
    %c0_46 = arith.constant 0 : index
    %66 = vector.load %arg10[%c0_45, %c0_46] : memref<1x16xf32, #tpu.memory_space<vmem>>, vector<1x16xf32>
    %67 = arith.mulf %56, %65 : vector<1x16xf32>
    %68 = arith.subf %66, %67 : vector<1x16xf32>
    %c0_47 = arith.constant 0 : index
    %c0_48 = arith.constant 0 : index
    %69 = vector.load %arg12[%c0_47, %c0_48] : memref<16x256xf32, #tpu.memory_space<vmem>>, vector<16x256xf32>
    %cst_49 = arith.constant dense<0.000000e+00> : vector<1x256xf32>
    %70 = tpu.matmul %65, %69, %cst_49 {dimension_numbers = #tpu.dot_dimension_numbers<[1], [0], [0], [1], [0, 0, 1, 1], [], []>} : vector<1x16xf32>, vector<16x256xf32>, vector<1x256xf32> -> vector<1x256xf32>
    %c0_50 = arith.constant 0 : index
    %c0_51 = arith.constant 0 : index
    %71 = vector.load %arg12[%c0_50, %c0_51] : memref<16x256xf32, #tpu.memory_space<vmem>>, vector<16x256xf32>
    %cst_52 = arith.constant dense<0.000000e+00> : vector<1x256xf32>
    %72 = tpu.matmul %68, %71, %cst_52 {dimension_numbers = #tpu.dot_dimension_numbers<[1], [0], [0], [1], [0, 0, 1, 1], [], []>} : vector<1x16xf32>, vector<16x256xf32>, vector<1x256xf32> -> vector<1x256xf32>
    %73 = vector.broadcast %70 : vector<1x256xf32> to vector<2x256xf32>
    %74 = arith.mulf %45, %73 : vector<2x256xf32>
    %75 = vector.broadcast %72 : vector<1x256xf32> to vector<2x256xf32>
    %76 = arith.addf %74, %75 : vector<2x256xf32>
    %cst_53 = arith.constant 0.000000e+00 : f32
    %77 = vector.broadcast %cst_53 : f32 to vector<2x256xf32>
    %78 = arith.maximumf %76, %77 : vector<2x256xf32>
    %79 = arith.truncf %78 : vector<2x256xf32> to vector<2x256xbf16>
    %c0_54 = arith.constant 0 : index
    %c0_55 = arith.constant 0 : index
    %80 = vector.load %arg13[%c0_54, %c0_55] : memref<256x128xbf16, #tpu.memory_space<vmem>>, vector<256x128xbf16>
    %cst_56 = arith.constant dense<0.000000e+00> : vector<2x128xf32>
    %81 = tpu.matmul %79, %80, %cst_56 {dimension_numbers = #tpu.dot_dimension_numbers<[1], [0], [0], [1], [0, 0, 1, 1], [], []>} : vector<2x256xbf16>, vector<256x128xbf16>, vector<2x128xf32> -> vector<2x128xf32>
    %c0_57 = arith.constant 0 : index
    %c0_58 = arith.constant 0 : index
    %82 = vector.load %arg14[%c0_57, %c0_58] : memref<1x128xf32, #tpu.memory_space<vmem>>, vector<1x128xf32>
    %83 = vector.broadcast %82 : vector<1x128xf32> to vector<2x128xf32>
    %84 = arith.addf %81, %83 : vector<2x128xf32>
    %c0_59 = arith.constant 0 : index
    %c0_60 = arith.constant 0 : index
    %85 = vector.load %arg15[%c0_59, %c0_60] : memref<128x70xf32, #tpu.memory_space<vmem>>, vector<128x70xf32>
    %cst_61 = arith.constant dense<0.000000e+00> : vector<2x70xf32>
    %86 = tpu.matmul %84, %85, %cst_61 {dimension_numbers = #tpu.dot_dimension_numbers<[1], [0], [0], [1], [0, 0, 1, 1], [], []>} : vector<2x128xf32>, vector<128x70xf32>, vector<2x70xf32> -> vector<2x70xf32>
    %c0_62 = arith.constant 0 : index
    %c0_63 = arith.constant 0 : index
    %87 = vector.load %arg16[%c0_62, %c0_63] : memref<1x70xf32, #tpu.memory_space<vmem>>, vector<1x70xf32>
    %88 = vector.broadcast %87 : vector<1x70xf32> to vector<2x70xf32>
    %89 = arith.addf %86, %88 : vector<2x70xf32>
    %c0_64 = arith.constant 0 : index
    %c0_65 = arith.constant 0 : index
    %90 = vector.load %arg17[%c0_64, %c0_65] : memref<2x70xf32, #tpu.memory_space<vmem>>, vector<2x70xf32>
    tpu.vector_store %arg17[%c0_64, %c0_65], %89 {strides = array<i32>} : memref<2x70xf32, #tpu.memory_space<vmem>>, vector<2x70xf32>,
    return
  }
}

module attributes {stable_mosaic.version = 11 : i64} {
  func.func @_rp_var_z_kernel(%arg0: memref<2xi32, #tpu.memory_space<smem>>, %arg1: memref<2x9xf32, #tpu.memory_space<smem>>, %arg2: memref<2x32xf32, #tpu.memory_space<vmem>>, %arg3: memref<2x32xf32, #tpu.memory_space<vmem>>, %arg4: memref<1x32xf32, #tpu.memory_space<vmem>>, %arg5: memref<2x32x32xf32, #tpu.memory_space<vmem>>, %arg6: memref<2x32xf32, #tpu.memory_space<vmem>>) attributes {dimension_semantics = [], scalar_prefetch = 0 : i64, scratch_operands = 0 : i64, tpu.core_type = #tpu.core_type<tc>} {
    %0 = tpu.iota {dimensions = array<i32: 0>} : vector<32x32xi32>
    %1 = tpu.iota {dimensions = array<i32: 1>} : vector<32x32xi32>
    %2 = arith.cmpi eq, %0, %1 : vector<32x32xi32>
    %3 = arith.extui %2 : vector<32x32xi1> to vector<32x32xi32>
    %4 = arith.sitofp %3 : vector<32x32xi32> to vector<32x32xf32>
    %c0 = arith.constant 0 : index
    %c0_0 = arith.constant 0 : index
    %5 = vector.load %arg2[%c0, %c0_0] : memref<2x32xf32, #tpu.memory_space<vmem>>, vector<2x32xf32>
    %c0_1 = arith.constant 0 : index
    %6 = memref.load %arg0[%c0_1] : memref<2xi32, #tpu.memory_space<smem>>
    %cst = arith.constant 0.000000e+00 : f32
    %7 = vector.broadcast %cst : f32 to vector<32x32xf32>
    %c0_i32 = arith.constant 0 : i32
    %8 = arith.addi %6, %c0_i32 : i32
    %9 = vector.broadcast %8 : i32 to vector<32x32xi32>
    %10 = arith.cmpi eq, %0, %9 : vector<32x32xi32>
    %c0_i32_2 = arith.constant 0 : i32
    %11 = arith.addi %6, %c0_i32_2 : i32
    %12 = vector.broadcast %11 : i32 to vector<32x32xi32>
    %13 = arith.cmpi eq, %1, %12 : vector<32x32xi32>
    %14 = arith.andi %10, %13 : vector<32x32xi1>
    %c0_3 = arith.constant 0 : index
    %c0_4 = arith.constant 0 : index
    %15 = memref.load %arg1[%c0_3, %c0_4] : memref<2x9xf32, #tpu.memory_space<smem>>
    %16 = arith.extui %14 : vector<32x32xi1> to vector<32x32xi32>
    %17 = arith.sitofp %16 : vector<32x32xi32> to vector<32x32xf32>
    %18 = vector.broadcast %15 : f32 to vector<32x32xf32>
    %19 = arith.mulf %18, %17 : vector<32x32xf32>
    %20 = arith.addf %7, %19 : vector<32x32xf32>
    %c0_i32_5 = arith.constant 0 : i32
    %21 = arith.addi %6, %c0_i32_5 : i32
    %22 = vector.broadcast %21 : i32 to vector<32x32xi32>
    %23 = arith.cmpi eq, %0, %22 : vector<32x32xi32>
    %c1_i32 = arith.constant 1 : i32
    %24 = arith.addi %6, %c1_i32 : i32
    %25 = vector.broadcast %24 : i32 to vector<32x32xi32>
    %26 = arith.cmpi eq, %1, %25 : vector<32x32xi32>
    %27 = arith.andi %23, %26 : vector<32x32xi1>
    %c0_6 = arith.constant 0 : index
    %c1 = arith.constant 1 : index
    %28 = memref.load %arg1[%c0_6, %c1] : memref<2x9xf32, #tpu.memory_space<smem>>
    %29 = arith.extui %27 : vector<32x32xi1> to vector<32x32xi32>
    %30 = arith.sitofp %29 : vector<32x32xi32> to vector<32x32xf32>
    %31 = vector.broadcast %28 : f32 to vector<32x32xf32>
    %32 = arith.mulf %31, %30 : vector<32x32xf32>
    %33 = arith.addf %20, %32 : vector<32x32xf32>
    %c0_i32_7 = arith.constant 0 : i32
    %34 = arith.addi %6, %c0_i32_7 : i32
    %35 = vector.broadcast %34 : i32 to vector<32x32xi32>
    %36 = arith.cmpi eq, %0, %35 : vector<32x32xi32>
    %c2_i32 = arith.constant 2 : i32
    %37 = arith.addi %6, %c2_i32 : i32
    %38 = vector.broadcast %37 : i32 to vector<32x32xi32>
    %39 = arith.cmpi eq, %1, %38 : vector<32x32xi32>
    %40 = arith.andi %36, %39 : vector<32x32xi1>
    %c0_8 = arith.constant 0 : index
    %c2 = arith.constant 2 : index
    %41 = memref.load %arg1[%c0_8, %c2] : memref<2x9xf32, #tpu.memory_space<smem>>
    %42 = arith.extui %40 : vector<32x32xi1> to vector<32x32xi32>
    %43 = arith.sitofp %42 : vector<32x32xi32> to vector<32x32xf32>
    %44 = vector.broadcast %41 : f32 to vector<32x32xf32>
    %45 = arith.mulf %44, %43 : vector<32x32xf32>
    %46 = arith.addf %33, %45 : vector<32x32xf32>
    %c1_i32_9 = arith.constant 1 : i32
    %47 = arith.addi %6, %c1_i32_9 : i32
    %48 = vector.broadcast %47 : i32 to vector<32x32xi32>
    %49 = arith.cmpi eq, %0, %48 : vector<32x32xi32>
    %c0_i32_10 = arith.constant 0 : i32
    %50 = arith.addi %6, %c0_i32_10 : i32
    %51 = vector.broadcast %50 : i32 to vector<32x32xi32>
    %52 = arith.cmpi eq, %1, %51 : vector<32x32xi32>
    %53 = arith.andi %49, %52 : vector<32x32xi1>
    %c0_11 = arith.constant 0 : index
    %c3 = arith.constant 3 : index
    %54 = memref.load %arg1[%c0_11, %c3] : memref<2x9xf32, #tpu.memory_space<smem>>
    %55 = arith.extui %53 : vector<32x32xi1> to vector<32x32xi32>
    %56 = arith.sitofp %55 : vector<32x32xi32> to vector<32x32xf32>
    %57 = vector.broadcast %54 : f32 to vector<32x32xf32>
    %58 = arith.mulf %57, %56 : vector<32x32xf32>
    %59 = arith.addf %46, %58 : vector<32x32xf32>
    %c1_i32_12 = arith.constant 1 : i32
    %60 = arith.addi %6, %c1_i32_12 : i32
    %61 = vector.broadcast %60 : i32 to vector<32x32xi32>
    %62 = arith.cmpi eq, %0, %61 : vector<32x32xi32>
    %c1_i32_13 = arith.constant 1 : i32
    %63 = arith.addi %6, %c1_i32_13 : i32
    %64 = vector.broadcast %63 : i32 to vector<32x32xi32>
    %65 = arith.cmpi eq, %1, %64 : vector<32x32xi32>
    %66 = arith.andi %62, %65 : vector<32x32xi1>
    %c0_14 = arith.constant 0 : index
    %c4 = arith.constant 4 : index
    %67 = memref.load %arg1[%c0_14, %c4] : memref<2x9xf32, #tpu.memory_space<smem>>
    %68 = arith.extui %66 : vector<32x32xi1> to vector<32x32xi32>
    %69 = arith.sitofp %68 : vector<32x32xi32> to vector<32x32xf32>
    %70 = vector.broadcast %67 : f32 to vector<32x32xf32>
    %71 = arith.mulf %70, %69 : vector<32x32xf32>
    %72 = arith.addf %59, %71 : vector<32x32xf32>
    %c1_i32_15 = arith.constant 1 : i32
    %73 = arith.addi %6, %c1_i32_15 : i32
    %74 = vector.broadcast %73 : i32 to vector<32x32xi32>
    %75 = arith.cmpi eq, %0, %74 : vector<32x32xi32>
    %c2_i32_16 = arith.constant 2 : i32
    %76 = arith.addi %6, %c2_i32_16 : i32
    %77 = vector.broadcast %76 : i32 to vector<32x32xi32>
    %78 = arith.cmpi eq, %1, %77 : vector<32x32xi32>
    %79 = arith.andi %75, %78 : vector<32x32xi1>
    %c0_17 = arith.constant 0 : index
    %c5 = arith.constant 5 : index
    %80 = memref.load %arg1[%c0_17, %c5] : memref<2x9xf32, #tpu.memory_space<smem>>
    %81 = arith.extui %79 : vector<32x32xi1> to vector<32x32xi32>
    %82 = arith.sitofp %81 : vector<32x32xi32> to vector<32x32xf32>
    %83 = vector.broadcast %80 : f32 to vector<32x32xf32>
    %84 = arith.mulf %83, %82 : vector<32x32xf32>
    %85 = arith.addf %72, %84 : vector<32x32xf32>
    %c2_i32_18 = arith.constant 2 : i32
    %86 = arith.addi %6, %c2_i32_18 : i32
    %87 = vector.broadcast %86 : i32 to vector<32x32xi32>
    %88 = arith.cmpi eq, %0, %87 : vector<32x32xi32>
    %c0_i32_19 = arith.constant 0 : i32
    %89 = arith.addi %6, %c0_i32_19 : i32
    %90 = vector.broadcast %89 : i32 to vector<32x32xi32>
    %91 = arith.cmpi eq, %1, %90 : vector<32x32xi32>
    %92 = arith.andi %88, %91 : vector<32x32xi1>
    %c0_20 = arith.constant 0 : index
    %c6 = arith.constant 6 : index
    %93 = memref.load %arg1[%c0_20, %c6] : memref<2x9xf32, #tpu.memory_space<smem>>
    %94 = arith.extui %92 : vector<32x32xi1> to vector<32x32xi32>
    %95 = arith.sitofp %94 : vector<32x32xi32> to vector<32x32xf32>
    %96 = vector.broadcast %93 : f32 to vector<32x32xf32>
    %97 = arith.mulf %96, %95 : vector<32x32xf32>
    %98 = arith.addf %85, %97 : vector<32x32xf32>
    %c2_i32_21 = arith.constant 2 : i32
    %99 = arith.addi %6, %c2_i32_21 : i32
    %100 = vector.broadcast %99 : i32 to vector<32x32xi32>
    %101 = arith.cmpi eq, %0, %100 : vector<32x32xi32>
    %c1_i32_22 = arith.constant 1 : i32
    %102 = arith.addi %6, %c1_i32_22 : i32
    %103 = vector.broadcast %102 : i32 to vector<32x32xi32>
    %104 = arith.cmpi eq, %1, %103 : vector<32x32xi32>
    %105 = arith.andi %101, %104 : vector<32x32xi1>
    %c0_23 = arith.constant 0 : index
    %c7 = arith.constant 7 : index
    %106 = memref.load %arg1[%c0_23, %c7] : memref<2x9xf32, #tpu.memory_space<smem>>
    %107 = arith.extui %105 : vector<32x32xi1> to vector<32x32xi32>
    %108 = arith.sitofp %107 : vector<32x32xi32> to vector<32x32xf32>
    %109 = vector.broadcast %106 : f32 to vector<32x32xf32>
    %110 = arith.mulf %109, %108 : vector<32x32xf32>
    %111 = arith.addf %98, %110 : vector<32x32xf32>
    %c2_i32_24 = arith.constant 2 : i32
    %112 = arith.addi %6, %c2_i32_24 : i32
    %113 = vector.broadcast %112 : i32 to vector<32x32xi32>
    %114 = arith.cmpi eq, %0, %113 : vector<32x32xi32>
    %c2_i32_25 = arith.constant 2 : i32
    %115 = arith.addi %6, %c2_i32_25 : i32
    %116 = vector.broadcast %115 : i32 to vector<32x32xi32>
    %117 = arith.cmpi eq, %1, %116 : vector<32x32xi32>
    %118 = arith.andi %114, %117 : vector<32x32xi1>
    %c0_26 = arith.constant 0 : index
    %c8 = arith.constant 8 : index
    %119 = memref.load %arg1[%c0_26, %c8] : memref<2x9xf32, #tpu.memory_space<smem>>
    %120 = arith.extui %118 : vector<32x32xi1> to vector<32x32xi32>
    %121 = arith.sitofp %120 : vector<32x32xi32> to vector<32x32xf32>
    %122 = vector.broadcast %119 : f32 to vector<32x32xf32>
    %123 = arith.mulf %122, %121 : vector<32x32xf32>
    %124 = arith.addf %111, %123 : vector<32x32xf32>
    %125 = vector.extract_strided_slice %5 {offsets = [0, 0], sizes = [1, 32], strides = [1, 1]} : vector<2x32xf32> to vector<1x32xf32>
    %126 = vector.broadcast %125 : vector<1x32xf32> to vector<32x32xf32>
    %127 = arith.mulf %4, %126 : vector<32x32xf32>
    %128 = arith.addf %124, %127 : vector<32x32xf32>
    %c1_27 = arith.constant 1 : index
    %129 = memref.load %arg0[%c1_27] : memref<2xi32, #tpu.memory_space<smem>>
    %cst_28 = arith.constant 0.000000e+00 : f32
    %130 = vector.broadcast %cst_28 : f32 to vector<32x32xf32>
    %c0_i32_29 = arith.constant 0 : i32
    %131 = arith.addi %129, %c0_i32_29 : i32
    %132 = vector.broadcast %131 : i32 to vector<32x32xi32>
    %133 = arith.cmpi eq, %0, %132 : vector<32x32xi32>
    %c0_i32_30 = arith.constant 0 : i32
    %134 = arith.addi %129, %c0_i32_30 : i32
    %135 = vector.broadcast %134 : i32 to vector<32x32xi32>
    %136 = arith.cmpi eq, %1, %135 : vector<32x32xi32>
    %137 = arith.andi %133, %136 : vector<32x32xi1>
    %c1_31 = arith.constant 1 : index
    %c0_32 = arith.constant 0 : index
    %138 = memref.load %arg1[%c1_31, %c0_32] : memref<2x9xf32, #tpu.memory_space<smem>>
    %139 = arith.extui %137 : vector<32x32xi1> to vector<32x32xi32>
    %140 = arith.sitofp %139 : vector<32x32xi32> to vector<32x32xf32>
    %141 = vector.broadcast %138 : f32 to vector<32x32xf32>
    %142 = arith.mulf %141, %140 : vector<32x32xf32>
    %143 = arith.addf %130, %142 : vector<32x32xf32>
    %c0_i32_33 = arith.constant 0 : i32
    %144 = arith.addi %129, %c0_i32_33 : i32
    %145 = vector.broadcast %144 : i32 to vector<32x32xi32>
    %146 = arith.cmpi eq, %0, %145 : vector<32x32xi32>
    %c1_i32_34 = arith.constant 1 : i32
    %147 = arith.addi %129, %c1_i32_34 : i32
    %148 = vector.broadcast %147 : i32 to vector<32x32xi32>
    %149 = arith.cmpi eq, %1, %148 : vector<32x32xi32>
    %150 = arith.andi %146, %149 : vector<32x32xi1>
    %c1_35 = arith.constant 1 : index
    %c1_36 = arith.constant 1 : index
    %151 = memref.load %arg1[%c1_35, %c1_36] : memref<2x9xf32, #tpu.memory_space<smem>>
    %152 = arith.extui %150 : vector<32x32xi1> to vector<32x32xi32>
    %153 = arith.sitofp %152 : vector<32x32xi32> to vector<32x32xf32>
    %154 = vector.broadcast %151 : f32 to vector<32x32xf32>
    %155 = arith.mulf %154, %153 : vector<32x32xf32>
    %156 = arith.addf %143, %155 : vector<32x32xf32>
    %c0_i32_37 = arith.constant 0 : i32
    %157 = arith.addi %129, %c0_i32_37 : i32
    %158 = vector.broadcast %157 : i32 to vector<32x32xi32>
    %159 = arith.cmpi eq, %0, %158 : vector<32x32xi32>
    %c2_i32_38 = arith.constant 2 : i32
    %160 = arith.addi %129, %c2_i32_38 : i32
    %161 = vector.broadcast %160 : i32 to vector<32x32xi32>
    %162 = arith.cmpi eq, %1, %161 : vector<32x32xi32>
    %163 = arith.andi %159, %162 : vector<32x32xi1>
    %c1_39 = arith.constant 1 : index
    %c2_40 = arith.constant 2 : index
    %164 = memref.load %arg1[%c1_39, %c2_40] : memref<2x9xf32, #tpu.memory_space<smem>>
    %165 = arith.extui %163 : vector<32x32xi1> to vector<32x32xi32>
    %166 = arith.sitofp %165 : vector<32x32xi32> to vector<32x32xf32>
    %167 = vector.broadcast %164 : f32 to vector<32x32xf32>
    %168 = arith.mulf %167, %166 : vector<32x32xf32>
    %169 = arith.addf %156, %168 : vector<32x32xf32>
    %c1_i32_41 = arith.constant 1 : i32
    %170 = arith.addi %129, %c1_i32_41 : i32
    %171 = vector.broadcast %170 : i32 to vector<32x32xi32>
    %172 = arith.cmpi eq, %0, %171 : vector<32x32xi32>
    %c0_i32_42 = arith.constant 0 : i32
    %173 = arith.addi %129, %c0_i32_42 : i32
    %174 = vector.broadcast %173 : i32 to vector<32x32xi32>
    %175 = arith.cmpi eq, %1, %174 : vector<32x32xi32>
    %176 = arith.andi %172, %175 : vector<32x32xi1>
    %c1_43 = arith.constant 1 : index
    %c3_44 = arith.constant 3 : index
    %177 = memref.load %arg1[%c1_43, %c3_44] : memref<2x9xf32, #tpu.memory_space<smem>>
    %178 = arith.extui %176 : vector<32x32xi1> to vector<32x32xi32>
    %179 = arith.sitofp %178 : vector<32x32xi32> to vector<32x32xf32>
    %180 = vector.broadcast %177 : f32 to vector<32x32xf32>
    %181 = arith.mulf %180, %179 : vector<32x32xf32>
    %182 = arith.addf %169, %181 : vector<32x32xf32>
    %c1_i32_45 = arith.constant 1 : i32
    %183 = arith.addi %129, %c1_i32_45 : i32
    %184 = vector.broadcast %183 : i32 to vector<32x32xi32>
    %185 = arith.cmpi eq, %0, %184 : vector<32x32xi32>
    %c1_i32_46 = arith.constant 1 : i32
    %186 = arith.addi %129, %c1_i32_46 : i32
    %187 = vector.broadcast %186 : i32 to vector<32x32xi32>
    %188 = arith.cmpi eq, %1, %187 : vector<32x32xi32>
    %189 = arith.andi %185, %188 : vector<32x32xi1>
    %c1_47 = arith.constant 1 : index
    %c4_48 = arith.constant 4 : index
    %190 = memref.load %arg1[%c1_47, %c4_48] : memref<2x9xf32, #tpu.memory_space<smem>>
    %191 = arith.extui %189 : vector<32x32xi1> to vector<32x32xi32>
    %192 = arith.sitofp %191 : vector<32x32xi32> to vector<32x32xf32>
    %193 = vector.broadcast %190 : f32 to vector<32x32xf32>
    %194 = arith.mulf %193, %192 : vector<32x32xf32>
    %195 = arith.addf %182, %194 : vector<32x32xf32>
    %c1_i32_49 = arith.constant 1 : i32
    %196 = arith.addi %129, %c1_i32_49 : i32
    %197 = vector.broadcast %196 : i32 to vector<32x32xi32>
    %198 = arith.cmpi eq, %0, %197 : vector<32x32xi32>
    %c2_i32_50 = arith.constant 2 : i32
    %199 = arith.addi %129, %c2_i32_50 : i32
    %200 = vector.broadcast %199 : i32 to vector<32x32xi32>
    %201 = arith.cmpi eq, %1, %200 : vector<32x32xi32>
    %202 = arith.andi %198, %201 : vector<32x32xi1>
    %c1_51 = arith.constant 1 : index
    %c5_52 = arith.constant 5 : index
    %203 = memref.load %arg1[%c1_51, %c5_52] : memref<2x9xf32, #tpu.memory_space<smem>>
    %204 = arith.extui %202 : vector<32x32xi1> to vector<32x32xi32>
    %205 = arith.sitofp %204 : vector<32x32xi32> to vector<32x32xf32>
    %206 = vector.broadcast %203 : f32 to vector<32x32xf32>
    %207 = arith.mulf %206, %205 : vector<32x32xf32>
    %208 = arith.addf %195, %207 : vector<32x32xf32>
    %c2_i32_53 = arith.constant 2 : i32
    %209 = arith.addi %129, %c2_i32_53 : i32
    %210 = vector.broadcast %209 : i32 to vector<32x32xi32>
    %211 = arith.cmpi eq, %0, %210 : vector<32x32xi32>
    %c0_i32_54 = arith.constant 0 : i32
    %212 = arith.addi %129, %c0_i32_54 : i32
    %213 = vector.broadcast %212 : i32 to vector<32x32xi32>
    %214 = arith.cmpi eq, %1, %213 : vector<32x32xi32>
    %215 = arith.andi %211, %214 : vector<32x32xi1>
    %c1_55 = arith.constant 1 : index
    %c6_56 = arith.constant 6 : index
    %216 = memref.load %arg1[%c1_55, %c6_56] : memref<2x9xf32, #tpu.memory_space<smem>>
    %217 = arith.extui %215 : vector<32x32xi1> to vector<32x32xi32>
    %218 = arith.sitofp %217 : vector<32x32xi32> to vector<32x32xf32>
    %219 = vector.broadcast %216 : f32 to vector<32x32xf32>
    %220 = arith.mulf %219, %218 : vector<32x32xf32>
    %221 = arith.addf %208, %220 : vector<32x32xf32>
    %c2_i32_57 = arith.constant 2 : i32
    %222 = arith.addi %129, %c2_i32_57 : i32
    %223 = vector.broadcast %222 : i32 to vector<32x32xi32>
    %224 = arith.cmpi eq, %0, %223 : vector<32x32xi32>
    %c1_i32_58 = arith.constant 1 : i32
    %225 = arith.addi %129, %c1_i32_58 : i32
    %226 = vector.broadcast %225 : i32 to vector<32x32xi32>
    %227 = arith.cmpi eq, %1, %226 : vector<32x32xi32>
    %228 = arith.andi %224, %227 : vector<32x32xi1>
    %c1_59 = arith.constant 1 : index
    %c7_60 = arith.constant 7 : index
    %229 = memref.load %arg1[%c1_59, %c7_60] : memref<2x9xf32, #tpu.memory_space<smem>>
    %230 = arith.extui %228 : vector<32x32xi1> to vector<32x32xi32>
    %231 = arith.sitofp %230 : vector<32x32xi32> to vector<32x32xf32>
    %232 = vector.broadcast %229 : f32 to vector<32x32xf32>
    %233 = arith.mulf %232, %231 : vector<32x32xf32>
    %234 = arith.addf %221, %233 : vector<32x32xf32>
    %c2_i32_61 = arith.constant 2 : i32
    %235 = arith.addi %129, %c2_i32_61 : i32
    %236 = vector.broadcast %235 : i32 to vector<32x32xi32>
    %237 = arith.cmpi eq, %0, %236 : vector<32x32xi32>
    %c2_i32_62 = arith.constant 2 : i32
    %238 = arith.addi %129, %c2_i32_62 : i32
    %239 = vector.broadcast %238 : i32 to vector<32x32xi32>
    %240 = arith.cmpi eq, %1, %239 : vector<32x32xi32>
    %241 = arith.andi %237, %240 : vector<32x32xi1>
    %c1_63 = arith.constant 1 : index
    %c8_64 = arith.constant 8 : index
    %242 = memref.load %arg1[%c1_63, %c8_64] : memref<2x9xf32, #tpu.memory_space<smem>>
    %243 = arith.extui %241 : vector<32x32xi1> to vector<32x32xi32>
    %244 = arith.sitofp %243 : vector<32x32xi32> to vector<32x32xf32>
    %245 = vector.broadcast %242 : f32 to vector<32x32xf32>
    %246 = arith.mulf %245, %244 : vector<32x32xf32>
    %247 = arith.addf %234, %246 : vector<32x32xf32>
    %248 = vector.extract_strided_slice %5 {offsets = [1, 0], sizes = [1, 32], strides = [1, 1]} : vector<2x32xf32> to vector<1x32xf32>
    %249 = vector.broadcast %248 : vector<1x32xf32> to vector<32x32xf32>
    %250 = arith.mulf %4, %249 : vector<32x32xf32>
    %251 = arith.addf %247, %250 : vector<32x32xf32>
    %252 = vector.shape_cast %128 : vector<32x32xf32> to vector<1x32x32xf32>
    %253 = vector.shape_cast %251 : vector<32x32xf32> to vector<1x32x32xf32>
    %254 = tpu.concatenate %252, %253 in 0 : vector<1x32x32xf32>, vector<1x32x32xf32> -> vector<2x32x32xf32>
    "tpu.trace_start"() <{level = 10 : i32, message = "bij,bkj->bik"}> : () -> ()
    %cst_65 = arith.constant dense<0.000000e+00> : vector<2x32x32xf32>
    %255 = tpu.matmul %254, %254, %cst_65 {dimension_numbers = #tpu.dot_dimension_numbers<[2], [2], [1], [1], [0, 0, 0, 1, 1, 1], [0], [0]>} : vector<2x32x32xf32>, vector<2x32x32xf32>, vector<2x32x32xf32> -> vector<2x32x32xf32>
    "tpu.trace_stop"() : () -> ()
    %c0_66 = arith.constant 0 : index
    %c0_67 = arith.constant 0 : index
    %c0_68 = arith.constant 0 : index
    %256 = vector.load %arg5[%c0_66, %c0_67, %c0_68] : memref<2x32x32xf32, #tpu.memory_space<vmem>>, vector<2x32x32xf32>
    tpu.vector_store %arg5[%c0_66, %c0_67, %c0_68], %255 {strides = array<i32>} : memref<2x32x32xf32, #tpu.memory_space<vmem>>, vector<2x32x32xf32>,
    %257 = arith.cmpi sle, %1, %0 : vector<32x32xi32>
    %258 = vector.shape_cast %257 : vector<32x32xi1> to vector<1x32x32xi1>
    %cst_69 = arith.constant 0.000000e+00 : f32
    %259 = vector.shape_cast %258 : vector<1x32x32xi1> to vector<1x32x32xi1>
    %260 = vector.broadcast %259 : vector<1x32x32xi1> to vector<2x32x32xi1>
    %261 = vector.broadcast %cst_69 : f32 to vector<2x32x32xf32>
    %262 = arith.select %260, %255, %261 : vector<2x32x32xi1>, vector<2x32x32xf32>
    %c0_70 = arith.constant 0 : index
    %c0_71 = arith.constant 0 : index
    %263 = vector.load %arg3[%c0_70, %c0_71] : memref<2x32xf32, #tpu.memory_space<vmem>>, vector<2x32xf32>
    %c0_72 = arith.constant 0 : index
    %c0_73 = arith.constant 0 : index
    %264 = vector.load %arg4[%c0_72, %c0_73] : memref<1x32xf32, #tpu.memory_space<vmem>>, vector<1x32xf32>
    %265 = vector.shape_cast %264 : vector<1x32xf32> to vector<1x1x32xf32>
    %266 = vector.broadcast %265 : vector<1x1x32xf32> to vector<2x32x32xf32>
    %267 = arith.mulf %262, %266 : vector<2x32x32xf32>
    %cst_74 = arith.constant dense<0.000000e+00> : vector<2x32xf32>
    %268 = vector.multi_reduction <add>, %267, %cst_74 [2] : vector<2x32x32xf32> to vector<2x32xf32>
    %269 = arith.addf %263, %268 : vector<2x32xf32>
    %c0_75 = arith.constant 0 : index
    %c0_76 = arith.constant 0 : index
    %270 = vector.load %arg6[%c0_75, %c0_76] : memref<2x32xf32, #tpu.memory_space<vmem>>, vector<2x32xf32>
    tpu.vector_store %arg6[%c0_75, %c0_76], %269 {strides = array<i32>} : memref<2x32xf32, #tpu.memory_space<vmem>>, vector<2x32xf32>,
    return
  }
}

module attributes {stable_mosaic.version = 11 : i64} {
  func.func @_chain_kernel(%arg0: memref<2x32xf32, #tpu.memory_space<vmem>>, %arg1: memref<32x128xf32, #tpu.memory_space<vmem>>, %arg2: memref<1x128xf32, #tpu.memory_space<vmem>>, %arg3: memref<128x256xbf16, #tpu.memory_space<vmem>>, %arg4: memref<1x256xf32, #tpu.memory_space<vmem>>, %arg5: memref<1x16xf32, #tpu.memory_space<vmem>>, %arg6: memref<1x16xf32, #tpu.memory_space<vmem>>, %arg7: memref<256x16xf32, #tpu.memory_space<vmem>>, %arg8: memref<16x256xf32, #tpu.memory_space<vmem>>, %arg9: memref<256x512xbf16, #tpu.memory_space<vmem>>, %arg10: memref<1x512xf32, #tpu.memory_space<vmem>>, %arg11: memref<1x8xf32, #tpu.memory_space<vmem>>, %arg12: memref<1x8xf32, #tpu.memory_space<vmem>>, %arg13: memref<512x8xf32, #tpu.memory_space<vmem>>, %arg14: memref<8x512xf32, #tpu.memory_space<vmem>>, %arg15: memref<512x1024xbf16, #tpu.memory_space<vmem>>, %arg16: memref<1x1024xf32, #tpu.memory_space<vmem>>, %arg17: memref<2x1024xf32, #tpu.memory_space<vmem>>) attributes {dimension_semantics = [], scalar_prefetch = 0 : i64, scratch_operands = 0 : i64, tpu.core_type = #tpu.core_type<tc>} {
    %c0 = arith.constant 0 : index
    %c0_0 = arith.constant 0 : index
    %0 = vector.load %arg0[%c0, %c0_0] : memref<2x32xf32, #tpu.memory_space<vmem>>, vector<2x32xf32>
    %c0_1 = arith.constant 0 : index
    %c0_2 = arith.constant 0 : index
    %1 = vector.load %arg1[%c0_1, %c0_2] : memref<32x128xf32, #tpu.memory_space<vmem>>, vector<32x128xf32>
    %cst = arith.constant dense<0.000000e+00> : vector<2x128xf32>
    %2 = tpu.matmul %0, %1, %cst {dimension_numbers = #tpu.dot_dimension_numbers<[1], [0], [0], [1], [0, 0, 1, 1], [], []>} : vector<2x32xf32>, vector<32x128xf32>, vector<2x128xf32> -> vector<2x128xf32>
    %c0_3 = arith.constant 0 : index
    %c0_4 = arith.constant 0 : index
    %3 = vector.load %arg2[%c0_3, %c0_4] : memref<1x128xf32, #tpu.memory_space<vmem>>, vector<1x128xf32>
    %4 = vector.broadcast %3 : vector<1x128xf32> to vector<2x128xf32>
    %5 = arith.addf %2, %4 : vector<2x128xf32>
    %6 = arith.truncf %5 : vector<2x128xf32> to vector<2x128xbf16>
    %c0_5 = arith.constant 0 : index
    %c0_6 = arith.constant 0 : index
    %7 = vector.load %arg3[%c0_5, %c0_6] : memref<128x256xbf16, #tpu.memory_space<vmem>>, vector<128x256xbf16>
    %cst_7 = arith.constant dense<0.000000e+00> : vector<2x256xf32>
    %8 = tpu.matmul %6, %7, %cst_7 {dimension_numbers = #tpu.dot_dimension_numbers<[1], [0], [0], [1], [0, 0, 1, 1], [], []>} : vector<2x128xbf16>, vector<128x256xbf16>, vector<2x256xf32> -> vector<2x256xf32>
    %c0_8 = arith.constant 0 : index
    %c0_9 = arith.constant 0 : index
    %9 = vector.load %arg4[%c0_8, %c0_9] : memref<1x256xf32, #tpu.memory_space<vmem>>, vector<1x256xf32>
    %10 = vector.broadcast %9 : vector<1x256xf32> to vector<2x256xf32>
    %11 = arith.addf %8, %10 : vector<2x256xf32>
    %cst_10 = arith.constant dense<0.000000e+00> : vector<256xf32>
    %12 = vector.multi_reduction <add>, %11, %cst_10 [0] : vector<2x256xf32> to vector<256xf32>
    %13 = vector.shape_cast %12 : vector<256xf32> to vector<1x256xf32>
    %c0_11 = arith.constant 0 : index
    %c0_12 = arith.constant 0 : index
    %14 = vector.load %arg7[%c0_11, %c0_12] : memref<256x16xf32, #tpu.memory_space<vmem>>, vector<256x16xf32>
    %cst_13 = arith.constant dense<0.000000e+00> : vector<1x16xf32>
    %15 = tpu.matmul %13, %14, %cst_13 {dimension_numbers = #tpu.dot_dimension_numbers<[1], [0], [0], [1], [0, 0, 1, 1], [], []>} : vector<1x256xf32>, vector<256x16xf32>, vector<1x16xf32> -> vector<1x16xf32>
    %16 = arith.mulf %11, %11 : vector<2x256xf32>
    %cst_14 = arith.constant dense<0.000000e+00> : vector<256xf32>
    %17 = vector.multi_reduction <add>, %16, %cst_14 [0] : vector<2x256xf32> to vector<256xf32>
    %18 = vector.shape_cast %17 : vector<256xf32> to vector<1x256xf32>
    %c0_15 = arith.constant 0 : index
    %c0_16 = arith.constant 0 : index
    %19 = vector.load %arg7[%c0_15, %c0_16] : memref<256x16xf32, #tpu.memory_space<vmem>>, vector<256x16xf32>
    %cst_17 = arith.constant dense<0.000000e+00> : vector<1x16xf32>
    %20 = tpu.matmul %18, %19, %cst_17 {dimension_numbers = #tpu.dot_dimension_numbers<[1], [0], [0], [1], [0, 0, 1, 1], [], []>} : vector<1x256xf32>, vector<256x16xf32>, vector<1x16xf32> -> vector<1x16xf32>
    %cst_18 = arith.constant 3.125000e-02 : f32
    %21 = vector.broadcast %cst_18 : f32 to vector<1x16xf32>
    %22 = arith.mulf %15, %21 : vector<1x16xf32>
    %cst_19 = arith.constant 3.125000e-02 : f32
    %23 = vector.broadcast %cst_19 : f32 to vector<1x16xf32>
    %24 = arith.mulf %20, %23 : vector<1x16xf32>
    %25 = arith.mulf %22, %22 : vector<1x16xf32>
    %26 = arith.subf %24, %25 : vector<1x16xf32>
    %c0_20 = arith.constant 0 : index
    %c0_21 = arith.constant 0 : index
    %27 = vector.load %arg5[%c0_20, %c0_21] : memref<1x16xf32, #tpu.memory_space<vmem>>, vector<1x16xf32>
    %cst_22 = arith.constant 9.99999974E-6 : f32
    %28 = vector.broadcast %cst_22 : f32 to vector<1x16xf32>
    %29 = arith.addf %26, %28 : vector<1x16xf32>
    %30 = math.rsqrt %29 : vector<1x16xf32>
    %31 = arith.mulf %27, %30 : vector<1x16xf32>
    %c0_23 = arith.constant 0 : index
    %c0_24 = arith.constant 0 : index
    %32 = vector.load %arg6[%c0_23, %c0_24] : memref<1x16xf32, #tpu.memory_space<vmem>>, vector<1x16xf32>
    %33 = arith.mulf %22, %31 : vector<1x16xf32>
    %34 = arith.subf %32, %33 : vector<1x16xf32>
    %c0_25 = arith.constant 0 : index
    %c0_26 = arith.constant 0 : index
    %35 = vector.load %arg8[%c0_25, %c0_26] : memref<16x256xf32, #tpu.memory_space<vmem>>, vector<16x256xf32>
    %cst_27 = arith.constant dense<0.000000e+00> : vector<1x256xf32>
    %36 = tpu.matmul %31, %35, %cst_27 {dimension_numbers = #tpu.dot_dimension_numbers<[1], [0], [0], [1], [0, 0, 1, 1], [], []>} : vector<1x16xf32>, vector<16x256xf32>, vector<1x256xf32> -> vector<1x256xf32>
    %c0_28 = arith.constant 0 : index
    %c0_29 = arith.constant 0 : index
    %37 = vector.load %arg8[%c0_28, %c0_29] : memref<16x256xf32, #tpu.memory_space<vmem>>, vector<16x256xf32>
    %cst_30 = arith.constant dense<0.000000e+00> : vector<1x256xf32>
    %38 = tpu.matmul %34, %37, %cst_30 {dimension_numbers = #tpu.dot_dimension_numbers<[1], [0], [0], [1], [0, 0, 1, 1], [], []>} : vector<1x16xf32>, vector<16x256xf32>, vector<1x256xf32> -> vector<1x256xf32>
    %39 = vector.broadcast %36 : vector<1x256xf32> to vector<2x256xf32>
    %40 = arith.mulf %11, %39 : vector<2x256xf32>
    %41 = vector.broadcast %38 : vector<1x256xf32> to vector<2x256xf32>
    %42 = arith.addf %40, %41 : vector<2x256xf32>
    %cst_31 = arith.constant 0.000000e+00 : f32
    %43 = vector.broadcast %cst_31 : f32 to vector<2x256xf32>
    %44 = arith.maximumf %42, %43 : vector<2x256xf32>
    %45 = arith.truncf %44 : vector<2x256xf32> to vector<2x256xbf16>
    %c0_32 = arith.constant 0 : index
    %c0_33 = arith.constant 0 : index
    %46 = vector.load %arg9[%c0_32, %c0_33] : memref<256x512xbf16, #tpu.memory_space<vmem>>, vector<256x512xbf16>
    %cst_34 = arith.constant dense<0.000000e+00> : vector<2x512xf32>
    %47 = tpu.matmul %45, %46, %cst_34 {dimension_numbers = #tpu.dot_dimension_numbers<[1], [0], [0], [1], [0, 0, 1, 1], [], []>} : vector<2x256xbf16>, vector<256x512xbf16>, vector<2x512xf32> -> vector<2x512xf32>
    %c0_35 = arith.constant 0 : index
    %c0_36 = arith.constant 0 : index
    %48 = vector.load %arg10[%c0_35, %c0_36] : memref<1x512xf32, #tpu.memory_space<vmem>>, vector<1x512xf32>
    %49 = vector.broadcast %48 : vector<1x512xf32> to vector<2x512xf32>
    %50 = arith.addf %47, %49 : vector<2x512xf32>
    %cst_37 = arith.constant dense<0.000000e+00> : vector<512xf32>
    %51 = vector.multi_reduction <add>, %50, %cst_37 [0] : vector<2x512xf32> to vector<512xf32>
    %52 = vector.shape_cast %51 : vector<512xf32> to vector<1x512xf32>
    %c0_38 = arith.constant 0 : index
    %c0_39 = arith.constant 0 : index
    %53 = vector.load %arg13[%c0_38, %c0_39] : memref<512x8xf32, #tpu.memory_space<vmem>>, vector<512x8xf32>
    %cst_40 = arith.constant dense<0.000000e+00> : vector<1x8xf32>
    %54 = tpu.matmul %52, %53, %cst_40 {dimension_numbers = #tpu.dot_dimension_numbers<[1], [0], [0], [1], [0, 0, 1, 1], [], []>} : vector<1x512xf32>, vector<512x8xf32>, vector<1x8xf32> -> vector<1x8xf32>
    %55 = arith.mulf %50, %50 : vector<2x512xf32>
    %cst_41 = arith.constant dense<0.000000e+00> : vector<512xf32>
    %56 = vector.multi_reduction <add>, %55, %cst_41 [0] : vector<2x512xf32> to vector<512xf32>
    %57 = vector.shape_cast %56 : vector<512xf32> to vector<1x512xf32>
    %c0_42 = arith.constant 0 : index
    %c0_43 = arith.constant 0 : index
    %58 = vector.load %arg13[%c0_42, %c0_43] : memref<512x8xf32, #tpu.memory_space<vmem>>, vector<512x8xf32>
    %cst_44 = arith.constant dense<0.000000e+00> : vector<1x8xf32>
    %59 = tpu.matmul %57, %58, %cst_44 {dimension_numbers = #tpu.dot_dimension_numbers<[1], [0], [0], [1], [0, 0, 1, 1], [], []>} : vector<1x512xf32>, vector<512x8xf32>, vector<1x8xf32> -> vector<1x8xf32>
    %cst_45 = arith.constant 7.812500e-03 : f32
    %60 = vector.broadcast %cst_45 : f32 to vector<1x8xf32>
    %61 = arith.mulf %54, %60 : vector<1x8xf32>
    %cst_46 = arith.constant 7.812500e-03 : f32
    %62 = vector.broadcast %cst_46 : f32 to vector<1x8xf32>
    %63 = arith.mulf %59, %62 : vector<1x8xf32>
    %64 = arith.mulf %61, %61 : vector<1x8xf32>
    %65 = arith.subf %63, %64 : vector<1x8xf32>
    %c0_47 = arith.constant 0 : index
    %c0_48 = arith.constant 0 : index
    %66 = vector.load %arg11[%c0_47, %c0_48] : memref<1x8xf32, #tpu.memory_space<vmem>>, vector<1x8xf32>
    %cst_49 = arith.constant 9.99999974E-6 : f32
    %67 = vector.broadcast %cst_49 : f32 to vector<1x8xf32>
    %68 = arith.addf %65, %67 : vector<1x8xf32>
    %69 = math.rsqrt %68 : vector<1x8xf32>
    %70 = arith.mulf %66, %69 : vector<1x8xf32>
    %c0_50 = arith.constant 0 : index
    %c0_51 = arith.constant 0 : index
    %71 = vector.load %arg12[%c0_50, %c0_51] : memref<1x8xf32, #tpu.memory_space<vmem>>, vector<1x8xf32>
    %72 = arith.mulf %61, %70 : vector<1x8xf32>
    %73 = arith.subf %71, %72 : vector<1x8xf32>
    %c0_52 = arith.constant 0 : index
    %c0_53 = arith.constant 0 : index
    %74 = vector.load %arg14[%c0_52, %c0_53] : memref<8x512xf32, #tpu.memory_space<vmem>>, vector<8x512xf32>
    %cst_54 = arith.constant dense<0.000000e+00> : vector<1x512xf32>
    %75 = tpu.matmul %70, %74, %cst_54 {dimension_numbers = #tpu.dot_dimension_numbers<[1], [0], [0], [1], [0, 0, 1, 1], [], []>} : vector<1x8xf32>, vector<8x512xf32>, vector<1x512xf32> -> vector<1x512xf32>
    %c0_55 = arith.constant 0 : index
    %c0_56 = arith.constant 0 : index
    %76 = vector.load %arg14[%c0_55, %c0_56] : memref<8x512xf32, #tpu.memory_space<vmem>>, vector<8x512xf32>
    %cst_57 = arith.constant dense<0.000000e+00> : vector<1x512xf32>
    %77 = tpu.matmul %73, %76, %cst_57 {dimension_numbers = #tpu.dot_dimension_numbers<[1], [0], [0], [1], [0, 0, 1, 1], [], []>} : vector<1x8xf32>, vector<8x512xf32>, vector<1x512xf32> -> vector<1x512xf32>
    %78 = vector.broadcast %75 : vector<1x512xf32> to vector<2x512xf32>
    %79 = arith.mulf %50, %78 : vector<2x512xf32>
    %80 = vector.broadcast %77 : vector<1x512xf32> to vector<2x512xf32>
    %81 = arith.addf %79, %80 : vector<2x512xf32>
    %cst_58 = arith.constant 0.000000e+00 : f32
    %82 = vector.broadcast %cst_58 : f32 to vector<2x512xf32>
    %83 = arith.maximumf %81, %82 : vector<2x512xf32>
    %84 = arith.truncf %83 : vector<2x512xf32> to vector<2x512xbf16>
    %c0_59 = arith.constant 0 : index
    %c0_60 = arith.constant 0 : index
    %85 = vector.load %arg15[%c0_59, %c0_60] : memref<512x1024xbf16, #tpu.memory_space<vmem>>, vector<512x1024xbf16>
    %cst_61 = arith.constant dense<0.000000e+00> : vector<2x1024xf32>
    %86 = tpu.matmul %84, %85, %cst_61 {dimension_numbers = #tpu.dot_dimension_numbers<[1], [0], [0], [1], [0, 0, 1, 1], [], []>} : vector<2x512xbf16>, vector<512x1024xbf16>, vector<2x1024xf32> -> vector<2x1024xf32>
    %c0_62 = arith.constant 0 : index
    %c0_63 = arith.constant 0 : index
    %87 = vector.load %arg16[%c0_62, %c0_63] : memref<1x1024xf32, #tpu.memory_space<vmem>>, vector<1x1024xf32>
    %88 = vector.broadcast %87 : vector<1x1024xf32> to vector<2x1024xf32>
    %89 = arith.addf %86, %88 : vector<2x1024xf32>
    %90 = arith.negf %89 : vector<2x1024xf32>
    %91 = math.exp %90 : vector<2x1024xf32>
    %cst_64 = arith.constant 1.000000e+00 : f32
    %92 = vector.broadcast %cst_64 : f32 to vector<2x1024xf32>
    %93 = arith.addf %92, %91 : vector<2x1024xf32>
    %94 = arith.divf %92, %93 : vector<2x1024xf32>
    %c0_65 = arith.constant 0 : index
    %c0_66 = arith.constant 0 : index
    %95 = vector.load %arg17[%c0_65, %c0_66] : memref<2x1024xf32, #tpu.memory_space<vmem>>, vector<2x1024xf32>
    tpu.vector_store %arg17[%c0_65, %c0_66], %94 {strides = array<i32>} : memref<2x1024xf32, #tpu.memory_space<vmem>>, vector<2x1024xf32>,
    return
  }
}

</mosaic_0001>

<llo_original>
// kernel: vae_forward.4
$region0: #{vae_forward.4}
  #allocation0 [shape = 'u32[]', space=smem, size = 0x4, offset = 0x4, fixed_abs, tag = 'smem constant byte address 0x4 - core index']
  #allocation1 [shape = 'u32[144,128]{1,0:T(1,128)}', space=vmem, size = 0x12000, scoped, tag = 'internal scratch']
  %s0 = inlined_call_operand.vmem [shape: s32[2], index: 0, kind: input, shape index: {}]
  %s1 = inlined_call_operand.vmem [shape: f32[2,9], index: 1, kind: input, shape index: {}]
  %s2 = inlined_call_operand.vmem [shape: f32[2,32], index: 2, kind: input, shape index: {}]
  %s3 = inlined_call_operand.vmem [shape: f32[2,32], index: 3, kind: input, shape index: {}]
  %s4 = inlined_call_operand.vmem [shape: f32[1,32], index: 4, kind: input, shape index: {}]
  %s5 = inlined_call_operand.hbm [shape: f32[2,32,32], index: 5, kind: output, shape index: {0}]
  %s6 = inlined_call_operand.vmem [shape: f32[2,32], index: 6, kind: output, shape index: {1}]
  %7 = xla_tuple %s5, %s6
  %s8 = sld [smem:[#allocation0]]
  $region46: #{vae_forward.4} parent=0
    _
  %s10 = ssub.s32 1, %s8
  %s11 = scalar_select 0, %s10, %s8
  $region1: #{vae_forward.4} parent=0
    #allocation2 [shape = 'u8[512]{0}', space=smem, size = 0x200, scoped, tag = 'input window, operand 0, single buffered']
    #allocation3 [shape = 's32[1]{0}', space=sflag, size = 0x4, scoped, tag = 'scoped memory for vae_forward.4']
    #allocation4 [shape = 's32[1]{0}', space=sflag, size = 0x4, scoped, tag = 'scoped memory for vae_forward.4']
    #allocation5 [shape = 'u8[1024]{0}', space=smem, size = 0x400, scoped, tag = 'input window, operand 1, single buffered']
    #allocation6 [shape = 's32[1]{0}', space=sflag, size = 0x4, scoped, tag = 'scoped memory for vae_forward.4']
    #allocation7 [shape = 'u8[32768]{0}', space=vmem, size = 0x8000, scoped, tag = 'output window, operand 0, single buffered']
    %12 = vsyncpa [#allocation4], 0
    %13 = vsyncpa [#allocation6], 0
    %14 = vsyncpa [#allocation3], 0
    // Predicated region
    $region2: #{vae_forward.4} parent=1 // pred_check
      _
    $region3: #{vae_forward.4} parent=1 // pred_check_branch
      %16 = sbr.rel (0) target = $region5
    $region4: #{vae_forward.4} parent=1 // pred_region
      %s18 = ssub.s32 16, 16
      %19 = vsyncadd [#allocation4], %s18
      %s21 = sshll.u32 %s0, 4
      %s22 = int_to_ptr.vmem [resolvable:$true] %s21
      %24 = dma.vmem_to_smem %s22, 16, [#allocation2], [#allocation4]
    $region5: #{vae_forward.4} parent=1 // pred_fallthru
      _
    // Predicated region
    $region6: #{vae_forward.4} parent=1 // pred_check
      _
    $region7: #{vae_forward.4} parent=1 // pred_check_branch
      %26 = sbr.rel (0) target = $region9
    $region8: #{vae_forward.4} parent=1 // pred_region
      %s28 = ssub.s32 32, 32
      %29 = vsyncadd [#allocation6], %s28
      %s31 = sshll.u32 %s1, 4
      %s32 = int_to_ptr.vmem [resolvable:$true] %s31
      %34 = dma.vmem_to_smem %s32, 32, [#allocation5], [#allocation6]
    $region9: #{vae_forward.4} parent=1 // pred_fallthru
      _
    // Predicated region
    $region10: #{vae_forward.4} parent=1 // pred_check
      _
    $region11: #{vae_forward.4} parent=1 // pred_check_branch
      %36 = sbr.rel (0) target = $region13
    $region12: #{vae_forward.4} parent=1 // pred_region
      _
    $region13: #{vae_forward.4} parent=1 // pred_fallthru
      _
    // Predicated region
    $region14: #{vae_forward.4} parent=1 // pred_check
      _
    $region15: #{vae_forward.4} parent=1 // pred_check_branch
      %38 = sbr.rel (0) target = $region17
    $region16: #{vae_forward.4} parent=1 // pred_region
      _
    $region17: #{vae_forward.4} parent=1 // pred_fallthru
      _
    // Predicated region
    $region18: #{vae_forward.4} parent=1 // pred_check
      _
    $region19: #{vae_forward.4} parent=1 // pred_check_branch
      %40 = sbr.rel (0) target = $region21
    $region20: #{vae_forward.4} parent=1 // pred_region
      _
    $region21: #{vae_forward.4} parent=1 // pred_fallthru
      _
    // Predicated region
    $region22: #{vae_forward.4} parent=1 // pred_check
      _
    $region23: #{vae_forward.4} parent=1 // pred_check_branch
      %42 = sbr.rel (0) target = $region25
    $region24: #{vae_forward.4} parent=1 // pred_region
      %43 = dma.done [#allocation4], 16
    $region25: #{vae_forward.4} parent=1 // pred_fallthru
      _
    // Predicated region
    $region26: #{vae_forward.4} parent=1 // pred_check
      _
    $region27: #{vae_forward.4} parent=1 // pred_check_branch
      %45 = sbr.rel (0) target = $region29
    $region28: #{vae_forward.4} parent=1 // pred_region
      %46 = dma.done [#allocation6], 32
    $region29: #{vae_forward.4} parent=1 // pred_fallthru
      _
    %47 = sfence
    %v48 = vlaneseq
    %v49 = vshrl.u32 %v48, 7
    %v50 = vadd.s32 %v49, 8
    %v51 = vadd.s32 %v49, 16
    %v52 = vadd.s32 %v49, 24
    %v53 = vlaneseq
    %v54 = vand.u32 %v53, 127
    %vm55 = vcmp.eq.s32.totalorder %v49, %v54
    %vm56 = vcmp.eq.s32.totalorder %v50, %v54
    %vm57 = vcmp.eq.s32.totalorder %v51, %v54
    %vm58 = vcmp.eq.s32.totalorder %v52, %v54
    %v59 = vsel %vm55, 1, 0
    %v60 = vsel %vm56, 1, 0
    %v61 = vsel %vm57, 1, 0
    %v62 = vsel %vm58, 1, 0
    %v63 = vcvt.s32.f32 %v59
    %v64 = vcvt.s32.f32 %v60
    %v65 = vcvt.s32.f32 %v61
    %v66 = vcvt.s32.f32 %v62
    %v67 = vld [vmem:[%s2] sm:$0x3]
    %s68 = sld [smem:[#allocation2]]
    %v69 = vstv %s68
    %vm70 = vcmp.eq.s32.totalorder %v49, %v69
    %vm71 = vcmp.eq.s32.totalorder %v50, %v69
    %vm72 = vcmp.eq.s32.totalorder %v51, %v69
    %vm73 = vcmp.eq.s32.totalorder %v52, %v69
    %vm74 = vcmp.eq.s32.totalorder %v54, %v69
    %vm75 = vmand %vm70, %vm74
    %vm76 = vmand %vm71, %vm74
    %vm77 = vmand %vm72, %vm74
    %vm78 = vmand %vm73, %vm74
    %s79 = sld [smem:[#allocation5]]
    %v80 = vsel %vm75, 1, 0
    %v81 = vsel %vm76, 1, 0
    %v82 = vsel %vm77, 1, 0
    %v83 = vsel %vm78, 1, 0
    %v84 = vcvt.s32.f32 %v80
    %v85 = vcvt.s32.f32 %v81
    %v86 = vcvt.s32.f32 %v82
    %v87 = vcvt.s32.f32 %v83
    %v88 = vstv %s79
    %v89 = vmul.f32 %v88, %v84
    %v90 = vmul.f32 %v88, %v85
    %v91 = vmul.f32 %v88, %v86
    %v92 = vmul.f32 %v88, %v87
    %v93 = vadd.f32 %v89, 0.0
    %v94 = vadd.f32 %v90, 0.0
    %v95 = vadd.f32 %v91, 0.0
    %v96 = vadd.f32 %v92, 0.0
    %s97 = sadd.s32 %s68, 1
    %v98 = vstv %s97
    %vm99 = vcmp.eq.s32.totalorder %v54, %v98
    %vm100 = vmand %vm70, %vm99
    %vm101 = vmand %vm71, %vm99
    %vm102 = vmand %vm72, %vm99
    %vm103 = vmand %vm73, %vm99
    %s104 = sld [smem:[#allocation5 + $0x1]]
    %v105 = vsel %vm100, 1, 0
    %v106 = vsel %vm101, 1, 0
    %v107 = vsel %vm102, 1, 0
    %v108 = vsel %vm103, 1, 0
    %v109 = vcvt.s32.f32 %v105
    %v110 = vcvt.s32.f32 %v106
    %v111 = vcvt.s32.f32 %v107
    %v112 = vcvt.s32.f32 %v108
    %v113 = vstv %s104
    %v114 = vmul.f32 %v113, %v109
    %v115 = vmul.f32 %v113, %v110
    %v116 = vmul.f32 %v113, %v111
    %v117 = vmul.f32 %v113, %v112
    %v118 = vadd.f32 %v93, %v114
    %v119 = vadd.f32 %v94, %v115
    %v120 = vadd.f32 %v95, %v116
    %v121 = vadd.f32 %v96, %v117
    %s122 = sadd.s32 %s68, 2
    %v123 = vstv %s122
    %vm124 = vcmp.eq.s32.totalorder %v54, %v123
    %vm125 = vmand %vm70, %vm124
    %vm126 = vmand %vm71, %vm124
    %vm127 = vmand %vm72, %vm124
    %vm128 = vmand %vm73, %vm124
    %s129 = sld [smem:[#allocation5 + $0x2]]
    %v130 = vsel %vm125, 1, 0
    %v131 = vsel %vm126, 1, 0
    %v132 = vsel %vm127, 1, 0
    %v133 = vsel %vm128, 1, 0
    %v134 = vcvt.s32.f32 %v130
    %v135 = vcvt.s32.f32 %v131
    %v136 = vcvt.s32.f32 %v132
    %v137 = vcvt.s32.f32 %v133
    %v138 = vstv %s129
    %v139 = vmul.f32 %v138, %v134
    %v140 = vmul.f32 %v138, %v135
    %v141 = vmul.f32 %v138, %v136
    %v142 = vmul.f32 %v138, %v137
    %v143 = vadd.f32 %v118, %v139
    %v144 = vadd.f32 %v119, %v140
    %v145 = vadd.f32 %v120, %v141
    %v146 = vadd.f32 %v121, %v142
    %vm147 = vcmp.eq.s32.totalorder %v49, %v98
    %vm148 = vcmp.eq.s32.totalorder %v50, %v98
    %vm149 = vcmp.eq.s32.totalorder %v51, %v98
    %vm150 = vcmp.eq.s32.totalorder %v52, %v98
    %vm151 = vmand %vm147, %vm74
    %vm152 = vmand %vm148, %vm74
    %vm153 = vmand %vm149, %vm74
    %vm154 = vmand %vm150, %vm74
    %s155 = sld [smem:[#allocation5 + $0x3]]
    %v156 = vsel %vm151, 1, 0
    %v157 = vsel %vm152, 1, 0
    %v158 = vsel %vm153, 1, 0
    %v159 = vsel %vm154, 1, 0
    %v160 = vcvt.s32.f32 %v156
    %v161 = vcvt.s32.f32 %v157
    %v162 = vcvt.s32.f32 %v158
    %v163 = vcvt.s32.f32 %v159
    %v164 = vstv %s155
    %v165 = vmul.f32 %v164, %v160
    %v166 = vmul.f32 %v164, %v161
    %v167 = vmul.f32 %v164, %v162
    %v168 = vmul.f32 %v164, %v163
    %v169 = vadd.f32 %v143, %v165
    %v170 = vadd.f32 %v144, %v166
    %v171 = vadd.f32 %v145, %v167
    %v172 = vadd.f32 %v146, %v168
    %vm173 = vmand %vm147, %vm99
    %vm174 = vmand %vm148, %vm99
    %vm175 = vmand %vm149, %vm99
    %vm176 = vmand %vm150, %vm99
    %s177 = sld [smem:[#allocation5 + $0x4]]
    %v178 = vsel %vm173, 1, 0
    %v179 = vsel %vm174, 1, 0
    %v180 = vsel %vm175, 1, 0
    %v181 = vsel %vm176, 1, 0
    %v182 = vcvt.s32.f32 %v178
    %v183 = vcvt.s32.f32 %v179
    %v184 = vcvt.s32.f32 %v180
    %v185 = vcvt.s32.f32 %v181
    %v186 = vstv %s177
    %v187 = vmul.f32 %v186, %v182
    %v188 = vmul.f32 %v186, %v183
    %v189 = vmul.f32 %v186, %v184
    %v190 = vmul.f32 %v186, %v185
    %v191 = vadd.f32 %v169, %v187
    %v192 = vadd.f32 %v170, %v188
    %v193 = vadd.f32 %v171, %v189
    %v194 = vadd.f32 %v172, %v190
    %vm195 = vmand %vm147, %vm124
    %vm196 = vmand %vm148, %vm124
    %vm197 = vmand %vm149, %vm124
    %vm198 = vmand %vm150, %vm124
    %s199 = sld [smem:[#allocation5 + $0x5]]
    %v200 = vsel %vm195, 1, 0
    %v201 = vsel %vm196, 1, 0
    %v202 = vsel %vm197, 1, 0
    %v203 = vsel %vm198, 1, 0
    %v204 = vcvt.s32.f32 %v200
    %v205 = vcvt.s32.f32 %v201
    %v206 = vcvt.s32.f32 %v202
    %v207 = vcvt.s32.f32 %v203
    %v208 = vstv %s199
    %v209 = vmul.f32 %v208, %v204
    %v210 = vmul.f32 %v208, %v205
    %v211 = vmul.f32 %v208, %v206
    %v212 = vmul.f32 %v208, %v207
    %v213 = vadd.f32 %v191, %v209
    %v214 = vadd.f32 %v192, %v210
    %v215 = vadd.f32 %v193, %v211
    %v216 = vadd.f32 %v194, %v212
    %vm217 = vcmp.eq.s32.totalorder %v49, %v123
    %vm218 = vcmp.eq.s32.totalorder %v50, %v123
    %vm219 = vcmp.eq.s32.totalorder %v51, %v123
    %vm220 = vcmp.eq.s32.totalorder %v52, %v123
    %vm221 = vmand %vm217, %vm74
    %vm222 = vmand %vm218, %vm74
    %vm223 = vmand %vm219, %vm74
    %vm224 = vmand %vm220, %vm74
    %s225 = sld [smem:[#allocation5 + $0x6]]
    %v226 = vsel %vm221, 1, 0
    %v227 = vsel %vm222, 1, 0
    %v228 = vsel %vm223, 1, 0
    %v229 = vsel %vm224, 1, 0
    %v230 = vcvt.s32.f32 %v226
    %v231 = vcvt.s32.f32 %v227
    %v232 = vcvt.s32.f32 %v228
    %v233 = vcvt.s32.f32 %v229
    %v234 = vstv %s225
    %v235 = vmul.f32 %v234, %v230
    %v236 = vmul.f32 %v234, %v231
    %v237 = vmul.f32 %v234, %v232
    %v238 = vmul.f32 %v234, %v233
    %v239 = vadd.f32 %v213, %v235
    %v240 = vadd.f32 %v214, %v236
    %v241 = vadd.f32 %v215, %v237
    %v242 = vadd.f32 %v216, %v238
    %vm243 = vmand %vm217, %vm99
    %vm244 = vmand %vm218, %vm99
    %vm245 = vmand %vm219, %vm99
    %vm246 = vmand %vm220, %vm99
    %s247 = sld [smem:[#allocation5 + $0x7]]
    %v248 = vsel %vm243, 1, 0
    %v249 = vsel %vm244, 1, 0
    %v250 = vsel %vm245, 1, 0
    %v251 = vsel %vm246, 1, 0
    %v252 = vcvt.s32.f32 %v248
    %v253 = vcvt.s32.f32 %v249
    %v254 = vcvt.s32.f32 %v250
    %v255 = vcvt.s32.f32 %v251
    %v256 = vstv %s247
    %v257 = vmul.f32 %v256, %v252
    %v258 = vmul.f32 %v256, %v253
    %v259 = vmul.f32 %v256, %v254
    %v260 = vmul.f32 %v256, %v255
    %v261 = vadd.f32 %v239, %v257
    %v262 = vadd.f32 %v240, %v258
    %v263 = vadd.f32 %v241, %v259
    %v264 = vadd.f32 %v242, %v260
    %vm265 = vmand %vm217, %vm124
    %vm266 = vmand %vm218, %vm124
    %vm267 = vmand %vm219, %vm124
    %vm268 = vmand %vm220, %vm124
    %s269 = sld [smem:[#allocation5 + $0x8]]
    %v270 = vsel %vm265, 1, 0
    %v271 = vsel %vm266, 1, 0
    %v272 = vsel %vm267, 1, 0
    %v273 = vsel %vm268, 1, 0
    %v274 = vcvt.s32.f32 %v270
    %v275 = vcvt.s32.f32 %v271
    %v276 = vcvt.s32.f32 %v272
    %v277 = vcvt.s32.f32 %v273
    %v278 = vstv %s269
    %v279 = vmul.f32 %v278, %v274
    %v280 = vmul.f32 %v278, %v275
    %v281 = vmul.f32 %v278, %v276
    %v282 = vmul.f32 %v278, %v277
    %v283 = vadd.f32 %v261, %v279
    %v284 = vadd.f32 %v262, %v280
    %v285 = vadd.f32 %v263, %v281
    %v286 = vadd.f32 %v264, %v282
    %v287 = vlaneseq
    %v288 = vshrl.u32 %v287, 7
    %v289 = vsub.s32 0, %v288
    %v290 = vrot.slane %v67, %v289
    %v291 = vmul.f32 %v63, %v290
    %v292 = vmul.f32 %v64, %v290
    %v293 = vmul.f32 %v65, %v290
    %v294 = vmul.f32 %v66, %v290
    %v295 = vadd.f32 %v283, %v291
    %v296 = vadd.f32 %v284, %v292
    %v297 = vadd.f32 %v285, %v293
    %v298 = vadd.f32 %v286, %v294
    %s299 = sld [smem:[#allocation2 + $0x1]]
    %v300 = vstv %s299
    %vm301 = vcmp.eq.s32.totalorder %v49, %v300
    %vm302 = vcmp.eq.s32.totalorder %v50, %v300
    %vm303 = vcmp.eq.s32.totalorder %v51, %v300
    %vm304 = vcmp.eq.s32.totalorder %v52, %v300
    %vm305 = vcmp.eq.s32.totalorder %v54, %v300
    %vm306 = vmand %vm301, %vm305
    %vm307 = vmand %vm302, %vm305
    %vm308 = vmand %vm303, %vm305
    %vm309 = vmand %vm304, %vm305
    %s310 = sld [smem:[#allocation5 + $0x80]]
    %v311 = vsel %vm306, 1, 0
    %v312 = vsel %vm307, 1, 0
    %v313 = vsel %vm308, 1, 0
    %v314 = vsel %vm309, 1, 0
    %v315 = vcvt.s32.f32 %v311
    %v316 = vcvt.s32.f32 %v312
    %v317 = vcvt.s32.f32 %v313
    %v318 = vcvt.s32.f32 %v314
    %v319 = vstv %s310
    %v320 = vmul.f32 %v319, %v315
    %v321 = vmul.f32 %v319, %v316
    %v322 = vmul.f32 %v319, %v317
    %v323 = vmul.f32 %v319, %v318
    %v324 = vadd.f32 %v320, 0.0
    %v325 = vadd.f32 %v321, 0.0
    %v326 = vadd.f32 %v322, 0.0
    %v327 = vadd.f32 %v323, 0.0
    %s328 = sadd.s32 %s299, 1
    %v329 = vstv %s328
    %vm330 = vcmp.eq.s32.totalorder %v54, %v329
    %vm331 = vmand %vm301, %vm330
    %vm332 = vmand %vm302, %vm330
    %vm333 = vmand %vm303, %vm330
    %vm334 = vmand %vm304, %vm330
    %s335 = sld [smem:[#allocation5 + $0x81]]
    %v336 = vsel %vm331, 1, 0
    %v337 = vsel %vm332, 1, 0
    %v338 = vsel %vm333, 1, 0
    %v339 = vsel %vm334, 1, 0
    %v340 = vcvt.s32.f32 %v336
    %v341 = vcvt.s32.f32 %v337
    %v342 = vcvt.s32.f32 %v338
    %v343 = vcvt.s32.f32 %v339
    %v344 = vstv %s335
    %v345 = vmul.f32 %v344, %v340
    %v346 = vmul.f32 %v344, %v341
    %v347 = vmul.f32 %v344, %v342
    %v348 = vmul.f32 %v344, %v343
    %v349 = vadd.f32 %v324, %v345
    %v350 = vadd.f32 %v325, %v346
    %v351 = vadd.f32 %v326, %v347
    %v352 = vadd.f32 %v327, %v348
    %s353 = sadd.s32 %s299, 2
    %v354 = vstv %s353
    %vm355 = vcmp.eq.s32.totalorder %v54, %v354
    %vm356 = vmand %vm301, %vm355
    %vm357 = vmand %vm302, %vm355
    %vm358 = vmand %vm303, %vm355
    %vm359 = vmand %vm304, %vm355
    %s360 = sld [smem:[#allocation5 + $0x82]]
    %v361 = vsel %vm356, 1, 0
    %v362 = vsel %vm357, 1, 0
    %v363 = vsel %vm358, 1, 0
    %v364 = vsel %vm359, 1, 0
    %v365 = vcvt.s32.f32 %v361
    %v366 = vcvt.s32.f32 %v362
    %v367 = vcvt.s32.f32 %v363
    %v368 = vcvt.s32.f32 %v364
    %v369 = vstv %s360
    %v370 = vmul.f32 %v369, %v365
    %v371 = vmul.f32 %v369, %v366
    %v372 = vmul.f32 %v369, %v367
    %v373 = vmul.f32 %v369, %v368
    %v374 = vadd.f32 %v349, %v370
    %v375 = vadd.f32 %v350, %v371
    %v376 = vadd.f32 %v351, %v372
    %v377 = vadd.f32 %v352, %v373
    %vm378 = vcmp.eq.s32.totalorder %v49, %v329
    %vm379 = vcmp.eq.s32.totalorder %v50, %v329
    %vm380 = vcmp.eq.s32.totalorder %v51, %v329
    %vm381 = vcmp.eq.s32.totalorder %v52, %v329
    %vm382 = vmand %vm378, %vm305
    %vm383 = vmand %vm379, %vm305
    %vm384 = vmand %vm380, %vm305
    %vm385 = vmand %vm381, %vm305
    %s386 = sld [smem:[#allocation5 + $0x83]]
    %v387 = vsel %vm382, 1, 0
    %v388 = vsel %vm383, 1, 0
    %v389 = vsel %vm384, 1, 0
    %v390 = vsel %vm385, 1, 0
    %v391 = vcvt.s32.f32 %v387
    %v392 = vcvt.s32.f32 %v388
    %v393 = vcvt.s32.f32 %v389
    %v394 = vcvt.s32.f32 %v390
    %v395 = vstv %s386
    %v396 = vmul.f32 %v395, %v391
    %v397 = vmul.f32 %v395, %v392
    %v398 = vmul.f32 %v395, %v393
    %v399 = vmul.f32 %v395, %v394
    %v400 = vadd.f32 %v374, %v396
    %v401 = vadd.f32 %v375, %v397
    %v402 = vadd.f32 %v376, %v398
    %v403 = vadd.f32 %v377, %v399
    %vm404 = vmand %vm378, %vm330
    %vm405 = vmand %vm379, %vm330
    %vm406 = vmand %vm380, %vm330
    %vm407 = vmand %vm381, %vm330
    %s408 = sld [smem:[#allocation5 + $0x84]]
    %v409 = vsel %vm404, 1, 0
    %v410 = vsel %vm405, 1, 0
    %v411 = vsel %vm406, 1, 0
    %v412 = vsel %vm407, 1, 0
    %v413 = vcvt.s32.f32 %v409
    %v414 = vcvt.s32.f32 %v410
    %v415 = vcvt.s32.f32 %v411
    %v416 = vcvt.s32.f32 %v412
    %v417 = vstv %s408
    %v418 = vmul.f32 %v417, %v413
    %v419 = vmul.f32 %v417, %v414
    %v420 = vmul.f32 %v417, %v415
    %v421 = vmul.f32 %v417, %v416
    %v422 = vadd.f32 %v400, %v418
    %v423 = vadd.f32 %v401, %v419
    %v424 = vadd.f32 %v402, %v420
    %v425 = vadd.f32 %v403, %v421
    %vm426 = vmand %vm378, %vm355
    %vm427 = vmand %vm379, %vm355
    %vm428 = vmand %vm380, %vm355
    %vm429 = vmand %vm381, %vm355
    %s430 = sld [smem:[#allocation5 + $0x85]]
    %v431 = vsel %vm426, 1, 0
    %v432 = vsel %vm427, 1, 0
    %v433 = vsel %vm428, 1, 0
    %v434 = vsel %vm429, 1, 0
    %v435 = vcvt.s32.f32 %v431
    %v436 = vcvt.s32.f32 %v432
    %v437 = vcvt.s32.f32 %v433
    %v438 = vcvt.s32.f32 %v434
    %v439 = vstv %s430
    %v440 = vmul.f32 %v439, %v435
    %v441 = vmul.f32 %v439, %v436
    %v442 = vmul.f32 %v439, %v437
    %v443 = vmul.f32 %v439, %v438
    %v444 = vadd.f32 %v422, %v440
    %v445 = vadd.f32 %v423, %v441
    %v446 = vadd.f32 %v424, %v442
    %v447 = vadd.f32 %v425, %v443
    %vm448 = vcmp.eq.s32.totalorder %v49, %v354
    %vm449 = vcmp.eq.s32.totalorder %v50, %v354
    %vm450 = vcmp.eq.s32.totalorder %v51, %v354
    %vm451 = vcmp.eq.s32.totalorder %v52, %v354
    %vm452 = vmand %vm448, %vm305
    %vm453 = vmand %vm449, %vm305
    %vm454 = vmand %vm450, %vm305
    %vm455 = vmand %vm451, %vm305
    %s456 = sld [smem:[#allocation5 + $0x86]]
    %v457 = vsel %vm452, 1, 0
    %v458 = vsel %vm453, 1, 0
    %v459 = vsel %vm454, 1, 0
    %v460 = vsel %vm455, 1, 0
    %v461 = vcvt.s32.f32 %v457
    %v462 = vcvt.s32.f32 %v458
    %v463 = vcvt.s32.f32 %v459
    %v464 = vcvt.s32.f32 %v460
    %v465 = vstv %s456
    %v466 = vmul.f32 %v465, %v461
    %v467 = vmul.f32 %v465, %v462
    %v468 = vmul.f32 %v465, %v463
    %v469 = vmul.f32 %v465, %v464
    %v470 = vadd.f32 %v444, %v466
    %v471 = vadd.f32 %v445, %v467
    %v472 = vadd.f32 %v446, %v468
    %v473 = vadd.f32 %v447, %v469
    %vm474 = vmand %vm448, %vm330
    %vm475 = vmand %vm449, %vm330
    %vm476 = vmand %vm450, %vm330
    %vm477 = vmand %vm451, %vm330
    %s478 = sld [smem:[#allocation5 + $0x87]]
    %v479 = vsel %vm474, 1, 0
    %v480 = vsel %vm475, 1, 0
    %v481 = vsel %vm476, 1, 0
    %v482 = vsel %vm477, 1, 0
    %v483 = vcvt.s32.f32 %v479
    %v484 = vcvt.s32.f32 %v480
    %v485 = vcvt.s32.f32 %v481
    %v486 = vcvt.s32.f32 %v482
    %v487 = vstv %s478
    %v488 = vmul.f32 %v487, %v483
    %v489 = vmul.f32 %v487, %v484
    %v490 = vmul.f32 %v487, %v485
    %v491 = vmul.f32 %v487, %v486
    %v492 = vadd.f32 %v470, %v488
    %v493 = vadd.f32 %v471, %v489
    %v494 = vadd.f32 %v472, %v490
    %v495 = vadd.f32 %v473, %v491
    %vm496 = vmand %vm448, %vm355
    %vm497 = vmand %vm449, %vm355
    %vm498 = vmand %vm450, %vm355
    %vm499 = vmand %vm451, %vm355
    %s500 = sld [smem:[#allocation5 + $0x88]]
    %v501 = vsel %vm496, 1, 0
    %v502 = vsel %vm497, 1, 0
    %v503 = vsel %vm498, 1, 0
    %v504 = vsel %vm499, 1, 0
    %v505 = vcvt.s32.f32 %v501
    %v506 = vcvt.s32.f32 %v502
    %v507 = vcvt.s32.f32 %v503
    %v508 = vcvt.s32.f32 %v504
    %v509 = vstv %s500
    %v510 = vmul.f32 %v509, %v505
    %v511 = vmul.f32 %v509, %v506
    %v512 = vmul.f32 %v509, %v507
    %v513 = vmul.f32 %v509, %v508
    %v514 = vadd.f32 %v492, %v510
    %v515 = vadd.f32 %v493, %v511
    %v516 = vadd.f32 %v494, %v512
    %v517 = vadd.f32 %v495, %v513
    %v518 = vlaneseq
    %v519 = vshrl.u32 %v518, 7
    %v520 = vsub.s32 1, %v519
    %v521 = vrot.slane %v67, %v520
    %v522 = vmul.f32 %v63, %v521
    %v523 = vmul.f32 %v64, %v521
    %v524 = vmul.f32 %v65, %v521
    %v525 = vmul.f32 %v66, %v521
    %v526 = vadd.f32 %v514, %v522
    %v527 = vadd.f32 %v515, %v523
    %v528 = vadd.f32 %v516, %v524
    %v529 = vadd.f32 %v517, %v525
    %vm530 = vcmask 261120
    %v532 = vsel %vm530, %v295, 0
    %v535 = vsel %vm530, %v296, 0
    %v538 = vsel %vm530, %v297, 0
    %v541 = vsel %vm530, %v298, 0
    %543 = vmatprep.subr.mxu0 0.0
    %544 = vmatpush1.xpose.msra.mxu0 %v532
    %545 = vmatprep.subr.mxu0 0.0
    %546 = vmatpush1.xpose.msra.mxu0 %v535
    %547 = vmatprep.subr.mxu0 0.0
    %548 = vmatpush1.xpose.msra.mxu0 %v538
    %549 = vmatprep.subr.mxu0 0.0
    %550 = vmatpush1.xpose.msra.mxu0 %v541
    %551 = vmatprep.subr.mxu0 0.0
    %552 = vmatpush1.xpose.msra.mxu0 0.0
    %553 = vmatprep.subr.mxu0 0.0
    %554 = vmatpush1.xpose.msra.mxu0 0.0
    %555 = vmatprep.subr.mxu0 0.0
    %556 = vmatpush1.xpose.msra.mxu0 0.0
    %557 = vmatprep.subr.mxu0 0.0
    %558 = vmatpush1.xpose.msra.mxu0 0.0
    %559 = vmatprep.subr.mxu0 0.0
    %560 = vmatpush1.xpose.msra.mxu0 0.0
    %561 = vmatprep.subr.mxu0 0.0
    %562 = vmatpush1.xpose.msra.mxu0 0.0
    %563 = vmatprep.subr.mxu0 0.0
    %564 = vmatpush1.xpose.msra.mxu0 0.0
    %565 = vmatprep.subr.mxu0 0.0
    %566 = vmatpush1.xpose.msra.mxu0 0.0
    %567 = vmatprep.subr.mxu0 0.0
    %568 = vmatpush1.xpose.msra.mxu0 0.0
    %569 = vmatprep.subr.mxu0 0.0
    %570 = vmatpush1.xpose.msra.mxu0 0.0
    %571 = vmatprep.subr.mxu0 0.0
    %572 = vmatpush1.xpose.msra.mxu0 0.0
    %573 = vmatprep.subr.mxu0 0.0
    %574 = vmatpush1.xpose.msra.mxu0 0.0
    %575 = vmatprep.subr.mxu0 0.0
    %576 = vmatpush1.xpose.msra.mxu0 0.0
    %577 = vmatprep.subr.mxu0 0.0
    %578 = vmatpush1.xpose.msra.mxu0 0.0
    %579 = vmatprep.subr.mxu0 0.0
    %580 = vmatpush1.xpose.msra.mxu0 0.0
    %581 = vmatprep.subr.mxu0 0.0
    %582 = vmatpush1.xpose.msra.mxu0 0.0
    %583 = vmatprep.subr.mxu0 0.0
    %584 = vmatpush1.xpose.msra.mxu0 0.0
    %585 = vmatprep.subr.mxu0 0.0
    %586 = vmatpush1.xpose.msra.mxu0 0.0
    %587 = vmatprep.subr.mxu0 0.0
    %588 = vmatpush1.xpose.msra.mxu0 0.0
    %589 = vmatprep.subr.mxu0 0.0
    %590 = vmatpush1.xpose.msra.mxu0 0.0
    %591 = vmatprep.subr.mxu0 0.0
    %592 = vmatpush1.xpose.msra.mxu0 0.0
    %593 = vmatprep.subr.mxu0 0.0
    %594 = vmatpush1.xpose.msra.mxu0 0.0
    %595 = vmatprep.subr.mxu0 0.0
    %596 = vmatpush1.xpose.msra.mxu0 0.0
    %597 = vmatprep.subr.mxu0 0.0
    %598 = vmatpush1.xpose.msra.mxu0 0.0
    %599 = vmatprep.subr.mxu0 0.0
    %600 = vmatpush1.xpose.msra.mxu0 0.0
    %601 = vmatprep.subr.mxu0 0.0
    %602 = vmatpush1.xpose.msra.mxu0 0.0
    %603 = vmatprep.subr.mxu0 0.0
    %604 = vmatpush1.xpose.msra.mxu0 0.0
    %605 = vmatprep.subr.mxu0 0.0
    %606 = vmatpush1.xpose.msra.mxu0 0.0
    %607 = vmatprep.mubr.f32.mxu0 0.0
    %608 = vmatmul.mubr.f32.gmra.mrb[0].mxu0 %v532
    %v609 = vpop.f32.mrb[0].mxu0
    %v610 = vadd.f32 0.0, %v609
    %v611 = vpop.f32.mrb[0].mxu0
    %612 = vmatprep.mubr.f32.mxu0 0.0
    %613 = vmatmul.mubr.f32.gmra.mrb[0].mxu0 %v535
    %v614 = vpop.f32.mrb[0].mxu0
    %v615 = vadd.f32 0.0, %v614
    %v616 = vpop.f32.mrb[0].mxu0
    %617 = vmatprep.mubr.f32.mxu0 0.0
    %618 = vmatmul.mubr.f32.gmra.mrb[0].mxu0 %v538
    %v619 = vpop.f32.mrb[0].mxu0
    %v620 = vadd.f32 0.0, %v619
    %v621 = vpop.f32.mrb[0].mxu0
    %622 = vmatprep.mubr.f32.mxu0 0.0
    %623 = vmatmul.mubr.f32.gmra.mrb[0].mxu0 %v541
    %v624 = vpop.f32.mrb[0].mxu0
    %v625 = vadd.f32 0.0, %v624
    %v626 = vpop.f32.mrb[0].mxu0
    %627 = vdwg.mxu0
    %v629 = vsel %vm530, %v526, 0
    %v632 = vsel %vm530, %v527, 0
    %v635 = vsel %vm530, %v528, 0
    %v638 = vsel %vm530, %v529, 0
    %640 = vmatprep.subr.mxu0 0.0
    %641 = vmatpush1.xpose.msra.mxu0 %v629
    %642 = vmatprep.subr.mxu0 0.0
    %643 = vmatpush1.xpose.msra.mxu0 %v632
    %644 = vmatprep.subr.mxu0 0.0
    %645 = vmatpush1.xpose.msra.mxu0 %v635
    %646 = vmatprep.subr.mxu0 0.0
    %647 = vmatpush1.xpose.msra.mxu0 %v638
    %648 = vmatprep.subr.mxu0 0.0
    %649 = vmatpush1.xpose.msra.mxu0 0.0
    %650 = vmatprep.subr.mxu0 0.0
    %651 = vmatpush1.xpose.msra.mxu0 0.0
    %652 = vmatprep.subr.mxu0 0.0
    %653 = vmatpush1.xpose.msra.mxu0 0.0
    %654 = vmatprep.subr.mxu0 0.0
    %655 = vmatpush1.xpose.msra.mxu0 0.0
    %656 = vmatprep.subr.mxu0 0.0
    %657 = vmatpush1.xpose.msra.mxu0 0.0
    %658 = vmatprep.subr.mxu0 0.0
    %659 = vmatpush1.xpose.msra.mxu0 0.0
    %660 = vmatprep.subr.mxu0 0.0
    %661 = vmatpush1.xpose.msra.mxu0 0.0
    %662 = vmatprep.subr.mxu0 0.0
    %663 = vmatpush1.xpose.msra.mxu0 0.0
    %664 = vmatprep.subr.mxu0 0.0
    %665 = vmatpush1.xpose.msra.mxu0 0.0
    %666 = vmatprep.subr.mxu0 0.0
    %667 = vmatpush1.xpose.msra.mxu0 0.0
    %668 = vmatprep.subr.mxu0 0.0
    %669 = vmatpush1.xpose.msra.mxu0 0.0
    %670 = vmatprep.subr.mxu0 0.0
    %671 = vmatpush1.xpose.msra.mxu0 0.0
    %672 = vmatprep.subr.mxu0 0.0
    %673 = vmatpush1.xpose.msra.mxu0 0.0
    %674 = vmatprep.subr.mxu0 0.0
    %675 = vmatpush1.xpose.msra.mxu0 0.0
    %676 = vmatprep.subr.mxu0 0.0
    %677 = vmatpush1.xpose.msra.mxu0 0.0
    %678 = vmatprep.subr.mxu0 0.0
    %679 = vmatpush1.xpose.msra.mxu0 0.0
    %680 = vmatprep.subr.mxu0 0.0
    %681 = vmatpush1.xpose.msra.mxu0 0.0
    %682 = vmatprep.subr.mxu0 0.0
    %683 = vmatpush1.xpose.msra.mxu0 0.0
    %684 = vmatprep.subr.mxu0 0.0
    %685 = vmatpush1.xpose.msra.mxu0 0.0
    %686 = vmatprep.subr.mxu0 0.0
    %687 = vmatpush1.xpose.msra.mxu0 0.0
    %688 = vmatprep.subr.mxu0 0.0
    %689 = vmatpush1.xpose.msra.mxu0 0.0
    %690 = vmatprep.subr.mxu0 0.0
    %691 = vmatpush1.xpose.msra.mxu0 0.0
    %692 = vmatprep.subr.mxu0 0.0
    %693 = vmatpush1.xpose.msra.mxu0 0.0
    %694 = vmatprep.subr.mxu0 0.0
    %695 = vmatpush1.xpose.msra.mxu0 0.0
    %696 = vmatprep.subr.mxu0 0.0
    %697 = vmatpush1.xpose.msra.mxu0 0.0
    %698 = vmatprep.subr.mxu0 0.0
    %699 = vmatpush1.xpose.msra.mxu0 0.0
    %700 = vmatprep.subr.mxu0 0.0
    %701 = vmatpush1.xpose.msra.mxu0 0.0
    %702 = vmatprep.subr.mxu0 0.0
    %703 = vmatpush1.xpose.msra.mxu0 0.0
    %704 = vmatprep.mubr.f32.mxu0 0.0
    %705 = vmatmul.mubr.f32.gmra.mrb[0].mxu0 %v629
    %v706 = vpop.f32.mrb[0].mxu0
    %v707 = vadd.f32 0.0, %v706
    %v708 = vpop.f32.mrb[0].mxu0
    %709 = vmatprep.mubr.f32.mxu0 0.0
    %710 = vmatmul.mubr.f32.gmra.mrb[0].mxu0 %v632
    %v711 = vpop.f32.mrb[0].mxu0
    %v712 = vadd.f32 0.0, %v711
    %v713 = vpop.f32.mrb[0].mxu0
    %714 = vmatprep.mubr.f32.mxu0 0.0
    %715 = vmatmul.mubr.f32.gmra.mrb[0].mxu0 %v635
    %v716 = vpop.f32.mrb[0].mxu0
    %v717 = vadd.f32 0.0, %v716
    %v718 = vpop.f32.mrb[0].mxu0
    %719 = vmatprep.mubr.f32.mxu0 0.0
    %720 = vmatmul.mubr.f32.gmra.mrb[0].mxu0 %v638
    %v721 = vpop.f32.mrb[0].mxu0
    %v722 = vadd.f32 0.0, %v721
    %v723 = vpop.f32.mrb[0].mxu0
    %724 = vdwg.mxu0
    %725 = vst.msk [vmem:[#allocation7] sm:$0xff] %vm530, %v610
    %726 = vst.msk [vmem:[#allocation7 + $0x8] sm:$0xff] %vm530, %v615
    %727 = vst.msk [vmem:[#allocation7 + $0x10] sm:$0xff] %vm530, %v620
    %728 = vst.msk [vmem:[#allocation7 + $0x18] sm:$0xff] %vm530, %v625
    %729 = vst.msk [vmem:[#allocation7 + $0x20] sm:$0xff] %vm530, %v707
    %730 = vst.msk [vmem:[#allocation7 + $0x28] sm:$0xff] %vm530, %v712
    %731 = vst.msk [vmem:[#allocation7 + $0x30] sm:$0xff] %vm530, %v717
    %732 = vst.msk [vmem:[#allocation7 + $0x38] sm:$0xff] %vm530, %v722
    %vm733 = vcmp.le.s32.totalorder %v54, %v49
    %vm734 = vcmp.le.s32.totalorder %v54, %v50
    %vm735 = vcmp.le.s32.totalorder %v54, %v51
    %vm736 = vcmp.le.s32.totalorder %v54, %v52
    %v737 = vsel %vm733, 1, 0
    %v738 = vsel %vm734, 1, 0
    %v739 = vsel %vm735, 1, 0
    %v740 = vsel %vm736, 1, 0
    %vm741 = vcmp.eq.s32.totalorder %v737, 1
    %vm742 = vcmp.eq.s32.totalorder %v738, 1
    %vm743 = vcmp.eq.s32.totalorder %v739, 1
    %vm744 = vcmp.eq.s32.totalorder %v740, 1
    %v745 = vsel %vm741, %v610, 0.0
    %v746 = vsel %vm742, %v615, 0.0
    %v747 = vsel %vm743, %v620, 0.0
    %v748 = vsel %vm744, %v625, 0.0
    %v749 = vsel %vm741, %v707, 0.0
    %v750 = vsel %vm742, %v712, 0.0
    %v751 = vsel %vm743, %v717, 0.0
    %v752 = vsel %vm744, %v722, 0.0
    %v753 = vld [vmem:[%s3] sm:$0x3]
    %v754 = vld [vmem:[%s4] sm:$0x1]
    %v756 = vlaneseq
    %v757 = vshrl.u32 %v756, 7
    %v758 = vsub.s32 0, %v757
    %v759 = vrot.slane %v754, %v758
    %v761 = vmul.f32 %v745, %v759
    %v762 = vmul.f32 %v746, %v759
    %v763 = vmul.f32 %v747, %v759
    %v764 = vmul.f32 %v748, %v759
    %v765 = vmul.f32 %v749, %v759
    %v766 = vmul.f32 %v750, %v759
    %v767 = vmul.f32 %v751, %v759
    %v768 = vmul.f32 %v752, %v759
    %v769 = vsel %vm530, %v761, 0.0
    %770 = vadd.xlane.f32.xlu0 %v769
    %v771 = vpop.xlane.xlu0 %770
    %v772 = vsel %vm530, %v762, 0.0
    %773 = vadd.xlane.f32.xlu0 %v772
    %v774 = vpop.xlane.xlu0 %773
    %v775 = vsel %vm530, %v763, 0.0
    %776 = vadd.xlane.f32.xlu0 %v775
    %v777 = vpop.xlane.xlu0 %776
    %v778 = vsel %vm530, %v764, 0.0
    %779 = vadd.xlane.f32.xlu0 %v778
    %v780 = vpop.xlane.xlu0 %779
    %v781 = vsel %vm530, %v765, 0.0
    %782 = vadd.xlane.f32.xlu0 %v781
    %v783 = vpop.xlane.xlu0 %782
    %v784 = vsel %vm530, %v766, 0.0
    %785 = vadd.xlane.f32.xlu0 %v784
    %v786 = vpop.xlane.xlu0 %785
    %v787 = vsel %vm530, %v767, 0.0
    %788 = vadd.xlane.f32.xlu0 %v787
    %v789 = vpop.xlane.xlu0 %788
    %v790 = vsel %vm530, %v768, 0.0
    %791 = vadd.xlane.f32.xlu0 %v790
    %v792 = vpop.xlane.xlu0 %791
    %v801 = vlaneseq
    %v802 = vshrl.u32 %v801, 7
    %v803 = vsub.s32 %v54, %v802
    %v804 = vrot.slane %v771, %v803
    %v805 = vadd.s32 %v54, 4294967288
    %v806 = vlaneseq
    %v807 = vshrl.u32 %v806, 7
    %v808 = vsub.s32 %v805, %v807
    %v809 = vrot.slane %v774, %v808
    %vm810 = vcmask 130112
    %v811 = vsel %vm810, %v809, %v804
    %v812 = vadd.s32 %v54, 4294967280
    %v813 = vlaneseq
    %v814 = vshrl.u32 %v813, 7
    %v815 = vsub.s32 %v812, %v814
    %v816 = vrot.slane %v777, %v815
    %vm817 = vcmask 195712
    %v818 = vsel %vm817, %v816, %v811
    %v819 = vadd.s32 %v54, 4294967272
    %v820 = vlaneseq
    %v821 = vshrl.u32 %v820, 7
    %v822 = vsub.s32 %v819, %v821
    %v823 = vrot.slane %v780, %v822
    %vm824 = vcmask 261312
    %v825 = vsel %vm824, %v823, %v818
    %v826 = vlaneseq
    %v827 = vshrl.u32 %v826, 7
    %v828 = vsub.s32 %v54, %v827
    %v829 = vrot.slane %v783, %v828
    %v830 = vlaneseq
    %v831 = vshrl.u32 %v830, 7
    %v832 = vsub.s32 %v805, %v831
    %v833 = vrot.slane %v786, %v832
    %v834 = vsel %vm810, %v833, %v829
    %v835 = vlaneseq
    %v836 = vshrl.u32 %v835, 7
    %v837 = vsub.s32 %v812, %v836
    %v838 = vrot.slane %v789, %v837
    %v839 = vsel %vm817, %v838, %v834
    %v840 = vlaneseq
    %v841 = vshrl.u32 %v840, 7
    %v842 = vsub.s32 %v819, %v841
    %v843 = vrot.slane %v792, %v842
    %v844 = vsel %vm824, %v843, %v839
    %vm845 = vcmask 1041409
    %v846 = vsel %vm845, %v844, %v825
    %v848 = vadd.f32 %v753, %v846
    %vm849 = vcmask 254976
    %850 = vst.msk [vmem:[%s6] sm:$0x3] %vm849, %v848
    // Predicated region
    $region30: #{vae_forward.4} parent=1 // pred_check
      _
    $region31: #{vae_forward.4} parent=1 // pred_check_branch
      %852 = sbr.rel (0) target = $region33
    $region32: #{vae_forward.4} parent=1 // pred_region
      %s854 = ssub.s32 1024, 1024
      %855 = vsyncadd [#allocation3], %s854
      %s856 = sshll.u32 [#allocation7], 4
      %s857 = int_to_ptr.vmem [resolvable:$true] %s856
      %862 = dma.vmem_to_hbm [thread:$0]  %s857, 1024, %s5, [#allocation3], 128, 128, 8
    $region33: #{vae_forward.4} parent=1 // pred_fallthru
      _
    // Predicated region
    $region34: #{vae_forward.4} parent=1 // pred_check
      _
    $region35: #{vae_forward.4} parent=1 // pred_check_branch
      %864 = sbr.rel (0) target = $region37
    $region36: #{vae_forward.4} parent=1 // pred_region
      _
    $region37: #{vae_forward.4} parent=1 // pred_fallthru
      _
    // Predicated region
    $region38: #{vae_forward.4} parent=1 // pred_check
      _
    $region39: #{vae_forward.4} parent=1 // pred_check_branch
      %866 = sbr.rel (0) target = $region41
    $region40: #{vae_forward.4} parent=1 // pred_region
      %867 = dma.done [#allocation3], 1024
    $region41: #{vae_forward.4} parent=1 // pred_fallthru
      _
    // Predicated region
    $region42: #{vae_forward.4} parent=1 // pred_check
      _
    $region43: #{vae_forward.4} parent=1 // pred_check_branch
      %869 = sbr.rel (0) target = $region45
    $region44: #{vae_forward.4} parent=1 // pred_region
      _
    $region45: #{vae_forward.4} parent=1 // pred_fallthru
      _
    %870 = vsyncpa [#allocation3], 1
    %871 = vsyncpa [#allocation4], 1
    %872 = vsyncpa [#allocation6], 1

// kernel: vae_forward.3
$region0: #{vae_forward.3}
  #allocation0 [shape = 'u32[]', space=smem, size = 0x4, offset = 0x4, fixed_abs, tag = 'smem constant byte address 0x4 - core index']
  #allocation1 [shape = 'u32[144,128]{1,0:T(1,128)}', space=vmem, size = 0x12000, scoped, tag = 'internal scratch']
  %s0 = inlined_call_operand.vmem [shape: f32[2,1024], index: 0, kind: input, shape index: {}]
  %s1 = inlined_call_operand.vmem [shape: bf16[1024,512], index: 1, kind: input, shape index: {}]
  %s2 = inlined_call_operand.vmem [shape: f32[1,512], index: 2, kind: input, shape index: {}]
  %s3 = inlined_call_operand.vmem [shape: f32[1,8], index: 3, kind: input, shape index: {}]
  %s4 = inlined_call_operand.vmem [shape: f32[1,8], index: 4, kind: input, shape index: {}]
  %s5 = inlined_call_operand.vmem [shape: f32[512,8], index: 5, kind: input, shape index: {}]
  %s6 = inlined_call_operand.hbm [shape: f32[8,512], index: 6, kind: input, shape index: {}]
  %s7 = inlined_call_operand.hbm [shape: bf16[512,256], index: 7, kind: input, shape index: {}]
  %s8 = inlined_call_operand.vmem [shape: f32[1,256], index: 8, kind: input, shape index: {}]
  %s9 = inlined_call_operand.vmem [shape: f32[1,16], index: 9, kind: input, shape index: {}]
  %s10 = inlined_call_operand.vmem [shape: f32[1,16], index: 10, kind: input, shape index: {}]
  %s11 = inlined_call_operand.vmem [shape: f32[256,16], index: 11, kind: input, shape index: {}]
  %s12 = inlined_call_operand.hbm [shape: f32[16,256], index: 12, kind: input, shape index: {}]
  %s13 = inlined_call_operand.vmem [shape: bf16[256,128], index: 13, kind: input, shape index: {}]
  %s14 = inlined_call_operand.vmem [shape: f32[1,128], index: 14, kind: input, shape index: {}]
  %s15 = inlined_call_operand.vmem [shape: f32[128,70], index: 15, kind: input, shape index: {}]
  %s16 = inlined_call_operand.vmem [shape: f32[1,70], index: 16, kind: input, shape index: {}]
  %s17 = inlined_call_operand.vmem [shape: f32[2,70], index: 17, kind: output, shape index: {}]
  %s18 = sld [smem:[#allocation0]]
  $region90: #{vae_forward.3} parent=0
    _
  %s20 = ssub.s32 1, %s18
  %s21 = scalar_select 0, %s20, %s18
  $region1: #{vae_forward.3} parent=0
    #allocation2 [shape = 'u8[16384]{0}', space=vmem, size = 0x4000, scoped, tag = 'input window, operand 6, single buffered']
    #allocation3 [shape = 's32[1]{0}', space=sflag, size = 0x4, scoped, tag = 'scoped memory for vae_forward.3']
    #allocation4 [shape = 'u8[262144]{0}', space=vmem, size = 0x40000, scoped, tag = 'input window, operand 7, single buffered']
    #allocation5 [shape = 's32[1]{0}', space=sflag, size = 0x4, scoped, tag = 'scoped memory for vae_forward.3']
    #allocation6 [shape = 'u8[16384]{0}', space=vmem, size = 0x4000, scoped, tag = 'input window, operand 12, single buffered']
    %22 = vsyncpa [#allocation3], 0
    %23 = vsyncpa [#allocation5], 0
    // Predicated region
    $region2: #{vae_forward.3} parent=1 // pred_check
      _
    $region3: #{vae_forward.3} parent=1 // pred_check_branch
      %25 = sbr.rel (0) target = $region5
    $region4: #{vae_forward.3} parent=1 // pred_region
      _
    $region5: #{vae_forward.3} parent=1 // pred_fallthru
      _
    // Predicated region
    $region6: #{vae_forward.3} parent=1 // pred_check
      _
    $region7: #{vae_forward.3} parent=1 // pred_check_branch
      %27 = sbr.rel (0) target = $region9
    $region8: #{vae_forward.3} parent=1 // pred_region
      _
    $region9: #{vae_forward.3} parent=1 // pred_fallthru
      _
    // Predicated region
    $region10: #{vae_forward.3} parent=1 // pred_check
      _
    $region11: #{vae_forward.3} parent=1 // pred_check_branch
      %29 = sbr.rel (0) target = $region13
    $region12: #{vae_forward.3} parent=1 // pred_region
      _
    $region13: #{vae_forward.3} parent=1 // pred_fallthru
      _
    // Predicated region
    $region14: #{vae_forward.3} parent=1 // pred_check
      _
    $region15: #{vae_forward.3} parent=1 // pred_check_branch
      %31 = sbr.rel (0) target = $region17
    $region16: #{vae_forward.3} parent=1 // pred_region
      _
    $region17: #{vae_forward.3} parent=1 // pred_fallthru
      _
    // Predicated region
    $region18: #{vae_forward.3} parent=1 // pred_check
      _
    $region19: #{vae_forward.3} parent=1 // pred_check_branch
      %33 = sbr.rel (0) target = $region21
    $region20: #{vae_forward.3} parent=1 // pred_region
      _
    $region21: #{vae_forward.3} parent=1 // pred_fallthru
      _
    // Predicated region
    $region22: #{vae_forward.3} parent=1 // pred_check
      _
    $region23: #{vae_forward.3} parent=1 // pred_check_branch
      %35 = sbr.rel (0) target = $region25
    $region24: #{vae_forward.3} parent=1 // pred_region
      _
    $region25: #{vae_forward.3} parent=1 // pred_fallthru
      _
    // Predicated region
    $region26: #{vae_forward.3} parent=1 // pred_check
      _
    $region27: #{vae_forward.3} parent=1 // pred_check_branch
      %37 = sbr.rel (0) target = $region29
    $region28: #{vae_forward.3} parent=1 // pred_region
      %s39 = ssub.s32 512, 512
      %40 = vsyncadd [#allocation3], %s39
      %s42 = sshll.u32 [#allocation2], 4
      %s43 = int_to_ptr.vmem [resolvable:$true] %s42
      %45 = dma.hbm_to_vmem [thread:$0]  %s6, 512, %s43, [#allocation3]
    $region29: #{vae_forward.3} parent=1 // pred_fallthru
      _
    // Predicated region
    $region30: #{vae_forward.3} parent=1 // pred_check
      _
    $region31: #{vae_forward.3} parent=1 // pred_check_branch
      %47 = sbr.rel (0) target = $region33
    $region32: #{vae_forward.3} parent=1 // pred_region
      %s49 = ssub.s32 8192, 8192
      %50 = vsyncadd [#allocation5], %s49
      %s51 = sshll.u32 [#allocation4], 4
      %s52 = int_to_ptr.vmem [resolvable:$true] %s51
      %57 = dma.hbm_to_vmem [thread:$0]  %s7, 8192, %s52, [#allocation5], 128, 128, 8
    $region33: #{vae_forward.3} parent=1 // pred_fallthru
      _
    // Predicated region
    $region34: #{vae_forward.3} parent=1 // pred_check
      _
    $region35: #{vae_forward.3} parent=1 // pred_check_branch
      %59 = sbr.rel (0) target = $region37
    $region36: #{vae_forward.3} parent=1 // pred_region
      _
    $region37: #{vae_forward.3} parent=1 // pred_fallthru
      _
    // Predicated region
    $region38: #{vae_forward.3} parent=1 // pred_check
      _
    $region39: #{vae_forward.3} parent=1 // pred_check_branch
      %61 = sbr.rel (0) target = $region41
    $region40: #{vae_forward.3} parent=1 // pred_region
      _
    $region41: #{vae_forward.3} parent=1 // pred_fallthru
      _
    // Predicated region
    $region42: #{vae_forward.3} parent=1 // pred_check
      _
    $region43: #{vae_forward.3} parent=1 // pred_check_branch
      %63 = sbr.rel (0) target = $region45
    $region44: #{vae_forward.3} parent=1 // pred_region
      _
    $region45: #{vae_forward.3} parent=1 // pred_fallthru
      _
    // Predicated region
    $region46: #{vae_forward.3} parent=1 // pred_check
      _
    $region47: #{vae_forward.3} parent=1 // pred_check_branch
      %65 = sbr.rel (0) target = $region49
    $region48: #{vae_forward.3} parent=1 // pred_region
      _
    $region49: #{vae_forward.3} parent=1 // pred_fallthru
      _
    // Predicated region
    $region50: #{vae_forward.3} parent=1 // pred_check
      _
    $region51: #{vae_forward.3} parent=1 // pred_check_branch
      %67 = sbr.rel (0) target = $region53
    $region52: #{vae_forward.3} parent=1 // pred_region
      %s69 = ssub.s32 512, 512
      %70 = vsyncadd [#allocation5], %s69
      %s71 = sshll.u32 [#allocation6], 4
      %s72 = int_to_ptr.vmem [resolvable:$true] %s71
      %77 = dma.hbm_to_vmem [thread:$0]  %s12, 512, %s72, [#allocation5], 256, 256, 16
    $region53: #{vae_forward.3} parent=1 // pred_fallthru
      _
    // Predicated region
    $region54: #{vae_forward.3} parent=1 // pred_check
      _
    $region55: #{vae_forward.3} parent=1 // pred_check_branch
      %79 = sbr.rel (0) target = $region57
    $region56: #{vae_forward.3} parent=1 // pred_region
      _
    $region57: #{vae_forward.3} parent=1 // pred_fallthru
      _
    // Predicated region
    $region58: #{vae_forward.3} parent=1 // pred_check
      _
    $region59: #{vae_forward.3} parent=1 // pred_check_branch
      %81 = sbr.rel (0) target = $region61
    $region60: #{vae_forward.3} parent=1 // pred_region
      _
    $region61: #{vae_forward.3} parent=1 // pred_fallthru
      _
    // Predicated region
    $region62: #{vae_forward.3} parent=1 // pred_check
      _
    $region63: #{vae_forward.3} parent=1 // pred_check_branch
      %83 = sbr.rel (0) target = $region65
    $region64: #{vae_forward.3} parent=1 // pred_region
      _
    $region65: #{vae_forward.3} parent=1 // pred_fallthru
      _
    // Predicated region
    $region66: #{vae_forward.3} parent=1 // pred_check
      _
    $region67: #{vae_forward.3} parent=1 // pred_check_branch
      %85 = sbr.rel (0) target = $region69
    $region68: #{vae_forward.3} parent=1 // pred_region
      _
    $region69: #{vae_forward.3} parent=1 // pred_fallthru
      _
    // Predicated region
    $region70: #{vae_forward.3} parent=1 // pred_check
      _
    $region71: #{vae_forward.3} parent=1 // pred_check_branch
      %87 = sbr.rel (0) target = $region73
    $region72: #{vae_forward.3} parent=1 // pred_region
      %88 = dma.done [#allocation3], 512
    $region73: #{vae_forward.3} parent=1 // pred_fallthru
      _
    // Predicated region
    $region74: #{vae_forward.3} parent=1 // pred_check
      _
    $region75: #{vae_forward.3} parent=1 // pred_check_branch
      %90 = sbr.rel (0) target = $region77
    $region76: #{vae_forward.3} parent=1 // pred_region
      %91 = dma.done [#allocation5], 8192
    $region77: #{vae_forward.3} parent=1 // pred_fallthru
      _
    // Predicated region
    $region78: #{vae_forward.3} parent=1 // pred_check
      _
    $region79: #{vae_forward.3} parent=1 // pred_check_branch
      %93 = sbr.rel (0) target = $region81
    $region80: #{vae_forward.3} parent=1 // pred_region
      %94 = dma.done [#allocation5], 512
    $region81: #{vae_forward.3} parent=1 // pred_fallthru
      _
    %v96 = vld [vmem:[%s0] sm:$0xff]
    %v97 = vld [vmem:[%s0 + $0x8] sm:$0xff]
    %v100 = vcombine.high %v96, %v96
    %v102 = vunpack.c.l.s4 1983009808
    %v103 = vunpack.c.0.s8 %v102
    %v104 = vlaneseq
    %v105 = vshrl.u32 %v104, 7
    %v106 = vsub.s32 %v103, %v105
    %v107 = vrot.slane %v96, %v106
    %v109 = vunpack.c.l.s4 1983009808
    %v110 = vunpack.c.0.s8 %v109
    %v111 = vlaneseq
    %v112 = vshrl.u32 %v111, 7
    %v113 = vsub.s32 %v110, %v112
    %v114 = vrot.slane %v100, %v113
    %v115 = vcombine.high %v107, %v107
    %v116 = vcombine.high %v114, %v114
    %v117 = vcombine.high %v97, %v97
    %v119 = vunpack.c.l.s4 1983009808
    %v120 = vunpack.c.0.s8 %v119
    %v121 = vlaneseq
    %v122 = vshrl.u32 %v121, 7
    %v123 = vsub.s32 %v120, %v122
    %v124 = vrot.slane %v97, %v123
    %v126 = vunpack.c.l.s4 1983009808
    %v127 = vunpack.c.0.s8 %v126
    %v128 = vlaneseq
    %v129 = vshrl.u32 %v128, 7
    %v130 = vsub.s32 %v127, %v129
    %v131 = vrot.slane %v117, %v130
    %v132 = vcombine.high %v124, %v124
    %v133 = vcombine.high %v131, %v131
    %v142 = vpack.c.bf16 %v107, %v107
    %v143 = vpack.c.bf16 %v115, %v115
    %v144 = vpack.c.bf16 %v114, %v114
    %v145 = vpack.c.bf16 %v116, %v116
    %v146 = vpack.c.bf16 %v124, %v124
    %v147 = vpack.c.bf16 %v132, %v132
    %v148 = vpack.c.bf16 %v131, %v131
    %v149 = vpack.c.bf16 %v133, %v133
    %v150 = vld [vmem:[%s1] sm:$0xff]
    %v151 = vld [vmem:[%s1 + $0x8] sm:$0xff]
    %v152 = vld [vmem:[%s1 + $0x10] sm:$0xff]
    %v153 = vld [vmem:[%s1 + $0x18] sm:$0xff]
    %v154 = vld [vmem:[%s1 + $0x20] sm:$0xff]
    %v155 = vld [vmem:[%s1 + $0x28] sm:$0xff]
    %v156 = vld [vmem:[%s1 + $0x30] sm:$0xff]
    %v157 = vld [vmem:[%s1 + $0x38] sm:$0xff]
    %v158 = vld [vmem:[%s1 + $0x40] sm:$0xff]
    %v159 = vld [vmem:[%s1 + $0x48] sm:$0xff]
    %v160 = vld [vmem:[%s1 + $0x50] sm:$0xff]
    %v161 = vld [vmem:[%s1 + $0x58] sm:$0xff]
    %v162 = vld [vmem:[%s1 + $0x60] sm:$0xff]
    %v163 = vld [vmem:[%s1 + $0x68] sm:$0xff]
    %v164 = vld [vmem:[%s1 + $0x70] sm:$0xff]
    %v165 = vld [vmem:[%s1 + $0x78] sm:$0xff]
    %v166 = vld [vmem:[%s1 + $0x80] sm:$0xff]
    %v167 = vld [vmem:[%s1 + $0x88] sm:$0xff]
    %v168 = vld [vmem:[%s1 + $0x90] sm:$0xff]
    %v169 = vld [vmem:[%s1 + $0x98] sm:$0xff]
    %v170 = vld [vmem:[%s1 + $0xa0] sm:$0xff]
    %v171 = vld [vmem:[%s1 + $0xa8] sm:$0xff]
    %v172 = vld [vmem:[%s1 + $0xb0] sm:$0xff]
    %v173 = vld [vmem:[%s1 + $0xb8] sm:$0xff]
    %v174 = vld [vmem:[%s1 + $0xc0] sm:$0xff]
    %v175 = vld [vmem:[%s1 + $0xc8] sm:$0xff]
    %v176 = vld [vmem:[%s1 + $0xd0] sm:$0xff]
    %v177 = vld [vmem:[%s1 + $0xd8] sm:$0xff]
    %v178 = vld [vmem:[%s1 + $0xe0] sm:$0xff]
    %v179 = vld [vmem:[%s1 + $0xe8] sm:$0xff]
    %v180 = vld [vmem:[%s1 + $0xf0] sm:$0xff]
    %v181 = vld [vmem:[%s1 + $0xf8] sm:$0xff]
    %v182 = vld [vmem:[%s1 + $0x100] sm:$0xff]
    %v183 = vld [vmem:[%s1 + $0x108] sm:$0xff]
    %v184 = vld [vmem:[%s1 + $0x110] sm:$0xff]
    %v185 = vld [vmem:[%s1 + $0x118] sm:$0xff]
    %v186 = vld [vmem:[%s1 + $0x120] sm:$0xff]
    %v187 = vld [vmem:[%s1 + $0x128] sm:$0xff]
    %v188 = vld [vmem:[%s1 + $0x130] sm:$0xff]
    %v189 = vld [vmem:[%s1 + $0x138] sm:$0xff]
    %v190 = vld [vmem:[%s1 + $0x140] sm:$0xff]
    %v191 = vld [vmem:[%s1 + $0x148] sm:$0xff]
    %v192 = vld [vmem:[%s1 + $0x150] sm:$0xff]
    %v193 = vld [vmem:[%s1 + $0x158] sm:$0xff]
    %v194 = vld [vmem:[%s1 + $0x160] sm:$0xff]
    %v195 = vld [vmem:[%s1 + $0x168] sm:$0xff]
    %v196 = vld [vmem:[%s1 + $0x170] sm:$0xff]
    %v197 = vld [vmem:[%s1 + $0x178] sm:$0xff]
    %v198 = vld [vmem:[%s1 + $0x180] sm:$0xff]
    %v199 = vld [vmem:[%s1 + $0x188] sm:$0xff]
    %v200 = vld [vmem:[%s1 + $0x190] sm:$0xff]
    %v201 = vld [vmem:[%s1 + $0x198] sm:$0xff]
    %v202 = vld [vmem:[%s1 + $0x1a0] sm:$0xff]
    %v203 = vld [vmem:[%s1 + $0x1a8] sm:$0xff]
    %v204 = vld [vmem:[%s1 + $0x1b0] sm:$0xff]
    %v205 = vld [vmem:[%s1 + $0x1b8] sm:$0xff]
    %v206 = vld [vmem:[%s1 + $0x1c0] sm:$0xff]
    %v207 = vld [vmem:[%s1 + $0x1c8] sm:$0xff]
    %v208 = vld [vmem:[%s1 + $0x1d0] sm:$0xff]
    %v209 = vld [vmem:[%s1 + $0x1d8] sm:$0xff]
    %v210 = vld [vmem:[%s1 + $0x1e0] sm:$0xff]
    %v211 = vld [vmem:[%s1 + $0x1e8] sm:$0xff]
    %v212 = vld [vmem:[%s1 + $0x1f0] sm:$0xff]
    %v213 = vld [vmem:[%s1 + $0x1f8] sm:$0xff]
    %v214 = vld [vmem:[%s1 + $0x200] sm:$0xff]
    %v215 = vld [vmem:[%s1 + $0x208] sm:$0xff]
    %v216 = vld [vmem:[%s1 + $0x210] sm:$0xff]
    %v217 = vld [vmem:[%s1 + $0x218] sm:$0xff]
    %v218 = vld [vmem:[%s1 + $0x220] sm:$0xff]
    %v219 = vld [vmem:[%s1 + $0x228] sm:$0xff]
    %v220 = vld [vmem:[%s1 + $0x230] sm:$0xff]
    %v221 = vld [vmem:[%s1 + $0x238] sm:$0xff]
    %v222 = vld [vmem:[%s1 + $0x240] sm:$0xff]
    %v223 = vld [vmem:[%s1 + $0x248] sm:$0xff]
    %v224 = vld [vmem:[%s1 + $0x250] sm:$0xff]
    %v225 = vld [vmem:[%s1 + $0x258] sm:$0xff]
    %v226 = vld [vmem:[%s1 + $0x260] sm:$0xff]
    %v227 = vld [vmem:[%s1 + $0x268] sm:$0xff]
    %v228 = vld [vmem:[%s1 + $0x270] sm:$0xff]
    %v229 = vld [vmem:[%s1 + $0x278] sm:$0xff]
    %v230 = vld [vmem:[%s1 + $0x280] sm:$0xff]
    %v231 = vld [vmem:[%s1 + $0x288] sm:$0xff]
    %v232 = vld [vmem:[%s1 + $0x290] sm:$0xff]
    %v233 = vld [vmem:[%s1 + $0x298] sm:$0xff]
    %v234 = vld [vmem:[%s1 + $0x2a0] sm:$0xff]
    %v235 = vld [vmem:[%s1 + $0x2a8] sm:$0xff]
    %v236 = vld [vmem:[%s1 + $0x2b0] sm:$0xff]
    %v237 = vld [vmem:[%s1 + $0x2b8] sm:$0xff]
    %v238 = vld [vmem:[%s1 + $0x2c0] sm:$0xff]
    %v239 = vld [vmem:[%s1 + $0x2c8] sm:$0xff]
    %v240 = vld [vmem:[%s1 + $0x2d0] sm:$0xff]
    %v241 = vld [vmem:[%s1 + $0x2d8] sm:$0xff]
    %v242 = vld [vmem:[%s1 + $0x2e0] sm:$0xff]
    %v243 = vld [vmem:[%s1 + $0x2e8] sm:$0xff]
    %v244 = vld [vmem:[%s1 + $0x2f0] sm:$0xff]
    %v245 = vld [vmem:[%s1 + $0x2f8] sm:$0xff]
    %v246 = vld [vmem:[%s1 + $0x300] sm:$0xff]
    %v247 = vld [vmem:[%s1 + $0x308] sm:$0xff]
    %v248 = vld [vmem:[%s1 + $0x310] sm:$0xff]
    %v249 = vld [vmem:[%s1 + $0x318] sm:$0xff]
    %v250 = vld [vmem:[%s1 + $0x320] sm:$0xff]
    %v251 = vld [vmem:[%s1 + $0x328] sm:$0xff]
    %v252 = vld [vmem:[%s1 + $0x330] sm:$0xff]
    %v253 = vld [vmem:[%s1 + $0x338] sm:$0xff]
    %v254 = vld [vmem:[%s1 + $0x340] sm:$0xff]
    %v255 = vld [vmem:[%s1 + $0x348] sm:$0xff]
    %v256 = vld [vmem:[%s1 + $0x350] sm:$0xff]
    %v257 = vld [vmem:[%s1 + $0x358] sm:$0xff]
    %v258 = vld [vmem:[%s1 + $0x360] sm:$0xff]
    %v259 = vld [vmem:[%s1 + $0x368] sm:$0xff]
    %v260 = vld [vmem:[%s1 + $0x370] sm:$0xff]
    %v261 = vld [vmem:[%s1 + $0x378] sm:$0xff]
    %v262 = vld [vmem:[%s1 + $0x380] sm:$0xff]
    %v263 = vld [vmem:[%s1 + $0x388] sm:$0xff]
    %v264 = vld [vmem:[%s1 + $0x390] sm:$0xff]
    %v265 = vld [vmem:[%s1 + $0x398] sm:$0xff]
    %v266 = vld [vmem:[%s1 + $0x3a0] sm:$0xff]
    %v267 = vld [vmem:[%s1 + $0x3a8] sm:$0xff]
    %v268 = vld [vmem:[%s1 + $0x3b0] sm:$0xff]
    %v269 = vld [vmem:[%s1 + $0x3b8] sm:$0xff]
    %v270 = vld [vmem:[%s1 + $0x3c0] sm:$0xff]
    %v271 = vld [vmem:[%s1 + $0x3c8] sm:$0xff]
    %v272 = vld [vmem:[%s1 + $0x3d0] sm:$0xff]
    %v273 = vld [vmem:[%s1 + $0x3d8] sm:$0xff]
    %v274 = vld [vmem:[%s1 + $0x3e0] sm:$0xff]
    %v275 = vld [vmem:[%s1 + $0x3e8] sm:$0xff]
    %v276 = vld [vmem:[%s1 + $0x3f0] sm:$0xff]
    %v277 = vld [vmem:[%s1 + $0x3f8] sm:$0xff]
    %v278 = vld [vmem:[%s1 + $0x400] sm:$0xff]
    %v279 = vld [vmem:[%s1 + $0x408] sm:$0xff]
    %v280 = vld [vmem:[%s1 + $0x410] sm:$0xff]
    %v281 = vld [vmem:[%s1 + $0x418] sm:$0xff]
    %v282 = vld [vmem:[%s1 + $0x420] sm:$0xff]
    %v283 = vld [vmem:[%s1 + $0x428] sm:$0xff]
    %v284 = vld [vmem:[%s1 + $0x430] sm:$0xff]
    %v285 = vld [vmem:[%s1 + $0x438] sm:$0xff]
    %v286 = vld [vmem:[%s1 + $0x440] sm:$0xff]
    %v287 = vld [vmem:[%s1 + $0x448] sm:$0xff]
    %v288 = vld [vmem:[%s1 + $0x450] sm:$0xff]
    %v289 = vld [vmem:[%s1 + $0x458] sm:$0xff]
    %v290 = vld [vmem:[%s1 + $0x460] sm:$0xff]
    %v291 = vld [vmem:[%s1 + $0x468] sm:$0xff]
    %v292 = vld [vmem:[%s1 + $0x470] sm:$0xff]
    %v293 = vld [vmem:[%s1 + $0x478] sm:$0xff]
    %v294 = vld [vmem:[%s1 + $0x480] sm:$0xff]
    %v295 = vld [vmem:[%s1 + $0x488] sm:$0xff]
    %v296 = vld [vmem:[%s1 + $0x490] sm:$0xff]
    %v297 = vld [vmem:[%s1 + $0x498] sm:$0xff]
    %v298 = vld [vmem:[%s1 + $0x4a0] sm:$0xff]
    %v299 = vld [vmem:[%s1 + $0x4a8] sm:$0xff]
    %v300 = vld [vmem:[%s1 + $0x4b0] sm:$0xff]
    %v301 = vld [vmem:[%s1 + $0x4b8] sm:$0xff]
    %v302 = vld [vmem:[%s1 + $0x4c0] sm:$0xff]
    %v303 = vld [vmem:[%s1 + $0x4c8] sm:$0xff]
    %v304 = vld [vmem:[%s1 + $0x4d0] sm:$0xff]
    %v305 = vld [vmem:[%s1 + $0x4d8] sm:$0xff]
    %v306 = vld [vmem:[%s1 + $0x4e0] sm:$0xff]
    %v307 = vld [vmem:[%s1 + $0x4e8] sm:$0xff]
    %v308 = vld [vmem:[%s1 + $0x4f0] sm:$0xff]
    %v309 = vld [vmem:[%s1 + $0x4f8] sm:$0xff]
    %v310 = vld [vmem:[%s1 + $0x500] sm:$0xff]
    %v311 = vld [vmem:[%s1 + $0x508] sm:$0xff]
    %v312 = vld [vmem:[%s1 + $0x510] sm:$0xff]
    %v313 = vld [vmem:[%s1 + $0x518] sm:$0xff]
    %v314 = vld [vmem:[%s1 + $0x520] sm:$0xff]
    %v315 = vld [vmem:[%s1 + $0x528] sm:$0xff]
    %v316 = vld [vmem:[%s1 + $0x530] sm:$0xff]
    %v317 = vld [vmem:[%s1 + $0x538] sm:$0xff]
    %v318 = vld [vmem:[%s1 + $0x540] sm:$0xff]
    %v319 = vld [vmem:[%s1 + $0x548] sm:$0xff]
    %v320 = vld [vmem:[%s1 + $0x550] sm:$0xff]
    %v321 = vld [vmem:[%s1 + $0x558] sm:$0xff]
    %v322 = vld [vmem:[%s1 + $0x560] sm:$0xff]
    %v323 = vld [vmem:[%s1 + $0x568] sm:$0xff]
    %v324 = vld [vmem:[%s1 + $0x570] sm:$0xff]
    %v325 = vld [vmem:[%s1 + $0x578] sm:$0xff]
    %v326 = vld [vmem:[%s1 + $0x580] sm:$0xff]
    %v327 = vld [vmem:[%s1 + $0x588] sm:$0xff]
    %v328 = vld [vmem:[%s1 + $0x590] sm:$0xff]
    %v329 = vld [vmem:[%s1 + $0x598] sm:$0xff]
    %v330 = vld [vmem:[%s1 + $0x5a0] sm:$0xff]
    %v331 = vld [vmem:[%s1 + $0x5a8] sm:$0xff]
    %v332 = vld [vmem:[%s1 + $0x5b0] sm:$0xff]
    %v333 = vld [vmem:[%s1 + $0x5b8] sm:$0xff]
    %v334 = vld [vmem:[%s1 + $0x5c0] sm:$0xff]
    %v335 = vld [vmem:[%s1 + $0x5c8] sm:$0xff]
    %v336 = vld [vmem:[%s1 + $0x5d0] sm:$0xff]
    %v337 = vld [vmem:[%s1 + $0x5d8] sm:$0xff]
    %v338 = vld [vmem:[%s1 + $0x5e0] sm:$0xff]
    %v339 = vld [vmem:[%s1 + $0x5e8] sm:$0xff]
    %v340 = vld [vmem:[%s1 + $0x5f0] sm:$0xff]
    %v341 = vld [vmem:[%s1 + $0x5f8] sm:$0xff]
    %v342 = vld [vmem:[%s1 + $0x600] sm:$0xff]
    %v343 = vld [vmem:[%s1 + $0x608] sm:$0xff]
    %v344 = vld [vmem:[%s1 + $0x610] sm:$0xff]
    %v345 = vld [vmem:[%s1 + $0x618] sm:$0xff]
    %v346 = vld [vmem:[%s1 + $0x620] sm:$0xff]
    %v347 = vld [vmem:[%s1 + $0x628] sm:$0xff]
    %v348 = vld [vmem:[%s1 + $0x630] sm:$0xff]
    %v349 = vld [vmem:[%s1 + $0x638] sm:$0xff]
    %v350 = vld [vmem:[%s1 + $0x640] sm:$0xff]
    %v351 = vld [vmem:[%s1 + $0x648] sm:$0xff]
    %v352 = vld [vmem:[%s1 + $0x650] sm:$0xff]
    %v353 = vld [vmem:[%s1 + $0x658] sm:$0xff]
    %v354 = vld [vmem:[%s1 + $0x660] sm:$0xff]
    %v355 = vld [vmem:[%s1 + $0x668] sm:$0xff]
    %v356 = vld [vmem:[%s1 + $0x670] sm:$0xff]
    %v357 = vld [vmem:[%s1 + $0x678] sm:$0xff]
    %v358 = vld [vmem:[%s1 + $0x680] sm:$0xff]
    %v359 = vld [vmem:[%s1 + $0x688] sm:$0xff]
    %v360 = vld [vmem:[%s1 + $0x690] sm:$0xff]
    %v361 = vld [vmem:[%s1 + $0x698] sm:$0xff]
    %v362 = vld [vmem:[%s1 + $0x6a0] sm:$0xff]
    %v363 = vld [vmem:[%s1 + $0x6a8] sm:$0xff]
    %v364 = vld [vmem:[%s1 + $0x6b0] sm:$0xff]
    %v365 = vld [vmem:[%s1 + $0x6b8] sm:$0xff]
    %v366 = vld [vmem:[%s1 + $0x6c0] sm:$0xff]
    %v367 = vld [vmem:[%s1 + $0x6c8] sm:$0xff]
    %v368 = vld [vmem:[%s1 + $0x6d0] sm:$0xff]
    %v369 = vld [vmem:[%s1 + $0x6d8] sm:$0xff]
    %v370 = vld [vmem:[%s1 + $0x6e0] sm:$0xff]
    %v371 = vld [vmem:[%s1 + $0x6e8] sm:$0xff]
    %v372 = vld [vmem:[%s1 + $0x6f0] sm:$0xff]
    %v373 = vld [vmem:[%s1 + $0x6f8] sm:$0xff]
    %v374 = vld [vmem:[%s1 + $0x700] sm:$0xff]
    %v375 = vld [vmem:[%s1 + $0x708] sm:$0xff]
    %v376 = vld [vmem:[%s1 + $0x710] sm:$0xff]
    %v377 = vld [vmem:[%s1 + $0x718] sm:$0xff]
    %v378 = vld [vmem:[%s1 + $0x720] sm:$0xff]
    %v379 = vld [vmem:[%s1 + $0x728] sm:$0xff]
    %v380 = vld [vmem:[%s1 + $0x730] sm:$0xff]
    %v381 = vld [vmem:[%s1 + $0x738] sm:$0xff]
    %v382 = vld [vmem:[%s1 + $0x740] sm:$0xff]
    %v383 = vld [vmem:[%s1 + $0x748] sm:$0xff]
    %v384 = vld [vmem:[%s1 + $0x750] sm:$0xff]
    %v385 = vld [vmem:[%s1 + $0x758] sm:$0xff]
    %v386 = vld [vmem:[%s1 + $0x760] sm:$0xff]
    %v387 = vld [vmem:[%s1 + $0x768] sm:$0xff]
    %v388 = vld [vmem:[%s1 + $0x770] sm:$0xff]
    %v389 = vld [vmem:[%s1 + $0x778] sm:$0xff]
    %v390 = vld [vmem:[%s1 + $0x780] sm:$0xff]
    %v391 = vld [vmem:[%s1 + $0x788] sm:$0xff]
    %v392 = vld [vmem:[%s1 + $0x790] sm:$0xff]
    %v393 = vld [vmem:[%s1 + $0x798] sm:$0xff]
    %v394 = vld [vmem:[%s1 + $0x7a0] sm:$0xff]
    %v395 = vld [vmem:[%s1 + $0x7a8] sm:$0xff]
    %v396 = vld [vmem:[%s1 + $0x7b0] sm:$0xff]
    %v397 = vld [vmem:[%s1 + $0x7b8] sm:$0xff]
    %v398 = vld [vmem:[%s1 + $0x7c0] sm:$0xff]
    %v399 = vld [vmem:[%s1 + $0x7c8] sm:$0xff]
    %v400 = vld [vmem:[%s1 + $0x7d0] sm:$0xff]
    %v401 = vld [vmem:[%s1 + $0x7d8] sm:$0xff]
    %v402 = vld [vmem:[%s1 + $0x7e0] sm:$0xff]
    %v403 = vld [vmem:[%s1 + $0x7e8] sm:$0xff]
    %v404 = vld [vmem:[%s1 + $0x7f0] sm:$0xff]
    %v405 = vld [vmem:[%s1 + $0x7f8] sm:$0xff]
    %v406 = vld [vmem:[%s2] sm:$0xf]
    %v408 = vlaneseq
    %v409 = vshrl.u32 %v408, 7
    %v410 = vsub.s32 0, %v409
    %v411 = vrot.slane %v406, %v410
    %v412 = vlaneseq
    %v413 = vshrl.u32 %v412, 7
    %v414 = vsub.s32 1, %v413
    %v415 = vrot.slane %v406, %v414
    %v416 = vlaneseq
    %v417 = vshrl.u32 %v416, 7
    %v418 = vsub.s32 2, %v417
    %v419 = vrot.slane %v406, %v418
    %v420 = vlaneseq
    %v421 = vshrl.u32 %v420, 7
    %v422 = vsub.s32 3, %v421
    %v423 = vrot.slane %v406, %v422
    %v684 = vunpack.c.l.b16 %v150
    %v685 = vunpack.c.h.b16 %v150
    %v686 = vunpack.c.l.b16 %v151
    %v687 = vunpack.c.h.b16 %v151
    %v688 = vunpack.c.l.b16 %v152
    %v689 = vunpack.c.h.b16 %v152
    %v690 = vunpack.c.l.b16 %v153
    %v691 = vunpack.c.h.b16 %v153
    %v692 = vunpack.c.l.b16 %v154
    %v693 = vunpack.c.h.b16 %v154
    %v694 = vunpack.c.l.b16 %v155
    %v695 = vunpack.c.h.b16 %v155
    %v696 = vunpack.c.l.b16 %v156
    %v697 = vunpack.c.h.b16 %v156
    %v698 = vunpack.c.l.b16 %v157
    %v699 = vunpack.c.h.b16 %v157
    %v700 = vunpack.c.l.b16 %v158
    %v701 = vunpack.c.h.b16 %v158
    %v702 = vunpack.c.l.b16 %v159
    %v703 = vunpack.c.h.b16 %v159
    %v704 = vunpack.c.l.b16 %v160
    %v705 = vunpack.c.h.b16 %v160
    %v706 = vunpack.c.l.b16 %v161
    %v707 = vunpack.c.h.b16 %v161
    %v708 = vunpack.c.l.b16 %v162
    %v709 = vunpack.c.h.b16 %v162
    %v710 = vunpack.c.l.b16 %v163
    %v711 = vunpack.c.h.b16 %v163
    %v712 = vunpack.c.l.b16 %v164
    %v713 = vunpack.c.h.b16 %v164
    %v714 = vunpack.c.l.b16 %v165
    %v715 = vunpack.c.h.b16 %v165
    %v716 = vunpack.c.l.b16 %v166
    %v717 = vunpack.c.h.b16 %v166
    %v718 = vunpack.c.l.b16 %v167
    %v719 = vunpack.c.h.b16 %v167
    %v720 = vunpack.c.l.b16 %v168
    %v721 = vunpack.c.h.b16 %v168
    %v722 = vunpack.c.l.b16 %v169
    %v723 = vunpack.c.h.b16 %v169
    %v724 = vunpack.c.l.b16 %v170
    %v725 = vunpack.c.h.b16 %v170
    %v726 = vunpack.c.l.b16 %v171
    %v727 = vunpack.c.h.b16 %v171
    %v728 = vunpack.c.l.b16 %v172
    %v729 = vunpack.c.h.b16 %v172
    %v730 = vunpack.c.l.b16 %v173
    %v731 = vunpack.c.h.b16 %v173
    %v732 = vunpack.c.l.b16 %v174
    %v733 = vunpack.c.h.b16 %v174
    %v734 = vunpack.c.l.b16 %v175
    %v735 = vunpack.c.h.b16 %v175
    %v736 = vunpack.c.l.b16 %v176
    %v737 = vunpack.c.h.b16 %v176
    %v738 = vunpack.c.l.b16 %v177
    %v739 = vunpack.c.h.b16 %v177
    %v740 = vunpack.c.l.b16 %v178
    %v741 = vunpack.c.h.b16 %v178
    %v742 = vunpack.c.l.b16 %v179
    %v743 = vunpack.c.h.b16 %v179
    %v744 = vunpack.c.l.b16 %v180
    %v745 = vunpack.c.h.b16 %v180
    %v746 = vunpack.c.l.b16 %v181
    %v747 = vunpack.c.h.b16 %v181
    %v748 = vunpack.c.l.b16 %v182
    %v749 = vunpack.c.h.b16 %v182
    %v750 = vunpack.c.l.b16 %v183
    %v751 = vunpack.c.h.b16 %v183
    %v752 = vunpack.c.l.b16 %v184
    %v753 = vunpack.c.h.b16 %v184
    %v754 = vunpack.c.l.b16 %v185
    %v755 = vunpack.c.h.b16 %v185
    %v756 = vunpack.c.l.b16 %v186
    %v757 = vunpack.c.h.b16 %v186
    %v758 = vunpack.c.l.b16 %v187
    %v759 = vunpack.c.h.b16 %v187
    %v760 = vunpack.c.l.b16 %v188
    %v761 = vunpack.c.h.b16 %v188
    %v762 = vunpack.c.l.b16 %v189
    %v763 = vunpack.c.h.b16 %v189
    %v764 = vunpack.c.l.b16 %v190
    %v765 = vunpack.c.h.b16 %v190
    %v766 = vunpack.c.l.b16 %v191
    %v767 = vunpack.c.h.b16 %v191
    %v768 = vunpack.c.l.b16 %v192
    %v769 = vunpack.c.h.b16 %v192
    %v770 = vunpack.c.l.b16 %v193
    %v771 = vunpack.c.h.b16 %v193
    %v772 = vunpack.c.l.b16 %v194
    %v773 = vunpack.c.h.b16 %v194
    %v774 = vunpack.c.l.b16 %v195
    %v775 = vunpack.c.h.b16 %v195
    %v776 = vunpack.c.l.b16 %v196
    %v777 = vunpack.c.h.b16 %v196
    %v778 = vunpack.c.l.b16 %v197
    %v779 = vunpack.c.h.b16 %v197
    %v780 = vunpack.c.l.b16 %v198
    %v781 = vunpack.c.h.b16 %v198
    %v782 = vunpack.c.l.b16 %v199
    %v783 = vunpack.c.h.b16 %v199
    %v784 = vunpack.c.l.b16 %v200
    %v785 = vunpack.c.h.b16 %v200
    %v786 = vunpack.c.l.b16 %v201
    %v787 = vunpack.c.h.b16 %v201
    %v788 = vunpack.c.l.b16 %v202
    %v789 = vunpack.c.h.b16 %v202
    %v790 = vunpack.c.l.b16 %v203
    %v791 = vunpack.c.h.b16 %v203
    %v792 = vunpack.c.l.b16 %v204
    %v793 = vunpack.c.h.b16 %v204
    %v794 = vunpack.c.l.b16 %v205
    %v795 = vunpack.c.h.b16 %v205
    %v796 = vunpack.c.l.b16 %v206
    %v797 = vunpack.c.h.b16 %v206
    %v798 = vunpack.c.l.b16 %v207
    %v799 = vunpack.c.h.b16 %v207
    %v800 = vunpack.c.l.b16 %v208
    %v801 = vunpack.c.h.b16 %v208
    %v802 = vunpack.c.l.b16 %v209
    %v803 = vunpack.c.h.b16 %v209
    %v804 = vunpack.c.l.b16 %v210
    %v805 = vunpack.c.h.b16 %v210
    %v806 = vunpack.c.l.b16 %v211
    %v807 = vunpack.c.h.b16 %v211
    %v808 = vunpack.c.l.b16 %v212
    %v809 = vunpack.c.h.b16 %v212
    %v810 = vunpack.c.l.b16 %v213
    %v811 = vunpack.c.h.b16 %v213
    %v812 = vunpack.c.l.b16 %v214
    %v813 = vunpack.c.h.b16 %v214
    %v814 = vunpack.c.l.b16 %v215
    %v815 = vunpack.c.h.b16 %v215
    %v816 = vunpack.c.l.b16 %v216
    %v817 = vunpack.c.h.b16 %v216
    %v818 = vunpack.c.l.b16 %v217
    %v819 = vunpack.c.h.b16 %v217
    %v820 = vunpack.c.l.b16 %v218
    %v821 = vunpack.c.h.b16 %v218
    %v822 = vunpack.c.l.b16 %v219
    %v823 = vunpack.c.h.b16 %v219
    %v824 = vunpack.c.l.b16 %v220
    %v825 = vunpack.c.h.b16 %v220
    %v826 = vunpack.c.l.b16 %v221
    %v827 = vunpack.c.h.b16 %v221
    %v828 = vunpack.c.l.b16 %v222
    %v829 = vunpack.c.h.b16 %v222
    %v830 = vunpack.c.l.b16 %v223
    %v831 = vunpack.c.h.b16 %v223
    %v832 = vunpack.c.l.b16 %v224
    %v833 = vunpack.c.h.b16 %v224
    %v834 = vunpack.c.l.b16 %v225
    %v835 = vunpack.c.h.b16 %v225
    %v836 = vunpack.c.l.b16 %v226
    %v837 = vunpack.c.h.b16 %v226
    %v838 = vunpack.c.l.b16 %v227
    %v839 = vunpack.c.h.b16 %v227
    %v840 = vunpack.c.l.b16 %v228
    %v841 = vunpack.c.h.b16 %v228
    %v842 = vunpack.c.l.b16 %v229
    %v843 = vunpack.c.h.b16 %v229
    %v844 = vunpack.c.l.b16 %v230
    %v845 = vunpack.c.h.b16 %v230
    %v846 = vunpack.c.l.b16 %v231
    %v847 = vunpack.c.h.b16 %v231
    %v848 = vunpack.c.l.b16 %v232
    %v849 = vunpack.c.h.b16 %v232
    %v850 = vunpack.c.l.b16 %v233
    %v851 = vunpack.c.h.b16 %v233
    %v852 = vunpack.c.l.b16 %v234
    %v853 = vunpack.c.h.b16 %v234
    %v854 = vunpack.c.l.b16 %v235
    %v855 = vunpack.c.h.b16 %v235
    %v856 = vunpack.c.l.b16 %v236
    %v857 = vunpack.c.h.b16 %v236
    %v858 = vunpack.c.l.b16 %v237
    %v859 = vunpack.c.h.b16 %v237
    %v860 = vunpack.c.l.b16 %v238
    %v861 = vunpack.c.h.b16 %v238
    %v862 = vunpack.c.l.b16 %v239
    %v863 = vunpack.c.h.b16 %v239
    %v864 = vunpack.c.l.b16 %v240
    %v865 = vunpack.c.h.b16 %v240
    %v866 = vunpack.c.l.b16 %v241
    %v867 = vunpack.c.h.b16 %v241
    %v868 = vunpack.c.l.b16 %v242
    %v869 = vunpack.c.h.b16 %v242
    %v870 = vunpack.c.l.b16 %v243
    %v871 = vunpack.c.h.b16 %v243
    %v872 = vunpack.c.l.b16 %v244
    %v873 = vunpack.c.h.b16 %v244
    %v874 = vunpack.c.l.b16 %v245
    %v875 = vunpack.c.h.b16 %v245
    %v876 = vunpack.c.l.b16 %v246
    %v877 = vunpack.c.h.b16 %v246
    %v878 = vunpack.c.l.b16 %v247
    %v879 = vunpack.c.h.b16 %v247
    %v880 = vunpack.c.l.b16 %v248
    %v881 = vunpack.c.h.b16 %v248
    %v882 = vunpack.c.l.b16 %v249
    %v883 = vunpack.c.h.b16 %v249
    %v884 = vunpack.c.l.b16 %v250
    %v885 = vunpack.c.h.b16 %v250
    %v886 = vunpack.c.l.b16 %v251
    %v887 = vunpack.c.h.b16 %v251
    %v888 = vunpack.c.l.b16 %v252
    %v889 = vunpack.c.h.b16 %v252
    %v890 = vunpack.c.l.b16 %v253
    %v891 = vunpack.c.h.b16 %v253
    %v892 = vunpack.c.l.b16 %v254
    %v893 = vunpack.c.h.b16 %v254
    %v894 = vunpack.c.l.b16 %v255
    %v895 = vunpack.c.h.b16 %v255
    %v896 = vunpack.c.l.b16 %v256
    %v897 = vunpack.c.h.b16 %v256
    %v898 = vunpack.c.l.b16 %v257
    %v899 = vunpack.c.h.b16 %v257
    %v900 = vunpack.c.l.b16 %v258
    %v901 = vunpack.c.h.b16 %v258
    %v902 = vunpack.c.l.b16 %v259
    %v903 = vunpack.c.h.b16 %v259
    %v904 = vunpack.c.l.b16 %v260
    %v905 = vunpack.c.h.b16 %v260
    %v906 = vunpack.c.l.b16 %v261
    %v907 = vunpack.c.h.b16 %v261
    %v908 = vunpack.c.l.b16 %v262
    %v909 = vunpack.c.h.b16 %v262
    %v910 = vunpack.c.l.b16 %v263
    %v911 = vunpack.c.h.b16 %v263
    %v912 = vunpack.c.l.b16 %v264
    %v913 = vunpack.c.h.b16 %v264
    %v914 = vunpack.c.l.b16 %v265
    %v915 = vunpack.c.h.b16 %v265
    %v916 = vunpack.c.l.b16 %v266
    %v917 = vunpack.c.h.b16 %v266
    %v918 = vunpack.c.l.b16 %v267
    %v919 = vunpack.c.h.b16 %v267
    %v920 = vunpack.c.l.b16 %v268
    %v921 = vunpack.c.h.b16 %v268
    %v922 = vunpack.c.l.b16 %v269
    %v923 = vunpack.c.h.b16 %v269
    %v924 = vunpack.c.l.b16 %v270
    %v925 = vunpack.c.h.b16 %v270
    %v926 = vunpack.c.l.b16 %v271
    %v927 = vunpack.c.h.b16 %v271
    %v928 = vunpack.c.l.b16 %v272
    %v929 = vunpack.c.h.b16 %v272
    %v930 = vunpack.c.l.b16 %v273
    %v931 = vunpack.c.h.b16 %v273
    %v932 = vunpack.c.l.b16 %v274
    %v933 = vunpack.c.h.b16 %v274
    %v934 = vunpack.c.l.b16 %v275
    %v935 = vunpack.c.h.b16 %v275
    %v936 = vunpack.c.l.b16 %v276
    %v937 = vunpack.c.h.b16 %v276
    %v938 = vunpack.c.l.b16 %v277
    %v939 = vunpack.c.h.b16 %v277
    %v940 = vunpack.c.l.b16 %v278
    %v941 = vunpack.c.h.b16 %v278
    %v942 = vunpack.c.l.b16 %v279
    %v943 = vunpack.c.h.b16 %v279
    %v944 = vunpack.c.l.b16 %v280
    %v945 = vunpack.c.h.b16 %v280
    %v946 = vunpack.c.l.b16 %v281
    %v947 = vunpack.c.h.b16 %v281
    %v948 = vunpack.c.l.b16 %v282
    %v949 = vunpack.c.h.b16 %v282
    %v950 = vunpack.c.l.b16 %v283
    %v951 = vunpack.c.h.b16 %v283
    %v952 = vunpack.c.l.b16 %v284
    %v953 = vunpack.c.h.b16 %v284
    %v954 = vunpack.c.l.b16 %v285
    %v955 = vunpack.c.h.b16 %v285
    %v956 = vunpack.c.l.b16 %v286
    %v957 = vunpack.c.h.b16 %v286
    %v958 = vunpack.c.l.b16 %v287
    %v959 = vunpack.c.h.b16 %v287
    %v960 = vunpack.c.l.b16 %v288
    %v961 = vunpack.c.h.b16 %v288
    %v962 = vunpack.c.l.b16 %v289
    %v963 = vunpack.c.h.b16 %v289
    %v964 = vunpack.c.l.b16 %v290
    %v965 = vunpack.c.h.b16 %v290
    %v966 = vunpack.c.l.b16 %v291
    %v967 = vunpack.c.h.b16 %v291
    %v968 = vunpack.c.l.b16 %v292
    %v969 = vunpack.c.h.b16 %v292
    %v970 = vunpack.c.l.b16 %v293
    %v971 = vunpack.c.h.b16 %v293
    %v972 = vunpack.c.l.b16 %v294
    %v973 = vunpack.c.h.b16 %v294
    %v974 = vunpack.c.l.b16 %v295
    %v975 = vunpack.c.h.b16 %v295
    %v976 = vunpack.c.l.b16 %v296
    %v977 = vunpack.c.h.b16 %v296
    %v978 = vunpack.c.l.b16 %v297
    %v979 = vunpack.c.h.b16 %v297
    %v980 = vunpack.c.l.b16 %v298
    %v981 = vunpack.c.h.b16 %v298
    %v982 = vunpack.c.l.b16 %v299
    %v983 = vunpack.c.h.b16 %v299
    %v984 = vunpack.c.l.b16 %v300
    %v985 = vunpack.c.h.b16 %v300
    %v986 = vunpack.c.l.b16 %v301
    %v987 = vunpack.c.h.b16 %v301
    %v988 = vunpack.c.l.b16 %v302
    %v989 = vunpack.c.h.b16 %v302
    %v990 = vunpack.c.l.b16 %v303
    %v991 = vunpack.c.h.b16 %v303
    %v992 = vunpack.c.l.b16 %v304
    %v993 = vunpack.c.h.b16 %v304
    %v994 = vunpack.c.l.b16 %v305
    %v995 = vunpack.c.h.b16 %v305
    %v996 = vunpack.c.l.b16 %v306
    %v997 = vunpack.c.h.b16 %v306
    %v998 = vunpack.c.l.b16 %v307
    %v999 = vunpack.c.h.b16 %v307
    %v1000 = vunpack.c.l.b16 %v308
    %v1001 = vunpack.c.h.b16 %v308
    %v1002 = vunpack.c.l.b16 %v309
    %v1003 = vunpack.c.h.b16 %v309
    %v1004 = vunpack.c.l.b16 %v310
    %v1005 = vunpack.c.h.b16 %v310
    %v1006 = vunpack.c.l.b16 %v311
    %v1007 = vunpack.c.h.b16 %v311
    %v1008 = vunpack.c.l.b16 %v312
    %v1009 = vunpack.c.h.b16 %v312
    %v1010 = vunpack.c.l.b16 %v313
    %v1011 = vunpack.c.h.b16 %v313
    %v1012 = vunpack.c.l.b16 %v314
    %v1013 = vunpack.c.h.b16 %v314
    %v1014 = vunpack.c.l.b16 %v315
    %v1015 = vunpack.c.h.b16 %v315
    %v1016 = vunpack.c.l.b16 %v316
    %v1017 = vunpack.c.h.b16 %v316
    %v1018 = vunpack.c.l.b16 %v317
    %v1019 = vunpack.c.h.b16 %v317
    %v1020 = vunpack.c.l.b16 %v318
    %v1021 = vunpack.c.h.b16 %v318
    %v1022 = vunpack.c.l.b16 %v319
    %v1023 = vunpack.c.h.b16 %v319
    %v1024 = vunpack.c.l.b16 %v320
    %v1025 = vunpack.c.h.b16 %v320
    %v1026 = vunpack.c.l.b16 %v321
    %v1027 = vunpack.c.h.b16 %v321
    %v1028 = vunpack.c.l.b16 %v322
    %v1029 = vunpack.c.h.b16 %v322
    %v1030 = vunpack.c.l.b16 %v323
    %v1031 = vunpack.c.h.b16 %v323
    %v1032 = vunpack.c.l.b16 %v324
    %v1033 = vunpack.c.h.b16 %v324
    %v1034 = vunpack.c.l.b16 %v325
    %v1035 = vunpack.c.h.b16 %v325
    %v1036 = vunpack.c.l.b16 %v326
    %v1037 = vunpack.c.h.b16 %v326
    %v1038 = vunpack.c.l.b16 %v327
    %v1039 = vunpack.c.h.b16 %v327
    %v1040 = vunpack.c.l.b16 %v328
    %v1041 = vunpack.c.h.b16 %v328
    %v1042 = vunpack.c.l.b16 %v329
    %v1043 = vunpack.c.h.b16 %v329
    %v1044 = vunpack.c.l.b16 %v330
    %v1045 = vunpack.c.h.b16 %v330
    %v1046 = vunpack.c.l.b16 %v331
    %v1047 = vunpack.c.h.b16 %v331
    %v1048 = vunpack.c.l.b16 %v332
    %v1049 = vunpack.c.h.b16 %v332
    %v1050 = vunpack.c.l.b16 %v333
    %v1051 = vunpack.c.h.b16 %v333
    %v1052 = vunpack.c.l.b16 %v334
    %v1053 = vunpack.c.h.b16 %v334
    %v1054 = vunpack.c.l.b16 %v335
    %v1055 = vunpack.c.h.b16 %v335
    %v1056 = vunpack.c.l.b16 %v336
    %v1057 = vunpack.c.h.b16 %v336
    %v1058 = vunpack.c.l.b16 %v337
    %v1059 = vunpack.c.h.b16 %v337
    %v1060 = vunpack.c.l.b16 %v338
    %v1061 = vunpack.c.h.b16 %v338
    %v1062 = vunpack.c.l.b16 %v339
    %v1063 = vunpack.c.h.b16 %v339
    %v1064 = vunpack.c.l.b16 %v340
    %v1065 = vunpack.c.h.b16 %v340
    %v1066 = vunpack.c.l.b16 %v341
    %v1067 = vunpack.c.h.b16 %v341
    %v1068 = vunpack.c.l.b16 %v342
    %v1069 = vunpack.c.h.b16 %v342
    %v1070 = vunpack.c.l.b16 %v343
    %v1071 = vunpack.c.h.b16 %v343
    %v1072 = vunpack.c.l.b16 %v344
    %v1073 = vunpack.c.h.b16 %v344
    %v1074 = vunpack.c.l.b16 %v345
    %v1075 = vunpack.c.h.b16 %v345
    %v1076 = vunpack.c.l.b16 %v346
    %v1077 = vunpack.c.h.b16 %v346
    %v1078 = vunpack.c.l.b16 %v347
    %v1079 = vunpack.c.h.b16 %v347
    %v1080 = vunpack.c.l.b16 %v348
    %v1081 = vunpack.c.h.b16 %v348
    %v1082 = vunpack.c.l.b16 %v349
    %v1083 = vunpack.c.h.b16 %v349
    %v1084 = vunpack.c.l.b16 %v350
    %v1085 = vunpack.c.h.b16 %v350
    %v1086 = vunpack.c.l.b16 %v351
    %v1087 = vunpack.c.h.b16 %v351
    %v1088 = vunpack.c.l.b16 %v352
    %v1089 = vunpack.c.h.b16 %v352
    %v1090 = vunpack.c.l.b16 %v353
    %v1091 = vunpack.c.h.b16 %v353
    %v1092 = vunpack.c.l.b16 %v354
    %v1093 = vunpack.c.h.b16 %v354
    %v1094 = vunpack.c.l.b16 %v355
    %v1095 = vunpack.c.h.b16 %v355
    %v1096 = vunpack.c.l.b16 %v356
    %v1097 = vunpack.c.h.b16 %v356
    %v1098 = vunpack.c.l.b16 %v357
    %v1099 = vunpack.c.h.b16 %v357
    %v1100 = vunpack.c.l.b16 %v358
    %v1101 = vunpack.c.h.b16 %v358
    %v1102 = vunpack.c.l.b16 %v359
    %v1103 = vunpack.c.h.b16 %v359
    %v1104 = vunpack.c.l.b16 %v360
    %v1105 = vunpack.c.h.b16 %v360
    %v1106 = vunpack.c.l.b16 %v361
    %v1107 = vunpack.c.h.b16 %v361
    %v1108 = vunpack.c.l.b16 %v362
    %v1109 = vunpack.c.h.b16 %v362
    %v1110 = vunpack.c.l.b16 %v363
    %v1111 = vunpack.c.h.b16 %v363
    %v1112 = vunpack.c.l.b16 %v364
    %v1113 = vunpack.c.h.b16 %v364
    %v1114 = vunpack.c.l.b16 %v365
    %v1115 = vunpack.c.h.b16 %v365
    %v1116 = vunpack.c.l.b16 %v366
    %v1117 = vunpack.c.h.b16 %v366
    %v1118 = vunpack.c.l.b16 %v367
    %v1119 = vunpack.c.h.b16 %v367
    %v1120 = vunpack.c.l.b16 %v368
    %v1121 = vunpack.c.h.b16 %v368
    %v1122 = vunpack.c.l.b16 %v369
    %v1123 = vunpack.c.h.b16 %v369
    %v1124 = vunpack.c.l.b16 %v370
    %v1125 = vunpack.c.h.b16 %v370
    %v1126 = vunpack.c.l.b16 %v371
    %v1127 = vunpack.c.h.b16 %v371
    %v1128 = vunpack.c.l.b16 %v372
    %v1129 = vunpack.c.h.b16 %v372
    %v1130 = vunpack.c.l.b16 %v373
    %v1131 = vunpack.c.h.b16 %v373
    %v1132 = vunpack.c.l.b16 %v374
    %v1133 = vunpack.c.h.b16 %v374
    %v1134 = vunpack.c.l.b16 %v375
    %v1135 = vunpack.c.h.b16 %v375
    %v1136 = vunpack.c.l.b16 %v376
    %v1137 = vunpack.c.h.b16 %v376
    %v1138 = vunpack.c.l.b16 %v377
    %v1139 = vunpack.c.h.b16 %v377
    %v1140 = vunpack.c.l.b16 %v378
    %v1141 = vunpack.c.h.b16 %v378
    %v1142 = vunpack.c.l.b16 %v379
    %v1143 = vunpack.c.h.b16 %v379
    %v1144 = vunpack.c.l.b16 %v380
    %v1145 = vunpack.c.h.b16 %v380
    %v1146 = vunpack.c.l.b16 %v381
    %v1147 = vunpack.c.h.b16 %v381
    %v1148 = vunpack.c.l.b16 %v382
    %v1149 = vunpack.c.h.b16 %v382
    %v1150 = vunpack.c.l.b16 %v383
    %v1151 = vunpack.c.h.b16 %v383
    %v1152 = vunpack.c.l.b16 %v384
    %v1153 = vunpack.c.h.b16 %v384
    %v1154 = vunpack.c.l.b16 %v385
    %v1155 = vunpack.c.h.b16 %v385
    %v1156 = vunpack.c.l.b16 %v386
    %v1157 = vunpack.c.h.b16 %v386
    %v1158 = vunpack.c.l.b16 %v387
    %v1159 = vunpack.c.h.b16 %v387
    %v1160 = vunpack.c.l.b16 %v388
    %v1161 = vunpack.c.h.b16 %v388
    %v1162 = vunpack.c.l.b16 %v389
    %v1163 = vunpack.c.h.b16 %v389
    %v1164 = vunpack.c.l.b16 %v390
    %v1165 = vunpack.c.h.b16 %v390
    %v1166 = vunpack.c.l.b16 %v391
    %v1167 = vunpack.c.h.b16 %v391
    %v1168 = vunpack.c.l.b16 %v392
    %v1169 = vunpack.c.h.b16 %v392
    %v1170 = vunpack.c.l.b16 %v393
    %v1171 = vunpack.c.h.b16 %v393
    %v1172 = vunpack.c.l.b16 %v394
    %v1173 = vunpack.c.h.b16 %v394
    %v1174 = vunpack.c.l.b16 %v395
    %v1175 = vunpack.c.h.b16 %v395
    %v1176 = vunpack.c.l.b16 %v396
    %v1177 = vunpack.c.h.b16 %v396
    %v1178 = vunpack.c.l.b16 %v397
    %v1179 = vunpack.c.h.b16 %v397
    %v1180 = vunpack.c.l.b16 %v398
    %v1181 = vunpack.c.h.b16 %v398
    %v1182 = vunpack.c.l.b16 %v399
    %v1183 = vunpack.c.h.b16 %v399
    %v1184 = vunpack.c.l.b16 %v400
    %v1185 = vunpack.c.h.b16 %v400
    %v1186 = vunpack.c.l.b16 %v401
    %v1187 = vunpack.c.h.b16 %v401
    %v1188 = vunpack.c.l.b16 %v402
    %v1189 = vunpack.c.h.b16 %v402
    %v1190 = vunpack.c.l.b16 %v403
    %v1191 = vunpack.c.h.b16 %v403
    %v1192 = vunpack.c.l.b16 %v404
    %v1193 = vunpack.c.h.b16 %v404
    %v1194 = vunpack.c.l.b16 %v405
    %v1195 = vunpack.c.h.b16 %v405
    %v1196 = vpack.c.b16 %v688, %v684
    %v1197 = vpack.c.b16 %v689, %v685
    %v1198 = vpack.c.b16 %v690, %v686
    %v1199 = vpack.c.b16 %v691, %v687
    %v1200 = vpack.c.b16 %v696, %v692
    %v1201 = vpack.c.b16 %v697, %v693
    %v1202 = vpack.c.b16 %v698, %v694
    %v1203 = vpack.c.b16 %v699, %v695
    %v1204 = vpack.c.b16 %v704, %v700
    %v1205 = vpack.c.b16 %v705, %v701
    %v1206 = vpack.c.b16 %v706, %v702
    %v1207 = vpack.c.b16 %v707, %v703
    %v1208 = vpack.c.b16 %v712, %v708
    %v1209 = vpack.c.b16 %v713, %v709
    %v1210 = vpack.c.b16 %v714, %v710
    %v1211 = vpack.c.b16 %v715, %v711
    %v1212 = vpack.c.b16 %v720, %v716
    %v1213 = vpack.c.b16 %v721, %v717
    %v1214 = vpack.c.b16 %v722, %v718
    %v1215 = vpack.c.b16 %v723, %v719
    %v1216 = vpack.c.b16 %v728, %v724
    %v1217 = vpack.c.b16 %v729, %v725
    %v1218 = vpack.c.b16 %v730, %v726
    %v1219 = vpack.c.b16 %v731, %v727
    %v1220 = vpack.c.b16 %v736, %v732
    %v1221 = vpack.c.b16 %v737, %v733
    %v1222 = vpack.c.b16 %v738, %v734
    %v1223 = vpack.c.b16 %v739, %v735
    %v1224 = vpack.c.b16 %v744, %v740
    %v1225 = vpack.c.b16 %v745, %v741
    %v1226 = vpack.c.b16 %v746, %v742
    %v1227 = vpack.c.b16 %v747, %v743
    %v1228 = vpack.c.b16 %v752, %v748
    %v1229 = vpack.c.b16 %v753, %v749
    %v1230 = vpack.c.b16 %v754, %v750
    %v1231 = vpack.c.b16 %v755, %v751
    %v1232 = vpack.c.b16 %v760, %v756
    %v1233 = vpack.c.b16 %v761, %v757
    %v1234 = vpack.c.b16 %v762, %v758
    %v1235 = vpack.c.b16 %v763, %v759
    %v1236 = vpack.c.b16 %v768, %v764
    %v1237 = vpack.c.b16 %v769, %v765
    %v1238 = vpack.c.b16 %v770, %v766
    %v1239 = vpack.c.b16 %v771, %v767
    %v1240 = vpack.c.b16 %v776, %v772
    %v1241 = vpack.c.b16 %v777, %v773
    %v1242 = vpack.c.b16 %v778, %v774
    %v1243 = vpack.c.b16 %v779, %v775
    %v1244 = vpack.c.b16 %v784, %v780
    %v1245 = vpack.c.b16 %v785, %v781
    %v1246 = vpack.c.b16 %v786, %v782
    %v1247 = vpack.c.b16 %v787, %v783
    %v1248 = vpack.c.b16 %v792, %v788
    %v1249 = vpack.c.b16 %v793, %v789
    %v1250 = vpack.c.b16 %v794, %v790
    %v1251 = vpack.c.b16 %v795, %v791
    %v1252 = vpack.c.b16 %v800, %v796
    %v1253 = vpack.c.b16 %v801, %v797
    %v1254 = vpack.c.b16 %v802, %v798
    %v1255 = vpack.c.b16 %v803, %v799
    %v1256 = vpack.c.b16 %v808, %v804
    %v1257 = vpack.c.b16 %v809, %v805
    %v1258 = vpack.c.b16 %v810, %v806
    %v1259 = vpack.c.b16 %v811, %v807
    %v1260 = vpack.c.b16 %v816, %v812
    %v1261 = vpack.c.b16 %v817, %v813
    %v1262 = vpack.c.b16 %v818, %v814
    %v1263 = vpack.c.b16 %v819, %v815
    %v1264 = vpack.c.b16 %v824, %v820
    %v1265 = vpack.c.b16 %v825, %v821
    %v1266 = vpack.c.b16 %v826, %v822
    %v1267 = vpack.c.b16 %v827, %v823
    %v1268 = vpack.c.b16 %v832, %v828
    %v1269 = vpack.c.b16 %v833, %v829
    %v1270 = vpack.c.b16 %v834, %v830
    %v1271 = vpack.c.b16 %v835, %v831
    %v1272 = vpack.c.b16 %v840, %v836
    %v1273 = vpack.c.b16 %v841, %v837
    %v1274 = vpack.c.b16 %v842, %v838
    %v1275 = vpack.c.b16 %v843, %v839
    %v1276 = vpack.c.b16 %v848, %v844
    %v1277 = vpack.c.b16 %v849, %v845
    %v1278 = vpack.c.b16 %v850, %v846
    %v1279 = vpack.c.b16 %v851, %v847
    %v1280 = vpack.c.b16 %v856, %v852
    %v1281 = vpack.c.b16 %v857, %v853
    %v1282 = vpack.c.b16 %v858, %v854
    %v1283 = vpack.c.b16 %v859, %v855
    %v1284 = vpack.c.b16 %v864, %v860
    %v1285 = vpack.c.b16 %v865, %v861
    %v1286 = vpack.c.b16 %v866, %v862
    %v1287 = vpack.c.b16 %v867, %v863
    %v1288 = vpack.c.b16 %v872, %v868
    %v1289 = vpack.c.b16 %v873, %v869
    %v1290 = vpack.c.b16 %v874, %v870
    %v1291 = vpack.c.b16 %v875, %v871
    %v1292 = vpack.c.b16 %v880, %v876
    %v1293 = vpack.c.b16 %v881, %v877
    %v1294 = vpack.c.b16 %v882, %v878
    %v1295 = vpack.c.b16 %v883, %v879
    %v1296 = vpack.c.b16 %v888, %v884
    %v1297 = vpack.c.b16 %v889, %v885
    %v1298 = vpack.c.b16 %v890, %v886
    %v1299 = vpack.c.b16 %v891, %v887
    %v1300 = vpack.c.b16 %v896, %v892
    %v1301 = vpack.c.b16 %v897, %v893
    %v1302 = vpack.c.b16 %v898, %v894
    %v1303 = vpack.c.b16 %v899, %v895
    %v1304 = vpack.c.b16 %v904, %v900
    %v1305 = vpack.c.b16 %v905, %v901
    %v1306 = vpack.c.b16 %v906, %v902
    %v1307 = vpack.c.b16 %v907, %v903
    %v1308 = vpack.c.b16 %v912, %v908
    %v1309 = vpack.c.b16 %v913, %v909
    %v1310 = vpack.c.b16 %v914, %v910
    %v1311 = vpack.c.b16 %v915, %v911
    %v1312 = vpack.c.b16 %v920, %v916
    %v1313 = vpack.c.b16 %v921, %v917
    %v1314 = vpack.c.b16 %v922, %v918
    %v1315 = vpack.c.b16 %v923, %v919
    %v1316 = vpack.c.b16 %v928, %v924
    %v1317 = vpack.c.b16 %v929, %v925
    %v1318 = vpack.c.b16 %v930, %v926
    %v1319 = vpack.c.b16 %v931, %v927
    %v1320 = vpack.c.b16 %v936, %v932
    %v1321 = vpack.c.b16 %v937, %v933
    %v1322 = vpack.c.b16 %v938, %v934
    %v1323 = vpack.c.b16 %v939, %v935
    %v1324 = vpack.c.b16 %v944, %v940
    %v1325 = vpack.c.b16 %v945, %v941
    %v1326 = vpack.c.b16 %v946, %v942
    %v1327 = vpack.c.b16 %v947, %v943
    %v1328 = vpack.c.b16 %v952, %v948
    %v1329 = vpack.c.b16 %v953, %v949
    %v1330 = vpack.c.b16 %v954, %v950
    %v1331 = vpack.c.b16 %v955, %v951
    %v1332 = vpack.c.b16 %v960, %v956
    %v1333 = vpack.c.b16 %v961, %v957
    %v1334 = vpack.c.b16 %v962, %v958
    %v1335 = vpack.c.b16 %v963, %v959
    %v1336 = vpack.c.b16 %v968, %v964
    %v1337 = vpack.c.b16 %v969, %v965
    %v1338 = vpack.c.b16 %v970, %v966
    %v1339 = vpack.c.b16 %v971, %v967
    %v1340 = vpack.c.b16 %v976, %v972
    %v1341 = vpack.c.b16 %v977, %v973
    %v1342 = vpack.c.b16 %v978, %v974
    %v1343 = vpack.c.b16 %v979, %v975
    %v1344 = vpack.c.b16 %v984, %v980
    %v1345 = vpack.c.b16 %v985, %v981
    %v1346 = vpack.c.b16 %v986, %v982
    %v1347 = vpack.c.b16 %v987, %v983
    %v1348 = vpack.c.b16 %v992, %v988
    %v1349 = vpack.c.b16 %v993, %v989
    %v1350 = vpack.c.b16 %v994, %v990
    %v1351 = vpack.c.b16 %v995, %v991
    %v1352 = vpack.c.b16 %v1000, %v996
    %v1353 = vpack.c.b16 %v1001, %v997
    %v1354 = vpack.c.b16 %v1002, %v998
    %v1355 = vpack.c.b16 %v1003, %v999
    %v1356 = vpack.c.b16 %v1008, %v1004
    %v1357 = vpack.c.b16 %v1009, %v1005
    %v1358 = vpack.c.b16 %v1010, %v1006
    %v1359 = vpack.c.b16 %v1011, %v1007
    %v1360 = vpack.c.b16 %v1016, %v1012
    %v1361 = vpack.c.b16 %v1017, %v1013
    %v1362 = vpack.c.b16 %v1018, %v1014
    %v1363 = vpack.c.b16 %v1019, %v1015
    %v1364 = vpack.c.b16 %v1024, %v1020
    %v1365 = vpack.c.b16 %v1025, %v1021
    %v1366 = vpack.c.b16 %v1026, %v1022
    %v1367 = vpack.c.b16 %v1027, %v1023
    %v1368 = vpack.c.b16 %v1032, %v1028
    %v1369 = vpack.c.b16 %v1033, %v1029
    %v1370 = vpack.c.b16 %v1034, %v1030
    %v1371 = vpack.c.b16 %v1035, %v1031
    %v1372 = vpack.c.b16 %v1040, %v1036
    %v1373 = vpack.c.b16 %v1041, %v1037
    %v1374 = vpack.c.b16 %v1042, %v1038
    %v1375 = vpack.c.b16 %v1043, %v1039
    %v1376 = vpack.c.b16 %v1048, %v1044
    %v1377 = vpack.c.b16 %v1049, %v1045
    %v1378 = vpack.c.b16 %v1050, %v1046
    %v1379 = vpack.c.b16 %v1051, %v1047
    %v1380 = vpack.c.b16 %v1056, %v1052
    %v1381 = vpack.c.b16 %v1057, %v1053
    %v1382 = vpack.c.b16 %v1058, %v1054
    %v1383 = vpack.c.b16 %v1059, %v1055
    %v1384 = vpack.c.b16 %v1064, %v1060
    %v1385 = vpack.c.b16 %v1065, %v1061
    %v1386 = vpack.c.b16 %v1066, %v1062
    %v1387 = vpack.c.b16 %v1067, %v1063
    %v1388 = vpack.c.b16 %v1072, %v1068
    %v1389 = vpack.c.b16 %v1073, %v1069
    %v1390 = vpack.c.b16 %v1074, %v1070
    %v1391 = vpack.c.b16 %v1075, %v1071
    %v1392 = vpack.c.b16 %v1080, %v1076
    %v1393 = vpack.c.b16 %v1081, %v1077
    %v1394 = vpack.c.b16 %v1082, %v1078
    %v1395 = vpack.c.b16 %v1083, %v1079
    %v1396 = vpack.c.b16 %v1088, %v1084
    %v1397 = vpack.c.b16 %v1089, %v1085
    %v1398 = vpack.c.b16 %v1090, %v1086
    %v1399 = vpack.c.b16 %v1091, %v1087
    %v1400 = vpack.c.b16 %v1096, %v1092
    %v1401 = vpack.c.b16 %v1097, %v1093
    %v1402 = vpack.c.b16 %v1098, %v1094
    %v1403 = vpack.c.b16 %v1099, %v1095
    %v1404 = vpack.c.b16 %v1104, %v1100
    %v1405 = vpack.c.b16 %v1105, %v1101
    %v1406 = vpack.c.b16 %v1106, %v1102
    %v1407 = vpack.c.b16 %v1107, %v1103
    %v1408 = vpack.c.b16 %v1112, %v1108
    %v1409 = vpack.c.b16 %v1113, %v1109
    %v1410 = vpack.c.b16 %v1114, %v1110
    %v1411 = vpack.c.b16 %v1115, %v1111
    %v1412 = vpack.c.b16 %v1120, %v1116
    %v1413 = vpack.c.b16 %v1121, %v1117
    %v1414 = vpack.c.b16 %v1122, %v1118
    %v1415 = vpack.c.b16 %v1123, %v1119
    %v1416 = vpack.c.b16 %v1128, %v1124
    %v1417 = vpack.c.b16 %v1129, %v1125
    %v1418 = vpack.c.b16 %v1130, %v1126
    %v1419 = vpack.c.b16 %v1131, %v1127
    %v1420 = vpack.c.b16 %v1136, %v1132
    %v1421 = vpack.c.b16 %v1137, %v1133
    %v1422 = vpack.c.b16 %v1138, %v1134
    %v1423 = vpack.c.b16 %v1139, %v1135
    %v1424 = vpack.c.b16 %v1144, %v1140
    %v1425 = vpack.c.b16 %v1145, %v1141
    %v1426 = vpack.c.b16 %v1146, %v1142
    %v1427 = vpack.c.b16 %v1147, %v1143
    %v1428 = vpack.c.b16 %v1152, %v1148
    %v1429 = vpack.c.b16 %v1153, %v1149
    %v1430 = vpack.c.b16 %v1154, %v1150
    %v1431 = vpack.c.b16 %v1155, %v1151
    %v1432 = vpack.c.b16 %v1160, %v1156
    %v1433 = vpack.c.b16 %v1161, %v1157
    %v1434 = vpack.c.b16 %v1162, %v1158
    %v1435 = vpack.c.b16 %v1163, %v1159
    %v1436 = vpack.c.b16 %v1168, %v1164
    %v1437 = vpack.c.b16 %v1169, %v1165
    %v1438 = vpack.c.b16 %v1170, %v1166
    %v1439 = vpack.c.b16 %v1171, %v1167
    %v1440 = vpack.c.b16 %v1176, %v1172
    %v1441 = vpack.c.b16 %v1177, %v1173
    %v1442 = vpack.c.b16 %v1178, %v1174
    %v1443 = vpack.c.b16 %v1179, %v1175
    %v1444 = vpack.c.b16 %v1184, %v1180
    %v1445 = vpack.c.b16 %v1185, %v1181
    %v1446 = vpack.c.b16 %v1186, %v1182
    %v1447 = vpack.c.b16 %v1187, %v1183
    %v1448 = vpack.c.b16 %v1192, %v1188
    %v1449 = vpack.c.b16 %v1193, %v1189
    %v1450 = vpack.c.b16 %v1194, %v1190
    %v1451 = vpack.c.b16 %v1195, %v1191
    %1708 = vmatprep.subr.bf16.mxu0 %v1197
    %1709 = vmatpush1.bf16.msra.mxu0 %v1196
    %1710 = vmatprep.subr.bf16.mxu0 %v1201
    %1711 = vmatpush1.bf16.msra.mxu0 %v1200
    %1712 = vmatprep.subr.bf16.mxu0 %v1205
    %1713 = vmatpush1.bf16.msra.mxu0 %v1204
    %1714 = vmatprep.subr.bf16.mxu0 %v1209
    %1715 = vmatpush1.bf16.msra.mxu0 %v1208
    %1716 = vmatprep.subr.bf16.mxu0 %v1213
    %1717 = vmatpush1.bf16.msra.mxu0 %v1212
    %1718 = vmatprep.subr.bf16.mxu0 %v1217
    %1719 = vmatpush1.bf16.msra.mxu0 %v1216
    %1720 = vmatprep.subr.bf16.mxu0 %v1221
    %1721 = vmatpush1.bf16.msra.mxu0 %v1220
    %1722 = vmatprep.subr.bf16.mxu0 %v1225
    %1723 = vmatpush1.bf16.msra.mxu0 %v1224
    %1724 = vmatprep.subr.bf16.mxu0 %v1229
    %1725 = vmatpush1.bf16.msra.mxu0 %v1228
    %1726 = vmatprep.subr.bf16.mxu0 %v1233
    %1727 = vmatpush1.bf16.msra.mxu0 %v1232
    %1728 = vmatprep.subr.bf16.mxu0 %v1237
    %1729 = vmatpush1.bf16.msra.mxu0 %v1236
    %1730 = vmatprep.subr.bf16.mxu0 %v1241
    %1731 = vmatpush1.bf16.msra.mxu0 %v1240
    %1732 = vmatprep.subr.bf16.mxu0 %v1245
    %1733 = vmatpush1.bf16.msra.mxu0 %v1244
    %1734 = vmatprep.subr.bf16.mxu0 %v1249
    %1735 = vmatpush1.bf16.msra.mxu0 %v1248
    %1736 = vmatprep.subr.bf16.mxu0 %v1253
    %1737 = vmatpush1.bf16.msra.mxu0 %v1252
    %1738 = vmatprep.subr.bf16.mxu0 %v1257
    %1739 = vmatpush1.bf16.msra.mxu0 %v1256
    %1740 = vmatprep.mubr.bf16.mxu0 %v143
    %1741 = vmatmul.mubr.bf16.gmra.mrb[0].mxu0 %v142
    %v1742 = vpop.f32.mrb[0].mxu0
    %v1743 = vadd.f32 %v411, %v1742
    %v1744 = vpop.f32.mrb[0].mxu0
    %v1745 = vadd.f32 %v415, %v1744
    %v1746 = vpop.f32.mrb[0].mxu0
    %v1747 = vpop.f32.mrb[0].mxu0
    %1748 = vdwg.mxu0
    %1749 = vmatprep.subr.bf16.mxu0 %v1261
    %1750 = vmatpush1.bf16.msra.mxu0 %v1260
    %1751 = vmatprep.subr.bf16.mxu0 %v1265
    %1752 = vmatpush1.bf16.msra.mxu0 %v1264
    %1753 = vmatprep.subr.bf16.mxu0 %v1269
    %1754 = vmatpush1.bf16.msra.mxu0 %v1268
    %1755 = vmatprep.subr.bf16.mxu0 %v1273
    %1756 = vmatpush1.bf16.msra.mxu0 %v1272
    %1757 = vmatprep.subr.bf16.mxu0 %v1277
    %1758 = vmatpush1.bf16.msra.mxu0 %v1276
    %1759 = vmatprep.subr.bf16.mxu0 %v1281
    %1760 = vmatpush1.bf16.msra.mxu0 %v1280
    %1761 = vmatprep.subr.bf16.mxu0 %v1285
    %1762 = vmatpush1.bf16.msra.mxu0 %v1284
    %1763 = vmatprep.subr.bf16.mxu0 %v1289
    %1764 = vmatpush1.bf16.msra.mxu0 %v1288
    %1765 = vmatprep.subr.bf16.mxu0 %v1293
    %1766 = vmatpush1.bf16.msra.mxu0 %v1292
    %1767 = vmatprep.subr.bf16.mxu0 %v1297
    %1768 = vmatpush1.bf16.msra.mxu0 %v1296
    %1769 = vmatprep.subr.bf16.mxu0 %v1301
    %1770 = vmatpush1.bf16.msra.mxu0 %v1300
    %1771 = vmatprep.subr.bf16.mxu0 %v1305
    %1772 = vmatpush1.bf16.msra.mxu0 %v1304
    %1773 = vmatprep.subr.bf16.mxu0 %v1309
    %1774 = vmatpush1.bf16.msra.mxu0 %v1308
    %1775 = vmatprep.subr.bf16.mxu0 %v1313
    %1776 = vmatpush1.bf16.msra.mxu0 %v1312
    %1777 = vmatprep.subr.bf16.mxu0 %v1317
    %1778 = vmatpush1.bf16.msra.mxu0 %v1316
    %1779 = vmatprep.subr.bf16.mxu0 %v1321
    %1780 = vmatpush1.bf16.msra.mxu0 %v1320
    %1781 = vmatprep.mubr.bf16.mxu0 %v145
    %1782 = vmatmul.mubr.bf16.gmra.mrb[0].mxu0 %v144
    %v1783 = vpop.f32.mrb[0].mxu0
    %v1784 = vadd.f32 %v1743, %v1783
    %v1785 = vpop.f32.mrb[0].mxu0
    %v1786 = vadd.f32 %v1745, %v1785
    %v1787 = vpop.f32.mrb[0].mxu0
    %v1788 = vpop.f32.mrb[0].mxu0
    %1789 = vdwg.mxu0
    %1790 = vmatprep.subr.bf16.mxu0 %v1325
    %1791 = vmatpush1.bf16.msra.mxu0 %v1324
    %1792 = vmatprep.subr.bf16.mxu0 %v1329
    %1793 = vmatpush1.bf16.msra.mxu0 %v1328
    %1794 = vmatprep.subr.bf16.mxu0 %v1333
    %1795 = vmatpush1.bf16.msra.mxu0 %v1332
    %1796 = vmatprep.subr.bf16.mxu0 %v1337
    %1797 = vmatpush1.bf16.msra.mxu0 %v1336
    %1798 = vmatprep.subr.bf16.mxu0 %v1341
    %1799 = vmatpush1.bf16.msra.mxu0 %v1340
    %1800 = vmatprep.subr.bf16.mxu0 %v1345
    %1801 = vmatpush1.bf16.msra.mxu0 %v1344
    %1802 = vmatprep.subr.bf16.mxu0 %v1349
    %1803 = vmatpush1.bf16.msra.mxu0 %v1348
    %1804 = vmatprep.subr.bf16.mxu0 %v1353
    %1805 = vmatpush1.bf16.msra.mxu0 %v1352
    %1806 = vmatprep.subr.bf16.mxu0 %v1357
    %1807 = vmatpush1.bf16.msra.mxu0 %v1356
    %1808 = vmatprep.subr.bf16.mxu0 %v1361
    %1809 = vmatpush1.bf16.msra.mxu0 %v1360
    %1810 = vmatprep.subr.bf16.mxu0 %v1365
    %1811 = vmatpush1.bf16.msra.mxu0 %v1364
    %1812 = vmatprep.subr.bf16.mxu0 %v1369
    %1813 = vmatpush1.bf16.msra.mxu0 %v1368
    %1814 = vmatprep.subr.bf16.mxu0 %v1373
    %1815 = vmatpush1.bf16.msra.mxu0 %v1372
    %1816 = vmatprep.subr.bf16.mxu0 %v1377
    %1817 = vmatpush1.bf16.msra.mxu0 %v1376
    %1818 = vmatprep.subr.bf16.mxu0 %v1381
    %1819 = vmatpush1.bf16.msra.mxu0 %v1380
    %1820 = vmatprep.subr.bf16.mxu0 %v1385
    %1821 = vmatpush1.bf16.msra.mxu0 %v1384
    %1822 = vmatprep.mubr.bf16.mxu0 %v147
    %1823 = vmatmul.mubr.bf16.gmra.mrb[0].mxu0 %v146
    %v1824 = vpop.f32.mrb[0].mxu0
    %v1825 = vadd.f32 %v1784, %v1824
    %v1826 = vpop.f32.mrb[0].mxu0
    %v1827 = vadd.f32 %v1786, %v1826
    %v1828 = vpop.f32.mrb[0].mxu0
    %v1829 = vpop.f32.mrb[0].mxu0
    %1830 = vdwg.mxu0
    %1831 = vmatprep.subr.bf16.mxu0 %v1389
    %1832 = vmatpush1.bf16.msra.mxu0 %v1388
    %1833 = vmatprep.subr.bf16.mxu0 %v1393
    %1834 = vmatpush1.bf16.msra.mxu0 %v1392
    %1835 = vmatprep.subr.bf16.mxu0 %v1397
    %1836 = vmatpush1.bf16.msra.mxu0 %v1396
    %1837 = vmatprep.subr.bf16.mxu0 %v1401
    %1838 = vmatpush1.bf16.msra.mxu0 %v1400
    %1839 = vmatprep.subr.bf16.mxu0 %v1405
    %1840 = vmatpush1.bf16.msra.mxu0 %v1404
    %1841 = vmatprep.subr.bf16.mxu0 %v1409
    %1842 = vmatpush1.bf16.msra.mxu0 %v1408
    %1843 = vmatprep.subr.bf16.mxu0 %v1413
    %1844 = vmatpush1.bf16.msra.mxu0 %v1412
    %1845 = vmatprep.subr.bf16.mxu0 %v1417
    %1846 = vmatpush1.bf16.msra.mxu0 %v1416
    %1847 = vmatprep.subr.bf16.mxu0 %v1421
    %1848 = vmatpush1.bf16.msra.mxu0 %v1420
    %1849 = vmatprep.subr.bf16.mxu0 %v1425
    %1850 = vmatpush1.bf16.msra.mxu0 %v1424
    %1851 = vmatprep.subr.bf16.mxu0 %v1429
    %1852 = vmatpush1.bf16.msra.mxu0 %v1428
    %1853 = vmatprep.subr.bf16.mxu0 %v1433
    %1854 = vmatpush1.bf16.msra.mxu0 %v1432
    %1855 = vmatprep.subr.bf16.mxu0 %v1437
    %1856 = vmatpush1.bf16.msra.mxu0 %v1436
    %1857 = vmatprep.subr.bf16.mxu0 %v1441
    %1858 = vmatpush1.bf16.msra.mxu0 %v1440
    %1859 = vmatprep.subr.bf16.mxu0 %v1445
    %1860 = vmatpush1.bf16.msra.mxu0 %v1444
    %1861 = vmatprep.subr.bf16.mxu0 %v1449
    %1862 = vmatpush1.bf16.msra.mxu0 %v1448
    %1863 = vmatprep.mubr.bf16.mxu0 %v149
    %1864 = vmatmul.mubr.bf16.gmra.mrb[0].mxu0 %v148
    %v1865 = vpop.f32.mrb[0].mxu0
    %v1866 = vadd.f32 %v1825, %v1865
    %v1867 = vpop.f32.mrb[0].mxu0
    %v1868 = vadd.f32 %v1827, %v1867
    %v1869 = vpop.f32.mrb[0].mxu0
    %v1870 = vpop.f32.mrb[0].mxu0
    %1871 = vdwg.mxu0
    %1872 = vmatprep.subr.bf16.mxu0 %v1199
    %1873 = vmatpush1.bf16.msra.mxu0 %v1198
    %1874 = vmatprep.subr.bf16.mxu0 %v1203
    %1875 = vmatpush1.bf16.msra.mxu0 %v1202
    %1876 = vmatprep.subr.bf16.mxu0 %v1207
    %1877 = vmatpush1.bf16.msra.mxu0 %v1206
    %1878 = vmatprep.subr.bf16.mxu0 %v1211
    %1879 = vmatpush1.bf16.msra.mxu0 %v1210
    %1880 = vmatprep.subr.bf16.mxu0 %v1215
    %1881 = vmatpush1.bf16.msra.mxu0 %v1214
    %1882 = vmatprep.subr.bf16.mxu0 %v1219
    %1883 = vmatpush1.bf16.msra.mxu0 %v1218
    %1884 = vmatprep.subr.bf16.mxu0 %v1223
    %1885 = vmatpush1.bf16.msra.mxu0 %v1222
    %1886 = vmatprep.subr.bf16.mxu0 %v1227
    %1887 = vmatpush1.bf16.msra.mxu0 %v1226
    %1888 = vmatprep.subr.bf16.mxu0 %v1231
    %1889 = vmatpush1.bf16.msra.mxu0 %v1230
    %1890 = vmatprep.subr.bf16.mxu0 %v1235
    %1891 = vmatpush1.bf16.msra.mxu0 %v1234
    %1892 = vmatprep.subr.bf16.mxu0 %v1239
    %1893 = vmatpush1.bf16.msra.mxu0 %v1238
    %1894 = vmatprep.subr.bf16.mxu0 %v1243
    %1895 = vmatpush1.bf16.msra.mxu0 %v1242
    %1896 = vmatprep.subr.bf16.mxu0 %v1247
    %1897 = vmatpush1.bf16.msra.mxu0 %v1246
    %1898 = vmatprep.subr.bf16.mxu0 %v1251
    %1899 = vmatpush1.bf16.msra.mxu0 %v1250
    %1900 = vmatprep.subr.bf16.mxu0 %v1255
    %1901 = vmatpush1.bf16.msra.mxu0 %v1254
    %1902 = vmatprep.subr.bf16.mxu0 %v1259
    %1903 = vmatpush1.bf16.msra.mxu0 %v1258
    %1904 = vmatprep.mubr.bf16.mxu0 %v143
    %1905 = vmatmul.mubr.bf16.gmra.mrb[0].mxu0 %v142
    %v1906 = vpop.f32.mrb[0].mxu0
    %v1907 = vadd.f32 %v419, %v1906
    %v1908 = vpop.f32.mrb[0].mxu0
    %v1909 = vadd.f32 %v423, %v1908
    %v1910 = vpop.f32.mrb[0].mxu0
    %v1911 = vpop.f32.mrb[0].mxu0
    %1912 = vdwg.mxu0
    %1913 = vmatprep.subr.bf16.mxu0 %v1263
    %1914 = vmatpush1.bf16.msra.mxu0 %v1262
    %1915 = vmatprep.subr.bf16.mxu0 %v1267
    %1916 = vmatpush1.bf16.msra.mxu0 %v1266
    %1917 = vmatprep.subr.bf16.mxu0 %v1271
    %1918 = vmatpush1.bf16.msra.mxu0 %v1270
    %1919 = vmatprep.subr.bf16.mxu0 %v1275
    %1920 = vmatpush1.bf16.msra.mxu0 %v1274
    %1921 = vmatprep.subr.bf16.mxu0 %v1279
    %1922 = vmatpush1.bf16.msra.mxu0 %v1278
    %1923 = vmatprep.subr.bf16.mxu0 %v1283
    %1924 = vmatpush1.bf16.msra.mxu0 %v1282
    %1925 = vmatprep.subr.bf16.mxu0 %v1287
    %1926 = vmatpush1.bf16.msra.mxu0 %v1286
    %1927 = vmatprep.subr.bf16.mxu0 %v1291
    %1928 = vmatpush1.bf16.msra.mxu0 %v1290
    %1929 = vmatprep.subr.bf16.mxu0 %v1295
    %1930 = vmatpush1.bf16.msra.mxu0 %v1294
    %1931 = vmatprep.subr.bf16.mxu0 %v1299
    %1932 = vmatpush1.bf16.msra.mxu0 %v1298
    %1933 = vmatprep.subr.bf16.mxu0 %v1303
    %1934 = vmatpush1.bf16.msra.mxu0 %v1302
    %1935 = vmatprep.subr.bf16.mxu0 %v1307
    %1936 = vmatpush1.bf16.msra.mxu0 %v1306
    %1937 = vmatprep.subr.bf16.mxu0 %v1311
    %1938 = vmatpush1.bf16.msra.mxu0 %v1310
    %1939 = vmatprep.subr.bf16.mxu0 %v1315
    %1940 = vmatpush1.bf16.msra.mxu0 %v1314
    %1941 = vmatprep.subr.bf16.mxu0 %v1319
    %1942 = vmatpush1.bf16.msra.mxu0 %v1318
    %1943 = vmatprep.subr.bf16.mxu0 %v1323
    %1944 = vmatpush1.bf16.msra.mxu0 %v1322
    %1945 = vmatprep.mubr.bf16.mxu0 %v145
    %1946 = vmatmul.mubr.bf16.gmra.mrb[0].mxu0 %v144
    %v1947 = vpop.f32.mrb[0].mxu0
    %v1948 = vadd.f32 %v1907, %v1947
    %v1949 = vpop.f32.mrb[0].mxu0
    %v1950 = vadd.f32 %v1909, %v1949
    %v1951 = vpop.f32.mrb[0].mxu0
    %v1952 = vpop.f32.mrb[0].mxu0
    %1953 = vdwg.mxu0
    %1954 = vmatprep.subr.bf16.mxu0 %v1327
    %1955 = vmatpush1.bf16.msra.mxu0 %v1326
    %1956 = vmatprep.subr.bf16.mxu0 %v1331
    %1957 = vmatpush1.bf16.msra.mxu0 %v1330
    %1958 = vmatprep.subr.bf16.mxu0 %v1335
    %1959 = vmatpush1.bf16.msra.mxu0 %v1334
    %1960 = vmatprep.subr.bf16.mxu0 %v1339
    %1961 = vmatpush1.bf16.msra.mxu0 %v1338
    %1962 = vmatprep.subr.bf16.mxu0 %v1343
    %1963 = vmatpush1.bf16.msra.mxu0 %v1342
    %1964 = vmatprep.subr.bf16.mxu0 %v1347
    %1965 = vmatpush1.bf16.msra.mxu0 %v1346
    %1966 = vmatprep.subr.bf16.mxu0 %v1351
    %1967 = vmatpush1.bf16.msra.mxu0 %v1350
    %1968 = vmatprep.subr.bf16.mxu0 %v1355
    %1969 = vmatpush1.bf16.msra.mxu0 %v1354
    %1970 = vmatprep.subr.bf16.mxu0 %v1359
    %1971 = vmatpush1.bf16.msra.mxu0 %v1358
    %1972 = vmatprep.subr.bf16.mxu0 %v1363
    %1973 = vmatpush1.bf16.msra.mxu0 %v1362
    %1974 = vmatprep.subr.bf16.mxu0 %v1367
    %1975 = vmatpush1.bf16.msra.mxu0 %v1366
    %1976 = vmatprep.subr.bf16.mxu0 %v1371
    %1977 = vmatpush1.bf16.msra.mxu0 %v1370
    %1978 = vmatprep.subr.bf16.mxu0 %v1375
    %1979 = vmatpush1.bf16.msra.mxu0 %v1374
    %1980 = vmatprep.subr.bf16.mxu0 %v1379
    %1981 = vmatpush1.bf16.msra.mxu0 %v1378
    %1982 = vmatprep.subr.bf16.mxu0 %v1383
    %1983 = vmatpush1.bf16.msra.mxu0 %v1382
    %1984 = vmatprep.subr.bf16.mxu0 %v1387
    %1985 = vmatpush1.bf16.msra.mxu0 %v1386
    %1986 = vmatprep.mubr.bf16.mxu0 %v147
    %1987 = vmatmul.mubr.bf16.gmra.mrb[0].mxu0 %v146
    %v1988 = vpop.f32.mrb[0].mxu0
    %v1989 = vadd.f32 %v1948, %v1988
    %v1990 = vpop.f32.mrb[0].mxu0
    %v1991 = vadd.f32 %v1950, %v1990
    %v1992 = vpop.f32.mrb[0].mxu0
    %v1993 = vpop.f32.mrb[0].mxu0
    %1994 = vdwg.mxu0
    %1995 = vmatprep.subr.bf16.mxu0 %v1391
    %1996 = vmatpush1.bf16.msra.mxu0 %v1390
    %1997 = vmatprep.subr.bf16.mxu0 %v1395
    %1998 = vmatpush1.bf16.msra.mxu0 %v1394
    %1999 = vmatprep.subr.bf16.mxu0 %v1399
    %2000 = vmatpush1.bf16.msra.mxu0 %v1398
    %2001 = vmatprep.subr.bf16.mxu0 %v1403
    %2002 = vmatpush1.bf16.msra.mxu0 %v1402
    %2003 = vmatprep.subr.bf16.mxu0 %v1407
    %2004 = vmatpush1.bf16.msra.mxu0 %v1406
    %2005 = vmatprep.subr.bf16.mxu0 %v1411
    %2006 = vmatpush1.bf16.msra.mxu0 %v1410
    %2007 = vmatprep.subr.bf16.mxu0 %v1415
    %2008 = vmatpush1.bf16.msra.mxu0 %v1414
    %2009 = vmatprep.subr.bf16.mxu0 %v1419
    %2010 = vmatpush1.bf16.msra.mxu0 %v1418
    %2011 = vmatprep.subr.bf16.mxu0 %v1423
    %2012 = vmatpush1.bf16.msra.mxu0 %v1422
    %2013 = vmatprep.subr.bf16.mxu0 %v1427
    %2014 = vmatpush1.bf16.msra.mxu0 %v1426
    %2015 = vmatprep.subr.bf16.mxu0 %v1431
    %2016 = vmatpush1.bf16.msra.mxu0 %v1430
    %2017 = vmatprep.subr.bf16.mxu0 %v1435
    %2018 = vmatpush1.bf16.msra.mxu0 %v1434
    %2019 = vmatprep.subr.bf16.mxu0 %v1439
    %2020 = vmatpush1.bf16.msra.mxu0 %v1438
    %2021 = vmatprep.subr.bf16.mxu0 %v1443
    %2022 = vmatpush1.bf16.msra.mxu0 %v1442
    %2023 = vmatprep.subr.bf16.mxu0 %v1447
    %2024 = vmatpush1.bf16.msra.mxu0 %v1446
    %2025 = vmatprep.subr.bf16.mxu0 %v1451
    %2026 = vmatpush1.bf16.msra.mxu0 %v1450
    %2027 = vmatprep.mubr.bf16.mxu0 %v149
    %2028 = vmatmul.mubr.bf16.gmra.mrb[0].mxu0 %v148
    %v2029 = vpop.f32.mrb[0].mxu0
    %v2030 = vadd.f32 %v1989, %v2029
    %v2031 = vpop.f32.mrb[0].mxu0
    %v2032 = vadd.f32 %v1991, %v2031
    %v2033 = vpop.f32.mrb[0].mxu0
    %v2034 = vpop.f32.mrb[0].mxu0
    %2035 = vdwg.mxu0
    %vm2036 = vcmask 1041408
    %v2037 = vsel %vm2036, %v1866, 0.0
    %v2038 = vrot.slane %v2037, 4
    %v2039 = vadd.f32 %v2037, %v2038
    %v2040 = vrot.slane %v2039, 2
    %v2041 = vadd.f32 %v2039, %v2040
    %v2042 = vrot.slane %v2041, 1
    %v2043 = vadd.f32 %v2041, %v2042
    %v2044 = vsel %vm2036, %v1868, 0.0
    %v2045 = vrot.slane %v2044, 4
    %v2046 = vadd.f32 %v2044, %v2045
    %v2047 = vrot.slane %v2046, 2
    %v2048 = vadd.f32 %v2046, %v2047
    %v2049 = vrot.slane %v2048, 1
    %v2050 = vadd.f32 %v2048, %v2049
    %v2051 = vsel %vm2036, %v2030, 0.0
    %v2052 = vrot.slane %v2051, 4
    %v2053 = vadd.f32 %v2051, %v2052
    %v2054 = vrot.slane %v2053, 2
    %v2055 = vadd.f32 %v2053, %v2054
    %v2056 = vrot.slane %v2055, 1
    %v2057 = vadd.f32 %v2055, %v2056
    %v2058 = vsel %vm2036, %v2032, 0.0
    %v2059 = vrot.slane %v2058, 4
    %v2060 = vadd.f32 %v2058, %v2059
    %v2061 = vrot.slane %v2060, 2
    %v2062 = vadd.f32 %v2060, %v2061
    %v2063 = vrot.slane %v2062, 1
    %v2064 = vadd.f32 %v2062, %v2063
    %v2065 = vld [vmem:[%s5] sm:$0xff]
    %v2066 = vld [vmem:[%s5 + $0x8] sm:$0xff]
    %v2067 = vld [vmem:[%s5 + $0x10] sm:$0xff]
    %v2068 = vld [vmem:[%s5 + $0x18] sm:$0xff]
    %v2069 = vld [vmem:[%s5 + $0x20] sm:$0xff]
    %v2070 = vld [vmem:[%s5 + $0x28] sm:$0xff]
    %v2071 = vld [vmem:[%s5 + $0x30] sm:$0xff]
    %v2072 = vld [vmem:[%s5 + $0x38] sm:$0xff]
    %v2073 = vld [vmem:[%s5 + $0x40] sm:$0xff]
    %v2074 = vld [vmem:[%s5 + $0x48] sm:$0xff]
    %v2075 = vld [vmem:[%s5 + $0x50] sm:$0xff]
    %v2076 = vld [vmem:[%s5 + $0x58] sm:$0xff]
    %v2077 = vld [vmem:[%s5 + $0x60] sm:$0xff]
    %v2078 = vld [vmem:[%s5 + $0x68] sm:$0xff]
    %v2079 = vld [vmem:[%s5 + $0x70] sm:$0xff]
    %v2080 = vld [vmem:[%s5 + $0x78] sm:$0xff]
    %v2081 = vld [vmem:[%s5 + $0x80] sm:$0xff]
    %v2082 = vld [vmem:[%s5 + $0x88] sm:$0xff]
    %v2083 = vld [vmem:[%s5 + $0x90] sm:$0xff]
    %v2084 = vld [vmem:[%s5 + $0x98] sm:$0xff]
    %v2085 = vld [vmem:[%s5 + $0xa0] sm:$0xff]
    %v2086 = vld [vmem:[%s5 + $0xa8] sm:$0xff]
    %v2087 = vld [vmem:[%s5 + $0xb0] sm:$0xff]
    %v2088 = vld [vmem:[%s5 + $0xb8] sm:$0xff]
    %v2089 = vld [vmem:[%s5 + $0xc0] sm:$0xff]
    %v2090 = vld [vmem:[%s5 + $0xc8] sm:$0xff]
    %v2091 = vld [vmem:[%s5 + $0xd0] sm:$0xff]
    %v2092 = vld [vmem:[%s5 + $0xd8] sm:$0xff]
    %v2093 = vld [vmem:[%s5 + $0xe0] sm:$0xff]
    %v2094 = vld [vmem:[%s5 + $0xe8] sm:$0xff]
    %v2095 = vld [vmem:[%s5 + $0xf0] sm:$0xff]
    %v2096 = vld [vmem:[%s5 + $0xf8] sm:$0xff]
    %v2097 = vld [vmem:[%s5 + $0x100] sm:$0xff]
    %v2098 = vld [vmem:[%s5 + $0x108] sm:$0xff]
    %v2099 = vld [vmem:[%s5 + $0x110] sm:$0xff]
    %v2100 = vld [vmem:[%s5 + $0x118] sm:$0xff]
    %v2101 = vld [vmem:[%s5 + $0x120] sm:$0xff]
    %v2102 = vld [vmem:[%s5 + $0x128] sm:$0xff]
    %v2103 = vld [vmem:[%s5 + $0x130] sm:$0xff]
    %v2104 = vld [vmem:[%s5 + $0x138] sm:$0xff]
    %v2105 = vld [vmem:[%s5 + $0x140] sm:$0xff]
    %v2106 = vld [vmem:[%s5 + $0x148] sm:$0xff]
    %v2107 = vld [vmem:[%s5 + $0x150] sm:$0xff]
    %v2108 = vld [vmem:[%s5 + $0x158] sm:$0xff]
    %v2109 = vld [vmem:[%s5 + $0x160] sm:$0xff]
    %v2110 = vld [vmem:[%s5 + $0x168] sm:$0xff]
    %v2111 = vld [vmem:[%s5 + $0x170] sm:$0xff]
    %v2112 = vld [vmem:[%s5 + $0x178] sm:$0xff]
    %v2113 = vld [vmem:[%s5 + $0x180] sm:$0xff]
    %v2114 = vld [vmem:[%s5 + $0x188] sm:$0xff]
    %v2115 = vld [vmem:[%s5 + $0x190] sm:$0xff]
    %v2116 = vld [vmem:[%s5 + $0x198] sm:$0xff]
    %v2117 = vld [vmem:[%s5 + $0x1a0] sm:$0xff]
    %v2118 = vld [vmem:[%s5 + $0x1a8] sm:$0xff]
    %v2119 = vld [vmem:[%s5 + $0x1b0] sm:$0xff]
    %v2120 = vld [vmem:[%s5 + $0x1b8] sm:$0xff]
    %v2121 = vld [vmem:[%s5 + $0x1c0] sm:$0xff]
    %v2122 = vld [vmem:[%s5 + $0x1c8] sm:$0xff]
    %v2123 = vld [vmem:[%s5 + $0x1d0] sm:$0xff]
    %v2124 = vld [vmem:[%s5 + $0x1d8] sm:$0xff]
    %v2125 = vld [vmem:[%s5 + $0x1e0] sm:$0xff]
    %v2126 = vld [vmem:[%s5 + $0x1e8] sm:$0xff]
    %v2127 = vld [vmem:[%s5 + $0x1f0] sm:$0xff]
    %v2128 = vld [vmem:[%s5 + $0x1f8] sm:$0xff]
    %2129 = vmatprep.subr.mxu0 0.0
    %2130 = vmatpush1.msra.mxu0 %v2065
    %2131 = vmatprep.subr.mxu0 0.0
    %2132 = vmatpush1.msra.mxu0 %v2066
    %2133 = vmatprep.subr.mxu0 0.0
    %2134 = vmatpush1.msra.mxu0 %v2067
    %2135 = vmatprep.subr.mxu0 0.0
    %2136 = vmatpush1.msra.mxu0 %v2068
    %2137 = vmatprep.subr.mxu0 0.0
    %2138 = vmatpush1.msra.mxu0 %v2069
    %2139 = vmatprep.subr.mxu0 0.0
    %2140 = vmatpush1.msra.mxu0 %v2070
    %2141 = vmatprep.subr.mxu0 0.0
    %2142 = vmatpush1.msra.mxu0 %v2071
    %2143 = vmatprep.subr.mxu0 0.0
    %2144 = vmatpush1.msra.mxu0 %v2072
    %2145 = vmatprep.subr.mxu0 0.0
    %2146 = vmatpush1.msra.mxu0 %v2073
    %2147 = vmatprep.subr.mxu0 0.0
    %2148 = vmatpush1.msra.mxu0 %v2074
    %2149 = vmatprep.subr.mxu0 0.0
    %2150 = vmatpush1.msra.mxu0 %v2075
    %2151 = vmatprep.subr.mxu0 0.0
    %2152 = vmatpush1.msra.mxu0 %v2076
    %2153 = vmatprep.subr.mxu0 0.0
    %2154 = vmatpush1.msra.mxu0 %v2077
    %2155 = vmatprep.subr.mxu0 0.0
    %2156 = vmatpush1.msra.mxu0 %v2078
    %2157 = vmatprep.subr.mxu0 0.0
    %2158 = vmatpush1.msra.mxu0 %v2079
    %2159 = vmatprep.subr.mxu0 0.0
    %2160 = vmatpush1.msra.mxu0 %v2080
    %2161 = vmatprep.subr.mxu0 0.0
    %2162 = vmatpush1.msra.mxu0 %v2081
    %2163 = vmatprep.subr.mxu0 0.0
    %2164 = vmatpush1.msra.mxu0 %v2082
    %2165 = vmatprep.subr.mxu0 0.0
    %2166 = vmatpush1.msra.mxu0 %v2083
    %2167 = vmatprep.subr.mxu0 0.0
    %2168 = vmatpush1.msra.mxu0 %v2084
    %2169 = vmatprep.subr.mxu0 0.0
    %2170 = vmatpush1.msra.mxu0 %v2085
    %2171 = vmatprep.subr.mxu0 0.0
    %2172 = vmatpush1.msra.mxu0 %v2086
    %2173 = vmatprep.subr.mxu0 0.0
    %2174 = vmatpush1.msra.mxu0 %v2087
    %2175 = vmatprep.subr.mxu0 0.0
    %2176 = vmatpush1.msra.mxu0 %v2088
    %2177 = vmatprep.subr.mxu0 0.0
    %2178 = vmatpush1.msra.mxu0 %v2089
    %2179 = vmatprep.subr.mxu0 0.0
    %2180 = vmatpush1.msra.mxu0 %v2090
    %2181 = vmatprep.subr.mxu0 0.0
    %2182 = vmatpush1.msra.mxu0 %v2091
    %2183 = vmatprep.subr.mxu0 0.0
    %2184 = vmatpush1.msra.mxu0 %v2092
    %2185 = vmatprep.subr.mxu0 0.0
    %2186 = vmatpush1.msra.mxu0 %v2093
    %2187 = vmatprep.subr.mxu0 0.0
    %2188 = vmatpush1.msra.mxu0 %v2094
    %2189 = vmatprep.subr.mxu0 0.0
    %2190 = vmatpush1.msra.mxu0 %v2095
    %2191 = vmatprep.subr.mxu0 0.0
    %2192 = vmatpush1.msra.mxu0 %v2096
    %2193 = vmatprep.mubr.f32.mxu0 %v2050
    %2194 = vmatmul.mubr.f32.gmra.mrb[0].mxu0 %v2043
    %v2195 = vpop.f32.mrb[0].mxu0
    %v2196 = vadd.f32 0.0, %v2195
    %v2197 = vpop.f32.mrb[0].mxu0
    %2198 = vdwg.mxu0
    %2199 = vmatprep.subr.mxu0 0.0
    %2200 = vmatpush1.msra.mxu0 %v2097
    %2201 = vmatprep.subr.mxu0 0.0
    %2202 = vmatpush1.msra.mxu0 %v2098
    %2203 = vmatprep.subr.mxu0 0.0
    %2204 = vmatpush1.msra.mxu0 %v2099
    %2205 = vmatprep.subr.mxu0 0.0
    %2206 = vmatpush1.msra.mxu0 %v2100
    %2207 = vmatprep.subr.mxu0 0.0
    %2208 = vmatpush1.msra.mxu0 %v2101
    %2209 = vmatprep.subr.mxu0 0.0
    %2210 = vmatpush1.msra.mxu0 %v2102
    %2211 = vmatprep.subr.mxu0 0.0
    %2212 = vmatpush1.msra.mxu0 %v2103
    %2213 = vmatprep.subr.mxu0 0.0
    %2214 = vmatpush1.msra.mxu0 %v2104
    %2215 = vmatprep.subr.mxu0 0.0
    %2216 = vmatpush1.msra.mxu0 %v2105
    %2217 = vmatprep.subr.mxu0 0.0
    %2218 = vmatpush1.msra.mxu0 %v2106
    %2219 = vmatprep.subr.mxu0 0.0
    %2220 = vmatpush1.msra.mxu0 %v2107
    %2221 = vmatprep.subr.mxu0 0.0
    %2222 = vmatpush1.msra.mxu0 %v2108
    %2223 = vmatprep.subr.mxu0 0.0
    %2224 = vmatpush1.msra.mxu0 %v2109
    %2225 = vmatprep.subr.mxu0 0.0
    %2226 = vmatpush1.msra.mxu0 %v2110
    %2227 = vmatprep.subr.mxu0 0.0
    %2228 = vmatpush1.msra.mxu0 %v2111
    %2229 = vmatprep.subr.mxu0 0.0
    %2230 = vmatpush1.msra.mxu0 %v2112
    %2231 = vmatprep.subr.mxu0 0.0
    %2232 = vmatpush1.msra.mxu0 %v2113
    %2233 = vmatprep.subr.mxu0 0.0
    %2234 = vmatpush1.msra.mxu0 %v2114
    %2235 = vmatprep.subr.mxu0 0.0
    %2236 = vmatpush1.msra.mxu0 %v2115
    %2237 = vmatprep.subr.mxu0 0.0
    %2238 = vmatpush1.msra.mxu0 %v2116
    %2239 = vmatprep.subr.mxu0 0.0
    %2240 = vmatpush1.msra.mxu0 %v2117
    %2241 = vmatprep.subr.mxu0 0.0
    %2242 = vmatpush1.msra.mxu0 %v2118
    %2243 = vmatprep.subr.mxu0 0.0
    %2244 = vmatpush1.msra.mxu0 %v2119
    %2245 = vmatprep.subr.mxu0 0.0
    %2246 = vmatpush1.msra.mxu0 %v2120
    %2247 = vmatprep.subr.mxu0 0.0
    %2248 = vmatpush1.msra.mxu0 %v2121
    %2249 = vmatprep.subr.mxu0 0.0
    %2250 = vmatpush1.msra.mxu0 %v2122
    %2251 = vmatprep.subr.mxu0 0.0
    %2252 = vmatpush1.msra.mxu0 %v2123
    %2253 = vmatprep.subr.mxu0 0.0
    %2254 = vmatpush1.msra.mxu0 %v2124
    %2255 = vmatprep.subr.mxu0 0.0
    %2256 = vmatpush1.msra.mxu0 %v2125
    %2257 = vmatprep.subr.mxu0 0.0
    %2258 = vmatpush1.msra.mxu0 %v2126
    %2259 = vmatprep.subr.mxu0 0.0
    %2260 = vmatpush1.msra.mxu0 %v2127
    %2261 = vmatprep.subr.mxu0 0.0
    %2262 = vmatpush1.msra.mxu0 %v2128
    %2263 = vmatprep.mubr.f32.mxu0 %v2064
    %2264 = vmatmul.mubr.f32.gmra.mrb[0].mxu0 %v2057
    %v2265 = vpop.f32.mrb[0].mxu0
    %v2266 = vadd.f32 %v2196, %v2265
    %v2267 = vpop.f32.mrb[0].mxu0
    %2268 = vdwg.mxu0
    %v2269 = vmul.f32 %v1866, %v1866
    %v2270 = vmul.f32 %v1868, %v1868
    %v2271 = vmul.f32 %v2030, %v2030
    %v2272 = vmul.f32 %v2032, %v2032
    %v2273 = vsel %vm2036, %v2269, 0.0
    %v2274 = vrot.slane %v2273, 4
    %v2275 = vadd.f32 %v2273, %v2274
    %v2276 = vrot.slane %v2275, 2
    %v2277 = vadd.f32 %v2275, %v2276
    %v2278 = vrot.slane %v2277, 1
    %v2279 = vadd.f32 %v2277, %v2278
    %v2280 = vsel %vm2036, %v2270, 0.0
    %v2281 = vrot.slane %v2280, 4
    %v2282 = vadd.f32 %v2280, %v2281
    %v2283 = vrot.slane %v2282, 2
    %v2284 = vadd.f32 %v2282, %v2283
    %v2285 = vrot.slane %v2284, 1
    %v2286 = vadd.f32 %v2284, %v2285
    %v2287 = vsel %vm2036, %v2271, 0.0
    %v2288 = vrot.slane %v2287, 4
    %v2289 = vadd.f32 %v2287, %v2288
    %v2290 = vrot.slane %v2289, 2
    %v2291 = vadd.f32 %v2289, %v2290
    %v2292 = vrot.slane %v2291, 1
    %v2293 = vadd.f32 %v2291, %v2292
    %v2294 = vsel %vm2036, %v2272, 0.0
    %v2295 = vrot.slane %v2294, 4
    %v2296 = vadd.f32 %v2294, %v2295
    %v2297 = vrot.slane %v2296, 2
    %v2298 = vadd.f32 %v2296, %v2297
    %v2299 = vrot.slane %v2298, 1
    %v2300 = vadd.f32 %v2298, %v2299
    %2301 = vmatprep.subr.mxu0 0.0
    %2302 = vmatpush1.msra.mxu0 %v2065
    %2303 = vmatprep.subr.mxu0 0.0
    %2304 = vmatpush1.msra.mxu0 %v2066
    %2305 = vmatprep.subr.mxu0 0.0
    %2306 = vmatpush1.msra.mxu0 %v2067
    %2307 = vmatprep.subr.mxu0 0.0
    %2308 = vmatpush1.msra.mxu0 %v2068
    %2309 = vmatprep.subr.mxu0 0.0
    %2310 = vmatpush1.msra.mxu0 %v2069
    %2311 = vmatprep.subr.mxu0 0.0
    %2312 = vmatpush1.msra.mxu0 %v2070
    %2313 = vmatprep.subr.mxu0 0.0
    %2314 = vmatpush1.msra.mxu0 %v2071
    %2315 = vmatprep.subr.mxu0 0.0
    %2316 = vmatpush1.msra.mxu0 %v2072
    %2317 = vmatprep.subr.mxu0 0.0
    %2318 = vmatpush1.msra.mxu0 %v2073
    %2319 = vmatprep.subr.mxu0 0.0
    %2320 = vmatpush1.msra.mxu0 %v2074
    %2321 = vmatprep.subr.mxu0 0.0
    %2322 = vmatpush1.msra.mxu0 %v2075
    %2323 = vmatprep.subr.mxu0 0.0
    %2324 = vmatpush1.msra.mxu0 %v2076
    %2325 = vmatprep.subr.mxu0 0.0
    %2326 = vmatpush1.msra.mxu0 %v2077
    %2327 = vmatprep.subr.mxu0 0.0
    %2328 = vmatpush1.msra.mxu0 %v2078
    %2329 = vmatprep.subr.mxu0 0.0
    %2330 = vmatpush1.msra.mxu0 %v2079
    %2331 = vmatprep.subr.mxu0 0.0
    %2332 = vmatpush1.msra.mxu0 %v2080
    %2333 = vmatprep.subr.mxu0 0.0
    %2334 = vmatpush1.msra.mxu0 %v2081
    %2335 = vmatprep.subr.mxu0 0.0
    %2336 = vmatpush1.msra.mxu0 %v2082
    %2337 = vmatprep.subr.mxu0 0.0
    %2338 = vmatpush1.msra.mxu0 %v2083
    %2339 = vmatprep.subr.mxu0 0.0
    %2340 = vmatpush1.msra.mxu0 %v2084
    %2341 = vmatprep.subr.mxu0 0.0
    %2342 = vmatpush1.msra.mxu0 %v2085
    %2343 = vmatprep.subr.mxu0 0.0
    %2344 = vmatpush1.msra.mxu0 %v2086
    %2345 = vmatprep.subr.mxu0 0.0
    %2346 = vmatpush1.msra.mxu0 %v2087
    %2347 = vmatprep.subr.mxu0 0.0
    %2348 = vmatpush1.msra.mxu0 %v2088
    %2349 = vmatprep.subr.mxu0 0.0
    %2350 = vmatpush1.msra.mxu0 %v2089
    %2351 = vmatprep.subr.mxu0 0.0
    %2352 = vmatpush1.msra.mxu0 %v2090
    %2353 = vmatprep.subr.mxu0 0.0
    %2354 = vmatpush1.msra.mxu0 %v2091
    %2355 = vmatprep.subr.mxu0 0.0
    %2356 = vmatpush1.msra.mxu0 %v2092
    %2357 = vmatprep.subr.mxu0 0.0
    %2358 = vmatpush1.msra.mxu0 %v2093
    %2359 = vmatprep.subr.mxu0 0.0
    %2360 = vmatpush1.msra.mxu0 %v2094
    %2361 = vmatprep.subr.mxu0 0.0
    %2362 = vmatpush1.msra.mxu0 %v2095
    %2363 = vmatprep.subr.mxu0 0.0
    %2364 = vmatpush1.msra.mxu0 %v2096
    %2365 = vmatprep.mubr.f32.mxu0 %v2286
    %2366 = vmatmul.mubr.f32.gmra.mrb[0].mxu0 %v2279
    %v2367 = vpop.f32.mrb[0].mxu0
    %v2368 = vadd.f32 0.0, %v2367
    %v2369 = vpop.f32.mrb[0].mxu0
    %2370 = vdwg.mxu0
    %2371 = vmatprep.subr.mxu0 0.0
    %2372 = vmatpush1.msra.mxu0 %v2097
    %2373 = vmatprep.subr.mxu0 0.0
    %2374 = vmatpush1.msra.mxu0 %v2098
    %2375 = vmatprep.subr.mxu0 0.0
    %2376 = vmatpush1.msra.mxu0 %v2099
    %2377 = vmatprep.subr.mxu0 0.0
    %2378 = vmatpush1.msra.mxu0 %v2100
    %2379 = vmatprep.subr.mxu0 0.0
    %2380 = vmatpush1.msra.mxu0 %v2101
    %2381 = vmatprep.subr.mxu0 0.0
    %2382 = vmatpush1.msra.mxu0 %v2102
    %2383 = vmatprep.subr.mxu0 0.0
    %2384 = vmatpush1.msra.mxu0 %v2103
    %2385 = vmatprep.subr.mxu0 0.0
    %2386 = vmatpush1.msra.mxu0 %v2104
    %2387 = vmatprep.subr.mxu0 0.0
    %2388 = vmatpush1.msra.mxu0 %v2105
    %2389 = vmatprep.subr.mxu0 0.0
    %2390 = vmatpush1.msra.mxu0 %v2106
    %2391 = vmatprep.subr.mxu0 0.0
    %2392 = vmatpush1.msra.mxu0 %v2107
    %2393 = vmatprep.subr.mxu0 0.0
    %2394 = vmatpush1.msra.mxu0 %v2108
    %2395 = vmatprep.subr.mxu0 0.0
    %2396 = vmatpush1.msra.mxu0 %v2109
    %2397 = vmatprep.subr.mxu0 0.0
    %2398 = vmatpush1.msra.mxu0 %v2110
    %2399 = vmatprep.subr.mxu0 0.0
    %2400 = vmatpush1.msra.mxu0 %v2111
    %2401 = vmatprep.subr.mxu0 0.0
    %2402 = vmatpush1.msra.mxu0 %v2112
    %2403 = vmatprep.subr.mxu0 0.0
    %2404 = vmatpush1.msra.mxu0 %v2113
    %2405 = vmatprep.subr.mxu0 0.0
    %2406 = vmatpush1.msra.mxu0 %v2114
    %2407 = vmatprep.subr.mxu0 0.0
    %2408 = vmatpush1.msra.mxu0 %v2115
    %2409 = vmatprep.subr.mxu0 0.0
    %2410 = vmatpush1.msra.mxu0 %v2116
    %2411 = vmatprep.subr.mxu0 0.0
    %2412 = vmatpush1.msra.mxu0 %v2117
    %2413 = vmatprep.subr.mxu0 0.0
    %2414 = vmatpush1.msra.mxu0 %v2118
    %2415 = vmatprep.subr.mxu0 0.0
    %2416 = vmatpush1.msra.mxu0 %v2119
    %2417 = vmatprep.subr.mxu0 0.0
    %2418 = vmatpush1.msra.mxu0 %v2120
    %2419 = vmatprep.subr.mxu0 0.0
    %2420 = vmatpush1.msra.mxu0 %v2121
    %2421 = vmatprep.subr.mxu0 0.0
    %2422 = vmatpush1.msra.mxu0 %v2122
    %2423 = vmatprep.subr.mxu0 0.0
    %2424 = vmatpush1.msra.mxu0 %v2123
    %2425 = vmatprep.subr.mxu0 0.0
    %2426 = vmatpush1.msra.mxu0 %v2124
    %2427 = vmatprep.subr.mxu0 0.0
    %2428 = vmatpush1.msra.mxu0 %v2125
    %2429 = vmatprep.subr.mxu0 0.0
    %2430 = vmatpush1.msra.mxu0 %v2126
    %2431 = vmatprep.subr.mxu0 0.0
    %2432 = vmatpush1.msra.mxu0 %v2127
    %2433 = vmatprep.subr.mxu0 0.0
    %2434 = vmatpush1.msra.mxu0 %v2128
    %2435 = vmatprep.mubr.f32.mxu0 %v2300
    %2436 = vmatmul.mubr.f32.gmra.mrb[0].mxu0 %v2293
    %v2437 = vpop.f32.mrb[0].mxu0
    %v2438 = vadd.f32 %v2368, %v2437
    %v2439 = vpop.f32.mrb[0].mxu0
    %2440 = vdwg.mxu0
    %v2441 = vmul.f32 %v2266, 0.0078125
    %v2442 = vmul.f32 %v2438, 0.0078125
    %v2443 = vmul.f32 %v2441, %v2441
    %v2444 = vsub.f32 %v2442, %v2443
    %v2445 = vld [vmem:[%s3] sm:$0x1]
    %v2446 = vadd.f32 %v2444, 1e-05
    %v2447 = vrsqrt.pop %v2446
    %v2448 = vmul.f32 %v2445, %v2447
    %v2449 = vld [vmem:[%s4] sm:$0x1]
    %v2450 = vmul.f32 %v2441, %v2448
    %v2451 = vsub.f32 %v2449, %v2450
    %v2452 = vld [vmem:[#allocation2] sm:$0xff]
    %v2453 = vld [vmem:[#allocation2 + $0x8] sm:$0xff]
    %v2454 = vld [vmem:[#allocation2 + $0x10] sm:$0xff]
    %v2455 = vld [vmem:[#allocation2 + $0x18] sm:$0xff]
    %vm2456 = vcmask 64512
    %v2458 = vsel %vm2456, %v2448, 0
    %2460 = vmatprep.subr.mxu0 %v2453
    %2461 = vmatpush1.msra.mxu0 %v2452
    %2462 = vmatprep.subr.mxu0 0.0
    %2463 = vmatpush1.msra.mxu0 0.0
    %2464 = vmatprep.subr.mxu0 0.0
    %2465 = vmatpush1.msra.mxu0 0.0
    %2466 = vmatprep.subr.mxu0 0.0
    %2467 = vmatpush1.msra.mxu0 0.0
    %2468 = vmatprep.subr.mxu0 0.0
    %2469 = vmatpush1.msra.mxu0 0.0
    %2470 = vmatprep.subr.mxu0 0.0
    %2471 = vmatpush1.msra.mxu0 0.0
    %2472 = vmatprep.subr.mxu0 0.0
    %2473 = vmatpush1.msra.mxu0 0.0
    %2474 = vmatprep.subr.mxu0 0.0
    %2475 = vmatpush1.msra.mxu0 0.0
    %2476 = vmatprep.subr.mxu0 0.0
    %2477 = vmatpush1.msra.mxu0 0.0
    %2478 = vmatprep.subr.mxu0 0.0
    %2479 = vmatpush1.msra.mxu0 0.0
    %2480 = vmatprep.subr.mxu0 0.0
    %2481 = vmatpush1.msra.mxu0 0.0
    %2482 = vmatprep.subr.mxu0 0.0
    %2483 = vmatpush1.msra.mxu0 0.0
    %2484 = vmatprep.subr.mxu0 0.0
    %2485 = vmatpush1.msra.mxu0 0.0
    %2486 = vmatprep.subr.mxu0 0.0
    %2487 = vmatpush1.msra.mxu0 0.0
    %2488 = vmatprep.subr.mxu0 0.0
    %2489 = vmatpush1.msra.mxu0 0.0
    %2490 = vmatprep.subr.mxu0 0.0
    %2491 = vmatpush1.msra.mxu0 0.0
    %2492 = vmatprep.subr.mxu0 0.0
    %2493 = vmatpush1.msra.mxu0 0.0
    %2494 = vmatprep.subr.mxu0 0.0
    %2495 = vmatpush1.msra.mxu0 0.0
    %2496 = vmatprep.subr.mxu0 0.0
    %2497 = vmatpush1.msra.mxu0 0.0
    %2498 = vmatprep.subr.mxu0 0.0
    %2499 = vmatpush1.msra.mxu0 0.0
    %2500 = vmatprep.subr.mxu0 0.0
    %2501 = vmatpush1.msra.mxu0 0.0
    %2502 = vmatprep.subr.mxu0 0.0
    %2503 = vmatpush1.msra.mxu0 0.0
    %2504 = vmatprep.subr.mxu0 0.0
    %2505 = vmatpush1.msra.mxu0 0.0
    %2506 = vmatprep.subr.mxu0 0.0
    %2507 = vmatpush1.msra.mxu0 0.0
    %2508 = vmatprep.subr.mxu0 0.0
    %2509 = vmatpush1.msra.mxu0 0.0
    %2510 = vmatprep.subr.mxu0 0.0
    %2511 = vmatpush1.msra.mxu0 0.0
    %2512 = vmatprep.subr.mxu0 0.0
    %2513 = vmatpush1.msra.mxu0 0.0
    %2514 = vmatprep.subr.mxu0 0.0
    %2515 = vmatpush1.msra.mxu0 0.0
    %2516 = vmatprep.subr.mxu0 0.0
    %2517 = vmatpush1.msra.mxu0 0.0
    %2518 = vmatprep.subr.mxu0 0.0
    %2519 = vmatpush1.msra.mxu0 0.0
    %2520 = vmatprep.subr.mxu0 0.0
    %2521 = vmatpush1.msra.mxu0 0.0
    %2522 = vmatprep.subr.mxu0 0.0
    %2523 = vmatpush1.msra.mxu0 0.0
    %2524 = vmatprep.mubr.f32.mxu0 0.0
    %2525 = vmatmul.mubr.f32.gmra.mrb[0].mxu0 %v2458
    %v2526 = vpop.f32.mrb[0].mxu0
    %v2527 = vadd.f32 0.0, %v2526
    %v2528 = vpop.f32.mrb[0].mxu0
    %v2529 = vadd.f32 0.0, %v2528
    %2530 = vdwg.mxu0
    %2531 = vmatprep.subr.mxu0 %v2455
    %2532 = vmatpush1.msra.mxu0 %v2454
    %2533 = vmatprep.subr.mxu0 0.0
    %2534 = vmatpush1.msra.mxu0 0.0
    %2535 = vmatprep.subr.mxu0 0.0
    %2536 = vmatpush1.msra.mxu0 0.0
    %2537 = vmatprep.subr.mxu0 0.0
    %2538 = vmatpush1.msra.mxu0 0.0
    %2539 = vmatprep.subr.mxu0 0.0
    %2540 = vmatpush1.msra.mxu0 0.0
    %2541 = vmatprep.subr.mxu0 0.0
    %2542 = vmatpush1.msra.mxu0 0.0
    %2543 = vmatprep.subr.mxu0 0.0
    %2544 = vmatpush1.msra.mxu0 0.0
    %2545 = vmatprep.subr.mxu0 0.0
    %2546 = vmatpush1.msra.mxu0 0.0
    %2547 = vmatprep.subr.mxu0 0.0
    %2548 = vmatpush1.msra.mxu0 0.0
    %2549 = vmatprep.subr.mxu0 0.0
    %2550 = vmatpush1.msra.mxu0 0.0
    %2551 = vmatprep.subr.mxu0 0.0
    %2552 = vmatpush1.msra.mxu0 0.0
    %2553 = vmatprep.subr.mxu0 0.0
    %2554 = vmatpush1.msra.mxu0 0.0
    %2555 = vmatprep.subr.mxu0 0.0
    %2556 = vmatpush1.msra.mxu0 0.0
    %2557 = vmatprep.subr.mxu0 0.0
    %2558 = vmatpush1.msra.mxu0 0.0
    %2559 = vmatprep.subr.mxu0 0.0
    %2560 = vmatpush1.msra.mxu0 0.0
    %2561 = vmatprep.subr.mxu0 0.0
    %2562 = vmatpush1.msra.mxu0 0.0
    %2563 = vmatprep.subr.mxu0 0.0
    %2564 = vmatpush1.msra.mxu0 0.0
    %2565 = vmatprep.subr.mxu0 0.0
    %2566 = vmatpush1.msra.mxu0 0.0
    %2567 = vmatprep.subr.mxu0 0.0
    %2568 = vmatpush1.msra.mxu0 0.0
    %2569 = vmatprep.subr.mxu0 0.0
    %2570 = vmatpush1.msra.mxu0 0.0
    %2571 = vmatprep.subr.mxu0 0.0
    %2572 = vmatpush1.msra.mxu0 0.0
    %2573 = vmatprep.subr.mxu0 0.0
    %2574 = vmatpush1.msra.mxu0 0.0
    %2575 = vmatprep.subr.mxu0 0.0
    %2576 = vmatpush1.msra.mxu0 0.0
    %2577 = vmatprep.subr.mxu0 0.0
    %2578 = vmatpush1.msra.mxu0 0.0
    %2579 = vmatprep.subr.mxu0 0.0
    %2580 = vmatpush1.msra.mxu0 0.0
    %2581 = vmatprep.subr.mxu0 0.0
    %2582 = vmatpush1.msra.mxu0 0.0
    %2583 = vmatprep.subr.mxu0 0.0
    %2584 = vmatpush1.msra.mxu0 0.0
    %2585 = vmatprep.subr.mxu0 0.0
    %2586 = vmatpush1.msra.mxu0 0.0
    %2587 = vmatprep.subr.mxu0 0.0
    %2588 = vmatpush1.msra.mxu0 0.0
    %2589 = vmatprep.subr.mxu0 0.0
    %2590 = vmatpush1.msra.mxu0 0.0
    %2591 = vmatprep.subr.mxu0 0.0
    %2592 = vmatpush1.msra.mxu0 0.0
    %2593 = vmatprep.subr.mxu0 0.0
    %2594 = vmatpush1.msra.mxu0 0.0
    %2595 = vmatprep.mubr.f32.mxu0 0.0
    %2596 = vmatmul.mubr.f32.gmra.mrb[0].mxu0 %v2458
    %v2597 = vpop.f32.mrb[0].mxu0
    %v2598 = vadd.f32 0.0, %v2597
    %v2599 = vpop.f32.mrb[0].mxu0
    %v2600 = vadd.f32 0.0, %v2599
    %2601 = vdwg.mxu0
    %v2603 = vsel %vm2456, %v2451, 0
    %2605 = vmatprep.subr.mxu0 %v2453
    %2606 = vmatpush1.msra.mxu0 %v2452
    %2607 = vmatprep.subr.mxu0 0.0
    %2608 = vmatpush1.msra.mxu0 0.0
    %2609 = vmatprep.subr.mxu0 0.0
    %2610 = vmatpush1.msra.mxu0 0.0
    %2611 = vmatprep.subr.mxu0 0.0
    %2612 = vmatpush1.msra.mxu0 0.0
    %2613 = vmatprep.subr.mxu0 0.0
    %2614 = vmatpush1.msra.mxu0 0.0
    %2615 = vmatprep.subr.mxu0 0.0
    %2616 = vmatpush1.msra.mxu0 0.0
    %2617 = vmatprep.subr.mxu0 0.0
    %2618 = vmatpush1.msra.mxu0 0.0
    %2619 = vmatprep.subr.mxu0 0.0
    %2620 = vmatpush1.msra.mxu0 0.0
    %2621 = vmatprep.subr.mxu0 0.0
    %2622 = vmatpush1.msra.mxu0 0.0
    %2623 = vmatprep.subr.mxu0 0.0
    %2624 = vmatpush1.msra.mxu0 0.0
    %2625 = vmatprep.subr.mxu0 0.0
    %2626 = vmatpush1.msra.mxu0 0.0
    %2627 = vmatprep.subr.mxu0 0.0
    %2628 = vmatpush1.msra.mxu0 0.0
    %2629 = vmatprep.subr.mxu0 0.0
    %2630 = vmatpush1.msra.mxu0 0.0
    %2631 = vmatprep.subr.mxu0 0.0
    %2632 = vmatpush1.msra.mxu0 0.0
    %2633 = vmatprep.subr.mxu0 0.0
    %2634 = vmatpush1.msra.mxu0 0.0
    %2635 = vmatprep.subr.mxu0 0.0
    %2636 = vmatpush1.msra.mxu0 0.0
    %2637 = vmatprep.subr.mxu0 0.0
    %2638 = vmatpush1.msra.mxu0 0.0
    %2639 = vmatprep.subr.mxu0 0.0
    %2640 = vmatpush1.msra.mxu0 0.0
    %2641 = vmatprep.subr.mxu0 0.0
    %2642 = vmatpush1.msra.mxu0 0.0
    %2643 = vmatprep.subr.mxu0 0.0
    %2644 = vmatpush1.msra.mxu0 0.0
    %2645 = vmatprep.subr.mxu0 0.0
    %2646 = vmatpush1.msra.mxu0 0.0
    %2647 = vmatprep.subr.mxu0 0.0
    %2648 = vmatpush1.msra.mxu0 0.0
    %2649 = vmatprep.subr.mxu0 0.0
    %2650 = vmatpush1.msra.mxu0 0.0
    %2651 = vmatprep.subr.mxu0 0.0
    %2652 = vmatpush1.msra.mxu0 0.0
    %2653 = vmatprep.subr.mxu0 0.0
    %2654 = vmatpush1.msra.mxu0 0.0
    %2655 = vmatprep.subr.mxu0 0.0
    %2656 = vmatpush1.msra.mxu0 0.0
    %2657 = vmatprep.subr.mxu0 0.0
    %2658 = vmatpush1.msra.mxu0 0.0
    %2659 = vmatprep.subr.mxu0 0.0
    %2660 = vmatpush1.msra.mxu0 0.0
    %2661 = vmatprep.subr.mxu0 0.0
    %2662 = vmatpush1.msra.mxu0 0.0
    %2663 = vmatprep.subr.mxu0 0.0
    %2664 = vmatpush1.msra.mxu0 0.0
    %2665 = vmatprep.subr.mxu0 0.0
    %2666 = vmatpush1.msra.mxu0 0.0
    %2667 = vmatprep.subr.mxu0 0.0
    %2668 = vmatpush1.msra.mxu0 0.0
    %2669 = vmatprep.mubr.f32.mxu0 0.0
    %2670 = vmatmul.mubr.f32.gmra.mrb[0].mxu0 %v2603
    %v2671 = vpop.f32.mrb[0].mxu0
    %v2672 = vadd.f32 0.0, %v2671
    %v2673 = vpop.f32.mrb[0].mxu0
    %v2674 = vadd.f32 0.0, %v2673
    %2675 = vdwg.mxu0
    %2676 = vmatprep.subr.mxu0 %v2455
    %2677 = vmatpush1.msra.mxu0 %v2454
    %2678 = vmatprep.subr.mxu0 0.0
    %2679 = vmatpush1.msra.mxu0 0.0
    %2680 = vmatprep.subr.mxu0 0.0
    %2681 = vmatpush1.msra.mxu0 0.0
    %2682 = vmatprep.subr.mxu0 0.0
    %2683 = vmatpush1.msra.mxu0 0.0
    %2684 = vmatprep.subr.mxu0 0.0
    %2685 = vmatpush1.msra.mxu0 0.0
    %2686 = vmatprep.subr.mxu0 0.0
    %2687 = vmatpush1.msra.mxu0 0.0
    %2688 = vmatprep.subr.mxu0 0.0
    %2689 = vmatpush1.msra.mxu0 0.0
    %2690 = vmatprep.subr.mxu0 0.0
    %2691 = vmatpush1.msra.mxu0 0.0
    %2692 = vmatprep.subr.mxu0 0.0
    %2693 = vmatpush1.msra.mxu0 0.0
    %2694 = vmatprep.subr.mxu0 0.0
    %2695 = vmatpush1.msra.mxu0 0.0
    %2696 = vmatprep.subr.mxu0 0.0
    %2697 = vmatpush1.msra.mxu0 0.0
    %2698 = vmatprep.subr.mxu0 0.0
    %2699 = vmatpush1.msra.mxu0 0.0
    %2700 = vmatprep.subr.mxu0 0.0
    %2701 = vmatpush1.msra.mxu0 0.0
    %2702 = vmatprep.subr.mxu0 0.0
    %2703 = vmatpush1.msra.mxu0 0.0
    %2704 = vmatprep.subr.mxu0 0.0
    %2705 = vmatpush1.msra.mxu0 0.0
    %2706 = vmatprep.subr.mxu0 0.0
    %2707 = vmatpush1.msra.mxu0 0.0
    %2708 = vmatprep.subr.mxu0 0.0
    %2709 = vmatpush1.msra.mxu0 0.0
    %2710 = vmatprep.subr.mxu0 0.0
    %2711 = vmatpush1.msra.mxu0 0.0
    %2712 = vmatprep.subr.mxu0 0.0
    %2713 = vmatpush1.msra.mxu0 0.0
    %2714 = vmatprep.subr.mxu0 0.0
    %2715 = vmatpush1.msra.mxu0 0.0
    %2716 = vmatprep.subr.mxu0 0.0
    %2717 = vmatpush1.msra.mxu0 0.0
    %2718 = vmatprep.subr.mxu0 0.0
    %2719 = vmatpush1.msra.mxu0 0.0
    %2720 = vmatprep.subr.mxu0 0.0
    %2721 = vmatpush1.msra.mxu0 0.0
    %2722 = vmatprep.subr.mxu0 0.0
    %2723 = vmatpush1.msra.mxu0 0.0
    %2724 = vmatprep.subr.mxu0 0.0
    %2725 = vmatpush1.msra.mxu0 0.0
    %2726 = vmatprep.subr.mxu0 0.0
    %2727 = vmatpush1.msra.mxu0 0.0
    %2728 = vmatprep.subr.mxu0 0.0
    %2729 = vmatpush1.msra.mxu0 0.0
    %2730 = vmatprep.subr.mxu0 0.0
    %2731 = vmatpush1.msra.mxu0 0.0
    %2732 = vmatprep.subr.mxu0 0.0
    %2733 = vmatpush1.msra.mxu0 0.0
    %2734 = vmatprep.subr.mxu0 0.0
    %2735 = vmatpush1.msra.mxu0 0.0
    %2736 = vmatprep.subr.mxu0 0.0
    %2737 = vmatpush1.msra.mxu0 0.0
    %2738 = vmatprep.subr.mxu0 0.0
    %2739 = vmatpush1.msra.mxu0 0.0
    %2740 = vmatprep.mubr.f32.mxu0 0.0
    %2741 = vmatmul.mubr.f32.gmra.mrb[0].mxu0 %v2603
    %v2742 = vpop.f32.mrb[0].mxu0
    %v2743 = vadd.f32 0.0, %v2742
    %v2744 = vpop.f32.mrb[0].mxu0
    %v2745 = vadd.f32 0.0, %v2744
    %2746 = vdwg.mxu0
    %v2747 = vlaneseq
    %v2748 = vshrl.u32 %v2747, 7
    %v2749 = vsub.s32 0, %v2748
    %v2750 = vrot.slane %v2527, %v2749
    %v2751 = vlaneseq
    %v2752 = vshrl.u32 %v2751, 7
    %v2753 = vsub.s32 0, %v2752
    %v2754 = vrot.slane %v2529, %v2753
    %v2755 = vlaneseq
    %v2756 = vshrl.u32 %v2755, 7
    %v2757 = vsub.s32 0, %v2756
    %v2758 = vrot.slane %v2598, %v2757
    %v2759 = vlaneseq
    %v2760 = vshrl.u32 %v2759, 7
    %v2761 = vsub.s32 0, %v2760
    %v2762 = vrot.slane %v2600, %v2761
    %v2763 = vmul.f32 %v1866, %v2750
    %v2764 = vmul.f32 %v1868, %v2754
    %v2765 = vmul.f32 %v2030, %v2758
    %v2766 = vmul.f32 %v2032, %v2762
    %v2767 = vlaneseq
    %v2768 = vshrl.u32 %v2767, 7
    %v2769 = vsub.s32 0, %v2768
    %v2770 = vrot.slane %v2672, %v2769
    %v2771 = vlaneseq
    %v2772 = vshrl.u32 %v2771, 7
    %v2773 = vsub.s32 0, %v2772
    %v2774 = vrot.slane %v2674, %v2773
    %v2775 = vlaneseq
    %v2776 = vshrl.u32 %v2775, 7
    %v2777 = vsub.s32 0, %v2776
    %v2778 = vrot.slane %v2743, %v2777
    %v2779 = vlaneseq
    %v2780 = vshrl.u32 %v2779, 7
    %v2781 = vsub.s32 0, %v2780
    %v2782 = vrot.slane %v2745, %v2781
    %v2783 = vadd.f32 %v2763, %v2770
    %v2784 = vadd.f32 %v2764, %v2774
    %v2785 = vadd.f32 %v2765, %v2778
    %v2786 = vadd.f32 %v2766, %v2782
    %v2787 = vmax.f32 %v2783, 0.0
    %v2788 = vmax.f32 %v2784, 0.0
    %v2789 = vmax.f32 %v2785, 0.0
    %v2790 = vmax.f32 %v2786, 0.0
    %v2791 = vpack.c.bf16 %v2787, %v2787
    %v2792 = vpack.c.bf16 %v2788, %v2788
    %v2793 = vpack.c.bf16 %v2789, %v2789
    %v2794 = vpack.c.bf16 %v2790, %v2790
    %v2795 = vld [vmem:[#allocation4] sm:$0xff]
    %v2796 = vld [vmem:[#allocation4 + $0x8] sm:$0xff]
    %v2797 = vld [vmem:[#allocation4 + $0x10] sm:$0xff]
    %v2798 = vld [vmem:[#allocation4 + $0x18] sm:$0xff]
    %v2799 = vld [vmem:[#allocation4 + $0x20] sm:$0xff]
    %v2800 = vld [vmem:[#allocation4 + $0x28] sm:$0xff]
    %v2801 = vld [vmem:[#allocation4 + $0x30] sm:$0xff]
    %v2802 = vld [vmem:[#allocation4 + $0x38] sm:$0xff]
    %v2803 = vld [vmem:[#allocation4 + $0x40] sm:$0xff]
    %v2804 = vld [vmem:[#allocation4 + $0x48] sm:$0xff]
    %v2805 = vld [vmem:[#allocation4 + $0x50] sm:$0xff]
    %v2806 = vld [vmem:[#allocation4 + $0x58] sm:$0xff]
    %v2807 = vld [vmem:[#allocation4 + $0x60] sm:$0xff]
    %v2808 = vld [vmem:[#allocation4 + $0x68] sm:$0xff]
    %v2809 = vld [vmem:[#allocation4 + $0x70] sm:$0xff]
    %v2810 = vld [vmem:[#allocation4 + $0x78] sm:$0xff]
    %v2811 = vld [vmem:[#allocation4 + $0x80] sm:$0xff]
    %v2812 = vld [vmem:[#allocation4 + $0x88] sm:$0xff]
    %v2813 = vld [vmem:[#allocation4 + $0x90] sm:$0xff]
    %v2814 = vld [vmem:[#allocation4 + $0x98] sm:$0xff]
    %v2815 = vld [vmem:[#allocation4 + $0xa0] sm:$0xff]
    %v2816 = vld [vmem:[#allocation4 + $0xa8] sm:$0xff]
    %v2817 = vld [vmem:[#allocation4 + $0xb0] sm:$0xff]
    %v2818 = vld [vmem:[#allocation4 + $0xb8] sm:$0xff]
    %v2819 = vld [vmem:[#allocation4 + $0xc0] sm:$0xff]
    %v2820 = vld [vmem:[#allocation4 + $0xc8] sm:$0xff]
    %v2821 = vld [vmem:[#allocation4 + $0xd0] sm:$0xff]
    %v2822 = vld [vmem:[#allocation4 + $0xd8] sm:$0xff]
    %v2823 = vld [vmem:[#allocation4 + $0xe0] sm:$0xff]
    %v2824 = vld [vmem:[#allocation4 + $0xe8] sm:$0xff]
    %v2825 = vld [vmem:[#allocation4 + $0xf0] sm:$0xff]
    %v2826 = vld [vmem:[#allocation4 + $0xf8] sm:$0xff]
    %v2827 = vld [vmem:[#allocation4 + $0x100] sm:$0xff]
    %v2828 = vld [vmem:[#allocation4 + $0x108] sm:$0xff]
    %v2829 = vld [vmem:[#allocation4 + $0x110] sm:$0xff]
    %v2830 = vld [vmem:[#allocation4 + $0x118] sm:$0xff]
    %v2831 = vld [vmem:[#allocation4 + $0x120] sm:$0xff]
    %v2832 = vld [vmem:[#allocation4 + $0x128] sm:$0xff]
    %v2833 = vld [vmem:[#allocation4 + $0x130] sm:$0xff]
    %v2834 = vld [vmem:[#allocation4 + $0x138] sm:$0xff]
    %v2835 = vld [vmem:[#allocation4 + $0x140] sm:$0xff]
    %v2836 = vld [vmem:[#allocation4 + $0x148] sm:$0xff]
    %v2837 = vld [vmem:[#allocation4 + $0x150] sm:$0xff]
    %v2838 = vld [vmem:[#allocation4 + $0x158] sm:$0xff]
    %v2839 = vld [vmem:[#allocation4 + $0x160] sm:$0xff]
    %v2840 = vld [vmem:[#allocation4 + $0x168] sm:$0xff]
    %v2841 = vld [vmem:[#allocation4 + $0x170] sm:$0xff]
    %v2842 = vld [vmem:[#allocation4 + $0x178] sm:$0xff]
    %v2843 = vld [vmem:[#allocation4 + $0x180] sm:$0xff]
    %v2844 = vld [vmem:[#allocation4 + $0x188] sm:$0xff]
    %v2845 = vld [vmem:[#allocation4 + $0x190] sm:$0xff]
    %v2846 = vld [vmem:[#allocation4 + $0x198] sm:$0xff]
    %v2847 = vld [vmem:[#allocation4 + $0x1a0] sm:$0xff]
    %v2848 = vld [vmem:[#allocation4 + $0x1a8] sm:$0xff]
    %v2849 = vld [vmem:[#allocation4 + $0x1b0] sm:$0xff]
    %v2850 = vld [vmem:[#allocation4 + $0x1b8] sm:$0xff]
    %v2851 = vld [vmem:[#allocation4 + $0x1c0] sm:$0xff]
    %v2852 = vld [vmem:[#allocation4 + $0x1c8] sm:$0xff]
    %v2853 = vld [vmem:[#allocation4 + $0x1d0] sm:$0xff]
    %v2854 = vld [vmem:[#allocation4 + $0x1d8] sm:$0xff]
    %v2855 = vld [vmem:[#allocation4 + $0x1e0] sm:$0xff]
    %v2856 = vld [vmem:[#allocation4 + $0x1e8] sm:$0xff]
    %v2857 = vld [vmem:[#allocation4 + $0x1f0] sm:$0xff]
    %v2858 = vld [vmem:[#allocation4 + $0x1f8] sm:$0xff]
    %v2859 = vld [vmem:[%s8] sm:$0x3]
    %v2861 = vlaneseq
    %v2862 = vshrl.u32 %v2861, 7
    %v2863 = vsub.s32 0, %v2862
    %v2864 = vrot.slane %v2859, %v2863
    %v2865 = vlaneseq
    %v2866 = vshrl.u32 %v2865, 7
    %v2867 = vsub.s32 1, %v2866
    %v2868 = vrot.slane %v2859, %v2867
    %v2935 = vunpack.c.l.b16 %v2795
    %v2936 = vunpack.c.h.b16 %v2795
    %v2937 = vunpack.c.l.b16 %v2796
    %v2938 = vunpack.c.h.b16 %v2796
    %v2939 = vunpack.c.l.b16 %v2797
    %v2940 = vunpack.c.h.b16 %v2797
    %v2941 = vunpack.c.l.b16 %v2798
    %v2942 = vunpack.c.h.b16 %v2798
    %v2943 = vunpack.c.l.b16 %v2799
    %v2944 = vunpack.c.h.b16 %v2799
    %v2945 = vunpack.c.l.b16 %v2800
    %v2946 = vunpack.c.h.b16 %v2800
    %v2947 = vunpack.c.l.b16 %v2801
    %v2948 = vunpack.c.h.b16 %v2801
    %v2949 = vunpack.c.l.b16 %v2802
    %v2950 = vunpack.c.h.b16 %v2802
    %v2951 = vunpack.c.l.b16 %v2803
    %v2952 = vunpack.c.h.b16 %v2803
    %v2953 = vunpack.c.l.b16 %v2804
    %v2954 = vunpack.c.h.b16 %v2804
    %v2955 = vunpack.c.l.b16 %v2805
    %v2956 = vunpack.c.h.b16 %v2805
    %v2957 = vunpack.c.l.b16 %v2806
    %v2958 = vunpack.c.h.b16 %v2806
    %v2959 = vunpack.c.l.b16 %v2807
    %v2960 = vunpack.c.h.b16 %v2807
    %v2961 = vunpack.c.l.b16 %v2808
    %v2962 = vunpack.c.h.b16 %v2808
    %v2963 = vunpack.c.l.b16 %v2809
    %v2964 = vunpack.c.h.b16 %v2809
    %v2965 = vunpack.c.l.b16 %v2810
    %v2966 = vunpack.c.h.b16 %v2810
    %v2967 = vunpack.c.l.b16 %v2811
    %v2968 = vunpack.c.h.b16 %v2811
    %v2969 = vunpack.c.l.b16 %v2812
    %v2970 = vunpack.c.h.b16 %v2812
    %v2971 = vunpack.c.l.b16 %v2813
    %v2972 = vunpack.c.h.b16 %v2813
    %v2973 = vunpack.c.l.b16 %v2814
    %v2974 = vunpack.c.h.b16 %v2814
    %v2975 = vunpack.c.l.b16 %v2815
    %v2976 = vunpack.c.h.b16 %v2815
    %v2977 = vunpack.c.l.b16 %v2816
    %v2978 = vunpack.c.h.b16 %v2816
    %v2979 = vunpack.c.l.b16 %v2817
    %v2980 = vunpack.c.h.b16 %v2817
    %v2981 = vunpack.c.l.b16 %v2818
    %v2982 = vunpack.c.h.b16 %v2818
    %v2983 = vunpack.c.l.b16 %v2819
    %v2984 = vunpack.c.h.b16 %v2819
    %v2985 = vunpack.c.l.b16 %v2820
    %v2986 = vunpack.c.h.b16 %v2820
    %v2987 = vunpack.c.l.b16 %v2821
    %v2988 = vunpack.c.h.b16 %v2821
    %v2989 = vunpack.c.l.b16 %v2822
    %v2990 = vunpack.c.h.b16 %v2822
    %v2991 = vunpack.c.l.b16 %v2823
    %v2992 = vunpack.c.h.b16 %v2823
    %v2993 = vunpack.c.l.b16 %v2824
    %v2994 = vunpack.c.h.b16 %v2824
    %v2995 = vunpack.c.l.b16 %v2825
    %v2996 = vunpack.c.h.b16 %v2825
    %v2997 = vunpack.c.l.b16 %v2826
    %v2998 = vunpack.c.h.b16 %v2826
    %v2999 = vunpack.c.l.b16 %v2827
    %v3000 = vunpack.c.h.b16 %v2827
    %v3001 = vunpack.c.l.b16 %v2828
    %v3002 = vunpack.c.h.b16 %v2828
    %v3003 = vunpack.c.l.b16 %v2829
    %v3004 = vunpack.c.h.b16 %v2829
    %v3005 = vunpack.c.l.b16 %v2830
    %v3006 = vunpack.c.h.b16 %v2830
    %v3007 = vunpack.c.l.b16 %v2831
    %v3008 = vunpack.c.h.b16 %v2831
    %v3009 = vunpack.c.l.b16 %v2832
    %v3010 = vunpack.c.h.b16 %v2832
    %v3011 = vunpack.c.l.b16 %v2833
    %v3012 = vunpack.c.h.b16 %v2833
    %v3013 = vunpack.c.l.b16 %v2834
    %v3014 = vunpack.c.h.b16 %v2834
    %v3015 = vunpack.c.l.b16 %v2835
    %v3016 = vunpack.c.h.b16 %v2835
    %v3017 = vunpack.c.l.b16 %v2836
    %v3018 = vunpack.c.h.b16 %v2836
    %v3019 = vunpack.c.l.b16 %v2837
    %v3020 = vunpack.c.h.b16 %v2837
    %v3021 = vunpack.c.l.b16 %v2838
    %v3022 = vunpack.c.h.b16 %v2838
    %v3023 = vunpack.c.l.b16 %v2839
    %v3024 = vunpack.c.h.b16 %v2839
    %v3025 = vunpack.c.l.b16 %v2840
    %v3026 = vunpack.c.h.b16 %v2840
    %v3027 = vunpack.c.l.b16 %v2841
    %v3028 = vunpack.c.h.b16 %v2841
    %v3029 = vunpack.c.l.b16 %v2842
    %v3030 = vunpack.c.h.b16 %v2842
    %v3031 = vunpack.c.l.b16 %v2843
    %v3032 = vunpack.c.h.b16 %v2843
    %v3033 = vunpack.c.l.b16 %v2844
    %v3034 = vunpack.c.h.b16 %v2844
    %v3035 = vunpack.c.l.b16 %v2845
    %v3036 = vunpack.c.h.b16 %v2845
    %v3037 = vunpack.c.l.b16 %v2846
    %v3038 = vunpack.c.h.b16 %v2846
    %v3039 = vunpack.c.l.b16 %v2847
    %v3040 = vunpack.c.h.b16 %v2847
    %v3041 = vunpack.c.l.b16 %v2848
    %v3042 = vunpack.c.h.b16 %v2848
    %v3043 = vunpack.c.l.b16 %v2849
    %v3044 = vunpack.c.h.b16 %v2849
    %v3045 = vunpack.c.l.b16 %v2850
    %v3046 = vunpack.c.h.b16 %v2850
    %v3047 = vunpack.c.l.b16 %v2851
    %v3048 = vunpack.c.h.b16 %v2851
    %v3049 = vunpack.c.l.b16 %v2852
    %v3050 = vunpack.c.h.b16 %v2852
    %v3051 = vunpack.c.l.b16 %v2853
    %v3052 = vunpack.c.h.b16 %v2853
    %v3053 = vunpack.c.l.b16 %v2854
    %v3054 = vunpack.c.h.b16 %v2854
    %v3055 = vunpack.c.l.b16 %v2855
    %v3056 = vunpack.c.h.b16 %v2855
    %v3057 = vunpack.c.l.b16 %v2856
    %v3058 = vunpack.c.h.b16 %v2856
    %v3059 = vunpack.c.l.b16 %v2857
    %v3060 = vunpack.c.h.b16 %v2857
    %v3061 = vunpack.c.l.b16 %v2858
    %v3062 = vunpack.c.h.b16 %v2858
    %v3063 = vpack.c.b16 %v2937, %v2935
    %v3064 = vpack.c.b16 %v2938, %v2936
    %v3065 = vpack.c.b16 %v2941, %v2939
    %v3066 = vpack.c.b16 %v2942, %v2940
    %v3067 = vpack.c.b16 %v2945, %v2943
    %v3068 = vpack.c.b16 %v2946, %v2944
    %v3069 = vpack.c.b16 %v2949, %v2947
    %v3070 = vpack.c.b16 %v2950, %v2948
    %v3071 = vpack.c.b16 %v2953, %v2951
    %v3072 = vpack.c.b16 %v2954, %v2952
    %v3073 = vpack.c.b16 %v2957, %v2955
    %v3074 = vpack.c.b16 %v2958, %v2956
    %v3075 = vpack.c.b16 %v2961, %v2959
    %v3076 = vpack.c.b16 %v2962, %v2960
    %v3077 = vpack.c.b16 %v2965, %v2963
    %v3078 = vpack.c.b16 %v2966, %v2964
    %v3079 = vpack.c.b16 %v2969, %v2967
    %v3080 = vpack.c.b16 %v2970, %v2968
    %v3081 = vpack.c.b16 %v2973, %v2971
    %v3082 = vpack.c.b16 %v2974, %v2972
    %v3083 = vpack.c.b16 %v2977, %v2975
    %v3084 = vpack.c.b16 %v2978, %v2976
    %v3085 = vpack.c.b16 %v2981, %v2979
    %v3086 = vpack.c.b16 %v2982, %v2980
    %v3087 = vpack.c.b16 %v2985, %v2983
    %v3088 = vpack.c.b16 %v2986, %v2984
    %v3089 = vpack.c.b16 %v2989, %v2987
    %v3090 = vpack.c.b16 %v2990, %v2988
    %v3091 = vpack.c.b16 %v2993, %v2991
    %v3092 = vpack.c.b16 %v2994, %v2992
    %v3093 = vpack.c.b16 %v2997, %v2995
    %v3094 = vpack.c.b16 %v2998, %v2996
    %v3095 = vpack.c.b16 %v3001, %v2999
    %v3096 = vpack.c.b16 %v3002, %v3000
    %v3097 = vpack.c.b16 %v3005, %v3003
    %v3098 = vpack.c.b16 %v3006, %v3004
    %v3099 = vpack.c.b16 %v3009, %v3007
    %v3100 = vpack.c.b16 %v3010, %v3008
    %v3101 = vpack.c.b16 %v3013, %v3011
    %v3102 = vpack.c.b16 %v3014, %v3012
    %v3103 = vpack.c.b16 %v3017, %v3015
    %v3104 = vpack.c.b16 %v3018, %v3016
    %v3105 = vpack.c.b16 %v3021, %v3019
    %v3106 = vpack.c.b16 %v3022, %v3020
    %v3107 = vpack.c.b16 %v3025, %v3023
    %v3108 = vpack.c.b16 %v3026, %v3024
    %v3109 = vpack.c.b16 %v3029, %v3027
    %v3110 = vpack.c.b16 %v3030, %v3028
    %v3111 = vpack.c.b16 %v3033, %v3031
    %v3112 = vpack.c.b16 %v3034, %v3032
    %v3113 = vpack.c.b16 %v3037, %v3035
    %v3114 = vpack.c.b16 %v3038, %v3036
    %v3115 = vpack.c.b16 %v3041, %v3039
    %v3116 = vpack.c.b16 %v3042, %v3040
    %v3117 = vpack.c.b16 %v3045, %v3043
    %v3118 = vpack.c.b16 %v3046, %v3044
    %v3119 = vpack.c.b16 %v3049, %v3047
    %v3120 = vpack.c.b16 %v3050, %v3048
    %v3121 = vpack.c.b16 %v3053, %v3051
    %v3122 = vpack.c.b16 %v3054, %v3052
    %v3123 = vpack.c.b16 %v3057, %v3055
    %v3124 = vpack.c.b16 %v3058, %v3056
    %v3125 = vpack.c.b16 %v3061, %v3059
    %v3126 = vpack.c.b16 %v3062, %v3060
    %3191 = vmatprep.subr.bf16.mxu0 %v3064
    %3192 = vmatpush1.bf16.msra.mxu0 %v3063
    %3193 = vmatprep.subr.bf16.mxu0 %v3066
    %3194 = vmatpush1.bf16.msra.mxu0 %v3065
    %3195 = vmatprep.subr.bf16.mxu0 %v3068
    %3196 = vmatpush1.bf16.msra.mxu0 %v3067
    %3197 = vmatprep.subr.bf16.mxu0 %v3070
    %3198 = vmatpush1.bf16.msra.mxu0 %v3069
    %3199 = vmatprep.subr.bf16.mxu0 %v3072
    %3200 = vmatpush1.bf16.msra.mxu0 %v3071
    %3201 = vmatprep.subr.bf16.mxu0 %v3074
    %3202 = vmatpush1.bf16.msra.mxu0 %v3073
    %3203 = vmatprep.subr.bf16.mxu0 %v3076
    %3204 = vmatpush1.bf16.msra.mxu0 %v3075
    %3205 = vmatprep.subr.bf16.mxu0 %v3078
    %3206 = vmatpush1.bf16.msra.mxu0 %v3077
    %3207 = vmatprep.subr.bf16.mxu0 %v3080
    %3208 = vmatpush1.bf16.msra.mxu0 %v3079
    %3209 = vmatprep.subr.bf16.mxu0 %v3082
    %3210 = vmatpush1.bf16.msra.mxu0 %v3081
    %3211 = vmatprep.subr.bf16.mxu0 %v3084
    %3212 = vmatpush1.bf16.msra.mxu0 %v3083
    %3213 = vmatprep.subr.bf16.mxu0 %v3086
    %3214 = vmatpush1.bf16.msra.mxu0 %v3085
    %3215 = vmatprep.subr.bf16.mxu0 %v3088
    %3216 = vmatpush1.bf16.msra.mxu0 %v3087
    %3217 = vmatprep.subr.bf16.mxu0 %v3090
    %3218 = vmatpush1.bf16.msra.mxu0 %v3089
    %3219 = vmatprep.subr.bf16.mxu0 %v3092
    %3220 = vmatpush1.bf16.msra.mxu0 %v3091
    %3221 = vmatprep.subr.bf16.mxu0 %v3094
    %3222 = vmatpush1.bf16.msra.mxu0 %v3093
    %3223 = vmatprep.mubr.bf16.mxu0 %v2792
    %3224 = vmatmul.mubr.bf16.gmra.mrb[0].mxu0 %v2791
    %v3225 = vpop.f32.mrb[0].mxu0
    %v3226 = vadd.f32 %v2864, %v3225
    %v3227 = vpop.f32.mrb[0].mxu0
    %v3228 = vadd.f32 %v2868, %v3227
    %v3229 = vpop.f32.mrb[0].mxu0
    %v3230 = vpop.f32.mrb[0].mxu0
    %3231 = vdwg.mxu0
    %3232 = vmatprep.subr.bf16.mxu0 %v3096
    %3233 = vmatpush1.bf16.msra.mxu0 %v3095
    %3234 = vmatprep.subr.bf16.mxu0 %v3098
    %3235 = vmatpush1.bf16.msra.mxu0 %v3097
    %3236 = vmatprep.subr.bf16.mxu0 %v3100
    %3237 = vmatpush1.bf16.msra.mxu0 %v3099
    %3238 = vmatprep.subr.bf16.mxu0 %v3102
    %3239 = vmatpush1.bf16.msra.mxu0 %v3101
    %3240 = vmatprep.subr.bf16.mxu0 %v3104
    %3241 = vmatpush1.bf16.msra.mxu0 %v3103
    %3242 = vmatprep.subr.bf16.mxu0 %v3106
    %3243 = vmatpush1.bf16.msra.mxu0 %v3105
    %3244 = vmatprep.subr.bf16.mxu0 %v3108
    %3245 = vmatpush1.bf16.msra.mxu0 %v3107
    %3246 = vmatprep.subr.bf16.mxu0 %v3110
    %3247 = vmatpush1.bf16.msra.mxu0 %v3109
    %3248 = vmatprep.subr.bf16.mxu0 %v3112
    %3249 = vmatpush1.bf16.msra.mxu0 %v3111
    %3250 = vmatprep.subr.bf16.mxu0 %v3114
    %3251 = vmatpush1.bf16.msra.mxu0 %v3113
    %3252 = vmatprep.subr.bf16.mxu0 %v3116
    %3253 = vmatpush1.bf16.msra.mxu0 %v3115
    %3254 = vmatprep.subr.bf16.mxu0 %v3118
    %3255 = vmatpush1.bf16.msra.mxu0 %v3117
    %3256 = vmatprep.subr.bf16.mxu0 %v3120
    %3257 = vmatpush1.bf16.msra.mxu0 %v3119
    %3258 = vmatprep.subr.bf16.mxu0 %v3122
    %3259 = vmatpush1.bf16.msra.mxu0 %v3121
    %3260 = vmatprep.subr.bf16.mxu0 %v3124
    %3261 = vmatpush1.bf16.msra.mxu0 %v3123
    %3262 = vmatprep.subr.bf16.mxu0 %v3126
    %3263 = vmatpush1.bf16.msra.mxu0 %v3125
    %3264 = vmatprep.mubr.bf16.mxu0 %v2794
    %3265 = vmatmul.mubr.bf16.gmra.mrb[0].mxu0 %v2793
    %v3266 = vpop.f32.mrb[0].mxu0
    %v3267 = vadd.f32 %v3226, %v3266
    %v3268 = vpop.f32.mrb[0].mxu0
    %v3269 = vadd.f32 %v3228, %v3268
    %v3270 = vpop.f32.mrb[0].mxu0
    %v3271 = vpop.f32.mrb[0].mxu0
    %3272 = vdwg.mxu0
    %v3273 = vsel %vm2036, %v3267, 0.0
    %v3274 = vrot.slane %v3273, 4
    %v3275 = vadd.f32 %v3273, %v3274
    %v3276 = vrot.slane %v3275, 2
    %v3277 = vadd.f32 %v3275, %v3276
    %v3278 = vrot.slane %v3277, 1
    %v3279 = vadd.f32 %v3277, %v3278
    %v3280 = vsel %vm2036, %v3269, 0.0
    %v3281 = vrot.slane %v3280, 4
    %v3282 = vadd.f32 %v3280, %v3281
    %v3283 = vrot.slane %v3282, 2
    %v3284 = vadd.f32 %v3282, %v3283
    %v3285 = vrot.slane %v3284, 1
    %v3286 = vadd.f32 %v3284, %v3285
    %v3287 = vld [vmem:[%s11] sm:$0xff]
    %v3288 = vld [vmem:[%s11 + $0x8] sm:$0xff]
    %v3289 = vld [vmem:[%s11 + $0x10] sm:$0xff]
    %v3290 = vld [vmem:[%s11 + $0x18] sm:$0xff]
    %v3291 = vld [vmem:[%s11 + $0x20] sm:$0xff]
    %v3292 = vld [vmem:[%s11 + $0x28] sm:$0xff]
    %v3293 = vld [vmem:[%s11 + $0x30] sm:$0xff]
    %v3294 = vld [vmem:[%s11 + $0x38] sm:$0xff]
    %v3295 = vld [vmem:[%s11 + $0x40] sm:$0xff]
    %v3296 = vld [vmem:[%s11 + $0x48] sm:$0xff]
    %v3297 = vld [vmem:[%s11 + $0x50] sm:$0xff]
    %v3298 = vld [vmem:[%s11 + $0x58] sm:$0xff]
    %v3299 = vld [vmem:[%s11 + $0x60] sm:$0xff]
    %v3300 = vld [vmem:[%s11 + $0x68] sm:$0xff]
    %v3301 = vld [vmem:[%s11 + $0x70] sm:$0xff]
    %v3302 = vld [vmem:[%s11 + $0x78] sm:$0xff]
    %v3303 = vld [vmem:[%s11 + $0x80] sm:$0xff]
    %v3304 = vld [vmem:[%s11 + $0x88] sm:$0xff]
    %v3305 = vld [vmem:[%s11 + $0x90] sm:$0xff]
    %v3306 = vld [vmem:[%s11 + $0x98] sm:$0xff]
    %v3307 = vld [vmem:[%s11 + $0xa0] sm:$0xff]
    %v3308 = vld [vmem:[%s11 + $0xa8] sm:$0xff]
    %v3309 = vld [vmem:[%s11 + $0xb0] sm:$0xff]
    %v3310 = vld [vmem:[%s11 + $0xb8] sm:$0xff]
    %v3311 = vld [vmem:[%s11 + $0xc0] sm:$0xff]
    %v3312 = vld [vmem:[%s11 + $0xc8] sm:$0xff]
    %v3313 = vld [vmem:[%s11 + $0xd0] sm:$0xff]
    %v3314 = vld [vmem:[%s11 + $0xd8] sm:$0xff]
    %v3315 = vld [vmem:[%s11 + $0xe0] sm:$0xff]
    %v3316 = vld [vmem:[%s11 + $0xe8] sm:$0xff]
    %v3317 = vld [vmem:[%s11 + $0xf0] sm:$0xff]
    %v3318 = vld [vmem:[%s11 + $0xf8] sm:$0xff]
    %3319 = vmatprep.subr.mxu0 0.0
    %3320 = vmatpush1.msra.mxu0 %v3287
    %3321 = vmatprep.subr.mxu0 0.0
    %3322 = vmatpush1.msra.mxu0 %v3288
    %3323 = vmatprep.subr.mxu0 0.0
    %3324 = vmatpush1.msra.mxu0 %v3289
    %3325 = vmatprep.subr.mxu0 0.0
    %3326 = vmatpush1.msra.mxu0 %v3290
    %3327 = vmatprep.subr.mxu0 0.0
    %3328 = vmatpush1.msra.mxu0 %v3291
    %3329 = vmatprep.subr.mxu0 0.0
    %3330 = vmatpush1.msra.mxu0 %v3292
    %3331 = vmatprep.subr.mxu0 0.0
    %3332 = vmatpush1.msra.mxu0 %v3293
    %3333 = vmatprep.subr.mxu0 0.0
    %3334 = vmatpush1.msra.mxu0 %v3294
    %3335 = vmatprep.subr.mxu0 0.0
    %3336 = vmatpush1.msra.mxu0 %v3295
    %3337 = vmatprep.subr.mxu0 0.0
    %3338 = vmatpush1.msra.mxu0 %v3296
    %3339 = vmatprep.subr.mxu0 0.0
    %3340 = vmatpush1.msra.mxu0 %v3297
    %3341 = vmatprep.subr.mxu0 0.0
    %3342 = vmatpush1.msra.mxu0 %v3298
    %3343 = vmatprep.subr.mxu0 0.0
    %3344 = vmatpush1.msra.mxu0 %v3299
    %3345 = vmatprep.subr.mxu0 0.0
    %3346 = vmatpush1.msra.mxu0 %v3300
    %3347 = vmatprep.subr.mxu0 0.0
    %3348 = vmatpush1.msra.mxu0 %v3301
    %3349 = vmatprep.subr.mxu0 0.0
    %3350 = vmatpush1.msra.mxu0 %v3302
    %3351 = vmatprep.subr.mxu0 0.0
    %3352 = vmatpush1.msra.mxu0 %v3303
    %3353 = vmatprep.subr.mxu0 0.0
    %3354 = vmatpush1.msra.mxu0 %v3304
    %3355 = vmatprep.subr.mxu0 0.0
    %3356 = vmatpush1.msra.mxu0 %v3305
    %3357 = vmatprep.subr.mxu0 0.0
    %3358 = vmatpush1.msra.mxu0 %v3306
    %3359 = vmatprep.subr.mxu0 0.0
    %3360 = vmatpush1.msra.mxu0 %v3307
    %3361 = vmatprep.subr.mxu0 0.0
    %3362 = vmatpush1.msra.mxu0 %v3308
    %3363 = vmatprep.subr.mxu0 0.0
    %3364 = vmatpush1.msra.mxu0 %v3309
    %3365 = vmatprep.subr.mxu0 0.0
    %3366 = vmatpush1.msra.mxu0 %v3310
    %3367 = vmatprep.subr.mxu0 0.0
    %3368 = vmatpush1.msra.mxu0 %v3311
    %3369 = vmatprep.subr.mxu0 0.0
    %3370 = vmatpush1.msra.mxu0 %v3312
    %3371 = vmatprep.subr.mxu0 0.0
    %3372 = vmatpush1.msra.mxu0 %v3313
    %3373 = vmatprep.subr.mxu0 0.0
    %3374 = vmatpush1.msra.mxu0 %v3314
    %3375 = vmatprep.subr.mxu0 0.0
    %3376 = vmatpush1.msra.mxu0 %v3315
    %3377 = vmatprep.subr.mxu0 0.0
    %3378 = vmatpush1.msra.mxu0 %v3316
    %3379 = vmatprep.subr.mxu0 0.0
    %3380 = vmatpush1.msra.mxu0 %v3317
    %3381 = vmatprep.subr.mxu0 0.0
    %3382 = vmatpush1.msra.mxu0 %v3318
    %3383 = vmatprep.mubr.f32.mxu0 %v3286
    %3384 = vmatmul.mubr.f32.gmra.mrb[0].mxu0 %v3279
    %v3385 = vpop.f32.mrb[0].mxu0
    %v3386 = vadd.f32 0.0, %v3385
    %v3387 = vpop.f32.mrb[0].mxu0
    %3388 = vdwg.mxu0
    %v3389 = vmul.f32 %v3267, %v3267
    %v3390 = vmul.f32 %v3269, %v3269
    %v3391 = vsel %vm2036, %v3389, 0.0
    %v3392 = vrot.slane %v3391, 4
    %v3393 = vadd.f32 %v3391, %v3392
    %v3394 = vrot.slane %v3393, 2
    %v3395 = vadd.f32 %v3393, %v3394
    %v3396 = vrot.slane %v3395, 1
    %v3397 = vadd.f32 %v3395, %v3396
    %v3398 = vsel %vm2036, %v3390, 0.0
    %v3399 = vrot.slane %v3398, 4
    %v3400 = vadd.f32 %v3398, %v3399
    %v3401 = vrot.slane %v3400, 2
    %v3402 = vadd.f32 %v3400, %v3401
    %v3403 = vrot.slane %v3402, 1
    %v3404 = vadd.f32 %v3402, %v3403
    %3405 = vmatprep.subr.mxu0 0.0
    %3406 = vmatpush1.msra.mxu0 %v3287
    %3407 = vmatprep.subr.mxu0 0.0
    %3408 = vmatpush1.msra.mxu0 %v3288
    %3409 = vmatprep.subr.mxu0 0.0
    %3410 = vmatpush1.msra.mxu0 %v3289
    %3411 = vmatprep.subr.mxu0 0.0
    %3412 = vmatpush1.msra.mxu0 %v3290
    %3413 = vmatprep.subr.mxu0 0.0
    %3414 = vmatpush1.msra.mxu0 %v3291
    %3415 = vmatprep.subr.mxu0 0.0
    %3416 = vmatpush1.msra.mxu0 %v3292
    %3417 = vmatprep.subr.mxu0 0.0
    %3418 = vmatpush1.msra.mxu0 %v3293
    %3419 = vmatprep.subr.mxu0 0.0
    %3420 = vmatpush1.msra.mxu0 %v3294
    %3421 = vmatprep.subr.mxu0 0.0
    %3422 = vmatpush1.msra.mxu0 %v3295
    %3423 = vmatprep.subr.mxu0 0.0
    %3424 = vmatpush1.msra.mxu0 %v3296
    %3425 = vmatprep.subr.mxu0 0.0
    %3426 = vmatpush1.msra.mxu0 %v3297
    %3427 = vmatprep.subr.mxu0 0.0
    %3428 = vmatpush1.msra.mxu0 %v3298
    %3429 = vmatprep.subr.mxu0 0.0
    %3430 = vmatpush1.msra.mxu0 %v3299
    %3431 = vmatprep.subr.mxu0 0.0
    %3432 = vmatpush1.msra.mxu0 %v3300
    %3433 = vmatprep.subr.mxu0 0.0
    %3434 = vmatpush1.msra.mxu0 %v3301
    %3435 = vmatprep.subr.mxu0 0.0
    %3436 = vmatpush1.msra.mxu0 %v3302
    %3437 = vmatprep.subr.mxu0 0.0
    %3438 = vmatpush1.msra.mxu0 %v3303
    %3439 = vmatprep.subr.mxu0 0.0
    %3440 = vmatpush1.msra.mxu0 %v3304
    %3441 = vmatprep.subr.mxu0 0.0
    %3442 = vmatpush1.msra.mxu0 %v3305
    %3443 = vmatprep.subr.mxu0 0.0
    %3444 = vmatpush1.msra.mxu0 %v3306
    %3445 = vmatprep.subr.mxu0 0.0
    %3446 = vmatpush1.msra.mxu0 %v3307
    %3447 = vmatprep.subr.mxu0 0.0
    %3448 = vmatpush1.msra.mxu0 %v3308
    %3449 = vmatprep.subr.mxu0 0.0
    %3450 = vmatpush1.msra.mxu0 %v3309
    %3451 = vmatprep.subr.mxu0 0.0
    %3452 = vmatpush1.msra.mxu0 %v3310
    %3453 = vmatprep.subr.mxu0 0.0
    %3454 = vmatpush1.msra.mxu0 %v3311
    %3455 = vmatprep.subr.mxu0 0.0
    %3456 = vmatpush1.msra.mxu0 %v3312
    %3457 = vmatprep.subr.mxu0 0.0
    %3458 = vmatpush1.msra.mxu0 %v3313
    %3459 = vmatprep.subr.mxu0 0.0
    %3460 = vmatpush1.msra.mxu0 %v3314
    %3461 = vmatprep.subr.mxu0 0.0
    %3462 = vmatpush1.msra.mxu0 %v3315
    %3463 = vmatprep.subr.mxu0 0.0
    %3464 = vmatpush1.msra.mxu0 %v3316
    %3465 = vmatprep.subr.mxu0 0.0
    %3466 = vmatpush1.msra.mxu0 %v3317
    %3467 = vmatprep.subr.mxu0 0.0
    %3468 = vmatpush1.msra.mxu0 %v3318
    %3469 = vmatprep.mubr.f32.mxu0 %v3404
    %3470 = vmatmul.mubr.f32.gmra.mrb[0].mxu0 %v3397
    %v3471 = vpop.f32.mrb[0].mxu0
    %v3472 = vadd.f32 0.0, %v3471
    %v3473 = vpop.f32.mrb[0].mxu0
    %3474 = vdwg.mxu0
    %v3475 = vmul.f32 %v3386, 0.03125
    %v3476 = vmul.f32 %v3472, 0.03125
    %v3477 = vmul.f32 %v3475, %v3475
    %v3478 = vsub.f32 %v3476, %v3477
    %v3479 = vld [vmem:[%s9] sm:$0x1]
    %v3480 = vadd.f32 %v3478, 1e-05
    %v3481 = vrsqrt.pop %v3480
    %v3482 = vmul.f32 %v3479, %v3481
    %v3483 = vld [vmem:[%s10] sm:$0x1]
    %v3484 = vmul.f32 %v3475, %v3482
    %v3485 = vsub.f32 %v3483, %v3484
    %v3486 = vld [vmem:[#allocation6] sm:$0xff]
    %v3487 = vld [vmem:[#allocation6 + $0x8] sm:$0xff]
    %v3488 = vld [vmem:[#allocation6 + $0x10] sm:$0xff]
    %v3489 = vld [vmem:[#allocation6 + $0x18] sm:$0xff]
    %vm3490 = vcmask 130048
    %v3492 = vsel %vm3490, %v3482, 0
    %3494 = vmatprep.subr.mxu0 %v3487
    %3495 = vmatpush1.msra.mxu0 %v3486
    %3496 = vmatprep.subr.mxu0 %v3489
    %3497 = vmatpush1.msra.mxu0 %v3488
    %3498 = vmatprep.subr.mxu0 0.0
    %3499 = vmatpush1.msra.mxu0 0.0
    %3500 = vmatprep.subr.mxu0 0.0
    %3501 = vmatpush1.msra.mxu0 0.0
    %3502 = vmatprep.subr.mxu0 0.0
    %3503 = vmatpush1.msra.mxu0 0.0
    %3504 = vmatprep.subr.mxu0 0.0
    %3505 = vmatpush1.msra.mxu0 0.0
    %3506 = vmatprep.subr.mxu0 0.0
    %3507 = vmatpush1.msra.mxu0 0.0
    %3508 = vmatprep.subr.mxu0 0.0
    %3509 = vmatpush1.msra.mxu0 0.0
    %3510 = vmatprep.subr.mxu0 0.0
    %3511 = vmatpush1.msra.mxu0 0.0
    %3512 = vmatprep.subr.mxu0 0.0
    %3513 = vmatpush1.msra.mxu0 0.0
    %3514 = vmatprep.subr.mxu0 0.0
    %3515 = vmatpush1.msra.mxu0 0.0
    %3516 = vmatprep.subr.mxu0 0.0
    %3517 = vmatpush1.msra.mxu0 0.0
    %3518 = vmatprep.subr.mxu0 0.0
    %3519 = vmatpush1.msra.mxu0 0.0
    %3520 = vmatprep.subr.mxu0 0.0
    %3521 = vmatpush1.msra.mxu0 0.0
    %3522 = vmatprep.subr.mxu0 0.0
    %3523 = vmatpush1.msra.mxu0 0.0
    %3524 = vmatprep.subr.mxu0 0.0
    %3525 = vmatpush1.msra.mxu0 0.0
    %3526 = vmatprep.subr.mxu0 0.0
    %3527 = vmatpush1.msra.mxu0 0.0
    %3528 = vmatprep.subr.mxu0 0.0
    %3529 = vmatpush1.msra.mxu0 0.0
    %3530 = vmatprep.subr.mxu0 0.0
    %3531 = vmatpush1.msra.mxu0 0.0
    %3532 = vmatprep.subr.mxu0 0.0
    %3533 = vmatpush1.msra.mxu0 0.0
    %3534 = vmatprep.subr.mxu0 0.0
    %3535 = vmatpush1.msra.mxu0 0.0
    %3536 = vmatprep.subr.mxu0 0.0
    %3537 = vmatpush1.msra.mxu0 0.0
    %3538 = vmatprep.subr.mxu0 0.0
    %3539 = vmatpush1.msra.mxu0 0.0
    %3540 = vmatprep.subr.mxu0 0.0
    %3541 = vmatpush1.msra.mxu0 0.0
    %3542 = vmatprep.subr.mxu0 0.0
    %3543 = vmatpush1.msra.mxu0 0.0
    %3544 = vmatprep.subr.mxu0 0.0
    %3545 = vmatpush1.msra.mxu0 0.0
    %3546 = vmatprep.subr.mxu0 0.0
    %3547 = vmatpush1.msra.mxu0 0.0
    %3548 = vmatprep.subr.mxu0 0.0
    %3549 = vmatpush1.msra.mxu0 0.0
    %3550 = vmatprep.subr.mxu0 0.0
    %3551 = vmatpush1.msra.mxu0 0.0
    %3552 = vmatprep.subr.mxu0 0.0
    %3553 = vmatpush1.msra.mxu0 0.0
    %3554 = vmatprep.subr.mxu0 0.0
    %3555 = vmatpush1.msra.mxu0 0.0
    %3556 = vmatprep.subr.mxu0 0.0
    %3557 = vmatpush1.msra.mxu0 0.0
    %3558 = vmatprep.mubr.f32.mxu0 0.0
    %3559 = vmatmul.mubr.f32.gmra.mrb[0].mxu0 %v3492
    %v3560 = vpop.f32.mrb[0].mxu0
    %v3561 = vadd.f32 0.0, %v3560
    %v3562 = vpop.f32.mrb[0].mxu0
    %v3563 = vadd.f32 0.0, %v3562
    %3564 = vdwg.mxu0
    %v3566 = vsel %vm3490, %v3485, 0
    %3568 = vmatprep.subr.mxu0 %v3487
    %3569 = vmatpush1.msra.mxu0 %v3486
    %3570 = vmatprep.subr.mxu0 %v3489
    %3571 = vmatpush1.msra.mxu0 %v3488
    %3572 = vmatprep.subr.mxu0 0.0
    %3573 = vmatpush1.msra.mxu0 0.0
    %3574 = vmatprep.subr.mxu0 0.0
    %3575 = vmatpush1.msra.mxu0 0.0
    %3576 = vmatprep.subr.mxu0 0.0
    %3577 = vmatpush1.msra.mxu0 0.0
    %3578 = vmatprep.subr.mxu0 0.0
    %3579 = vmatpush1.msra.mxu0 0.0
    %3580 = vmatprep.subr.mxu0 0.0
    %3581 = vmatpush1.msra.mxu0 0.0
    %3582 = vmatprep.subr.mxu0 0.0
    %3583 = vmatpush1.msra.mxu0 0.0
    %3584 = vmatprep.subr.mxu0 0.0
    %3585 = vmatpush1.msra.mxu0 0.0
    %3586 = vmatprep.subr.mxu0 0.0
    %3587 = vmatpush1.msra.mxu0 0.0
    %3588 = vmatprep.subr.mxu0 0.0
    %3589 = vmatpush1.msra.mxu0 0.0
    %3590 = vmatprep.subr.mxu0 0.0
    %3591 = vmatpush1.msra.mxu0 0.0
    %3592 = vmatprep.subr.mxu0 0.0
    %3593 = vmatpush1.msra.mxu0 0.0
    %3594 = vmatprep.subr.mxu0 0.0
    %3595 = vmatpush1.msra.mxu0 0.0
    %3596 = vmatprep.subr.mxu0 0.0
    %3597 = vmatpush1.msra.mxu0 0.0
    %3598 = vmatprep.subr.mxu0 0.0
    %3599 = vmatpush1.msra.mxu0 0.0
    %3600 = vmatprep.subr.mxu0 0.0
    %3601 = vmatpush1.msra.mxu0 0.0
    %3602 = vmatprep.subr.mxu0 0.0
    %3603 = vmatpush1.msra.mxu0 0.0
    %3604 = vmatprep.subr.mxu0 0.0
    %3605 = vmatpush1.msra.mxu0 0.0
    %3606 = vmatprep.subr.mxu0 0.0
    %3607 = vmatpush1.msra.mxu0 0.0
    %3608 = vmatprep.subr.mxu0 0.0
    %3609 = vmatpush1.msra.mxu0 0.0
    %3610 = vmatprep.subr.mxu0 0.0
    %3611 = vmatpush1.msra.mxu0 0.0
    %3612 = vmatprep.subr.mxu0 0.0
    %3613 = vmatpush1.msra.mxu0 0.0
    %3614 = vmatprep.subr.mxu0 0.0
    %3615 = vmatpush1.msra.mxu0 0.0
    %3616 = vmatprep.subr.mxu0 0.0
    %3617 = vmatpush1.msra.mxu0 0.0
    %3618 = vmatprep.subr.mxu0 0.0
    %3619 = vmatpush1.msra.mxu0 0.0
    %3620 = vmatprep.subr.mxu0 0.0
    %3621 = vmatpush1.msra.mxu0 0.0
    %3622 = vmatprep.subr.mxu0 0.0
    %3623 = vmatpush1.msra.mxu0 0.0
    %3624 = vmatprep.subr.mxu0 0.0
    %3625 = vmatpush1.msra.mxu0 0.0
    %3626 = vmatprep.subr.mxu0 0.0
    %3627 = vmatpush1.msra.mxu0 0.0
    %3628 = vmatprep.subr.mxu0 0.0
    %3629 = vmatpush1.msra.mxu0 0.0
    %3630 = vmatprep.subr.mxu0 0.0
    %3631 = vmatpush1.msra.mxu0 0.0
    %3632 = vmatprep.mubr.f32.mxu0 0.0
    %3633 = vmatmul.mubr.f32.gmra.mrb[0].mxu0 %v3566
    %v3634 = vpop.f32.mrb[0].mxu0
    %v3635 = vadd.f32 0.0, %v3634
    %v3636 = vpop.f32.mrb[0].mxu0
    %v3637 = vadd.f32 0.0, %v3636
    %3638 = vdwg.mxu0
    %v3639 = vlaneseq
    %v3640 = vshrl.u32 %v3639, 7
    %v3641 = vsub.s32 0, %v3640
    %v3642 = vrot.slane %v3561, %v3641
    %v3643 = vlaneseq
    %v3644 = vshrl.u32 %v3643, 7
    %v3645 = vsub.s32 0, %v3644
    %v3646 = vrot.slane %v3563, %v3645
    %v3647 = vmul.f32 %v3267, %v3642
    %v3648 = vmul.f32 %v3269, %v3646
    %v3649 = vlaneseq
    %v3650 = vshrl.u32 %v3649, 7
    %v3651 = vsub.s32 0, %v3650
    %v3652 = vrot.slane %v3635, %v3651
    %v3653 = vlaneseq
    %v3654 = vshrl.u32 %v3653, 7
    %v3655 = vsub.s32 0, %v3654
    %v3656 = vrot.slane %v3637, %v3655
    %v3657 = vadd.f32 %v3647, %v3652
    %v3658 = vadd.f32 %v3648, %v3656
    %v3659 = vmax.f32 %v3657, 0.0
    %v3660 = vmax.f32 %v3658, 0.0
    %v3661 = vpack.c.bf16 %v3659, %v3659
    %v3662 = vpack.c.bf16 %v3660, %v3660
    %v3663 = vld [vmem:[%s13] sm:$0xf]
    %v3664 = vld [vmem:[%s13 + $0x4] sm:$0xf]
    %v3665 = vld [vmem:[%s13 + $0x8] sm:$0xf]
    %v3666 = vld [vmem:[%s13 + $0xc] sm:$0xf]
    %v3667 = vld [vmem:[%s13 + $0x10] sm:$0xf]
    %v3668 = vld [vmem:[%s13 + $0x14] sm:$0xf]
    %v3669 = vld [vmem:[%s13 + $0x18] sm:$0xf]
    %v3670 = vld [vmem:[%s13 + $0x1c] sm:$0xf]
    %v3671 = vld [vmem:[%s13 + $0x20] sm:$0xf]
    %v3672 = vld [vmem:[%s13 + $0x24] sm:$0xf]
    %v3673 = vld [vmem:[%s13 + $0x28] sm:$0xf]
    %v3674 = vld [vmem:[%s13 + $0x2c] sm:$0xf]
    %v3675 = vld [vmem:[%s13 + $0x30] sm:$0xf]
    %v3676 = vld [vmem:[%s13 + $0x34] sm:$0xf]
    %v3677 = vld [vmem:[%s13 + $0x38] sm:$0xf]
    %v3678 = vld [vmem:[%s13 + $0x3c] sm:$0xf]
    %v3679 = vld [vmem:[%s13 + $0x40] sm:$0xf]
    %v3680 = vld [vmem:[%s13 + $0x44] sm:$0xf]
    %v3681 = vld [vmem:[%s13 + $0x48] sm:$0xf]
    %v3682 = vld [vmem:[%s13 + $0x4c] sm:$0xf]
    %v3683 = vld [vmem:[%s13 + $0x50] sm:$0xf]
    %v3684 = vld [vmem:[%s13 + $0x54] sm:$0xf]
    %v3685 = vld [vmem:[%s13 + $0x58] sm:$0xf]
    %v3686 = vld [vmem:[%s13 + $0x5c] sm:$0xf]
    %v3687 = vld [vmem:[%s13 + $0x60] sm:$0xf]
    %v3688 = vld [vmem:[%s13 + $0x64] sm:$0xf]
    %v3689 = vld [vmem:[%s13 + $0x68] sm:$0xf]
    %v3690 = vld [vmem:[%s13 + $0x6c] sm:$0xf]
    %v3691 = vld [vmem:[%s13 + $0x70] sm:$0xf]
    %v3692 = vld [vmem:[%s13 + $0x74] sm:$0xf]
    %v3693 = vld [vmem:[%s13 + $0x78] sm:$0xf]
    %v3694 = vld [vmem:[%s13 + $0x7c] sm:$0xf]
    %v3695 = vld [vmem:[%s14] sm:$0x1]
    %v3697 = vlaneseq
    %v3698 = vshrl.u32 %v3697, 7
    %v3699 = vsub.s32 0, %v3698
    %v3700 = vrot.slane %v3695, %v3699
    %v3734 = vunpack.c.l.b16 %v3663
    %v3735 = vunpack.c.l.b16 %v3664
    %v3736 = vunpack.c.l.b16 %v3665
    %v3737 = vunpack.c.l.b16 %v3666
    %v3738 = vunpack.c.l.b16 %v3667
    %v3739 = vunpack.c.l.b16 %v3668
    %v3740 = vunpack.c.l.b16 %v3669
    %v3741 = vunpack.c.l.b16 %v3670
    %v3742 = vunpack.c.l.b16 %v3671
    %v3743 = vunpack.c.l.b16 %v3672
    %v3744 = vunpack.c.l.b16 %v3673
    %v3745 = vunpack.c.l.b16 %v3674
    %v3746 = vunpack.c.l.b16 %v3675
    %v3747 = vunpack.c.l.b16 %v3676
    %v3748 = vunpack.c.l.b16 %v3677
    %v3749 = vunpack.c.l.b16 %v3678
    %v3750 = vunpack.c.l.b16 %v3679
    %v3751 = vunpack.c.l.b16 %v3680
    %v3752 = vunpack.c.l.b16 %v3681
    %v3753 = vunpack.c.l.b16 %v3682
    %v3754 = vunpack.c.l.b16 %v3683
    %v3755 = vunpack.c.l.b16 %v3684
    %v3756 = vunpack.c.l.b16 %v3685
    %v3757 = vunpack.c.l.b16 %v3686
    %v3758 = vunpack.c.l.b16 %v3687
    %v3759 = vunpack.c.l.b16 %v3688
    %v3760 = vunpack.c.l.b16 %v3689
    %v3761 = vunpack.c.l.b16 %v3690
    %v3762 = vunpack.c.l.b16 %v3691
    %v3763 = vunpack.c.l.b16 %v3692
    %v3764 = vunpack.c.l.b16 %v3693
    %v3765 = vunpack.c.l.b16 %v3694
    %v3766 = vpack.c.b16 %v3735, %v3734
    %v3767 = vpack.c.b16 %v3737, %v3736
    %v3768 = vpack.c.b16 %v3739, %v3738
    %v3769 = vpack.c.b16 %v3741, %v3740
    %v3770 = vpack.c.b16 %v3743, %v3742
    %v3771 = vpack.c.b16 %v3745, %v3744
    %v3772 = vpack.c.b16 %v3747, %v3746
    %v3773 = vpack.c.b16 %v3749, %v3748
    %v3774 = vpack.c.b16 %v3751, %v3750
    %v3775 = vpack.c.b16 %v3753, %v3752
    %v3776 = vpack.c.b16 %v3755, %v3754
    %v3777 = vpack.c.b16 %v3757, %v3756
    %v3778 = vpack.c.b16 %v3759, %v3758
    %v3779 = vpack.c.b16 %v3761, %v3760
    %v3780 = vpack.c.b16 %v3763, %v3762
    %v3781 = vpack.c.b16 %v3765, %v3764
    %3798 = vmatprep.subr.bf16.mxu0 0
    %3799 = vmatpush1.bf16.msra.mxu0 %v3766
    %3800 = vmatprep.subr.bf16.mxu0 0
    %3801 = vmatpush1.bf16.msra.mxu0 %v3767
    %3802 = vmatprep.subr.bf16.mxu0 0
    %3803 = vmatpush1.bf16.msra.mxu0 %v3768
    %3804 = vmatprep.subr.bf16.mxu0 0
    %3805 = vmatpush1.bf16.msra.mxu0 %v3769
    %3806 = vmatprep.subr.bf16.mxu0 0
    %3807 = vmatpush1.bf16.msra.mxu0 %v3770
    %3808 = vmatprep.subr.bf16.mxu0 0
    %3809 = vmatpush1.bf16.msra.mxu0 %v3771
    %3810 = vmatprep.subr.bf16.mxu0 0
    %3811 = vmatpush1.bf16.msra.mxu0 %v3772
    %3812 = vmatprep.subr.bf16.mxu0 0
    %3813 = vmatpush1.bf16.msra.mxu0 %v3773
    %3814 = vmatprep.subr.bf16.mxu0 0
    %3815 = vmatpush1.bf16.msra.mxu0 %v3774
    %3816 = vmatprep.subr.bf16.mxu0 0
    %3817 = vmatpush1.bf16.msra.mxu0 %v3775
    %3818 = vmatprep.subr.bf16.mxu0 0
    %3819 = vmatpush1.bf16.msra.mxu0 %v3776
    %3820 = vmatprep.subr.bf16.mxu0 0
    %3821 = vmatpush1.bf16.msra.mxu0 %v3777
    %3822 = vmatprep.subr.bf16.mxu0 0
    %3823 = vmatpush1.bf16.msra.mxu0 %v3778
    %3824 = vmatprep.subr.bf16.mxu0 0
    %3825 = vmatpush1.bf16.msra.mxu0 %v3779
    %3826 = vmatprep.subr.bf16.mxu0 0
    %3827 = vmatpush1.bf16.msra.mxu0 %v3780
    %3828 = vmatprep.subr.bf16.mxu0 0
    %3829 = vmatpush1.bf16.msra.mxu0 %v3781
    %3830 = vmatprep.mubr.bf16.mxu0 %v3662
    %3831 = vmatmul.mubr.bf16.gmra.mrb[0].mxu0 %v3661
    %v3832 = vpop.f32.mrb[0].mxu0
    %v3833 = vadd.f32 %v3700, %v3832
    %v3834 = vpop.f32.mrb[0].mxu0
    %v3835 = vpop.f32.mrb[0].mxu0
    %v3836 = vpop.f32.mrb[0].mxu0
    %3837 = vdwg.mxu0
    %v3838 = vld [vmem:[%s15] sm:$0xff]
    %v3839 = vld [vmem:[%s15 + $0x8] sm:$0xff]
    %v3840 = vld [vmem:[%s15 + $0x10] sm:$0xff]
    %v3841 = vld [vmem:[%s15 + $0x18] sm:$0xff]
    %v3842 = vld [vmem:[%s15 + $0x20] sm:$0xff]
    %v3843 = vld [vmem:[%s15 + $0x28] sm:$0xff]
    %v3844 = vld [vmem:[%s15 + $0x30] sm:$0xff]
    %v3845 = vld [vmem:[%s15 + $0x38] sm:$0xff]
    %v3846 = vld [vmem:[%s15 + $0x40] sm:$0xff]
    %v3847 = vld [vmem:[%s15 + $0x48] sm:$0xff]
    %v3848 = vld [vmem:[%s15 + $0x50] sm:$0xff]
    %v3849 = vld [vmem:[%s15 + $0x58] sm:$0xff]
    %v3850 = vld [vmem:[%s15 + $0x60] sm:$0xff]
    %v3851 = vld [vmem:[%s15 + $0x68] sm:$0xff]
    %v3852 = vld [vmem:[%s15 + $0x70] sm:$0xff]
    %v3853 = vld [vmem:[%s15 + $0x78] sm:$0xff]
    %v3854 = vld [vmem:[%s16] sm:$0x1]
    %v3856 = vlaneseq
    %v3857 = vshrl.u32 %v3856, 7
    %v3858 = vsub.s32 0, %v3857
    %v3859 = vrot.slane %v3854, %v3858
    %3861 = vmatprep.subr.mxu0 0.0
    %3862 = vmatpush1.msra.mxu0 %v3838
    %3863 = vmatprep.subr.mxu0 0.0
    %3864 = vmatpush1.msra.mxu0 %v3839
    %3865 = vmatprep.subr.mxu0 0.0
    %3866 = vmatpush1.msra.mxu0 %v3840
    %3867 = vmatprep.subr.mxu0 0.0
    %3868 = vmatpush1.msra.mxu0 %v3841
    %3869 = vmatprep.subr.mxu0 0.0
    %3870 = vmatpush1.msra.mxu0 %v3842
    %3871 = vmatprep.subr.mxu0 0.0
    %3872 = vmatpush1.msra.mxu0 %v3843
    %3873 = vmatprep.subr.mxu0 0.0
    %3874 = vmatpush1.msra.mxu0 %v3844
    %3875 = vmatprep.subr.mxu0 0.0
    %3876 = vmatpush1.msra.mxu0 %v3845
    %3877 = vmatprep.subr.mxu0 0.0
    %3878 = vmatpush1.msra.mxu0 %v3846
    %3879 = vmatprep.subr.mxu0 0.0
    %3880 = vmatpush1.msra.mxu0 %v3847
    %3881 = vmatprep.subr.mxu0 0.0
    %3882 = vmatpush1.msra.mxu0 %v3848
    %3883 = vmatprep.subr.mxu0 0.0
    %3884 = vmatpush1.msra.mxu0 %v3849
    %3885 = vmatprep.subr.mxu0 0.0
    %3886 = vmatpush1.msra.mxu0 %v3850
    %3887 = vmatprep.subr.mxu0 0.0
    %3888 = vmatpush1.msra.mxu0 %v3851
    %3889 = vmatprep.subr.mxu0 0.0
    %3890 = vmatpush1.msra.mxu0 %v3852
    %3891 = vmatprep.subr.mxu0 0.0
    %3892 = vmatpush1.msra.mxu0 %v3853
    %3893 = vmatprep.subr.mxu0 0.0
    %3894 = vmatpush1.msra.mxu0 0.0
    %3895 = vmatprep.subr.mxu0 0.0
    %3896 = vmatpush1.msra.mxu0 0.0
    %3897 = vmatprep.subr.mxu0 0.0
    %3898 = vmatpush1.msra.mxu0 0.0
    %3899 = vmatprep.subr.mxu0 0.0
    %3900 = vmatpush1.msra.mxu0 0.0
    %3901 = vmatprep.subr.mxu0 0.0
    %3902 = vmatpush1.msra.mxu0 0.0
    %3903 = vmatprep.subr.mxu0 0.0
    %3904 = vmatpush1.msra.mxu0 0.0
    %3905 = vmatprep.subr.mxu0 0.0
    %3906 = vmatpush1.msra.mxu0 0.0
    %3907 = vmatprep.subr.mxu0 0.0
    %3908 = vmatpush1.msra.mxu0 0.0
    %3909 = vmatprep.subr.mxu0 0.0
    %3910 = vmatpush1.msra.mxu0 0.0
    %3911 = vmatprep.subr.mxu0 0.0
    %3912 = vmatpush1.msra.mxu0 0.0
    %3913 = vmatprep.subr.mxu0 0.0
    %3914 = vmatpush1.msra.mxu0 0.0
    %3915 = vmatprep.subr.mxu0 0.0
    %3916 = vmatpush1.msra.mxu0 0.0
    %3917 = vmatprep.subr.mxu0 0.0
    %3918 = vmatpush1.msra.mxu0 0.0
    %3919 = vmatprep.subr.mxu0 0.0
    %3920 = vmatpush1.msra.mxu0 0.0
    %3921 = vmatprep.subr.mxu0 0.0
    %3922 = vmatpush1.msra.mxu0 0.0
    %3923 = vmatprep.subr.mxu0 0.0
    %3924 = vmatpush1.msra.mxu0 0.0
    %3925 = vmatprep.mubr.f32.mxu0 0.0
    %3926 = vmatmul.mubr.f32.gmra.mrb[0].mxu0 %v3833
    %v3927 = vpop.f32.mrb[0].mxu0
    %v3928 = vadd.f32 %v3859, %v3927
    %v3929 = vpop.f32.mrb[0].mxu0
    %3930 = vdwg.mxu0
    %vm3931 = vcmask 566272
    %3932 = vst.msk [vmem:[%s17] sm:$0x3] %vm3931, %v3928
    // Predicated region
    $region82: #{vae_forward.3} parent=1 // pred_check
      _
    $region83: #{vae_forward.3} parent=1 // pred_check_branch
      %3934 = sbr.rel (0) target = $region85
    $region84: #{vae_forward.3} parent=1 // pred_region
      _
    $region85: #{vae_forward.3} parent=1 // pred_fallthru
      _
    // Predicated region
    $region86: #{vae_forward.3} parent=1 // pred_check
      _
    $region87: #{vae_forward.3} parent=1 // pred_check_branch
      %3936 = sbr.rel (0) target = $region89
    $region88: #{vae_forward.3} parent=1 // pred_region
      _
    $region89: #{vae_forward.3} parent=1 // pred_fallthru
      _
    %3937 = vsyncpa [#allocation3], 1
    %3938 = vsyncpa [#allocation5], 1

// kernel: vae_forward.5
$region0: #{vae_forward.5}
  #allocation0 [shape = 'u32[]', space=smem, size = 0x4, offset = 0x4, fixed_abs, tag = 'smem constant byte address 0x4 - core index']
  #allocation1 [shape = 'u32[144,128]{1,0:T(1,128)}', space=vmem, size = 0x12000, scoped, tag = 'internal scratch']
  %s0 = inlined_call_operand.vmem [shape: f32[2,32], index: 0, kind: input, shape index: {}]
  %s1 = inlined_call_operand.vmem [shape: f32[32,128], index: 1, kind: input, shape index: {}]
  %s2 = inlined_call_operand.vmem [shape: f32[1,128], index: 2, kind: input, shape index: {}]
  %s3 = inlined_call_operand.vmem [shape: bf16[128,256], index: 3, kind: input, shape index: {}]
  %s4 = inlined_call_operand.vmem [shape: f32[1,256], index: 4, kind: input, shape index: {}]
  %s5 = inlined_call_operand.vmem [shape: f32[1,16], index: 5, kind: input, shape index: {}]
  %s6 = inlined_call_operand.vmem [shape: f32[1,16], index: 6, kind: input, shape index: {}]
  %s7 = inlined_call_operand.vmem [shape: f32[256,16], index: 7, kind: input, shape index: {}]
  %s8 = inlined_call_operand.vmem [shape: f32[16,256], index: 8, kind: input, shape index: {}]
  %s9 = inlined_call_operand.vmem [shape: bf16[256,512], index: 9, kind: input, shape index: {}]
  %s10 = inlined_call_operand.vmem [shape: f32[1,512], index: 10, kind: input, shape index: {}]
  %s11 = inlined_call_operand.vmem [shape: f32[1,8], index: 11, kind: input, shape index: {}]
  %s12 = inlined_call_operand.vmem [shape: f32[1,8], index: 12, kind: input, shape index: {}]
  %s13 = inlined_call_operand.vmem [shape: f32[512,8], index: 13, kind: input, shape index: {}]
  %s14 = inlined_call_operand.vmem [shape: f32[8,512], index: 14, kind: input, shape index: {}]
  %s15 = inlined_call_operand.vmem [shape: bf16[512,1024], index: 15, kind: input, shape index: {}]
  %s16 = inlined_call_operand.vmem [shape: f32[1,1024], index: 16, kind: input, shape index: {}]
  %s17 = inlined_call_operand.vmem [shape: f32[2,1024], index: 17, kind: output, shape index: {}]
  %s18 = sld [smem:[#allocation0]]
  $region78: #{vae_forward.5} parent=0
    _
  %s20 = ssub.s32 1, %s18
  %s21 = scalar_select 0, %s20, %s18
  // Predicated region
  $region2: #{vae_forward.5} parent=0 // pred_check
    _
  $region3: #{vae_forward.5} parent=0 // pred_check_branch
    %23 = sbr.rel (0) target = $region5
  $region4: #{vae_forward.5} parent=0 // pred_region
    _
  $region5: #{vae_forward.5} parent=0 // pred_fallthru
    _
  // Predicated region
  $region6: #{vae_forward.5} parent=0 // pred_check
    _
  $region7: #{vae_forward.5} parent=0 // pred_check_branch
    %25 = sbr.rel (0) target = $region9
  $region8: #{vae_forward.5} parent=0 // pred_region
    _
  $region9: #{vae_forward.5} parent=0 // pred_fallthru
    _
  // Predicated region
  $region10: #{vae_forward.5} parent=0 // pred_check
    _
  $region11: #{vae_forward.5} parent=0 // pred_check_branch
    %27 = sbr.rel (0) target = $region13
  $region12: #{vae_forward.5} parent=0 // pred_region
    _
  $region13: #{vae_forward.5} parent=0 // pred_fallthru
    _
  // Predicated region
  $region14: #{vae_forward.5} parent=0 // pred_check
    _
  $region15: #{vae_forward.5} parent=0 // pred_check_branch
    %29 = sbr.rel (0) target = $region17
  $region16: #{vae_forward.5} parent=0 // pred_region
    _
  $region17: #{vae_forward.5} parent=0 // pred_fallthru
    _
  // Predicated region
  $region18: #{vae_forward.5} parent=0 // pred_check
    _
  $region19: #{vae_forward.5} parent=0 // pred_check_branch
    %31 = sbr.rel (0) target = $region21
  $region20: #{vae_forward.5} parent=0 // pred_region
    _
  $region21: #{vae_forward.5} parent=0 // pred_fallthru
    _
  // Predicated region
  $region22: #{vae_forward.5} parent=0 // pred_check
    _
  $region23: #{vae_forward.5} parent=0 // pred_check_branch
    %33 = sbr.rel (0) target = $region25
  $region24: #{vae_forward.5} parent=0 // pred_region
    _
  $region25: #{vae_forward.5} parent=0 // pred_fallthru
    _
  // Predicated region
  $region26: #{vae_forward.5} parent=0 // pred_check
    _
  $region27: #{vae_forward.5} parent=0 // pred_check_branch
    %35 = sbr.rel (0) target = $region29
  $region28: #{vae_forward.5} parent=0 // pred_region
    _
  $region29: #{vae_forward.5} parent=0 // pred_fallthru
    _
  // Predicated region
  $region30: #{vae_forward.5} parent=0 // pred_check
    _
  $region31: #{vae_forward.5} parent=0 // pred_check_branch
    %37 = sbr.rel (0) target = $region33
  $region32: #{vae_forward.5} parent=0 // pred_region
    _
  $region33: #{vae_forward.5} parent=0 // pred_fallthru
    _
  // Predicated region
  $region34: #{vae_forward.5} parent=0 // pred_check
    _
  $region35: #{vae_forward.5} parent=0 // pred_check_branch
    %39 = sbr.rel (0) target = $region37
  $region36: #{vae_forward.5} parent=0 // pred_region
    _
  $region37: #{vae_forward.5} parent=0 // pred_fallthru
    _
  // Predicated region
  $region38: #{vae_forward.5} parent=0 // pred_check
    _
  $region39: #{vae_forward.5} parent=0 // pred_check_branch
    %41 = sbr.rel (0) target = $region41
  $region40: #{vae_forward.5} parent=0 // pred_region
    _
  $region41: #{vae_forward.5} parent=0 // pred_fallthru
    _
  // Predicated region
  $region42: #{vae_forward.5} parent=0 // pred_check
    _
  $region43: #{vae_forward.5} parent=0 // pred_check_branch
    %43 = sbr.rel (0) target = $region45
  $region44: #{vae_forward.5} parent=0 // pred_region
    _
  $region45: #{vae_forward.5} parent=0 // pred_fallthru
    _
  // Predicated region
  $region46: #{vae_forward.5} parent=0 // pred_check
    _
  $region47: #{vae_forward.5} parent=0 // pred_check_branch
    %45 = sbr.rel (0) target = $region49
  $region48: #{vae_forward.5} parent=0 // pred_region
    _
  $region49: #{vae_forward.5} parent=0 // pred_fallthru
    _
  // Predicated region
  $region50: #{vae_forward.5} parent=0 // pred_check
    _
  $region51: #{vae_forward.5} parent=0 // pred_check_branch
    %47 = sbr.rel (0) target = $region53
  $region52: #{vae_forward.5} parent=0 // pred_region
    _
  $region53: #{vae_forward.5} parent=0 // pred_fallthru
    _
  // Predicated region
  $region54: #{vae_forward.5} parent=0 // pred_check
    _
  $region55: #{vae_forward.5} parent=0 // pred_check_branch
    %49 = sbr.rel (0) target = $region57
  $region56: #{vae_forward.5} parent=0 // pred_region
    _
  $region57: #{vae_forward.5} parent=0 // pred_fallthru
    _
  // Predicated region
  $region58: #{vae_forward.5} parent=0 // pred_check
    _
  $region59: #{vae_forward.5} parent=0 // pred_check_branch
    %51 = sbr.rel (0) target = $region61
  $region60: #{vae_forward.5} parent=0 // pred_region
    _
  $region61: #{vae_forward.5} parent=0 // pred_fallthru
    _
  // Predicated region
  $region62: #{vae_forward.5} parent=0 // pred_check
    _
  $region63: #{vae_forward.5} parent=0 // pred_check_branch
    %53 = sbr.rel (0) target = $region65
  $region64: #{vae_forward.5} parent=0 // pred_region
    _
  $region65: #{vae_forward.5} parent=0 // pred_fallthru
    _
  // Predicated region
  $region66: #{vae_forward.5} parent=0 // pred_check
    _
  $region67: #{vae_forward.5} parent=0 // pred_check_branch
    %55 = sbr.rel (0) target = $region69
  $region68: #{vae_forward.5} parent=0 // pred_region
    _
  $region69: #{vae_forward.5} parent=0 // pred_fallthru
    _
  %v57 = vld [vmem:[%s0] sm:$0x3]
  %v58 = vld [vmem:[%s1] sm:$0xff]
  %v59 = vld [vmem:[%s1 + $0x8] sm:$0xff]
  %v60 = vld [vmem:[%s1 + $0x10] sm:$0xff]
  %v61 = vld [vmem:[%s1 + $0x18] sm:$0xff]
  %v62 = vld [vmem:[%s2] sm:$0x1]
  %v64 = vlaneseq
  %v65 = vshrl.u32 %v64, 7
  %v66 = vsub.s32 0, %v65
  %v67 = vrot.slane %v62, %v66
  %vm69 = vcmask 261120
  %v71 = vsel %vm69, %v57, 0
  %73 = vmatprep.subr.mxu0 0.0
  %74 = vmatpush1.msra.mxu0 %v58
  %75 = vmatprep.subr.mxu0 0.0
  %76 = vmatpush1.msra.mxu0 %v59
  %77 = vmatprep.subr.mxu0 0.0
  %78 = vmatpush1.msra.mxu0 %v60
  %79 = vmatprep.subr.mxu0 0.0
  %80 = vmatpush1.msra.mxu0 %v61
  %81 = vmatprep.subr.mxu0 0.0
  %82 = vmatpush1.msra.mxu0 0.0
  %83 = vmatprep.subr.mxu0 0.0
  %84 = vmatpush1.msra.mxu0 0.0
  %85 = vmatprep.subr.mxu0 0.0
  %86 = vmatpush1.msra.mxu0 0.0
  %87 = vmatprep.subr.mxu0 0.0
  %88 = vmatpush1.msra.mxu0 0.0
  %89 = vmatprep.subr.mxu0 0.0
  %90 = vmatpush1.msra.mxu0 0.0
  %91 = vmatprep.subr.mxu0 0.0
  %92 = vmatpush1.msra.mxu0 0.0
  %93 = vmatprep.subr.mxu0 0.0
  %94 = vmatpush1.msra.mxu0 0.0
  %95 = vmatprep.subr.mxu0 0.0
  %96 = vmatpush1.msra.mxu0 0.0
  %97 = vmatprep.subr.mxu0 0.0
  %98 = vmatpush1.msra.mxu0 0.0
  %99 = vmatprep.subr.mxu0 0.0
  %100 = vmatpush1.msra.mxu0 0.0
  %101 = vmatprep.subr.mxu0 0.0
  %102 = vmatpush1.msra.mxu0 0.0
  %103 = vmatprep.subr.mxu0 0.0
  %104 = vmatpush1.msra.mxu0 0.0
  %105 = vmatprep.subr.mxu0 0.0
  %106 = vmatpush1.msra.mxu0 0.0
  %107 = vmatprep.subr.mxu0 0.0
  %108 = vmatpush1.msra.mxu0 0.0
  %109 = vmatprep.subr.mxu0 0.0
  %110 = vmatpush1.msra.mxu0 0.0
  %111 = vmatprep.subr.mxu0 0.0
  %112 = vmatpush1.msra.mxu0 0.0
  %113 = vmatprep.subr.mxu0 0.0
  %114 = vmatpush1.msra.mxu0 0.0
  %115 = vmatprep.subr.mxu0 0.0
  %116 = vmatpush1.msra.mxu0 0.0
  %117 = vmatprep.subr.mxu0 0.0
  %118 = vmatpush1.msra.mxu0 0.0
  %119 = vmatprep.subr.mxu0 0.0
  %120 = vmatpush1.msra.mxu0 0.0
  %121 = vmatprep.subr.mxu0 0.0
  %122 = vmatpush1.msra.mxu0 0.0
  %123 = vmatprep.subr.mxu0 0.0
  %124 = vmatpush1.msra.mxu0 0.0
  %125 = vmatprep.subr.mxu0 0.0
  %126 = vmatpush1.msra.mxu0 0.0
  %127 = vmatprep.subr.mxu0 0.0
  %128 = vmatpush1.msra.mxu0 0.0
  %129 = vmatprep.subr.mxu0 0.0
  %130 = vmatpush1.msra.mxu0 0.0
  %131 = vmatprep.subr.mxu0 0.0
  %132 = vmatpush1.msra.mxu0 0.0
  %133 = vmatprep.subr.mxu0 0.0
  %134 = vmatpush1.msra.mxu0 0.0
  %135 = vmatprep.subr.mxu0 0.0
  %136 = vmatpush1.msra.mxu0 0.0
  %137 = vmatprep.mubr.f32.mxu0 0.0
  %138 = vmatmul.mubr.f32.gmra.mrb[0].mxu0 %v71
  %v139 = vpop.f32.mrb[0].mxu0
  %v140 = vadd.f32 %v67, %v139
  %v141 = vpop.f32.mrb[0].mxu0
  %142 = vdwg.mxu0
  %v143 = vpack.c.bf16 %v140, %v140
  %v144 = vld [vmem:[%s3] sm:$0xff]
  %v145 = vld [vmem:[%s3 + $0x8] sm:$0xff]
  %v146 = vld [vmem:[%s3 + $0x10] sm:$0xff]
  %v147 = vld [vmem:[%s3 + $0x18] sm:$0xff]
  %v148 = vld [vmem:[%s3 + $0x20] sm:$0xff]
  %v149 = vld [vmem:[%s3 + $0x28] sm:$0xff]
  %v150 = vld [vmem:[%s3 + $0x30] sm:$0xff]
  %v151 = vld [vmem:[%s3 + $0x38] sm:$0xff]
  %v152 = vld [vmem:[%s3 + $0x40] sm:$0xff]
  %v153 = vld [vmem:[%s3 + $0x48] sm:$0xff]
  %v154 = vld [vmem:[%s3 + $0x50] sm:$0xff]
  %v155 = vld [vmem:[%s3 + $0x58] sm:$0xff]
  %v156 = vld [vmem:[%s3 + $0x60] sm:$0xff]
  %v157 = vld [vmem:[%s3 + $0x68] sm:$0xff]
  %v158 = vld [vmem:[%s3 + $0x70] sm:$0xff]
  %v159 = vld [vmem:[%s3 + $0x78] sm:$0xff]
  %v160 = vld [vmem:[%s4] sm:$0x3]
  %v162 = vlaneseq
  %v163 = vshrl.u32 %v162, 7
  %v164 = vsub.s32 0, %v163
  %v165 = vrot.slane %v160, %v164
  %v166 = vlaneseq
  %v167 = vshrl.u32 %v166, 7
  %v168 = vsub.s32 1, %v167
  %v169 = vrot.slane %v160, %v168
  %v188 = vunpack.c.l.b16 %v144
  %v189 = vunpack.c.h.b16 %v144
  %v190 = vunpack.c.l.b16 %v145
  %v191 = vunpack.c.h.b16 %v145
  %v192 = vunpack.c.l.b16 %v146
  %v193 = vunpack.c.h.b16 %v146
  %v194 = vunpack.c.l.b16 %v147
  %v195 = vunpack.c.h.b16 %v147
  %v196 = vunpack.c.l.b16 %v148
  %v197 = vunpack.c.h.b16 %v148
  %v198 = vunpack.c.l.b16 %v149
  %v199 = vunpack.c.h.b16 %v149
  %v200 = vunpack.c.l.b16 %v150
  %v201 = vunpack.c.h.b16 %v150
  %v202 = vunpack.c.l.b16 %v151
  %v203 = vunpack.c.h.b16 %v151
  %v204 = vunpack.c.l.b16 %v152
  %v205 = vunpack.c.h.b16 %v152
  %v206 = vunpack.c.l.b16 %v153
  %v207 = vunpack.c.h.b16 %v153
  %v208 = vunpack.c.l.b16 %v154
  %v209 = vunpack.c.h.b16 %v154
  %v210 = vunpack.c.l.b16 %v155
  %v211 = vunpack.c.h.b16 %v155
  %v212 = vunpack.c.l.b16 %v156
  %v213 = vunpack.c.h.b16 %v156
  %v214 = vunpack.c.l.b16 %v157
  %v215 = vunpack.c.h.b16 %v157
  %v216 = vunpack.c.l.b16 %v158
  %v217 = vunpack.c.h.b16 %v158
  %v218 = vunpack.c.l.b16 %v159
  %v219 = vunpack.c.h.b16 %v159
  %v220 = vpack.c.b16 %v190, %v188
  %v221 = vpack.c.b16 %v191, %v189
  %v222 = vpack.c.b16 %v194, %v192
  %v223 = vpack.c.b16 %v195, %v193
  %v224 = vpack.c.b16 %v198, %v196
  %v225 = vpack.c.b16 %v199, %v197
  %v226 = vpack.c.b16 %v202, %v200
  %v227 = vpack.c.b16 %v203, %v201
  %v228 = vpack.c.b16 %v206, %v204
  %v229 = vpack.c.b16 %v207, %v205
  %v230 = vpack.c.b16 %v210, %v208
  %v231 = vpack.c.b16 %v211, %v209
  %v232 = vpack.c.b16 %v214, %v212
  %v233 = vpack.c.b16 %v215, %v213
  %v234 = vpack.c.b16 %v218, %v216
  %v235 = vpack.c.b16 %v219, %v217
  %252 = vmatprep.subr.bf16.mxu0 %v221
  %253 = vmatpush1.bf16.msra.mxu0 %v220
  %254 = vmatprep.subr.bf16.mxu0 %v223
  %255 = vmatpush1.bf16.msra.mxu0 %v222
  %256 = vmatprep.subr.bf16.mxu0 %v225
  %257 = vmatpush1.bf16.msra.mxu0 %v224
  %258 = vmatprep.subr.bf16.mxu0 %v227
  %259 = vmatpush1.bf16.msra.mxu0 %v226
  %260 = vmatprep.subr.bf16.mxu0 %v229
  %261 = vmatpush1.bf16.msra.mxu0 %v228
  %262 = vmatprep.subr.bf16.mxu0 %v231
  %263 = vmatpush1.bf16.msra.mxu0 %v230
  %264 = vmatprep.subr.bf16.mxu0 %v233
  %265 = vmatpush1.bf16.msra.mxu0 %v232
  %266 = vmatprep.subr.bf16.mxu0 %v235
  %267 = vmatpush1.bf16.msra.mxu0 %v234
  %268 = vmatprep.subr.bf16.mxu0 0
  %269 = vmatpush1.bf16.msra.mxu0 0
  %270 = vmatprep.subr.bf16.mxu0 0
  %271 = vmatpush1.bf16.msra.mxu0 0
  %272 = vmatprep.subr.bf16.mxu0 0
  %273 = vmatpush1.bf16.msra.mxu0 0
  %274 = vmatprep.subr.bf16.mxu0 0
  %275 = vmatpush1.bf16.msra.mxu0 0
  %276 = vmatprep.subr.bf16.mxu0 0
  %277 = vmatpush1.bf16.msra.mxu0 0
  %278 = vmatprep.subr.bf16.mxu0 0
  %279 = vmatpush1.bf16.msra.mxu0 0
  %280 = vmatprep.subr.bf16.mxu0 0
  %281 = vmatpush1.bf16.msra.mxu0 0
  %282 = vmatprep.subr.bf16.mxu0 0
  %283 = vmatpush1.bf16.msra.mxu0 0
  %284 = vmatprep.mubr.bf16.mxu0 0
  %285 = vmatmul.mubr.bf16.gmra.mrb[0].mxu0 %v143
  %v286 = vpop.f32.mrb[0].mxu0
  %v287 = vadd.f32 %v165, %v286
  %v288 = vpop.f32.mrb[0].mxu0
  %v289 = vadd.f32 %v169, %v288
  %v290 = vpop.f32.mrb[0].mxu0
  %v291 = vpop.f32.mrb[0].mxu0
  %292 = vdwg.mxu0
  %vm293 = vcmask 1041408
  %v294 = vsel %vm293, %v287, 0.0
  %v295 = vrot.slane %v294, 4
  %v296 = vadd.f32 %v294, %v295
  %v297 = vrot.slane %v296, 2
  %v298 = vadd.f32 %v296, %v297
  %v299 = vrot.slane %v298, 1
  %v300 = vadd.f32 %v298, %v299
  %v301 = vsel %vm293, %v289, 0.0
  %v302 = vrot.slane %v301, 4
  %v303 = vadd.f32 %v301, %v302
  %v304 = vrot.slane %v303, 2
  %v305 = vadd.f32 %v303, %v304
  %v306 = vrot.slane %v305, 1
  %v307 = vadd.f32 %v305, %v306
  %v308 = vld [vmem:[%s7] sm:$0xff]
  %v309 = vld [vmem:[%s7 + $0x8] sm:$0xff]
  %v310 = vld [vmem:[%s7 + $0x10] sm:$0xff]
  %v311 = vld [vmem:[%s7 + $0x18] sm:$0xff]
  %v312 = vld [vmem:[%s7 + $0x20] sm:$0xff]
  %v313 = vld [vmem:[%s7 + $0x28] sm:$0xff]
  %v314 = vld [vmem:[%s7 + $0x30] sm:$0xff]
  %v315 = vld [vmem:[%s7 + $0x38] sm:$0xff]
  %v316 = vld [vmem:[%s7 + $0x40] sm:$0xff]
  %v317 = vld [vmem:[%s7 + $0x48] sm:$0xff]
  %v318 = vld [vmem:[%s7 + $0x50] sm:$0xff]
  %v319 = vld [vmem:[%s7 + $0x58] sm:$0xff]
  %v320 = vld [vmem:[%s7 + $0x60] sm:$0xff]
  %v321 = vld [vmem:[%s7 + $0x68] sm:$0xff]
  %v322 = vld [vmem:[%s7 + $0x70] sm:$0xff]
  %v323 = vld [vmem:[%s7 + $0x78] sm:$0xff]
  %v324 = vld [vmem:[%s7 + $0x80] sm:$0xff]
  %v325 = vld [vmem:[%s7 + $0x88] sm:$0xff]
  %v326 = vld [vmem:[%s7 + $0x90] sm:$0xff]
  %v327 = vld [vmem:[%s7 + $0x98] sm:$0xff]
  %v328 = vld [vmem:[%s7 + $0xa0] sm:$0xff]
  %v329 = vld [vmem:[%s7 + $0xa8] sm:$0xff]
  %v330 = vld [vmem:[%s7 + $0xb0] sm:$0xff]
  %v331 = vld [vmem:[%s7 + $0xb8] sm:$0xff]
  %v332 = vld [vmem:[%s7 + $0xc0] sm:$0xff]
  %v333 = vld [vmem:[%s7 + $0xc8] sm:$0xff]
  %v334 = vld [vmem:[%s7 + $0xd0] sm:$0xff]
  %v335 = vld [vmem:[%s7 + $0xd8] sm:$0xff]
  %v336 = vld [vmem:[%s7 + $0xe0] sm:$0xff]
  %v337 = vld [vmem:[%s7 + $0xe8] sm:$0xff]
  %v338 = vld [vmem:[%s7 + $0xf0] sm:$0xff]
  %v339 = vld [vmem:[%s7 + $0xf8] sm:$0xff]
  %340 = vmatprep.subr.mxu0 0.0
  %341 = vmatpush1.msra.mxu0 %v308
  %342 = vmatprep.subr.mxu0 0.0
  %343 = vmatpush1.msra.mxu0 %v309
  %344 = vmatprep.subr.mxu0 0.0
  %345 = vmatpush1.msra.mxu0 %v310
  %346 = vmatprep.subr.mxu0 0.0
  %347 = vmatpush1.msra.mxu0 %v311
  %348 = vmatprep.subr.mxu0 0.0
  %349 = vmatpush1.msra.mxu0 %v312
  %350 = vmatprep.subr.mxu0 0.0
  %351 = vmatpush1.msra.mxu0 %v313
  %352 = vmatprep.subr.mxu0 0.0
  %353 = vmatpush1.msra.mxu0 %v314
  %354 = vmatprep.subr.mxu0 0.0
  %355 = vmatpush1.msra.mxu0 %v315
  %356 = vmatprep.subr.mxu0 0.0
  %357 = vmatpush1.msra.mxu0 %v316
  %358 = vmatprep.subr.mxu0 0.0
  %359 = vmatpush1.msra.mxu0 %v317
  %360 = vmatprep.subr.mxu0 0.0
  %361 = vmatpush1.msra.mxu0 %v318
  %362 = vmatprep.subr.mxu0 0.0
  %363 = vmatpush1.msra.mxu0 %v319
  %364 = vmatprep.subr.mxu0 0.0
  %365 = vmatpush1.msra.mxu0 %v320
  %366 = vmatprep.subr.mxu0 0.0
  %367 = vmatpush1.msra.mxu0 %v321
  %368 = vmatprep.subr.mxu0 0.0
  %369 = vmatpush1.msra.mxu0 %v322
  %370 = vmatprep.subr.mxu0 0.0
  %371 = vmatpush1.msra.mxu0 %v323
  %372 = vmatprep.subr.mxu0 0.0
  %373 = vmatpush1.msra.mxu0 %v324
  %374 = vmatprep.subr.mxu0 0.0
  %375 = vmatpush1.msra.mxu0 %v325
  %376 = vmatprep.subr.mxu0 0.0
  %377 = vmatpush1.msra.mxu0 %v326
  %378 = vmatprep.subr.mxu0 0.0
  %379 = vmatpush1.msra.mxu0 %v327
  %380 = vmatprep.subr.mxu0 0.0
  %381 = vmatpush1.msra.mxu0 %v328
  %382 = vmatprep.subr.mxu0 0.0
  %383 = vmatpush1.msra.mxu0 %v329
  %384 = vmatprep.subr.mxu0 0.0
  %385 = vmatpush1.msra.mxu0 %v330
  %386 = vmatprep.subr.mxu0 0.0
  %387 = vmatpush1.msra.mxu0 %v331
  %388 = vmatprep.subr.mxu0 0.0
  %389 = vmatpush1.msra.mxu0 %v332
  %390 = vmatprep.subr.mxu0 0.0
  %391 = vmatpush1.msra.mxu0 %v333
  %392 = vmatprep.subr.mxu0 0.0
  %393 = vmatpush1.msra.mxu0 %v334
  %394 = vmatprep.subr.mxu0 0.0
  %395 = vmatpush1.msra.mxu0 %v335
  %396 = vmatprep.subr.mxu0 0.0
  %397 = vmatpush1.msra.mxu0 %v336
  %398 = vmatprep.subr.mxu0 0.0
  %399 = vmatpush1.msra.mxu0 %v337
  %400 = vmatprep.subr.mxu0 0.0
  %401 = vmatpush1.msra.mxu0 %v338
  %402 = vmatprep.subr.mxu0 0.0
  %403 = vmatpush1.msra.mxu0 %v339
  %404 = vmatprep.mubr.f32.mxu0 %v307
  %405 = vmatmul.mubr.f32.gmra.mrb[0].mxu0 %v300
  %v406 = vpop.f32.mrb[0].mxu0
  %v407 = vadd.f32 0.0, %v406
  %v408 = vpop.f32.mrb[0].mxu0
  %409 = vdwg.mxu0
  %v410 = vmul.f32 %v287, %v287
  %v411 = vmul.f32 %v289, %v289
  %v412 = vsel %vm293, %v410, 0.0
  %v413 = vrot.slane %v412, 4
  %v414 = vadd.f32 %v412, %v413
  %v415 = vrot.slane %v414, 2
  %v416 = vadd.f32 %v414, %v415
  %v417 = vrot.slane %v416, 1
  %v418 = vadd.f32 %v416, %v417
  %v419 = vsel %vm293, %v411, 0.0
  %v420 = vrot.slane %v419, 4
  %v421 = vadd.f32 %v419, %v420
  %v422 = vrot.slane %v421, 2
  %v423 = vadd.f32 %v421, %v422
  %v424 = vrot.slane %v423, 1
  %v425 = vadd.f32 %v423, %v424
  %426 = vmatprep.subr.mxu0 0.0
  %427 = vmatpush1.msra.mxu0 %v308
  %428 = vmatprep.subr.mxu0 0.0
  %429 = vmatpush1.msra.mxu0 %v309
  %430 = vmatprep.subr.mxu0 0.0
  %431 = vmatpush1.msra.mxu0 %v310
  %432 = vmatprep.subr.mxu0 0.0
  %433 = vmatpush1.msra.mxu0 %v311
  %434 = vmatprep.subr.mxu0 0.0
  %435 = vmatpush1.msra.mxu0 %v312
  %436 = vmatprep.subr.mxu0 0.0
  %437 = vmatpush1.msra.mxu0 %v313
  %438 = vmatprep.subr.mxu0 0.0
  %439 = vmatpush1.msra.mxu0 %v314
  %440 = vmatprep.subr.mxu0 0.0
  %441 = vmatpush1.msra.mxu0 %v315
  %442 = vmatprep.subr.mxu0 0.0
  %443 = vmatpush1.msra.mxu0 %v316
  %444 = vmatprep.subr.mxu0 0.0
  %445 = vmatpush1.msra.mxu0 %v317
  %446 = vmatprep.subr.mxu0 0.0
  %447 = vmatpush1.msra.mxu0 %v318
  %448 = vmatprep.subr.mxu0 0.0
  %449 = vmatpush1.msra.mxu0 %v319
  %450 = vmatprep.subr.mxu0 0.0
  %451 = vmatpush1.msra.mxu0 %v320
  %452 = vmatprep.subr.mxu0 0.0
  %453 = vmatpush1.msra.mxu0 %v321
  %454 = vmatprep.subr.mxu0 0.0
  %455 = vmatpush1.msra.mxu0 %v322
  %456 = vmatprep.subr.mxu0 0.0
  %457 = vmatpush1.msra.mxu0 %v323
  %458 = vmatprep.subr.mxu0 0.0
  %459 = vmatpush1.msra.mxu0 %v324
  %460 = vmatprep.subr.mxu0 0.0
  %461 = vmatpush1.msra.mxu0 %v325
  %462 = vmatprep.subr.mxu0 0.0
  %463 = vmatpush1.msra.mxu0 %v326
  %464 = vmatprep.subr.mxu0 0.0
  %465 = vmatpush1.msra.mxu0 %v327
  %466 = vmatprep.subr.mxu0 0.0
  %467 = vmatpush1.msra.mxu0 %v328
  %468 = vmatprep.subr.mxu0 0.0
  %469 = vmatpush1.msra.mxu0 %v329
  %470 = vmatprep.subr.mxu0 0.0
  %471 = vmatpush1.msra.mxu0 %v330
  %472 = vmatprep.subr.mxu0 0.0
  %473 = vmatpush1.msra.mxu0 %v331
  %474 = vmatprep.subr.mxu0 0.0
  %475 = vmatpush1.msra.mxu0 %v332
  %476 = vmatprep.subr.mxu0 0.0
  %477 = vmatpush1.msra.mxu0 %v333
  %478 = vmatprep.subr.mxu0 0.0
  %479 = vmatpush1.msra.mxu0 %v334
  %480 = vmatprep.subr.mxu0 0.0
  %481 = vmatpush1.msra.mxu0 %v335
  %482 = vmatprep.subr.mxu0 0.0
  %483 = vmatpush1.msra.mxu0 %v336
  %484 = vmatprep.subr.mxu0 0.0
  %485 = vmatpush1.msra.mxu0 %v337
  %486 = vmatprep.subr.mxu0 0.0
  %487 = vmatpush1.msra.mxu0 %v338
  %488 = vmatprep.subr.mxu0 0.0
  %489 = vmatpush1.msra.mxu0 %v339
  %490 = vmatprep.mubr.f32.mxu0 %v425
  %491 = vmatmul.mubr.f32.gmra.mrb[0].mxu0 %v418
  %v492 = vpop.f32.mrb[0].mxu0
  %v493 = vadd.f32 0.0, %v492
  %v494 = vpop.f32.mrb[0].mxu0
  %495 = vdwg.mxu0
  %v496 = vmul.f32 %v407, 0.03125
  %v497 = vmul.f32 %v493, 0.03125
  %v498 = vmul.f32 %v496, %v496
  %v499 = vsub.f32 %v497, %v498
  %v500 = vld [vmem:[%s5] sm:$0x1]
  %v501 = vadd.f32 %v499, 1e-05
  %v502 = vrsqrt.pop %v501
  %v503 = vmul.f32 %v500, %v502
  %v504 = vld [vmem:[%s6] sm:$0x1]
  %v505 = vmul.f32 %v496, %v503
  %v506 = vsub.f32 %v504, %v505
  %v507 = vld [vmem:[%s8] sm:$0xff]
  %v508 = vld [vmem:[%s8 + $0x8] sm:$0xff]
  %v509 = vld [vmem:[%s8 + $0x10] sm:$0xff]
  %v510 = vld [vmem:[%s8 + $0x18] sm:$0xff]
  %vm511 = vcmask 130048
  %v513 = vsel %vm511, %v503, 0
  %515 = vmatprep.subr.mxu0 %v508
  %516 = vmatpush1.msra.mxu0 %v507
  %517 = vmatprep.subr.mxu0 %v510
  %518 = vmatpush1.msra.mxu0 %v509
  %519 = vmatprep.subr.mxu0 0.0
  %520 = vmatpush1.msra.mxu0 0.0
  %521 = vmatprep.subr.mxu0 0.0
  %522 = vmatpush1.msra.mxu0 0.0
  %523 = vmatprep.subr.mxu0 0.0
  %524 = vmatpush1.msra.mxu0 0.0
  %525 = vmatprep.subr.mxu0 0.0
  %526 = vmatpush1.msra.mxu0 0.0
  %527 = vmatprep.subr.mxu0 0.0
  %528 = vmatpush1.msra.mxu0 0.0
  %529 = vmatprep.subr.mxu0 0.0
  %530 = vmatpush1.msra.mxu0 0.0
  %531 = vmatprep.subr.mxu0 0.0
  %532 = vmatpush1.msra.mxu0 0.0
  %533 = vmatprep.subr.mxu0 0.0
  %534 = vmatpush1.msra.mxu0 0.0
  %535 = vmatprep.subr.mxu0 0.0
  %536 = vmatpush1.msra.mxu0 0.0
  %537 = vmatprep.subr.mxu0 0.0
  %538 = vmatpush1.msra.mxu0 0.0
  %539 = vmatprep.subr.mxu0 0.0
  %540 = vmatpush1.msra.mxu0 0.0
  %541 = vmatprep.subr.mxu0 0.0
  %542 = vmatpush1.msra.mxu0 0.0
  %543 = vmatprep.subr.mxu0 0.0
  %544 = vmatpush1.msra.mxu0 0.0
  %545 = vmatprep.subr.mxu0 0.0
  %546 = vmatpush1.msra.mxu0 0.0
  %547 = vmatprep.subr.mxu0 0.0
  %548 = vmatpush1.msra.mxu0 0.0
  %549 = vmatprep.subr.mxu0 0.0
  %550 = vmatpush1.msra.mxu0 0.0
  %551 = vmatprep.subr.mxu0 0.0
  %552 = vmatpush1.msra.mxu0 0.0
  %553 = vmatprep.subr.mxu0 0.0
  %554 = vmatpush1.msra.mxu0 0.0
  %555 = vmatprep.subr.mxu0 0.0
  %556 = vmatpush1.msra.mxu0 0.0
  %557 = vmatprep.subr.mxu0 0.0
  %558 = vmatpush1.msra.mxu0 0.0
  %559 = vmatprep.subr.mxu0 0.0
  %560 = vmatpush1.msra.mxu0 0.0
  %561 = vmatprep.subr.mxu0 0.0
  %562 = vmatpush1.msra.mxu0 0.0
  %563 = vmatprep.subr.mxu0 0.0
  %564 = vmatpush1.msra.mxu0 0.0
  %565 = vmatprep.subr.mxu0 0.0
  %566 = vmatpush1.msra.mxu0 0.0
  %567 = vmatprep.subr.mxu0 0.0
  %568 = vmatpush1.msra.mxu0 0.0
  %569 = vmatprep.subr.mxu0 0.0
  %570 = vmatpush1.msra.mxu0 0.0
  %571 = vmatprep.subr.mxu0 0.0
  %572 = vmatpush1.msra.mxu0 0.0
  %573 = vmatprep.subr.mxu0 0.0
  %574 = vmatpush1.msra.mxu0 0.0
  %575 = vmatprep.subr.mxu0 0.0
  %576 = vmatpush1.msra.mxu0 0.0
  %577 = vmatprep.subr.mxu0 0.0
  %578 = vmatpush1.msra.mxu0 0.0
  %579 = vmatprep.mubr.f32.mxu0 0.0
  %580 = vmatmul.mubr.f32.gmra.mrb[0].mxu0 %v513
  %v581 = vpop.f32.mrb[0].mxu0
  %v582 = vadd.f32 0.0, %v581
  %v583 = vpop.f32.mrb[0].mxu0
  %v584 = vadd.f32 0.0, %v583
  %585 = vdwg.mxu0
  %v587 = vsel %vm511, %v506, 0
  %589 = vmatprep.subr.mxu0 %v508
  %590 = vmatpush1.msra.mxu0 %v507
  %591 = vmatprep.subr.mxu0 %v510
  %592 = vmatpush1.msra.mxu0 %v509
  %593 = vmatprep.subr.mxu0 0.0
  %594 = vmatpush1.msra.mxu0 0.0
  %595 = vmatprep.subr.mxu0 0.0
  %596 = vmatpush1.msra.mxu0 0.0
  %597 = vmatprep.subr.mxu0 0.0
  %598 = vmatpush1.msra.mxu0 0.0
  %599 = vmatprep.subr.mxu0 0.0
  %600 = vmatpush1.msra.mxu0 0.0
  %601 = vmatprep.subr.mxu0 0.0
  %602 = vmatpush1.msra.mxu0 0.0
  %603 = vmatprep.subr.mxu0 0.0
  %604 = vmatpush1.msra.mxu0 0.0
  %605 = vmatprep.subr.mxu0 0.0
  %606 = vmatpush1.msra.mxu0 0.0
  %607 = vmatprep.subr.mxu0 0.0
  %608 = vmatpush1.msra.mxu0 0.0
  %609 = vmatprep.subr.mxu0 0.0
  %610 = vmatpush1.msra.mxu0 0.0
  %611 = vmatprep.subr.mxu0 0.0
  %612 = vmatpush1.msra.mxu0 0.0
  %613 = vmatprep.subr.mxu0 0.0
  %614 = vmatpush1.msra.mxu0 0.0
  %615 = vmatprep.subr.mxu0 0.0
  %616 = vmatpush1.msra.mxu0 0.0
  %617 = vmatprep.subr.mxu0 0.0
  %618 = vmatpush1.msra.mxu0 0.0
  %619 = vmatprep.subr.mxu0 0.0
  %620 = vmatpush1.msra.mxu0 0.0
  %621 = vmatprep.subr.mxu0 0.0
  %622 = vmatpush1.msra.mxu0 0.0
  %623 = vmatprep.subr.mxu0 0.0
  %624 = vmatpush1.msra.mxu0 0.0
  %625 = vmatprep.subr.mxu0 0.0
  %626 = vmatpush1.msra.mxu0 0.0
  %627 = vmatprep.subr.mxu0 0.0
  %628 = vmatpush1.msra.mxu0 0.0
  %629 = vmatprep.subr.mxu0 0.0
  %630 = vmatpush1.msra.mxu0 0.0
  %631 = vmatprep.subr.mxu0 0.0
  %632 = vmatpush1.msra.mxu0 0.0
  %633 = vmatprep.subr.mxu0 0.0
  %634 = vmatpush1.msra.mxu0 0.0
  %635 = vmatprep.subr.mxu0 0.0
  %636 = vmatpush1.msra.mxu0 0.0
  %637 = vmatprep.subr.mxu0 0.0
  %638 = vmatpush1.msra.mxu0 0.0
  %639 = vmatprep.subr.mxu0 0.0
  %640 = vmatpush1.msra.mxu0 0.0
  %641 = vmatprep.subr.mxu0 0.0
  %642 = vmatpush1.msra.mxu0 0.0
  %643 = vmatprep.subr.mxu0 0.0
  %644 = vmatpush1.msra.mxu0 0.0
  %645 = vmatprep.subr.mxu0 0.0
  %646 = vmatpush1.msra.mxu0 0.0
  %647 = vmatprep.subr.mxu0 0.0
  %648 = vmatpush1.msra.mxu0 0.0
  %649 = vmatprep.subr.mxu0 0.0
  %650 = vmatpush1.msra.mxu0 0.0
  %651 = vmatprep.subr.mxu0 0.0
  %652 = vmatpush1.msra.mxu0 0.0
  %653 = vmatprep.mubr.f32.mxu0 0.0
  %654 = vmatmul.mubr.f32.gmra.mrb[0].mxu0 %v587
  %v655 = vpop.f32.mrb[0].mxu0
  %v656 = vadd.f32 0.0, %v655
  %v657 = vpop.f32.mrb[0].mxu0
  %v658 = vadd.f32 0.0, %v657
  %659 = vdwg.mxu0
  %v660 = vlaneseq
  %v661 = vshrl.u32 %v660, 7
  %v662 = vsub.s32 0, %v661
  %v663 = vrot.slane %v582, %v662
  %v664 = vlaneseq
  %v665 = vshrl.u32 %v664, 7
  %v666 = vsub.s32 0, %v665
  %v667 = vrot.slane %v584, %v666
  %v668 = vmul.f32 %v287, %v663
  %v669 = vmul.f32 %v289, %v667
  %v670 = vlaneseq
  %v671 = vshrl.u32 %v670, 7
  %v672 = vsub.s32 0, %v671
  %v673 = vrot.slane %v656, %v672
  %v674 = vlaneseq
  %v675 = vshrl.u32 %v674, 7
  %v676 = vsub.s32 0, %v675
  %v677 = vrot.slane %v658, %v676
  %v678 = vadd.f32 %v668, %v673
  %v679 = vadd.f32 %v669, %v677
  %v680 = vmax.f32 %v678, 0.0
  %v681 = vmax.f32 %v679, 0.0
  %v682 = vpack.c.bf16 %v680, %v680
  %v683 = vpack.c.bf16 %v681, %v681
  %v684 = vld [vmem:[%s9] sm:$0xff]
  %v685 = vld [vmem:[%s9 + $0x8] sm:$0xff]
  %v686 = vld [vmem:[%s9 + $0x10] sm:$0xff]
  %v687 = vld [vmem:[%s9 + $0x18] sm:$0xff]
  %v688 = vld [vmem:[%s9 + $0x20] sm:$0xff]
  %v689 = vld [vmem:[%s9 + $0x28] sm:$0xff]
  %v690 = vld [vmem:[%s9 + $0x30] sm:$0xff]
  %v691 = vld [vmem:[%s9 + $0x38] sm:$0xff]
  %v692 = vld [vmem:[%s9 + $0x40] sm:$0xff]
  %v693 = vld [vmem:[%s9 + $0x48] sm:$0xff]
  %v694 = vld [vmem:[%s9 + $0x50] sm:$0xff]
  %v695 = vld [vmem:[%s9 + $0x58] sm:$0xff]
  %v696 = vld [vmem:[%s9 + $0x60] sm:$0xff]
  %v697 = vld [vmem:[%s9 + $0x68] sm:$0xff]
  %v698 = vld [vmem:[%s9 + $0x70] sm:$0xff]
  %v699 = vld [vmem:[%s9 + $0x78] sm:$0xff]
  %v700 = vld [vmem:[%s9 + $0x80] sm:$0xff]
  %v701 = vld [vmem:[%s9 + $0x88] sm:$0xff]
  %v702 = vld [vmem:[%s9 + $0x90] sm:$0xff]
  %v703 = vld [vmem:[%s9 + $0x98] sm:$0xff]
  %v704 = vld [vmem:[%s9 + $0xa0] sm:$0xff]
  %v705 = vld [vmem:[%s9 + $0xa8] sm:$0xff]
  %v706 = vld [vmem:[%s9 + $0xb0] sm:$0xff]
  %v707 = vld [vmem:[%s9 + $0xb8] sm:$0xff]
  %v708 = vld [vmem:[%s9 + $0xc0] sm:$0xff]
  %v709 = vld [vmem:[%s9 + $0xc8] sm:$0xff]
  %v710 = vld [vmem:[%s9 + $0xd0] sm:$0xff]
  %v711 = vld [vmem:[%s9 + $0xd8] sm:$0xff]
  %v712 = vld [vmem:[%s9 + $0xe0] sm:$0xff]
  %v713 = vld [vmem:[%s9 + $0xe8] sm:$0xff]
  %v714 = vld [vmem:[%s9 + $0xf0] sm:$0xff]
  %v715 = vld [vmem:[%s9 + $0xf8] sm:$0xff]
  %v716 = vld [vmem:[%s9 + $0x100] sm:$0xff]
  %v717 = vld [vmem:[%s9 + $0x108] sm:$0xff]
  %v718 = vld [vmem:[%s9 + $0x110] sm:$0xff]
  %v719 = vld [vmem:[%s9 + $0x118] sm:$0xff]
  %v720 = vld [vmem:[%s9 + $0x120] sm:$0xff]
  %v721 = vld [vmem:[%s9 + $0x128] sm:$0xff]
  %v722 = vld [vmem:[%s9 + $0x130] sm:$0xff]
  %v723 = vld [vmem:[%s9 + $0x138] sm:$0xff]
  %v724 = vld [vmem:[%s9 + $0x140] sm:$0xff]
  %v725 = vld [vmem:[%s9 + $0x148] sm:$0xff]
  %v726 = vld [vmem:[%s9 + $0x150] sm:$0xff]
  %v727 = vld [vmem:[%s9 + $0x158] sm:$0xff]
  %v728 = vld [vmem:[%s9 + $0x160] sm:$0xff]
  %v729 = vld [vmem:[%s9 + $0x168] sm:$0xff]
  %v730 = vld [vmem:[%s9 + $0x170] sm:$0xff]
  %v731 = vld [vmem:[%s9 + $0x178] sm:$0xff]
  %v732 = vld [vmem:[%s9 + $0x180] sm:$0xff]
  %v733 = vld [vmem:[%s9 + $0x188] sm:$0xff]
  %v734 = vld [vmem:[%s9 + $0x190] sm:$0xff]
  %v735 = vld [vmem:[%s9 + $0x198] sm:$0xff]
  %v736 = vld [vmem:[%s9 + $0x1a0] sm:$0xff]
  %v737 = vld [vmem:[%s9 + $0x1a8] sm:$0xff]
  %v738 = vld [vmem:[%s9 + $0x1b0] sm:$0xff]
  %v739 = vld [vmem:[%s9 + $0x1b8] sm:$0xff]
  %v740 = vld [vmem:[%s9 + $0x1c0] sm:$0xff]
  %v741 = vld [vmem:[%s9 + $0x1c8] sm:$0xff]
  %v742 = vld [vmem:[%s9 + $0x1d0] sm:$0xff]
  %v743 = vld [vmem:[%s9 + $0x1d8] sm:$0xff]
  %v744 = vld [vmem:[%s9 + $0x1e0] sm:$0xff]
  %v745 = vld [vmem:[%s9 + $0x1e8] sm:$0xff]
  %v746 = vld [vmem:[%s9 + $0x1f0] sm:$0xff]
  %v747 = vld [vmem:[%s9 + $0x1f8] sm:$0xff]
  %v748 = vld [vmem:[%s10] sm:$0xf]
  %v750 = vlaneseq
  %v751 = vshrl.u32 %v750, 7
  %v752 = vsub.s32 0, %v751
  %v753 = vrot.slane %v748, %v752
  %v754 = vlaneseq
  %v755 = vshrl.u32 %v754, 7
  %v756 = vsub.s32 1, %v755
  %v757 = vrot.slane %v748, %v756
  %v758 = vlaneseq
  %v759 = vshrl.u32 %v758, 7
  %v760 = vsub.s32 2, %v759
  %v761 = vrot.slane %v748, %v760
  %v762 = vlaneseq
  %v763 = vshrl.u32 %v762, 7
  %v764 = vsub.s32 3, %v763
  %v765 = vrot.slane %v748, %v764
  %v834 = vunpack.c.l.b16 %v684
  %v835 = vunpack.c.h.b16 %v684
  %v836 = vunpack.c.l.b16 %v685
  %v837 = vunpack.c.h.b16 %v685
  %v838 = vunpack.c.l.b16 %v686
  %v839 = vunpack.c.h.b16 %v686
  %v840 = vunpack.c.l.b16 %v687
  %v841 = vunpack.c.h.b16 %v687
  %v842 = vunpack.c.l.b16 %v688
  %v843 = vunpack.c.h.b16 %v688
  %v844 = vunpack.c.l.b16 %v689
  %v845 = vunpack.c.h.b16 %v689
  %v846 = vunpack.c.l.b16 %v690
  %v847 = vunpack.c.h.b16 %v690
  %v848 = vunpack.c.l.b16 %v691
  %v849 = vunpack.c.h.b16 %v691
  %v850 = vunpack.c.l.b16 %v692
  %v851 = vunpack.c.h.b16 %v692
  %v852 = vunpack.c.l.b16 %v693
  %v853 = vunpack.c.h.b16 %v693
  %v854 = vunpack.c.l.b16 %v694
  %v855 = vunpack.c.h.b16 %v694
  %v856 = vunpack.c.l.b16 %v695
  %v857 = vunpack.c.h.b16 %v695
  %v858 = vunpack.c.l.b16 %v696
  %v859 = vunpack.c.h.b16 %v696
  %v860 = vunpack.c.l.b16 %v697
  %v861 = vunpack.c.h.b16 %v697
  %v862 = vunpack.c.l.b16 %v698
  %v863 = vunpack.c.h.b16 %v698
  %v864 = vunpack.c.l.b16 %v699
  %v865 = vunpack.c.h.b16 %v699
  %v866 = vunpack.c.l.b16 %v700
  %v867 = vunpack.c.h.b16 %v700
  %v868 = vunpack.c.l.b16 %v701
  %v869 = vunpack.c.h.b16 %v701
  %v870 = vunpack.c.l.b16 %v702
  %v871 = vunpack.c.h.b16 %v702
  %v872 = vunpack.c.l.b16 %v703
  %v873 = vunpack.c.h.b16 %v703
  %v874 = vunpack.c.l.b16 %v704
  %v875 = vunpack.c.h.b16 %v704
  %v876 = vunpack.c.l.b16 %v705
  %v877 = vunpack.c.h.b16 %v705
  %v878 = vunpack.c.l.b16 %v706
  %v879 = vunpack.c.h.b16 %v706
  %v880 = vunpack.c.l.b16 %v707
  %v881 = vunpack.c.h.b16 %v707
  %v882 = vunpack.c.l.b16 %v708
  %v883 = vunpack.c.h.b16 %v708
  %v884 = vunpack.c.l.b16 %v709
  %v885 = vunpack.c.h.b16 %v709
  %v886 = vunpack.c.l.b16 %v710
  %v887 = vunpack.c.h.b16 %v710
  %v888 = vunpack.c.l.b16 %v711
  %v889 = vunpack.c.h.b16 %v711
  %v890 = vunpack.c.l.b16 %v712
  %v891 = vunpack.c.h.b16 %v712
  %v892 = vunpack.c.l.b16 %v713
  %v893 = vunpack.c.h.b16 %v713
  %v894 = vunpack.c.l.b16 %v714
  %v895 = vunpack.c.h.b16 %v714
  %v896 = vunpack.c.l.b16 %v715
  %v897 = vunpack.c.h.b16 %v715
  %v898 = vunpack.c.l.b16 %v716
  %v899 = vunpack.c.h.b16 %v716
  %v900 = vunpack.c.l.b16 %v717
  %v901 = vunpack.c.h.b16 %v717
  %v902 = vunpack.c.l.b16 %v718
  %v903 = vunpack.c.h.b16 %v718
  %v904 = vunpack.c.l.b16 %v719
  %v905 = vunpack.c.h.b16 %v719
  %v906 = vunpack.c.l.b16 %v720
  %v907 = vunpack.c.h.b16 %v720
  %v908 = vunpack.c.l.b16 %v721
  %v909 = vunpack.c.h.b16 %v721
  %v910 = vunpack.c.l.b16 %v722
  %v911 = vunpack.c.h.b16 %v722
  %v912 = vunpack.c.l.b16 %v723
  %v913 = vunpack.c.h.b16 %v723
  %v914 = vunpack.c.l.b16 %v724
  %v915 = vunpack.c.h.b16 %v724
  %v916 = vunpack.c.l.b16 %v725
  %v917 = vunpack.c.h.b16 %v725
  %v918 = vunpack.c.l.b16 %v726
  %v919 = vunpack.c.h.b16 %v726
  %v920 = vunpack.c.l.b16 %v727
  %v921 = vunpack.c.h.b16 %v727
  %v922 = vunpack.c.l.b16 %v728
  %v923 = vunpack.c.h.b16 %v728
  %v924 = vunpack.c.l.b16 %v729
  %v925 = vunpack.c.h.b16 %v729
  %v926 = vunpack.c.l.b16 %v730
  %v927 = vunpack.c.h.b16 %v730
  %v928 = vunpack.c.l.b16 %v731
  %v929 = vunpack.c.h.b16 %v731
  %v930 = vunpack.c.l.b16 %v732
  %v931 = vunpack.c.h.b16 %v732
  %v932 = vunpack.c.l.b16 %v733
  %v933 = vunpack.c.h.b16 %v733
  %v934 = vunpack.c.l.b16 %v734
  %v935 = vunpack.c.h.b16 %v734
  %v936 = vunpack.c.l.b16 %v735
  %v937 = vunpack.c.h.b16 %v735
  %v938 = vunpack.c.l.b16 %v736
  %v939 = vunpack.c.h.b16 %v736
  %v940 = vunpack.c.l.b16 %v737
  %v941 = vunpack.c.h.b16 %v737
  %v942 = vunpack.c.l.b16 %v738
  %v943 = vunpack.c.h.b16 %v738
  %v944 = vunpack.c.l.b16 %v739
  %v945 = vunpack.c.h.b16 %v739
  %v946 = vunpack.c.l.b16 %v740
  %v947 = vunpack.c.h.b16 %v740
  %v948 = vunpack.c.l.b16 %v741
  %v949 = vunpack.c.h.b16 %v741
  %v950 = vunpack.c.l.b16 %v742
  %v951 = vunpack.c.h.b16 %v742
  %v952 = vunpack.c.l.b16 %v743
  %v953 = vunpack.c.h.b16 %v743
  %v954 = vunpack.c.l.b16 %v744
  %v955 = vunpack.c.h.b16 %v744
  %v956 = vunpack.c.l.b16 %v745
  %v957 = vunpack.c.h.b16 %v745
  %v958 = vunpack.c.l.b16 %v746
  %v959 = vunpack.c.h.b16 %v746
  %v960 = vunpack.c.l.b16 %v747
  %v961 = vunpack.c.h.b16 %v747
  %v962 = vpack.c.b16 %v838, %v834
  %v963 = vpack.c.b16 %v839, %v835
  %v964 = vpack.c.b16 %v840, %v836
  %v965 = vpack.c.b16 %v841, %v837
  %v966 = vpack.c.b16 %v846, %v842
  %v967 = vpack.c.b16 %v847, %v843
  %v968 = vpack.c.b16 %v848, %v844
  %v969 = vpack.c.b16 %v849, %v845
  %v970 = vpack.c.b16 %v854, %v850
  %v971 = vpack.c.b16 %v855, %v851
  %v972 = vpack.c.b16 %v856, %v852
  %v973 = vpack.c.b16 %v857, %v853
  %v974 = vpack.c.b16 %v862, %v858
  %v975 = vpack.c.b16 %v863, %v859
  %v976 = vpack.c.b16 %v864, %v860
  %v977 = vpack.c.b16 %v865, %v861
  %v978 = vpack.c.b16 %v870, %v866
  %v979 = vpack.c.b16 %v871, %v867
  %v980 = vpack.c.b16 %v872, %v868
  %v981 = vpack.c.b16 %v873, %v869
  %v982 = vpack.c.b16 %v878, %v874
  %v983 = vpack.c.b16 %v879, %v875
  %v984 = vpack.c.b16 %v880, %v876
  %v985 = vpack.c.b16 %v881, %v877
  %v986 = vpack.c.b16 %v886, %v882
  %v987 = vpack.c.b16 %v887, %v883
  %v988 = vpack.c.b16 %v888, %v884
  %v989 = vpack.c.b16 %v889, %v885
  %v990 = vpack.c.b16 %v894, %v890
  %v991 = vpack.c.b16 %v895, %v891
  %v992 = vpack.c.b16 %v896, %v892
  %v993 = vpack.c.b16 %v897, %v893
  %v994 = vpack.c.b16 %v902, %v898
  %v995 = vpack.c.b16 %v903, %v899
  %v996 = vpack.c.b16 %v904, %v900
  %v997 = vpack.c.b16 %v905, %v901
  %v998 = vpack.c.b16 %v910, %v906
  %v999 = vpack.c.b16 %v911, %v907
  %v1000 = vpack.c.b16 %v912, %v908
  %v1001 = vpack.c.b16 %v913, %v909
  %v1002 = vpack.c.b16 %v918, %v914
  %v1003 = vpack.c.b16 %v919, %v915
  %v1004 = vpack.c.b16 %v920, %v916
  %v1005 = vpack.c.b16 %v921, %v917
  %v1006 = vpack.c.b16 %v926, %v922
  %v1007 = vpack.c.b16 %v927, %v923
  %v1008 = vpack.c.b16 %v928, %v924
  %v1009 = vpack.c.b16 %v929, %v925
  %v1010 = vpack.c.b16 %v934, %v930
  %v1011 = vpack.c.b16 %v935, %v931
  %v1012 = vpack.c.b16 %v936, %v932
  %v1013 = vpack.c.b16 %v937, %v933
  %v1014 = vpack.c.b16 %v942, %v938
  %v1015 = vpack.c.b16 %v943, %v939
  %v1016 = vpack.c.b16 %v944, %v940
  %v1017 = vpack.c.b16 %v945, %v941
  %v1018 = vpack.c.b16 %v950, %v946
  %v1019 = vpack.c.b16 %v951, %v947
  %v1020 = vpack.c.b16 %v952, %v948
  %v1021 = vpack.c.b16 %v953, %v949
  %v1022 = vpack.c.b16 %v958, %v954
  %v1023 = vpack.c.b16 %v959, %v955
  %v1024 = vpack.c.b16 %v960, %v956
  %v1025 = vpack.c.b16 %v961, %v957
  %1090 = vmatprep.subr.bf16.mxu0 %v963
  %1091 = vmatpush1.bf16.msra.mxu0 %v962
  %1092 = vmatprep.subr.bf16.mxu0 %v967
  %1093 = vmatpush1.bf16.msra.mxu0 %v966
  %1094 = vmatprep.subr.bf16.mxu0 %v971
  %1095 = vmatpush1.bf16.msra.mxu0 %v970
  %1096 = vmatprep.subr.bf16.mxu0 %v975
  %1097 = vmatpush1.bf16.msra.mxu0 %v974
  %1098 = vmatprep.subr.bf16.mxu0 %v979
  %1099 = vmatpush1.bf16.msra.mxu0 %v978
  %1100 = vmatprep.subr.bf16.mxu0 %v983
  %1101 = vmatpush1.bf16.msra.mxu0 %v982
  %1102 = vmatprep.subr.bf16.mxu0 %v987
  %1103 = vmatpush1.bf16.msra.mxu0 %v986
  %1104 = vmatprep.subr.bf16.mxu0 %v991
  %1105 = vmatpush1.bf16.msra.mxu0 %v990
  %1106 = vmatprep.subr.bf16.mxu0 %v995
  %1107 = vmatpush1.bf16.msra.mxu0 %v994
  %1108 = vmatprep.subr.bf16.mxu0 %v999
  %1109 = vmatpush1.bf16.msra.mxu0 %v998
  %1110 = vmatprep.subr.bf16.mxu0 %v1003
  %1111 = vmatpush1.bf16.msra.mxu0 %v1002
  %1112 = vmatprep.subr.bf16.mxu0 %v1007
  %1113 = vmatpush1.bf16.msra.mxu0 %v1006
  %1114 = vmatprep.subr.bf16.mxu0 %v1011
  %1115 = vmatpush1.bf16.msra.mxu0 %v1010
  %1116 = vmatprep.subr.bf16.mxu0 %v1015
  %1117 = vmatpush1.bf16.msra.mxu0 %v1014
  %1118 = vmatprep.subr.bf16.mxu0 %v1019
  %1119 = vmatpush1.bf16.msra.mxu0 %v1018
  %1120 = vmatprep.subr.bf16.mxu0 %v1023
  %1121 = vmatpush1.bf16.msra.mxu0 %v1022
  %1122 = vmatprep.mubr.bf16.mxu0 %v683
  %1123 = vmatmul.mubr.bf16.gmra.mrb[0].mxu0 %v682
  %v1124 = vpop.f32.mrb[0].mxu0
  %v1125 = vadd.f32 %v753, %v1124
  %v1126 = vpop.f32.mrb[0].mxu0
  %v1127 = vadd.f32 %v757, %v1126
  %v1128 = vpop.f32.mrb[0].mxu0
  %v1129 = vpop.f32.mrb[0].mxu0
  %1130 = vdwg.mxu0
  %1131 = vmatprep.subr.bf16.mxu0 %v965
  %1132 = vmatpush1.bf16.msra.mxu0 %v964
  %1133 = vmatprep.subr.bf16.mxu0 %v969
  %1134 = vmatpush1.bf16.msra.mxu0 %v968
  %1135 = vmatprep.subr.bf16.mxu0 %v973
  %1136 = vmatpush1.bf16.msra.mxu0 %v972
  %1137 = vmatprep.subr.bf16.mxu0 %v977
  %1138 = vmatpush1.bf16.msra.mxu0 %v976
  %1139 = vmatprep.subr.bf16.mxu0 %v981
  %1140 = vmatpush1.bf16.msra.mxu0 %v980
  %1141 = vmatprep.subr.bf16.mxu0 %v985
  %1142 = vmatpush1.bf16.msra.mxu0 %v984
  %1143 = vmatprep.subr.bf16.mxu0 %v989
  %1144 = vmatpush1.bf16.msra.mxu0 %v988
  %1145 = vmatprep.subr.bf16.mxu0 %v993
  %1146 = vmatpush1.bf16.msra.mxu0 %v992
  %1147 = vmatprep.subr.bf16.mxu0 %v997
  %1148 = vmatpush1.bf16.msra.mxu0 %v996
  %1149 = vmatprep.subr.bf16.mxu0 %v1001
  %1150 = vmatpush1.bf16.msra.mxu0 %v1000
  %1151 = vmatprep.subr.bf16.mxu0 %v1005
  %1152 = vmatpush1.bf16.msra.mxu0 %v1004
  %1153 = vmatprep.subr.bf16.mxu0 %v1009
  %1154 = vmatpush1.bf16.msra.mxu0 %v1008
  %1155 = vmatprep.subr.bf16.mxu0 %v1013
  %1156 = vmatpush1.bf16.msra.mxu0 %v1012
  %1157 = vmatprep.subr.bf16.mxu0 %v1017
  %1158 = vmatpush1.bf16.msra.mxu0 %v1016
  %1159 = vmatprep.subr.bf16.mxu0 %v1021
  %1160 = vmatpush1.bf16.msra.mxu0 %v1020
  %1161 = vmatprep.subr.bf16.mxu0 %v1025
  %1162 = vmatpush1.bf16.msra.mxu0 %v1024
  %1163 = vmatprep.mubr.bf16.mxu0 %v683
  %1164 = vmatmul.mubr.bf16.gmra.mrb[0].mxu0 %v682
  %v1165 = vpop.f32.mrb[0].mxu0
  %v1166 = vadd.f32 %v761, %v1165
  %v1167 = vpop.f32.mrb[0].mxu0
  %v1168 = vadd.f32 %v765, %v1167
  %v1169 = vpop.f32.mrb[0].mxu0
  %v1170 = vpop.f32.mrb[0].mxu0
  %1171 = vdwg.mxu0
  %v1172 = vsel %vm293, %v1125, 0.0
  %v1173 = vrot.slane %v1172, 4
  %v1174 = vadd.f32 %v1172, %v1173
  %v1175 = vrot.slane %v1174, 2
  %v1176 = vadd.f32 %v1174, %v1175
  %v1177 = vrot.slane %v1176, 1
  %v1178 = vadd.f32 %v1176, %v1177
  %v1179 = vsel %vm293, %v1127, 0.0
  %v1180 = vrot.slane %v1179, 4
  %v1181 = vadd.f32 %v1179, %v1180
  %v1182 = vrot.slane %v1181, 2
  %v1183 = vadd.f32 %v1181, %v1182
  %v1184 = vrot.slane %v1183, 1
  %v1185 = vadd.f32 %v1183, %v1184
  %v1186 = vsel %vm293, %v1166, 0.0
  %v1187 = vrot.slane %v1186, 4
  %v1188 = vadd.f32 %v1186, %v1187
  %v1189 = vrot.slane %v1188, 2
  %v1190 = vadd.f32 %v1188, %v1189
  %v1191 = vrot.slane %v1190, 1
  %v1192 = vadd.f32 %v1190, %v1191
  %v1193 = vsel %vm293, %v1168, 0.0
  %v1194 = vrot.slane %v1193, 4
  %v1195 = vadd.f32 %v1193, %v1194
  %v1196 = vrot.slane %v1195, 2
  %v1197 = vadd.f32 %v1195, %v1196
  %v1198 = vrot.slane %v1197, 1
  %v1199 = vadd.f32 %v1197, %v1198
  %v1200 = vld [vmem:[%s13] sm:$0xff]
  %v1201 = vld [vmem:[%s13 + $0x8] sm:$0xff]
  %v1202 = vld [vmem:[%s13 + $0x10] sm:$0xff]
  %v1203 = vld [vmem:[%s13 + $0x18] sm:$0xff]
  %v1204 = vld [vmem:[%s13 + $0x20] sm:$0xff]
  %v1205 = vld [vmem:[%s13 + $0x28] sm:$0xff]
  %v1206 = vld [vmem:[%s13 + $0x30] sm:$0xff]
  %v1207 = vld [vmem:[%s13 + $0x38] sm:$0xff]
  %v1208 = vld [vmem:[%s13 + $0x40] sm:$0xff]
  %v1209 = vld [vmem:[%s13 + $0x48] sm:$0xff]
  %v1210 = vld [vmem:[%s13 + $0x50] sm:$0xff]
  %v1211 = vld [vmem:[%s13 + $0x58] sm:$0xff]
  %v1212 = vld [vmem:[%s13 + $0x60] sm:$0xff]
  %v1213 = vld [vmem:[%s13 + $0x68] sm:$0xff]
  %v1214 = vld [vmem:[%s13 + $0x70] sm:$0xff]
  %v1215 = vld [vmem:[%s13 + $0x78] sm:$0xff]
  %v1216 = vld [vmem:[%s13 + $0x80] sm:$0xff]
  %v1217 = vld [vmem:[%s13 + $0x88] sm:$0xff]
  %v1218 = vld [vmem:[%s13 + $0x90] sm:$0xff]
  %v1219 = vld [vmem:[%s13 + $0x98] sm:$0xff]
  %v1220 = vld [vmem:[%s13 + $0xa0] sm:$0xff]
  %v1221 = vld [vmem:[%s13 + $0xa8] sm:$0xff]
  %v1222 = vld [vmem:[%s13 + $0xb0] sm:$0xff]
  %v1223 = vld [vmem:[%s13 + $0xb8] sm:$0xff]
  %v1224 = vld [vmem:[%s13 + $0xc0] sm:$0xff]
  %v1225 = vld [vmem:[%s13 + $0xc8] sm:$0xff]
  %v1226 = vld [vmem:[%s13 + $0xd0] sm:$0xff]
  %v1227 = vld [vmem:[%s13 + $0xd8] sm:$0xff]
  %v1228 = vld [vmem:[%s13 + $0xe0] sm:$0xff]
  %v1229 = vld [vmem:[%s13 + $0xe8] sm:$0xff]
  %v1230 = vld [vmem:[%s13 + $0xf0] sm:$0xff]
  %v1231 = vld [vmem:[%s13 + $0xf8] sm:$0xff]
  %v1232 = vld [vmem:[%s13 + $0x100] sm:$0xff]
  %v1233 = vld [vmem:[%s13 + $0x108] sm:$0xff]
  %v1234 = vld [vmem:[%s13 + $0x110] sm:$0xff]
  %v1235 = vld [vmem:[%s13 + $0x118] sm:$0xff]
  %v1236 = vld [vmem:[%s13 + $0x120] sm:$0xff]
  %v1237 = vld [vmem:[%s13 + $0x128] sm:$0xff]
  %v1238 = vld [vmem:[%s13 + $0x130] sm:$0xff]
  %v1239 = vld [vmem:[%s13 + $0x138] sm:$0xff]
  %v1240 = vld [vmem:[%s13 + $0x140] sm:$0xff]
  %v1241 = vld [vmem:[%s13 + $0x148] sm:$0xff]
  %v1242 = vld [vmem:[%s13 + $0x150] sm:$0xff]
  %v1243 = vld [vmem:[%s13 + $0x158] sm:$0xff]
  %v1244 = vld [vmem:[%s13 + $0x160] sm:$0xff]
  %v1245 = vld [vmem:[%s13 + $0x168] sm:$0xff]
  %v1246 = vld [vmem:[%s13 + $0x170] sm:$0xff]
  %v1247 = vld [vmem:[%s13 + $0x178] sm:$0xff]
  %v1248 = vld [vmem:[%s13 + $0x180] sm:$0xff]
  %v1249 = vld [vmem:[%s13 + $0x188] sm:$0xff]
  %v1250 = vld [vmem:[%s13 + $0x190] sm:$0xff]
  %v1251 = vld [vmem:[%s13 + $0x198] sm:$0xff]
  %v1252 = vld [vmem:[%s13 + $0x1a0] sm:$0xff]
  %v1253 = vld [vmem:[%s13 + $0x1a8] sm:$0xff]
  %v1254 = vld [vmem:[%s13 + $0x1b0] sm:$0xff]
  %v1255 = vld [vmem:[%s13 + $0x1b8] sm:$0xff]
  %v1256 = vld [vmem:[%s13 + $0x1c0] sm:$0xff]
  %v1257 = vld [vmem:[%s13 + $0x1c8] sm:$0xff]
  %v1258 = vld [vmem:[%s13 + $0x1d0] sm:$0xff]
  %v1259 = vld [vmem:[%s13 + $0x1d8] sm:$0xff]
  %v1260 = vld [vmem:[%s13 + $0x1e0] sm:$0xff]
  %v1261 = vld [vmem:[%s13 + $0x1e8] sm:$0xff]
  %v1262 = vld [vmem:[%s13 + $0x1f0] sm:$0xff]
  %v1263 = vld [vmem:[%s13 + $0x1f8] sm:$0xff]
  %1264 = vmatprep.subr.mxu0 0.0
  %1265 = vmatpush1.msra.mxu0 %v1200
  %1266 = vmatprep.subr.mxu0 0.0
  %1267 = vmatpush1.msra.mxu0 %v1201
  %1268 = vmatprep.subr.mxu0 0.0
  %1269 = vmatpush1.msra.mxu0 %v1202
  %1270 = vmatprep.subr.mxu0 0.0
  %1271 = vmatpush1.msra.mxu0 %v1203
  %1272 = vmatprep.subr.mxu0 0.0
  %1273 = vmatpush1.msra.mxu0 %v1204
  %1274 = vmatprep.subr.mxu0 0.0
  %1275 = vmatpush1.msra.mxu0 %v1205
  %1276 = vmatprep.subr.mxu0 0.0
  %1277 = vmatpush1.msra.mxu0 %v1206
  %1278 = vmatprep.subr.mxu0 0.0
  %1279 = vmatpush1.msra.mxu0 %v1207
  %1280 = vmatprep.subr.mxu0 0.0
  %1281 = vmatpush1.msra.mxu0 %v1208
  %1282 = vmatprep.subr.mxu0 0.0
  %1283 = vmatpush1.msra.mxu0 %v1209
  %1284 = vmatprep.subr.mxu0 0.0
  %1285 = vmatpush1.msra.mxu0 %v1210
  %1286 = vmatprep.subr.mxu0 0.0
  %1287 = vmatpush1.msra.mxu0 %v1211
  %1288 = vmatprep.subr.mxu0 0.0
  %1289 = vmatpush1.msra.mxu0 %v1212
  %1290 = vmatprep.subr.mxu0 0.0
  %1291 = vmatpush1.msra.mxu0 %v1213
  %1292 = vmatprep.subr.mxu0 0.0
  %1293 = vmatpush1.msra.mxu0 %v1214
  %1294 = vmatprep.subr.mxu0 0.0
  %1295 = vmatpush1.msra.mxu0 %v1215
  %1296 = vmatprep.subr.mxu0 0.0
  %1297 = vmatpush1.msra.mxu0 %v1216
  %1298 = vmatprep.subr.mxu0 0.0
  %1299 = vmatpush1.msra.mxu0 %v1217
  %1300 = vmatprep.subr.mxu0 0.0
  %1301 = vmatpush1.msra.mxu0 %v1218
  %1302 = vmatprep.subr.mxu0 0.0
  %1303 = vmatpush1.msra.mxu0 %v1219
  %1304 = vmatprep.subr.mxu0 0.0
  %1305 = vmatpush1.msra.mxu0 %v1220
  %1306 = vmatprep.subr.mxu0 0.0
  %1307 = vmatpush1.msra.mxu0 %v1221
  %1308 = vmatprep.subr.mxu0 0.0
  %1309 = vmatpush1.msra.mxu0 %v1222
  %1310 = vmatprep.subr.mxu0 0.0
  %1311 = vmatpush1.msra.mxu0 %v1223
  %1312 = vmatprep.subr.mxu0 0.0
  %1313 = vmatpush1.msra.mxu0 %v1224
  %1314 = vmatprep.subr.mxu0 0.0
  %1315 = vmatpush1.msra.mxu0 %v1225
  %1316 = vmatprep.subr.mxu0 0.0
  %1317 = vmatpush1.msra.mxu0 %v1226
  %1318 = vmatprep.subr.mxu0 0.0
  %1319 = vmatpush1.msra.mxu0 %v1227
  %1320 = vmatprep.subr.mxu0 0.0
  %1321 = vmatpush1.msra.mxu0 %v1228
  %1322 = vmatprep.subr.mxu0 0.0
  %1323 = vmatpush1.msra.mxu0 %v1229
  %1324 = vmatprep.subr.mxu0 0.0
  %1325 = vmatpush1.msra.mxu0 %v1230
  %1326 = vmatprep.subr.mxu0 0.0
  %1327 = vmatpush1.msra.mxu0 %v1231
  %1328 = vmatprep.mubr.f32.mxu0 %v1185
  %1329 = vmatmul.mubr.f32.gmra.mrb[0].mxu0 %v1178
  %v1330 = vpop.f32.mrb[0].mxu0
  %v1331 = vadd.f32 0.0, %v1330
  %v1332 = vpop.f32.mrb[0].mxu0
  %1333 = vdwg.mxu0
  %1334 = vmatprep.subr.mxu0 0.0
  %1335 = vmatpush1.msra.mxu0 %v1232
  %1336 = vmatprep.subr.mxu0 0.0
  %1337 = vmatpush1.msra.mxu0 %v1233
  %1338 = vmatprep.subr.mxu0 0.0
  %1339 = vmatpush1.msra.mxu0 %v1234
  %1340 = vmatprep.subr.mxu0 0.0
  %1341 = vmatpush1.msra.mxu0 %v1235
  %1342 = vmatprep.subr.mxu0 0.0
  %1343 = vmatpush1.msra.mxu0 %v1236
  %1344 = vmatprep.subr.mxu0 0.0
  %1345 = vmatpush1.msra.mxu0 %v1237
  %1346 = vmatprep.subr.mxu0 0.0
  %1347 = vmatpush1.msra.mxu0 %v1238
  %1348 = vmatprep.subr.mxu0 0.0
  %1349 = vmatpush1.msra.mxu0 %v1239
  %1350 = vmatprep.subr.mxu0 0.0
  %1351 = vmatpush1.msra.mxu0 %v1240
  %1352 = vmatprep.subr.mxu0 0.0
  %1353 = vmatpush1.msra.mxu0 %v1241
  %1354 = vmatprep.subr.mxu0 0.0
  %1355 = vmatpush1.msra.mxu0 %v1242
  %1356 = vmatprep.subr.mxu0 0.0
  %1357 = vmatpush1.msra.mxu0 %v1243
  %1358 = vmatprep.subr.mxu0 0.0
  %1359 = vmatpush1.msra.mxu0 %v1244
  %1360 = vmatprep.subr.mxu0 0.0
  %1361 = vmatpush1.msra.mxu0 %v1245
  %1362 = vmatprep.subr.mxu0 0.0
  %1363 = vmatpush1.msra.mxu0 %v1246
  %1364 = vmatprep.subr.mxu0 0.0
  %1365 = vmatpush1.msra.mxu0 %v1247
  %1366 = vmatprep.subr.mxu0 0.0
  %1367 = vmatpush1.msra.mxu0 %v1248
  %1368 = vmatprep.subr.mxu0 0.0
  %1369 = vmatpush1.msra.mxu0 %v1249
  %1370 = vmatprep.subr.mxu0 0.0
  %1371 = vmatpush1.msra.mxu0 %v1250
  %1372 = vmatprep.subr.mxu0 0.0
  %1373 = vmatpush1.msra.mxu0 %v1251
  %1374 = vmatprep.subr.mxu0 0.0
  %1375 = vmatpush1.msra.mxu0 %v1252
  %1376 = vmatprep.subr.mxu0 0.0
  %1377 = vmatpush1.msra.mxu0 %v1253
  %1378 = vmatprep.subr.mxu0 0.0
  %1379 = vmatpush1.msra.mxu0 %v1254
  %1380 = vmatprep.subr.mxu0 0.0
  %1381 = vmatpush1.msra.mxu0 %v1255
  %1382 = vmatprep.subr.mxu0 0.0
  %1383 = vmatpush1.msra.mxu0 %v1256
  %1384 = vmatprep.subr.mxu0 0.0
  %1385 = vmatpush1.msra.mxu0 %v1257
  %1386 = vmatprep.subr.mxu0 0.0
  %1387 = vmatpush1.msra.mxu0 %v1258
  %1388 = vmatprep.subr.mxu0 0.0
  %1389 = vmatpush1.msra.mxu0 %v1259
  %1390 = vmatprep.subr.mxu0 0.0
  %1391 = vmatpush1.msra.mxu0 %v1260
  %1392 = vmatprep.subr.mxu0 0.0
  %1393 = vmatpush1.msra.mxu0 %v1261
  %1394 = vmatprep.subr.mxu0 0.0
  %1395 = vmatpush1.msra.mxu0 %v1262
  %1396 = vmatprep.subr.mxu0 0.0
  %1397 = vmatpush1.msra.mxu0 %v1263
  %1398 = vmatprep.mubr.f32.mxu0 %v1199
  %1399 = vmatmul.mubr.f32.gmra.mrb[0].mxu0 %v1192
  %v1400 = vpop.f32.mrb[0].mxu0
  %v1401 = vadd.f32 %v1331, %v1400
  %v1402 = vpop.f32.mrb[0].mxu0
  %1403 = vdwg.mxu0
  %v1404 = vmul.f32 %v1125, %v1125
  %v1405 = vmul.f32 %v1127, %v1127
  %v1406 = vmul.f32 %v1166, %v1166
  %v1407 = vmul.f32 %v1168, %v1168
  %v1408 = vsel %vm293, %v1404, 0.0
  %v1409 = vrot.slane %v1408, 4
  %v1410 = vadd.f32 %v1408, %v1409
  %v1411 = vrot.slane %v1410, 2
  %v1412 = vadd.f32 %v1410, %v1411
  %v1413 = vrot.slane %v1412, 1
  %v1414 = vadd.f32 %v1412, %v1413
  %v1415 = vsel %vm293, %v1405, 0.0
  %v1416 = vrot.slane %v1415, 4
  %v1417 = vadd.f32 %v1415, %v1416
  %v1418 = vrot.slane %v1417, 2
  %v1419 = vadd.f32 %v1417, %v1418
  %v1420 = vrot.slane %v1419, 1
  %v1421 = vadd.f32 %v1419, %v1420
  %v1422 = vsel %vm293, %v1406, 0.0
  %v1423 = vrot.slane %v1422, 4
  %v1424 = vadd.f32 %v1422, %v1423
  %v1425 = vrot.slane %v1424, 2
  %v1426 = vadd.f32 %v1424, %v1425
  %v1427 = vrot.slane %v1426, 1
  %v1428 = vadd.f32 %v1426, %v1427
  %v1429 = vsel %vm293, %v1407, 0.0
  %v1430 = vrot.slane %v1429, 4
  %v1431 = vadd.f32 %v1429, %v1430
  %v1432 = vrot.slane %v1431, 2
  %v1433 = vadd.f32 %v1431, %v1432
  %v1434 = vrot.slane %v1433, 1
  %v1435 = vadd.f32 %v1433, %v1434
  %1436 = vmatprep.subr.mxu0 0.0
  %1437 = vmatpush1.msra.mxu0 %v1200
  %1438 = vmatprep.subr.mxu0 0.0
  %1439 = vmatpush1.msra.mxu0 %v1201
  %1440 = vmatprep.subr.mxu0 0.0
  %1441 = vmatpush1.msra.mxu0 %v1202
  %1442 = vmatprep.subr.mxu0 0.0
  %1443 = vmatpush1.msra.mxu0 %v1203
  %1444 = vmatprep.subr.mxu0 0.0
  %1445 = vmatpush1.msra.mxu0 %v1204
  %1446 = vmatprep.subr.mxu0 0.0
  %1447 = vmatpush1.msra.mxu0 %v1205
  %1448 = vmatprep.subr.mxu0 0.0
  %1449 = vmatpush1.msra.mxu0 %v1206
  %1450 = vmatprep.subr.mxu0 0.0
  %1451 = vmatpush1.msra.mxu0 %v1207
  %1452 = vmatprep.subr.mxu0 0.0
  %1453 = vmatpush1.msra.mxu0 %v1208
  %1454 = vmatprep.subr.mxu0 0.0
  %1455 = vmatpush1.msra.mxu0 %v1209
  %1456 = vmatprep.subr.mxu0 0.0
  %1457 = vmatpush1.msra.mxu0 %v1210
  %1458 = vmatprep.subr.mxu0 0.0
  %1459 = vmatpush1.msra.mxu0 %v1211
  %1460 = vmatprep.subr.mxu0 0.0
  %1461 = vmatpush1.msra.mxu0 %v1212
  %1462 = vmatprep.subr.mxu0 0.0
  %1463 = vmatpush1.msra.mxu0 %v1213
  %1464 = vmatprep.subr.mxu0 0.0
  %1465 = vmatpush1.msra.mxu0 %v1214
  %1466 = vmatprep.subr.mxu0 0.0
  %1467 = vmatpush1.msra.mxu0 %v1215
  %1468 = vmatprep.subr.mxu0 0.0
  %1469 = vmatpush1.msra.mxu0 %v1216
  %1470 = vmatprep.subr.mxu0 0.0
  %1471 = vmatpush1.msra.mxu0 %v1217
  %1472 = vmatprep.subr.mxu0 0.0
  %1473 = vmatpush1.msra.mxu0 %v1218
  %1474 = vmatprep.subr.mxu0 0.0
  %1475 = vmatpush1.msra.mxu0 %v1219
  %1476 = vmatprep.subr.mxu0 0.0
  %1477 = vmatpush1.msra.mxu0 %v1220
  %1478 = vmatprep.subr.mxu0 0.0
  %1479 = vmatpush1.msra.mxu0 %v1221
  %1480 = vmatprep.subr.mxu0 0.0
  %1481 = vmatpush1.msra.mxu0 %v1222
  %1482 = vmatprep.subr.mxu0 0.0
  %1483 = vmatpush1.msra.mxu0 %v1223
  %1484 = vmatprep.subr.mxu0 0.0
  %1485 = vmatpush1.msra.mxu0 %v1224
  %1486 = vmatprep.subr.mxu0 0.0
  %1487 = vmatpush1.msra.mxu0 %v1225
  %1488 = vmatprep.subr.mxu0 0.0
  %1489 = vmatpush1.msra.mxu0 %v1226
  %1490 = vmatprep.subr.mxu0 0.0
  %1491 = vmatpush1.msra.mxu0 %v1227
  %1492 = vmatprep.subr.mxu0 0.0
  %1493 = vmatpush1.msra.mxu0 %v1228
  %1494 = vmatprep.subr.mxu0 0.0
  %1495 = vmatpush1.msra.mxu0 %v1229
  %1496 = vmatprep.subr.mxu0 0.0
  %1497 = vmatpush1.msra.mxu0 %v1230
  %1498 = vmatprep.subr.mxu0 0.0
  %1499 = vmatpush1.msra.mxu0 %v1231
  %1500 = vmatprep.mubr.f32.mxu0 %v1421
  %1501 = vmatmul.mubr.f32.gmra.mrb[0].mxu0 %v1414
  %v1502 = vpop.f32.mrb[0].mxu0
  %v1503 = vadd.f32 0.0, %v1502
  %v1504 = vpop.f32.mrb[0].mxu0
  %1505 = vdwg.mxu0
  %1506 = vmatprep.subr.mxu0 0.0
  %1507 = vmatpush1.msra.mxu0 %v1232
  %1508 = vmatprep.subr.mxu0 0.0
  %1509 = vmatpush1.msra.mxu0 %v1233
  %1510 = vmatprep.subr.mxu0 0.0
  %1511 = vmatpush1.msra.mxu0 %v1234
  %1512 = vmatprep.subr.mxu0 0.0
  %1513 = vmatpush1.msra.mxu0 %v1235
  %1514 = vmatprep.subr.mxu0 0.0
  %1515 = vmatpush1.msra.mxu0 %v1236
  %1516 = vmatprep.subr.mxu0 0.0
  %1517 = vmatpush1.msra.mxu0 %v1237
  %1518 = vmatprep.subr.mxu0 0.0
  %1519 = vmatpush1.msra.mxu0 %v1238
  %1520 = vmatprep.subr.mxu0 0.0
  %1521 = vmatpush1.msra.mxu0 %v1239
  %1522 = vmatprep.subr.mxu0 0.0
  %1523 = vmatpush1.msra.mxu0 %v1240
  %1524 = vmatprep.subr.mxu0 0.0
  %1525 = vmatpush1.msra.mxu0 %v1241
  %1526 = vmatprep.subr.mxu0 0.0
  %1527 = vmatpush1.msra.mxu0 %v1242
  %1528 = vmatprep.subr.mxu0 0.0
  %1529 = vmatpush1.msra.mxu0 %v1243
  %1530 = vmatprep.subr.mxu0 0.0
  %1531 = vmatpush1.msra.mxu0 %v1244
  %1532 = vmatprep.subr.mxu0 0.0
  %1533 = vmatpush1.msra.mxu0 %v1245
  %1534 = vmatprep.subr.mxu0 0.0
  %1535 = vmatpush1.msra.mxu0 %v1246
  %1536 = vmatprep.subr.mxu0 0.0
  %1537 = vmatpush1.msra.mxu0 %v1247
  %1538 = vmatprep.subr.mxu0 0.0
  %1539 = vmatpush1.msra.mxu0 %v1248
  %1540 = vmatprep.subr.mxu0 0.0
  %1541 = vmatpush1.msra.mxu0 %v1249
  %1542 = vmatprep.subr.mxu0 0.0
  %1543 = vmatpush1.msra.mxu0 %v1250
  %1544 = vmatprep.subr.mxu0 0.0
  %1545 = vmatpush1.msra.mxu0 %v1251
  %1546 = vmatprep.subr.mxu0 0.0
  %1547 = vmatpush1.msra.mxu0 %v1252
  %1548 = vmatprep.subr.mxu0 0.0
  %1549 = vmatpush1.msra.mxu0 %v1253
  %1550 = vmatprep.subr.mxu0 0.0
  %1551 = vmatpush1.msra.mxu0 %v1254
  %1552 = vmatprep.subr.mxu0 0.0
  %1553 = vmatpush1.msra.mxu0 %v1255
  %1554 = vmatprep.subr.mxu0 0.0
  %1555 = vmatpush1.msra.mxu0 %v1256
  %1556 = vmatprep.subr.mxu0 0.0
  %1557 = vmatpush1.msra.mxu0 %v1257
  %1558 = vmatprep.subr.mxu0 0.0
  %1559 = vmatpush1.msra.mxu0 %v1258
  %1560 = vmatprep.subr.mxu0 0.0
  %1561 = vmatpush1.msra.mxu0 %v1259
  %1562 = vmatprep.subr.mxu0 0.0
  %1563 = vmatpush1.msra.mxu0 %v1260
  %1564 = vmatprep.subr.mxu0 0.0
  %1565 = vmatpush1.msra.mxu0 %v1261
  %1566 = vmatprep.subr.mxu0 0.0
  %1567 = vmatpush1.msra.mxu0 %v1262
  %1568 = vmatprep.subr.mxu0 0.0
  %1569 = vmatpush1.msra.mxu0 %v1263
  %1570 = vmatprep.mubr.f32.mxu0 %v1435
  %1571 = vmatmul.mubr.f32.gmra.mrb[0].mxu0 %v1428
  %v1572 = vpop.f32.mrb[0].mxu0
  %v1573 = vadd.f32 %v1503, %v1572
  %v1574 = vpop.f32.mrb[0].mxu0
  %1575 = vdwg.mxu0
  %v1576 = vmul.f32 %v1401, 0.0078125
  %v1577 = vmul.f32 %v1573, 0.0078125
  %v1578 = vmul.f32 %v1576, %v1576
  %v1579 = vsub.f32 %v1577, %v1578
  %v1580 = vld [vmem:[%s11] sm:$0x1]
  %v1581 = vadd.f32 %v1579, 1e-05
  %v1582 = vrsqrt.pop %v1581
  %v1583 = vmul.f32 %v1580, %v1582
  %v1584 = vld [vmem:[%s12] sm:$0x1]
  %v1585 = vmul.f32 %v1576, %v1583
  %v1586 = vsub.f32 %v1584, %v1585
  %v1587 = vld [vmem:[%s14] sm:$0xff]
  %v1588 = vld [vmem:[%s14 + $0x8] sm:$0xff]
  %v1589 = vld [vmem:[%s14 + $0x10] sm:$0xff]
  %v1590 = vld [vmem:[%s14 + $0x18] sm:$0xff]
  %vm1591 = vcmask 64512
  %v1593 = vsel %vm1591, %v1583, 0
  %1595 = vmatprep.subr.mxu0 %v1588
  %1596 = vmatpush1.msra.mxu0 %v1587
  %1597 = vmatprep.subr.mxu0 0.0
  %1598 = vmatpush1.msra.mxu0 0.0
  %1599 = vmatprep.subr.mxu0 0.0
  %1600 = vmatpush1.msra.mxu0 0.0
  %1601 = vmatprep.subr.mxu0 0.0
  %1602 = vmatpush1.msra.mxu0 0.0
  %1603 = vmatprep.subr.mxu0 0.0
  %1604 = vmatpush1.msra.mxu0 0.0
  %1605 = vmatprep.subr.mxu0 0.0
  %1606 = vmatpush1.msra.mxu0 0.0
  %1607 = vmatprep.subr.mxu0 0.0
  %1608 = vmatpush1.msra.mxu0 0.0
  %1609 = vmatprep.subr.mxu0 0.0
  %1610 = vmatpush1.msra.mxu0 0.0
  %1611 = vmatprep.subr.mxu0 0.0
  %1612 = vmatpush1.msra.mxu0 0.0
  %1613 = vmatprep.subr.mxu0 0.0
  %1614 = vmatpush1.msra.mxu0 0.0
  %1615 = vmatprep.subr.mxu0 0.0
  %1616 = vmatpush1.msra.mxu0 0.0
  %1617 = vmatprep.subr.mxu0 0.0
  %1618 = vmatpush1.msra.mxu0 0.0
  %1619 = vmatprep.subr.mxu0 0.0
  %1620 = vmatpush1.msra.mxu0 0.0
  %1621 = vmatprep.subr.mxu0 0.0
  %1622 = vmatpush1.msra.mxu0 0.0
  %1623 = vmatprep.subr.mxu0 0.0
  %1624 = vmatpush1.msra.mxu0 0.0
  %1625 = vmatprep.subr.mxu0 0.0
  %1626 = vmatpush1.msra.mxu0 0.0
  %1627 = vmatprep.subr.mxu0 0.0
  %1628 = vmatpush1.msra.mxu0 0.0
  %1629 = vmatprep.subr.mxu0 0.0
  %1630 = vmatpush1.msra.mxu0 0.0
  %1631 = vmatprep.subr.mxu0 0.0
  %1632 = vmatpush1.msra.mxu0 0.0
  %1633 = vmatprep.subr.mxu0 0.0
  %1634 = vmatpush1.msra.mxu0 0.0
  %1635 = vmatprep.subr.mxu0 0.0
  %1636 = vmatpush1.msra.mxu0 0.0
  %1637 = vmatprep.subr.mxu0 0.0
  %1638 = vmatpush1.msra.mxu0 0.0
  %1639 = vmatprep.subr.mxu0 0.0
  %1640 = vmatpush1.msra.mxu0 0.0
  %1641 = vmatprep.subr.mxu0 0.0
  %1642 = vmatpush1.msra.mxu0 0.0
  %1643 = vmatprep.subr.mxu0 0.0
  %1644 = vmatpush1.msra.mxu0 0.0
  %1645 = vmatprep.subr.mxu0 0.0
  %1646 = vmatpush1.msra.mxu0 0.0
  %1647 = vmatprep.subr.mxu0 0.0
  %1648 = vmatpush1.msra.mxu0 0.0
  %1649 = vmatprep.subr.mxu0 0.0
  %1650 = vmatpush1.msra.mxu0 0.0
  %1651 = vmatprep.subr.mxu0 0.0
  %1652 = vmatpush1.msra.mxu0 0.0
  %1653 = vmatprep.subr.mxu0 0.0
  %1654 = vmatpush1.msra.mxu0 0.0
  %1655 = vmatprep.subr.mxu0 0.0
  %1656 = vmatpush1.msra.mxu0 0.0
  %1657 = vmatprep.subr.mxu0 0.0
  %1658 = vmatpush1.msra.mxu0 0.0
  %1659 = vmatprep.mubr.f32.mxu0 0.0
  %1660 = vmatmul.mubr.f32.gmra.mrb[0].mxu0 %v1593
  %v1661 = vpop.f32.mrb[0].mxu0
  %v1662 = vadd.f32 0.0, %v1661
  %v1663 = vpop.f32.mrb[0].mxu0
  %v1664 = vadd.f32 0.0, %v1663
  %1665 = vdwg.mxu0
  %1666 = vmatprep.subr.mxu0 %v1590
  %1667 = vmatpush1.msra.mxu0 %v1589
  %1668 = vmatprep.subr.mxu0 0.0
  %1669 = vmatpush1.msra.mxu0 0.0
  %1670 = vmatprep.subr.mxu0 0.0
  %1671 = vmatpush1.msra.mxu0 0.0
  %1672 = vmatprep.subr.mxu0 0.0
  %1673 = vmatpush1.msra.mxu0 0.0
  %1674 = vmatprep.subr.mxu0 0.0
  %1675 = vmatpush1.msra.mxu0 0.0
  %1676 = vmatprep.subr.mxu0 0.0
  %1677 = vmatpush1.msra.mxu0 0.0
  %1678 = vmatprep.subr.mxu0 0.0
  %1679 = vmatpush1.msra.mxu0 0.0
  %1680 = vmatprep.subr.mxu0 0.0
  %1681 = vmatpush1.msra.mxu0 0.0
  %1682 = vmatprep.subr.mxu0 0.0
  %1683 = vmatpush1.msra.mxu0 0.0
  %1684 = vmatprep.subr.mxu0 0.0
  %1685 = vmatpush1.msra.mxu0 0.0
  %1686 = vmatprep.subr.mxu0 0.0
  %1687 = vmatpush1.msra.mxu0 0.0
  %1688 = vmatprep.subr.mxu0 0.0
  %1689 = vmatpush1.msra.mxu0 0.0
  %1690 = vmatprep.subr.mxu0 0.0
  %1691 = vmatpush1.msra.mxu0 0.0
  %1692 = vmatprep.subr.mxu0 0.0
  %1693 = vmatpush1.msra.mxu0 0.0
  %1694 = vmatprep.subr.mxu0 0.0
  %1695 = vmatpush1.msra.mxu0 0.0
  %1696 = vmatprep.subr.mxu0 0.0
  %1697 = vmatpush1.msra.mxu0 0.0
  %1698 = vmatprep.subr.mxu0 0.0
  %1699 = vmatpush1.msra.mxu0 0.0
  %1700 = vmatprep.subr.mxu0 0.0
  %1701 = vmatpush1.msra.mxu0 0.0
  %1702 = vmatprep.subr.mxu0 0.0
  %1703 = vmatpush1.msra.mxu0 0.0
  %1704 = vmatprep.subr.mxu0 0.0
  %1705 = vmatpush1.msra.mxu0 0.0
  %1706 = vmatprep.subr.mxu0 0.0
  %1707 = vmatpush1.msra.mxu0 0.0
  %1708 = vmatprep.subr.mxu0 0.0
  %1709 = vmatpush1.msra.mxu0 0.0
  %1710 = vmatprep.subr.mxu0 0.0
  %1711 = vmatpush1.msra.mxu0 0.0
  %1712 = vmatprep.subr.mxu0 0.0
  %1713 = vmatpush1.msra.mxu0 0.0
  %1714 = vmatprep.subr.mxu0 0.0
  %1715 = vmatpush1.msra.mxu0 0.0
  %1716 = vmatprep.subr.mxu0 0.0
  %1717 = vmatpush1.msra.mxu0 0.0
  %1718 = vmatprep.subr.mxu0 0.0
  %1719 = vmatpush1.msra.mxu0 0.0
  %1720 = vmatprep.subr.mxu0 0.0
  %1721 = vmatpush1.msra.mxu0 0.0
  %1722 = vmatprep.subr.mxu0 0.0
  %1723 = vmatpush1.msra.mxu0 0.0
  %1724 = vmatprep.subr.mxu0 0.0
  %1725 = vmatpush1.msra.mxu0 0.0
  %1726 = vmatprep.subr.mxu0 0.0
  %1727 = vmatpush1.msra.mxu0 0.0
  %1728 = vmatprep.subr.mxu0 0.0
  %1729 = vmatpush1.msra.mxu0 0.0
  %1730 = vmatprep.mubr.f32.mxu0 0.0
  %1731 = vmatmul.mubr.f32.gmra.mrb[0].mxu0 %v1593
  %v1732 = vpop.f32.mrb[0].mxu0
  %v1733 = vadd.f32 0.0, %v1732
  %v1734 = vpop.f32.mrb[0].mxu0
  %v1735 = vadd.f32 0.0, %v1734
  %1736 = vdwg.mxu0
  %v1738 = vsel %vm1591, %v1586, 0
  %1740 = vmatprep.subr.mxu0 %v1588
  %1741 = vmatpush1.msra.mxu0 %v1587
  %1742 = vmatprep.subr.mxu0 0.0
  %1743 = vmatpush1.msra.mxu0 0.0
  %1744 = vmatprep.subr.mxu0 0.0
  %1745 = vmatpush1.msra.mxu0 0.0
  %1746 = vmatprep.subr.mxu0 0.0
  %1747 = vmatpush1.msra.mxu0 0.0
  %1748 = vmatprep.subr.mxu0 0.0
  %1749 = vmatpush1.msra.mxu0 0.0
  %1750 = vmatprep.subr.mxu0 0.0
  %1751 = vmatpush1.msra.mxu0 0.0
  %1752 = vmatprep.subr.mxu0 0.0
  %1753 = vmatpush1.msra.mxu0 0.0
  %1754 = vmatprep.subr.mxu0 0.0
  %1755 = vmatpush1.msra.mxu0 0.0
  %1756 = vmatprep.subr.mxu0 0.0
  %1757 = vmatpush1.msra.mxu0 0.0
  %1758 = vmatprep.subr.mxu0 0.0
  %1759 = vmatpush1.msra.mxu0 0.0
  %1760 = vmatprep.subr.mxu0 0.0
  %1761 = vmatpush1.msra.mxu0 0.0
  %1762 = vmatprep.subr.mxu0 0.0
  %1763 = vmatpush1.msra.mxu0 0.0
  %1764 = vmatprep.subr.mxu0 0.0
  %1765 = vmatpush1.msra.mxu0 0.0
  %1766 = vmatprep.subr.mxu0 0.0
  %1767 = vmatpush1.msra.mxu0 0.0
  %1768 = vmatprep.subr.mxu0 0.0
  %1769 = vmatpush1.msra.mxu0 0.0
  %1770 = vmatprep.subr.mxu0 0.0
  %1771 = vmatpush1.msra.mxu0 0.0
  %1772 = vmatprep.subr.mxu0 0.0
  %1773 = vmatpush1.msra.mxu0 0.0
  %1774 = vmatprep.subr.mxu0 0.0
  %1775 = vmatpush1.msra.mxu0 0.0
  %1776 = vmatprep.subr.mxu0 0.0
  %1777 = vmatpush1.msra.mxu0 0.0
  %1778 = vmatprep.subr.mxu0 0.0
  %1779 = vmatpush1.msra.mxu0 0.0
  %1780 = vmatprep.subr.mxu0 0.0
  %1781 = vmatpush1.msra.mxu0 0.0
  %1782 = vmatprep.subr.mxu0 0.0
  %1783 = vmatpush1.msra.mxu0 0.0
  %1784 = vmatprep.subr.mxu0 0.0
  %1785 = vmatpush1.msra.mxu0 0.0
  %1786 = vmatprep.subr.mxu0 0.0
  %1787 = vmatpush1.msra.mxu0 0.0
  %1788 = vmatprep.subr.mxu0 0.0
  %1789 = vmatpush1.msra.mxu0 0.0
  %1790 = vmatprep.subr.mxu0 0.0
  %1791 = vmatpush1.msra.mxu0 0.0
  %1792 = vmatprep.subr.mxu0 0.0
  %1793 = vmatpush1.msra.mxu0 0.0
  %1794 = vmatprep.subr.mxu0 0.0
  %1795 = vmatpush1.msra.mxu0 0.0
  %1796 = vmatprep.subr.mxu0 0.0
  %1797 = vmatpush1.msra.mxu0 0.0
  %1798 = vmatprep.subr.mxu0 0.0
  %1799 = vmatpush1.msra.mxu0 0.0
  %1800 = vmatprep.subr.mxu0 0.0
  %1801 = vmatpush1.msra.mxu0 0.0
  %1802 = vmatprep.subr.mxu0 0.0
  %1803 = vmatpush1.msra.mxu0 0.0
  %1804 = vmatprep.mubr.f32.mxu0 0.0
  %1805 = vmatmul.mubr.f32.gmra.mrb[0].mxu0 %v1738
  %v1806 = vpop.f32.mrb[0].mxu0
  %v1807 = vadd.f32 0.0, %v1806
  %v1808 = vpop.f32.mrb[0].mxu0
  %v1809 = vadd.f32 0.0, %v1808
  %1810 = vdwg.mxu0
  %1811 = vmatprep.subr.mxu0 %v1590
  %1812 = vmatpush1.msra.mxu0 %v1589
  %1813 = vmatprep.subr.mxu0 0.0
  %1814 = vmatpush1.msra.mxu0 0.0
  %1815 = vmatprep.subr.mxu0 0.0
  %1816 = vmatpush1.msra.mxu0 0.0
  %1817 = vmatprep.subr.mxu0 0.0
  %1818 = vmatpush1.msra.mxu0 0.0
  %1819 = vmatprep.subr.mxu0 0.0
  %1820 = vmatpush1.msra.mxu0 0.0
  %1821 = vmatprep.subr.mxu0 0.0
  %1822 = vmatpush1.msra.mxu0 0.0
  %1823 = vmatprep.subr.mxu0 0.0
  %1824 = vmatpush1.msra.mxu0 0.0
  %1825 = vmatprep.subr.mxu0 0.0
  %1826 = vmatpush1.msra.mxu0 0.0
  %1827 = vmatprep.subr.mxu0 0.0
  %1828 = vmatpush1.msra.mxu0 0.0
  %1829 = vmatprep.subr.mxu0 0.0
  %1830 = vmatpush1.msra.mxu0 0.0
  %1831 = vmatprep.subr.mxu0 0.0
  %1832 = vmatpush1.msra.mxu0 0.0
  %1833 = vmatprep.subr.mxu0 0.0
  %1834 = vmatpush1.msra.mxu0 0.0
  %1835 = vmatprep.subr.mxu0 0.0
  %1836 = vmatpush1.msra.mxu0 0.0
  %1837 = vmatprep.subr.mxu0 0.0
  %1838 = vmatpush1.msra.mxu0 0.0
  %1839 = vmatprep.subr.mxu0 0.0
  %1840 = vmatpush1.msra.mxu0 0.0
  %1841 = vmatprep.subr.mxu0 0.0
  %1842 = vmatpush1.msra.mxu0 0.0
  %1843 = vmatprep.subr.mxu0 0.0
  %1844 = vmatpush1.msra.mxu0 0.0
  %1845 = vmatprep.subr.mxu0 0.0
  %1846 = vmatpush1.msra.mxu0 0.0
  %1847 = vmatprep.subr.mxu0 0.0
  %1848 = vmatpush1.msra.mxu0 0.0
  %1849 = vmatprep.subr.mxu0 0.0
  %1850 = vmatpush1.msra.mxu0 0.0
  %1851 = vmatprep.subr.mxu0 0.0
  %1852 = vmatpush1.msra.mxu0 0.0
  %1853 = vmatprep.subr.mxu0 0.0
  %1854 = vmatpush1.msra.mxu0 0.0
  %1855 = vmatprep.subr.mxu0 0.0
  %1856 = vmatpush1.msra.mxu0 0.0
  %1857 = vmatprep.subr.mxu0 0.0
  %1858 = vmatpush1.msra.mxu0 0.0
  %1859 = vmatprep.subr.mxu0 0.0
  %1860 = vmatpush1.msra.mxu0 0.0
  %1861 = vmatprep.subr.mxu0 0.0
  %1862 = vmatpush1.msra.mxu0 0.0
  %1863 = vmatprep.subr.mxu0 0.0
  %1864 = vmatpush1.msra.mxu0 0.0
  %1865 = vmatprep.subr.mxu0 0.0
  %1866 = vmatpush1.msra.mxu0 0.0
  %1867 = vmatprep.subr.mxu0 0.0
  %1868 = vmatpush1.msra.mxu0 0.0
  %1869 = vmatprep.subr.mxu0 0.0
  %1870 = vmatpush1.msra.mxu0 0.0
  %1871 = vmatprep.subr.mxu0 0.0
  %1872 = vmatpush1.msra.mxu0 0.0
  %1873 = vmatprep.subr.mxu0 0.0
  %1874 = vmatpush1.msra.mxu0 0.0
  %1875 = vmatprep.mubr.f32.mxu0 0.0
  %1876 = vmatmul.mubr.f32.gmra.mrb[0].mxu0 %v1738
  %v1877 = vpop.f32.mrb[0].mxu0
  %v1878 = vadd.f32 0.0, %v1877
  %v1879 = vpop.f32.mrb[0].mxu0
  %v1880 = vadd.f32 0.0, %v1879
  %1881 = vdwg.mxu0
  %v1882 = vlaneseq
  %v1883 = vshrl.u32 %v1882, 7
  %v1884 = vsub.s32 0, %v1883
  %v1885 = vrot.slane %v1662, %v1884
  %v1886 = vlaneseq
  %v1887 = vshrl.u32 %v1886, 7
  %v1888 = vsub.s32 0, %v1887
  %v1889 = vrot.slane %v1664, %v1888
  %v1890 = vlaneseq
  %v1891 = vshrl.u32 %v1890, 7
  %v1892 = vsub.s32 0, %v1891
  %v1893 = vrot.slane %v1733, %v1892
  %v1894 = vlaneseq
  %v1895 = vshrl.u32 %v1894, 7
  %v1896 = vsub.s32 0, %v1895
  %v1897 = vrot.slane %v1735, %v1896
  %v1898 = vmul.f32 %v1125, %v1885
  %v1899 = vmul.f32 %v1127, %v1889
  %v1900 = vmul.f32 %v1166, %v1893
  %v1901 = vmul.f32 %v1168, %v1897
  %v1902 = vlaneseq
  %v1903 = vshrl.u32 %v1902, 7
  %v1904 = vsub.s32 0, %v1903
  %v1905 = vrot.slane %v1807, %v1904
  %v1906 = vlaneseq
  %v1907 = vshrl.u32 %v1906, 7
  %v1908 = vsub.s32 0, %v1907
  %v1909 = vrot.slane %v1809, %v1908
  %v1910 = vlaneseq
  %v1911 = vshrl.u32 %v1910, 7
  %v1912 = vsub.s32 0, %v1911
  %v1913 = vrot.slane %v1878, %v1912
  %v1914 = vlaneseq
  %v1915 = vshrl.u32 %v1914, 7
  %v1916 = vsub.s32 0, %v1915
  %v1917 = vrot.slane %v1880, %v1916
  %v1918 = vadd.f32 %v1898, %v1905
  %v1919 = vadd.f32 %v1899, %v1909
  %v1920 = vadd.f32 %v1900, %v1913
  %v1921 = vadd.f32 %v1901, %v1917
  %v1922 = vmax.f32 %v1918, 0.0
  %v1923 = vmax.f32 %v1919, 0.0
  %v1924 = vmax.f32 %v1920, 0.0
  %v1925 = vmax.f32 %v1921, 0.0
  %v1926 = vpack.c.bf16 %v1922, %v1922
  %v1927 = vpack.c.bf16 %v1923, %v1923
  %v1928 = vpack.c.bf16 %v1924, %v1924
  %v1929 = vpack.c.bf16 %v1925, %v1925
  %v1930 = vld [vmem:[%s15] sm:$0xff]
  %v1931 = vld [vmem:[%s15 + $0x8] sm:$0xff]
  %v1932 = vld [vmem:[%s15 + $0x10] sm:$0xff]
  %v1933 = vld [vmem:[%s15 + $0x18] sm:$0xff]
  %v1934 = vld [vmem:[%s15 + $0x20] sm:$0xff]
  %v1935 = vld [vmem:[%s15 + $0x28] sm:$0xff]
  %v1936 = vld [vmem:[%s15 + $0x30] sm:$0xff]
  %v1937 = vld [vmem:[%s15 + $0x38] sm:$0xff]
  %v1938 = vld [vmem:[%s15 + $0x40] sm:$0xff]
  %v1939 = vld [vmem:[%s15 + $0x48] sm:$0xff]
  %v1940 = vld [vmem:[%s15 + $0x50] sm:$0xff]
  %v1941 = vld [vmem:[%s15 + $0x58] sm:$0xff]
  %v1942 = vld [vmem:[%s15 + $0x60] sm:$0xff]
  %v1943 = vld [vmem:[%s15 + $0x68] sm:$0xff]
  %v1944 = vld [vmem:[%s15 + $0x70] sm:$0xff]
  %v1945 = vld [vmem:[%s15 + $0x78] sm:$0xff]
  %v1946 = vld [vmem:[%s15 + $0x80] sm:$0xff]
  %v1947 = vld [vmem:[%s15 + $0x88] sm:$0xff]
  %v1948 = vld [vmem:[%s15 + $0x90] sm:$0xff]
  %v1949 = vld [vmem:[%s15 + $0x98] sm:$0xff]
  %v1950 = vld [vmem:[%s15 + $0xa0] sm:$0xff]
  %v1951 = vld [vmem:[%s15 + $0xa8] sm:$0xff]
  %v1952 = vld [vmem:[%s15 + $0xb0] sm:$0xff]
  %v1953 = vld [vmem:[%s15 + $0xb8] sm:$0xff]
  %v1954 = vld [vmem:[%s15 + $0xc0] sm:$0xff]
  %v1955 = vld [vmem:[%s15 + $0xc8] sm:$0xff]
  %v1956 = vld [vmem:[%s15 + $0xd0] sm:$0xff]
  %v1957 = vld [vmem:[%s15 + $0xd8] sm:$0xff]
  %v1958 = vld [vmem:[%s15 + $0xe0] sm:$0xff]
  %v1959 = vld [vmem:[%s15 + $0xe8] sm:$0xff]
  %v1960 = vld [vmem:[%s15 + $0xf0] sm:$0xff]
  %v1961 = vld [vmem:[%s15 + $0xf8] sm:$0xff]
  %v1962 = vld [vmem:[%s15 + $0x100] sm:$0xff]
  %v1963 = vld [vmem:[%s15 + $0x108] sm:$0xff]
  %v1964 = vld [vmem:[%s15 + $0x110] sm:$0xff]
  %v1965 = vld [vmem:[%s15 + $0x118] sm:$0xff]
  %v1966 = vld [vmem:[%s15 + $0x120] sm:$0xff]
  %v1967 = vld [vmem:[%s15 + $0x128] sm:$0xff]
  %v1968 = vld [vmem:[%s15 + $0x130] sm:$0xff]
  %v1969 = vld [vmem:[%s15 + $0x138] sm:$0xff]
  %v1970 = vld [vmem:[%s15 + $0x140] sm:$0xff]
  %v1971 = vld [vmem:[%s15 + $0x148] sm:$0xff]
  %v1972 = vld [vmem:[%s15 + $0x150] sm:$0xff]
  %v1973 = vld [vmem:[%s15 + $0x158] sm:$0xff]
  %v1974 = vld [vmem:[%s15 + $0x160] sm:$0xff]
  %v1975 = vld [vmem:[%s15 + $0x168] sm:$0xff]
  %v1976 = vld [vmem:[%s15 + $0x170] sm:$0xff]
  %v1977 = vld [vmem:[%s15 + $0x178] sm:$0xff]
  %v1978 = vld [vmem:[%s15 + $0x180] sm:$0xff]
  %v1979 = vld [vmem:[%s15 + $0x188] sm:$0xff]
  %v1980 = vld [vmem:[%s15 + $0x190] sm:$0xff]
  %v1981 = vld [vmem:[%s15 + $0x198] sm:$0xff]
  %v1982 = vld [vmem:[%s15 + $0x1a0] sm:$0xff]
  %v1983 = vld [vmem:[%s15 + $0x1a8] sm:$0xff]
  %v1984 = vld [vmem:[%s15 + $0x1b0] sm:$0xff]
  %v1985 = vld [vmem:[%s15 + $0x1b8] sm:$0xff]
  %v1986 = vld [vmem:[%s15 + $0x1c0] sm:$0xff]
  %v1987 = vld [vmem:[%s15 + $0x1c8] sm:$0xff]
  %v1988 = vld [vmem:[%s15 + $0x1d0] sm:$0xff]
  %v1989 = vld [vmem:[%s15 + $0x1d8] sm:$0xff]
  %v1990 = vld [vmem:[%s15 + $0x1e0] sm:$0xff]
  %v1991 = vld [vmem:[%s15 + $0x1e8] sm:$0xff]
  %v1992 = vld [vmem:[%s15 + $0x1f0] sm:$0xff]
  %v1993 = vld [vmem:[%s15 + $0x1f8] sm:$0xff]
  %v1994 = vld [vmem:[%s15 + $0x200] sm:$0xff]
  %v1995 = vld [vmem:[%s15 + $0x208] sm:$0xff]
  %v1996 = vld [vmem:[%s15 + $0x210] sm:$0xff]
  %v1997 = vld [vmem:[%s15 + $0x218] sm:$0xff]
  %v1998 = vld [vmem:[%s15 + $0x220] sm:$0xff]
  %v1999 = vld [vmem:[%s15 + $0x228] sm:$0xff]
  %v2000 = vld [vmem:[%s15 + $0x230] sm:$0xff]
  %v2001 = vld [vmem:[%s15 + $0x238] sm:$0xff]
  %v2002 = vld [vmem:[%s15 + $0x240] sm:$0xff]
  %v2003 = vld [vmem:[%s15 + $0x248] sm:$0xff]
  %v2004 = vld [vmem:[%s15 + $0x250] sm:$0xff]
  %v2005 = vld [vmem:[%s15 + $0x258] sm:$0xff]
  %v2006 = vld [vmem:[%s15 + $0x260] sm:$0xff]
  %v2007 = vld [vmem:[%s15 + $0x268] sm:$0xff]
  %v2008 = vld [vmem:[%s15 + $0x270] sm:$0xff]
  %v2009 = vld [vmem:[%s15 + $0x278] sm:$0xff]
  %v2010 = vld [vmem:[%s15 + $0x280] sm:$0xff]
  %v2011 = vld [vmem:[%s15 + $0x288] sm:$0xff]
  %v2012 = vld [vmem:[%s15 + $0x290] sm:$0xff]
  %v2013 = vld [vmem:[%s15 + $0x298] sm:$0xff]
  %v2014 = vld [vmem:[%s15 + $0x2a0] sm:$0xff]
  %v2015 = vld [vmem:[%s15 + $0x2a8] sm:$0xff]
  %v2016 = vld [vmem:[%s15 + $0x2b0] sm:$0xff]
  %v2017 = vld [vmem:[%s15 + $0x2b8] sm:$0xff]
  %v2018 = vld [vmem:[%s15 + $0x2c0] sm:$0xff]
  %v2019 = vld [vmem:[%s15 + $0x2c8] sm:$0xff]
  %v2020 = vld [vmem:[%s15 + $0x2d0] sm:$0xff]
  %v2021 = vld [vmem:[%s15 + $0x2d8] sm:$0xff]
  %v2022 = vld [vmem:[%s15 + $0x2e0] sm:$0xff]
  %v2023 = vld [vmem:[%s15 + $0x2e8] sm:$0xff]
  %v2024 = vld [vmem:[%s15 + $0x2f0] sm:$0xff]
  %v2025 = vld [vmem:[%s15 + $0x2f8] sm:$0xff]
  %v2026 = vld [vmem:[%s15 + $0x300] sm:$0xff]
  %v2027 = vld [vmem:[%s15 + $0x308] sm:$0xff]
  %v2028 = vld [vmem:[%s15 + $0x310] sm:$0xff]
  %v2029 = vld [vmem:[%s15 + $0x318] sm:$0xff]
  %v2030 = vld [vmem:[%s15 + $0x320] sm:$0xff]
  %v2031 = vld [vmem:[%s15 + $0x328] sm:$0xff]
  %v2032 = vld [vmem:[%s15 + $0x330] sm:$0xff]
  %v2033 = vld [vmem:[%s15 + $0x338] sm:$0xff]
  %v2034 = vld [vmem:[%s15 + $0x340] sm:$0xff]
  %v2035 = vld [vmem:[%s15 + $0x348] sm:$0xff]
  %v2036 = vld [vmem:[%s15 + $0x350] sm:$0xff]
  %v2037 = vld [vmem:[%s15 + $0x358] sm:$0xff]
  %v2038 = vld [vmem:[%s15 + $0x360] sm:$0xff]
  %v2039 = vld [vmem:[%s15 + $0x368] sm:$0xff]
  %v2040 = vld [vmem:[%s15 + $0x370] sm:$0xff]
  %v2041 = vld [vmem:[%s15 + $0x378] sm:$0xff]
  %v2042 = vld [vmem:[%s15 + $0x380] sm:$0xff]
  %v2043 = vld [vmem:[%s15 + $0x388] sm:$0xff]
  %v2044 = vld [vmem:[%s15 + $0x390] sm:$0xff]
  %v2045 = vld [vmem:[%s15 + $0x398] sm:$0xff]
  %v2046 = vld [vmem:[%s15 + $0x3a0] sm:$0xff]
  %v2047 = vld [vmem:[%s15 + $0x3a8] sm:$0xff]
  %v2048 = vld [vmem:[%s15 + $0x3b0] sm:$0xff]
  %v2049 = vld [vmem:[%s15 + $0x3b8] sm:$0xff]
  %v2050 = vld [vmem:[%s15 + $0x3c0] sm:$0xff]
  %v2051 = vld [vmem:[%s15 + $0x3c8] sm:$0xff]
  %v2052 = vld [vmem:[%s15 + $0x3d0] sm:$0xff]
  %v2053 = vld [vmem:[%s15 + $0x3d8] sm:$0xff]
  %v2054 = vld [vmem:[%s15 + $0x3e0] sm:$0xff]
  %v2055 = vld [vmem:[%s15 + $0x3e8] sm:$0xff]
  %v2056 = vld [vmem:[%s15 + $0x3f0] sm:$0xff]
  %v2057 = vld [vmem:[%s15 + $0x3f8] sm:$0xff]
  %v2058 = vld [vmem:[%s15 + $0x400] sm:$0xff]
  %v2059 = vld [vmem:[%s15 + $0x408] sm:$0xff]
  %v2060 = vld [vmem:[%s15 + $0x410] sm:$0xff]
  %v2061 = vld [vmem:[%s15 + $0x418] sm:$0xff]
  %v2062 = vld [vmem:[%s15 + $0x420] sm:$0xff]
  %v2063 = vld [vmem:[%s15 + $0x428] sm:$0xff]
  %v2064 = vld [vmem:[%s15 + $0x430] sm:$0xff]
  %v2065 = vld [vmem:[%s15 + $0x438] sm:$0xff]
  %v2066 = vld [vmem:[%s15 + $0x440] sm:$0xff]
  %v2067 = vld [vmem:[%s15 + $0x448] sm:$0xff]
  %v2068 = vld [vmem:[%s15 + $0x450] sm:$0xff]
  %v2069 = vld [vmem:[%s15 + $0x458] sm:$0xff]
  %v2070 = vld [vmem:[%s15 + $0x460] sm:$0xff]
  %v2071 = vld [vmem:[%s15 + $0x468] sm:$0xff]
  %v2072 = vld [vmem:[%s15 + $0x470] sm:$0xff]
  %v2073 = vld [vmem:[%s15 + $0x478] sm:$0xff]
  %v2074 = vld [vmem:[%s15 + $0x480] sm:$0xff]
  %v2075 = vld [vmem:[%s15 + $0x488] sm:$0xff]
  %v2076 = vld [vmem:[%s15 + $0x490] sm:$0xff]
  %v2077 = vld [vmem:[%s15 + $0x498] sm:$0xff]
  %v2078 = vld [vmem:[%s15 + $0x4a0] sm:$0xff]
  %v2079 = vld [vmem:[%s15 + $0x4a8] sm:$0xff]
  %v2080 = vld [vmem:[%s15 + $0x4b0] sm:$0xff]
  %v2081 = vld [vmem:[%s15 + $0x4b8] sm:$0xff]
  %v2082 = vld [vmem:[%s15 + $0x4c0] sm:$0xff]
  %v2083 = vld [vmem:[%s15 + $0x4c8] sm:$0xff]
  %v2084 = vld [vmem:[%s15 + $0x4d0] sm:$0xff]
  %v2085 = vld [vmem:[%s15 + $0x4d8] sm:$0xff]
  %v2086 = vld [vmem:[%s15 + $0x4e0] sm:$0xff]
  %v2087 = vld [vmem:[%s15 + $0x4e8] sm:$0xff]
  %v2088 = vld [vmem:[%s15 + $0x4f0] sm:$0xff]
  %v2089 = vld [vmem:[%s15 + $0x4f8] sm:$0xff]
  %v2090 = vld [vmem:[%s15 + $0x500] sm:$0xff]
  %v2091 = vld [vmem:[%s15 + $0x508] sm:$0xff]
  %v2092 = vld [vmem:[%s15 + $0x510] sm:$0xff]
  %v2093 = vld [vmem:[%s15 + $0x518] sm:$0xff]
  %v2094 = vld [vmem:[%s15 + $0x520] sm:$0xff]
  %v2095 = vld [vmem:[%s15 + $0x528] sm:$0xff]
  %v2096 = vld [vmem:[%s15 + $0x530] sm:$0xff]
  %v2097 = vld [vmem:[%s15 + $0x538] sm:$0xff]
  %v2098 = vld [vmem:[%s15 + $0x540] sm:$0xff]
  %v2099 = vld [vmem:[%s15 + $0x548] sm:$0xff]
  %v2100 = vld [vmem:[%s15 + $0x550] sm:$0xff]
  %v2101 = vld [vmem:[%s15 + $0x558] sm:$0xff]
  %v2102 = vld [vmem:[%s15 + $0x560] sm:$0xff]
  %v2103 = vld [vmem:[%s15 + $0x568] sm:$0xff]
  %v2104 = vld [vmem:[%s15 + $0x570] sm:$0xff]
  %v2105 = vld [vmem:[%s15 + $0x578] sm:$0xff]
  %v2106 = vld [vmem:[%s15 + $0x580] sm:$0xff]
  %v2107 = vld [vmem:[%s15 + $0x588] sm:$0xff]
  %v2108 = vld [vmem:[%s15 + $0x590] sm:$0xff]
  %v2109 = vld [vmem:[%s15 + $0x598] sm:$0xff]
  %v2110 = vld [vmem:[%s15 + $0x5a0] sm:$0xff]
  %v2111 = vld [vmem:[%s15 + $0x5a8] sm:$0xff]
  %v2112 = vld [vmem:[%s15 + $0x5b0] sm:$0xff]
  %v2113 = vld [vmem:[%s15 + $0x5b8] sm:$0xff]
  %v2114 = vld [vmem:[%s15 + $0x5c0] sm:$0xff]
  %v2115 = vld [vmem:[%s15 + $0x5c8] sm:$0xff]
  %v2116 = vld [vmem:[%s15 + $0x5d0] sm:$0xff]
  %v2117 = vld [vmem:[%s15 + $0x5d8] sm:$0xff]
  %v2118 = vld [vmem:[%s15 + $0x5e0] sm:$0xff]
  %v2119 = vld [vmem:[%s15 + $0x5e8] sm:$0xff]
  %v2120 = vld [vmem:[%s15 + $0x5f0] sm:$0xff]
  %v2121 = vld [vmem:[%s15 + $0x5f8] sm:$0xff]
  %v2122 = vld [vmem:[%s15 + $0x600] sm:$0xff]
  %v2123 = vld [vmem:[%s15 + $0x608] sm:$0xff]
  %v2124 = vld [vmem:[%s15 + $0x610] sm:$0xff]
  %v2125 = vld [vmem:[%s15 + $0x618] sm:$0xff]
  %v2126 = vld [vmem:[%s15 + $0x620] sm:$0xff]
  %v2127 = vld [vmem:[%s15 + $0x628] sm:$0xff]
  %v2128 = vld [vmem:[%s15 + $0x630] sm:$0xff]
  %v2129 = vld [vmem:[%s15 + $0x638] sm:$0xff]
  %v2130 = vld [vmem:[%s15 + $0x640] sm:$0xff]
  %v2131 = vld [vmem:[%s15 + $0x648] sm:$0xff]
  %v2132 = vld [vmem:[%s15 + $0x650] sm:$0xff]
  %v2133 = vld [vmem:[%s15 + $0x658] sm:$0xff]
  %v2134 = vld [vmem:[%s15 + $0x660] sm:$0xff]
  %v2135 = vld [vmem:[%s15 + $0x668] sm:$0xff]
  %v2136 = vld [vmem:[%s15 + $0x670] sm:$0xff]
  %v2137 = vld [vmem:[%s15 + $0x678] sm:$0xff]
  %v2138 = vld [vmem:[%s15 + $0x680] sm:$0xff]
  %v2139 = vld [vmem:[%s15 + $0x688] sm:$0xff]
  %v2140 = vld [vmem:[%s15 + $0x690] sm:$0xff]
  %v2141 = vld [vmem:[%s15 + $0x698] sm:$0xff]
  %v2142 = vld [vmem:[%s15 + $0x6a0] sm:$0xff]
  %v2143 = vld [vmem:[%s15 + $0x6a8] sm:$0xff]
  %v2144 = vld [vmem:[%s15 + $0x6b0] sm:$0xff]
  %v2145 = vld [vmem:[%s15 + $0x6b8] sm:$0xff]
  %v2146 = vld [vmem:[%s15 + $0x6c0] sm:$0xff]
  %v2147 = vld [vmem:[%s15 + $0x6c8] sm:$0xff]
  %v2148 = vld [vmem:[%s15 + $0x6d0] sm:$0xff]
  %v2149 = vld [vmem:[%s15 + $0x6d8] sm:$0xff]
  %v2150 = vld [vmem:[%s15 + $0x6e0] sm:$0xff]
  %v2151 = vld [vmem:[%s15 + $0x6e8] sm:$0xff]
  %v2152 = vld [vmem:[%s15 + $0x6f0] sm:$0xff]
  %v2153 = vld [vmem:[%s15 + $0x6f8] sm:$0xff]
  %v2154 = vld [vmem:[%s15 + $0x700] sm:$0xff]
  %v2155 = vld [vmem:[%s15 + $0x708] sm:$0xff]
  %v2156 = vld [vmem:[%s15 + $0x710] sm:$0xff]
  %v2157 = vld [vmem:[%s15 + $0x718] sm:$0xff]
  %v2158 = vld [vmem:[%s15 + $0x720] sm:$0xff]
  %v2159 = vld [vmem:[%s15 + $0x728] sm:$0xff]
  %v2160 = vld [vmem:[%s15 + $0x730] sm:$0xff]
  %v2161 = vld [vmem:[%s15 + $0x738] sm:$0xff]
  %v2162 = vld [vmem:[%s15 + $0x740] sm:$0xff]
  %v2163 = vld [vmem:[%s15 + $0x748] sm:$0xff]
  %v2164 = vld [vmem:[%s15 + $0x750] sm:$0xff]
  %v2165 = vld [vmem:[%s15 + $0x758] sm:$0xff]
  %v2166 = vld [vmem:[%s15 + $0x760] sm:$0xff]
  %v2167 = vld [vmem:[%s15 + $0x768] sm:$0xff]
  %v2168 = vld [vmem:[%s15 + $0x770] sm:$0xff]
  %v2169 = vld [vmem:[%s15 + $0x778] sm:$0xff]
  %v2170 = vld [vmem:[%s15 + $0x780] sm:$0xff]
  %v2171 = vld [vmem:[%s15 + $0x788] sm:$0xff]
  %v2172 = vld [vmem:[%s15 + $0x790] sm:$0xff]
  %v2173 = vld [vmem:[%s15 + $0x798] sm:$0xff]
  %v2174 = vld [vmem:[%s15 + $0x7a0] sm:$0xff]
  %v2175 = vld [vmem:[%s15 + $0x7a8] sm:$0xff]
  %v2176 = vld [vmem:[%s15 + $0x7b0] sm:$0xff]
  %v2177 = vld [vmem:[%s15 + $0x7b8] sm:$0xff]
  %v2178 = vld [vmem:[%s15 + $0x7c0] sm:$0xff]
  %v2179 = vld [vmem:[%s15 + $0x7c8] sm:$0xff]
  %v2180 = vld [vmem:[%s15 + $0x7d0] sm:$0xff]
  %v2181 = vld [vmem:[%s15 + $0x7d8] sm:$0xff]
  %v2182 = vld [vmem:[%s15 + $0x7e0] sm:$0xff]
  %v2183 = vld [vmem:[%s15 + $0x7e8] sm:$0xff]
  %v2184 = vld [vmem:[%s15 + $0x7f0] sm:$0xff]
  %v2185 = vld [vmem:[%s15 + $0x7f8] sm:$0xff]
  %v2186 = vld [vmem:[%s16] sm:$0xff]
  %v2188 = vlaneseq
  %v2189 = vshrl.u32 %v2188, 7
  %v2190 = vsub.s32 0, %v2189
  %v2191 = vrot.slane %v2186, %v2190
  %v2192 = vlaneseq
  %v2193 = vshrl.u32 %v2192, 7
  %v2194 = vsub.s32 1, %v2193
  %v2195 = vrot.slane %v2186, %v2194
  %v2196 = vlaneseq
  %v2197 = vshrl.u32 %v2196, 7
  %v2198 = vsub.s32 2, %v2197
  %v2199 = vrot.slane %v2186, %v2198
  %v2200 = vlaneseq
  %v2201 = vshrl.u32 %v2200, 7
  %v2202 = vsub.s32 3, %v2201
  %v2203 = vrot.slane %v2186, %v2202
  %v2204 = vlaneseq
  %v2205 = vshrl.u32 %v2204, 7
  %v2206 = vsub.s32 4, %v2205
  %v2207 = vrot.slane %v2186, %v2206
  %v2208 = vlaneseq
  %v2209 = vshrl.u32 %v2208, 7
  %v2210 = vsub.s32 5, %v2209
  %v2211 = vrot.slane %v2186, %v2210
  %v2212 = vlaneseq
  %v2213 = vshrl.u32 %v2212, 7
  %v2214 = vsub.s32 6, %v2213
  %v2215 = vrot.slane %v2186, %v2214
  %v2216 = vlaneseq
  %v2217 = vshrl.u32 %v2216, 7
  %v2218 = vsub.s32 7, %v2217
  %v2219 = vrot.slane %v2186, %v2218
  %v2484 = vunpack.c.l.b16 %v1930
  %v2485 = vunpack.c.h.b16 %v1930
  %v2486 = vunpack.c.l.b16 %v1931
  %v2487 = vunpack.c.h.b16 %v1931
  %v2488 = vunpack.c.l.b16 %v1932
  %v2489 = vunpack.c.h.b16 %v1932
  %v2490 = vunpack.c.l.b16 %v1933
  %v2491 = vunpack.c.h.b16 %v1933
  %v2492 = vunpack.c.l.b16 %v1934
  %v2493 = vunpack.c.h.b16 %v1934
  %v2494 = vunpack.c.l.b16 %v1935
  %v2495 = vunpack.c.h.b16 %v1935
  %v2496 = vunpack.c.l.b16 %v1936
  %v2497 = vunpack.c.h.b16 %v1936
  %v2498 = vunpack.c.l.b16 %v1937
  %v2499 = vunpack.c.h.b16 %v1937
  %v2500 = vunpack.c.l.b16 %v1938
  %v2501 = vunpack.c.h.b16 %v1938
  %v2502 = vunpack.c.l.b16 %v1939
  %v2503 = vunpack.c.h.b16 %v1939
  %v2504 = vunpack.c.l.b16 %v1940
  %v2505 = vunpack.c.h.b16 %v1940
  %v2506 = vunpack.c.l.b16 %v1941
  %v2507 = vunpack.c.h.b16 %v1941
  %v2508 = vunpack.c.l.b16 %v1942
  %v2509 = vunpack.c.h.b16 %v1942
  %v2510 = vunpack.c.l.b16 %v1943
  %v2511 = vunpack.c.h.b16 %v1943
  %v2512 = vunpack.c.l.b16 %v1944
  %v2513 = vunpack.c.h.b16 %v1944
  %v2514 = vunpack.c.l.b16 %v1945
  %v2515 = vunpack.c.h.b16 %v1945
  %v2516 = vunpack.c.l.b16 %v1946
  %v2517 = vunpack.c.h.b16 %v1946
  %v2518 = vunpack.c.l.b16 %v1947
  %v2519 = vunpack.c.h.b16 %v1947
  %v2520 = vunpack.c.l.b16 %v1948
  %v2521 = vunpack.c.h.b16 %v1948
  %v2522 = vunpack.c.l.b16 %v1949
  %v2523 = vunpack.c.h.b16 %v1949
  %v2524 = vunpack.c.l.b16 %v1950
  %v2525 = vunpack.c.h.b16 %v1950
  %v2526 = vunpack.c.l.b16 %v1951
  %v2527 = vunpack.c.h.b16 %v1951
  %v2528 = vunpack.c.l.b16 %v1952
  %v2529 = vunpack.c.h.b16 %v1952
  %v2530 = vunpack.c.l.b16 %v1953
  %v2531 = vunpack.c.h.b16 %v1953
  %v2532 = vunpack.c.l.b16 %v1954
  %v2533 = vunpack.c.h.b16 %v1954
  %v2534 = vunpack.c.l.b16 %v1955
  %v2535 = vunpack.c.h.b16 %v1955
  %v2536 = vunpack.c.l.b16 %v1956
  %v2537 = vunpack.c.h.b16 %v1956
  %v2538 = vunpack.c.l.b16 %v1957
  %v2539 = vunpack.c.h.b16 %v1957
  %v2540 = vunpack.c.l.b16 %v1958
  %v2541 = vunpack.c.h.b16 %v1958
  %v2542 = vunpack.c.l.b16 %v1959
  %v2543 = vunpack.c.h.b16 %v1959
  %v2544 = vunpack.c.l.b16 %v1960
  %v2545 = vunpack.c.h.b16 %v1960
  %v2546 = vunpack.c.l.b16 %v1961
  %v2547 = vunpack.c.h.b16 %v1961
  %v2548 = vunpack.c.l.b16 %v1962
  %v2549 = vunpack.c.h.b16 %v1962
  %v2550 = vunpack.c.l.b16 %v1963
  %v2551 = vunpack.c.h.b16 %v1963
  %v2552 = vunpack.c.l.b16 %v1964
  %v2553 = vunpack.c.h.b16 %v1964
  %v2554 = vunpack.c.l.b16 %v1965
  %v2555 = vunpack.c.h.b16 %v1965
  %v2556 = vunpack.c.l.b16 %v1966
  %v2557 = vunpack.c.h.b16 %v1966
  %v2558 = vunpack.c.l.b16 %v1967
  %v2559 = vunpack.c.h.b16 %v1967
  %v2560 = vunpack.c.l.b16 %v1968
  %v2561 = vunpack.c.h.b16 %v1968
  %v2562 = vunpack.c.l.b16 %v1969
  %v2563 = vunpack.c.h.b16 %v1969
  %v2564 = vunpack.c.l.b16 %v1970
  %v2565 = vunpack.c.h.b16 %v1970
  %v2566 = vunpack.c.l.b16 %v1971
  %v2567 = vunpack.c.h.b16 %v1971
  %v2568 = vunpack.c.l.b16 %v1972
  %v2569 = vunpack.c.h.b16 %v1972
  %v2570 = vunpack.c.l.b16 %v1973
  %v2571 = vunpack.c.h.b16 %v1973
  %v2572 = vunpack.c.l.b16 %v1974
  %v2573 = vunpack.c.h.b16 %v1974
  %v2574 = vunpack.c.l.b16 %v1975
  %v2575 = vunpack.c.h.b16 %v1975
  %v2576 = vunpack.c.l.b16 %v1976
  %v2577 = vunpack.c.h.b16 %v1976
  %v2578 = vunpack.c.l.b16 %v1977
  %v2579 = vunpack.c.h.b16 %v1977
  %v2580 = vunpack.c.l.b16 %v1978
  %v2581 = vunpack.c.h.b16 %v1978
  %v2582 = vunpack.c.l.b16 %v1979
  %v2583 = vunpack.c.h.b16 %v1979
  %v2584 = vunpack.c.l.b16 %v1980
  %v2585 = vunpack.c.h.b16 %v1980
  %v2586 = vunpack.c.l.b16 %v1981
  %v2587 = vunpack.c.h.b16 %v1981
  %v2588 = vunpack.c.l.b16 %v1982
  %v2589 = vunpack.c.h.b16 %v1982
  %v2590 = vunpack.c.l.b16 %v1983
  %v2591 = vunpack.c.h.b16 %v1983
  %v2592 = vunpack.c.l.b16 %v1984
  %v2593 = vunpack.c.h.b16 %v1984
  %v2594 = vunpack.c.l.b16 %v1985
  %v2595 = vunpack.c.h.b16 %v1985
  %v2596 = vunpack.c.l.b16 %v1986
  %v2597 = vunpack.c.h.b16 %v1986
  %v2598 = vunpack.c.l.b16 %v1987
  %v2599 = vunpack.c.h.b16 %v1987
  %v2600 = vunpack.c.l.b16 %v1988
  %v2601 = vunpack.c.h.b16 %v1988
  %v2602 = vunpack.c.l.b16 %v1989
  %v2603 = vunpack.c.h.b16 %v1989
  %v2604 = vunpack.c.l.b16 %v1990
  %v2605 = vunpack.c.h.b16 %v1990
  %v2606 = vunpack.c.l.b16 %v1991
  %v2607 = vunpack.c.h.b16 %v1991
  %v2608 = vunpack.c.l.b16 %v1992
  %v2609 = vunpack.c.h.b16 %v1992
  %v2610 = vunpack.c.l.b16 %v1993
  %v2611 = vunpack.c.h.b16 %v1993
  %v2612 = vunpack.c.l.b16 %v1994
  %v2613 = vunpack.c.h.b16 %v1994
  %v2614 = vunpack.c.l.b16 %v1995
  %v2615 = vunpack.c.h.b16 %v1995
  %v2616 = vunpack.c.l.b16 %v1996
  %v2617 = vunpack.c.h.b16 %v1996
  %v2618 = vunpack.c.l.b16 %v1997
  %v2619 = vunpack.c.h.b16 %v1997
  %v2620 = vunpack.c.l.b16 %v1998
  %v2621 = vunpack.c.h.b16 %v1998
  %v2622 = vunpack.c.l.b16 %v1999
  %v2623 = vunpack.c.h.b16 %v1999
  %v2624 = vunpack.c.l.b16 %v2000
  %v2625 = vunpack.c.h.b16 %v2000
  %v2626 = vunpack.c.l.b16 %v2001
  %v2627 = vunpack.c.h.b16 %v2001
  %v2628 = vunpack.c.l.b16 %v2002
  %v2629 = vunpack.c.h.b16 %v2002
  %v2630 = vunpack.c.l.b16 %v2003
  %v2631 = vunpack.c.h.b16 %v2003
  %v2632 = vunpack.c.l.b16 %v2004
  %v2633 = vunpack.c.h.b16 %v2004
  %v2634 = vunpack.c.l.b16 %v2005
  %v2635 = vunpack.c.h.b16 %v2005
  %v2636 = vunpack.c.l.b16 %v2006
  %v2637 = vunpack.c.h.b16 %v2006
  %v2638 = vunpack.c.l.b16 %v2007
  %v2639 = vunpack.c.h.b16 %v2007
  %v2640 = vunpack.c.l.b16 %v2008
  %v2641 = vunpack.c.h.b16 %v2008
  %v2642 = vunpack.c.l.b16 %v2009
  %v2643 = vunpack.c.h.b16 %v2009
  %v2644 = vunpack.c.l.b16 %v2010
  %v2645 = vunpack.c.h.b16 %v2010
  %v2646 = vunpack.c.l.b16 %v2011
  %v2647 = vunpack.c.h.b16 %v2011
  %v2648 = vunpack.c.l.b16 %v2012
  %v2649 = vunpack.c.h.b16 %v2012
  %v2650 = vunpack.c.l.b16 %v2013
  %v2651 = vunpack.c.h.b16 %v2013
  %v2652 = vunpack.c.l.b16 %v2014
  %v2653 = vunpack.c.h.b16 %v2014
  %v2654 = vunpack.c.l.b16 %v2015
  %v2655 = vunpack.c.h.b16 %v2015
  %v2656 = vunpack.c.l.b16 %v2016
  %v2657 = vunpack.c.h.b16 %v2016
  %v2658 = vunpack.c.l.b16 %v2017
  %v2659 = vunpack.c.h.b16 %v2017
  %v2660 = vunpack.c.l.b16 %v2018
  %v2661 = vunpack.c.h.b16 %v2018
  %v2662 = vunpack.c.l.b16 %v2019
  %v2663 = vunpack.c.h.b16 %v2019
  %v2664 = vunpack.c.l.b16 %v2020
  %v2665 = vunpack.c.h.b16 %v2020
  %v2666 = vunpack.c.l.b16 %v2021
  %v2667 = vunpack.c.h.b16 %v2021
  %v2668 = vunpack.c.l.b16 %v2022
  %v2669 = vunpack.c.h.b16 %v2022
  %v2670 = vunpack.c.l.b16 %v2023
  %v2671 = vunpack.c.h.b16 %v2023
  %v2672 = vunpack.c.l.b16 %v2024
  %v2673 = vunpack.c.h.b16 %v2024
  %v2674 = vunpack.c.l.b16 %v2025
  %v2675 = vunpack.c.h.b16 %v2025
  %v2676 = vunpack.c.l.b16 %v2026
  %v2677 = vunpack.c.h.b16 %v2026
  %v2678 = vunpack.c.l.b16 %v2027
  %v2679 = vunpack.c.h.b16 %v2027
  %v2680 = vunpack.c.l.b16 %v2028
  %v2681 = vunpack.c.h.b16 %v2028
  %v2682 = vunpack.c.l.b16 %v2029
  %v2683 = vunpack.c.h.b16 %v2029
  %v2684 = vunpack.c.l.b16 %v2030
  %v2685 = vunpack.c.h.b16 %v2030
  %v2686 = vunpack.c.l.b16 %v2031
  %v2687 = vunpack.c.h.b16 %v2031
  %v2688 = vunpack.c.l.b16 %v2032
  %v2689 = vunpack.c.h.b16 %v2032
  %v2690 = vunpack.c.l.b16 %v2033
  %v2691 = vunpack.c.h.b16 %v2033
  %v2692 = vunpack.c.l.b16 %v2034
  %v2693 = vunpack.c.h.b16 %v2034
  %v2694 = vunpack.c.l.b16 %v2035
  %v2695 = vunpack.c.h.b16 %v2035
  %v2696 = vunpack.c.l.b16 %v2036
  %v2697 = vunpack.c.h.b16 %v2036
  %v2698 = vunpack.c.l.b16 %v2037
  %v2699 = vunpack.c.h.b16 %v2037
  %v2700 = vunpack.c.l.b16 %v2038
  %v2701 = vunpack.c.h.b16 %v2038
  %v2702 = vunpack.c.l.b16 %v2039
  %v2703 = vunpack.c.h.b16 %v2039
  %v2704 = vunpack.c.l.b16 %v2040
  %v2705 = vunpack.c.h.b16 %v2040
  %v2706 = vunpack.c.l.b16 %v2041
  %v2707 = vunpack.c.h.b16 %v2041
  %v2708 = vunpack.c.l.b16 %v2042
  %v2709 = vunpack.c.h.b16 %v2042
  %v2710 = vunpack.c.l.b16 %v2043
  %v2711 = vunpack.c.h.b16 %v2043
  %v2712 = vunpack.c.l.b16 %v2044
  %v2713 = vunpack.c.h.b16 %v2044
  %v2714 = vunpack.c.l.b16 %v2045
  %v2715 = vunpack.c.h.b16 %v2045
  %v2716 = vunpack.c.l.b16 %v2046
  %v2717 = vunpack.c.h.b16 %v2046
  %v2718 = vunpack.c.l.b16 %v2047
  %v2719 = vunpack.c.h.b16 %v2047
  %v2720 = vunpack.c.l.b16 %v2048
  %v2721 = vunpack.c.h.b16 %v2048
  %v2722 = vunpack.c.l.b16 %v2049
  %v2723 = vunpack.c.h.b16 %v2049
  %v2724 = vunpack.c.l.b16 %v2050
  %v2725 = vunpack.c.h.b16 %v2050
  %v2726 = vunpack.c.l.b16 %v2051
  %v2727 = vunpack.c.h.b16 %v2051
  %v2728 = vunpack.c.l.b16 %v2052
  %v2729 = vunpack.c.h.b16 %v2052
  %v2730 = vunpack.c.l.b16 %v2053
  %v2731 = vunpack.c.h.b16 %v2053
  %v2732 = vunpack.c.l.b16 %v2054
  %v2733 = vunpack.c.h.b16 %v2054
  %v2734 = vunpack.c.l.b16 %v2055
  %v2735 = vunpack.c.h.b16 %v2055
  %v2736 = vunpack.c.l.b16 %v2056
  %v2737 = vunpack.c.h.b16 %v2056
  %v2738 = vunpack.c.l.b16 %v2057
  %v2739 = vunpack.c.h.b16 %v2057
  %v2740 = vunpack.c.l.b16 %v2058
  %v2741 = vunpack.c.h.b16 %v2058
  %v2742 = vunpack.c.l.b16 %v2059
  %v2743 = vunpack.c.h.b16 %v2059
  %v2744 = vunpack.c.l.b16 %v2060
  %v2745 = vunpack.c.h.b16 %v2060
  %v2746 = vunpack.c.l.b16 %v2061
  %v2747 = vunpack.c.h.b16 %v2061
  %v2748 = vunpack.c.l.b16 %v2062
  %v2749 = vunpack.c.h.b16 %v2062
  %v2750 = vunpack.c.l.b16 %v2063
  %v2751 = vunpack.c.h.b16 %v2063
  %v2752 = vunpack.c.l.b16 %v2064
  %v2753 = vunpack.c.h.b16 %v2064
  %v2754 = vunpack.c.l.b16 %v2065
  %v2755 = vunpack.c.h.b16 %v2065
  %v2756 = vunpack.c.l.b16 %v2066
  %v2757 = vunpack.c.h.b16 %v2066
  %v2758 = vunpack.c.l.b16 %v2067
  %v2759 = vunpack.c.h.b16 %v2067
  %v2760 = vunpack.c.l.b16 %v2068
  %v2761 = vunpack.c.h.b16 %v2068
  %v2762 = vunpack.c.l.b16 %v2069
  %v2763 = vunpack.c.h.b16 %v2069
  %v2764 = vunpack.c.l.b16 %v2070
  %v2765 = vunpack.c.h.b16 %v2070
  %v2766 = vunpack.c.l.b16 %v2071
  %v2767 = vunpack.c.h.b16 %v2071
  %v2768 = vunpack.c.l.b16 %v2072
  %v2769 = vunpack.c.h.b16 %v2072
  %v2770 = vunpack.c.l.b16 %v2073
  %v2771 = vunpack.c.h.b16 %v2073
  %v2772 = vunpack.c.l.b16 %v2074
  %v2773 = vunpack.c.h.b16 %v2074
  %v2774 = vunpack.c.l.b16 %v2075
  %v2775 = vunpack.c.h.b16 %v2075
  %v2776 = vunpack.c.l.b16 %v2076
  %v2777 = vunpack.c.h.b16 %v2076
  %v2778 = vunpack.c.l.b16 %v2077
  %v2779 = vunpack.c.h.b16 %v2077
  %v2780 = vunpack.c.l.b16 %v2078
  %v2781 = vunpack.c.h.b16 %v2078
  %v2782 = vunpack.c.l.b16 %v2079
  %v2783 = vunpack.c.h.b16 %v2079
  %v2784 = vunpack.c.l.b16 %v2080
  %v2785 = vunpack.c.h.b16 %v2080
  %v2786 = vunpack.c.l.b16 %v2081
  %v2787 = vunpack.c.h.b16 %v2081
  %v2788 = vunpack.c.l.b16 %v2082
  %v2789 = vunpack.c.h.b16 %v2082
  %v2790 = vunpack.c.l.b16 %v2083
  %v2791 = vunpack.c.h.b16 %v2083
  %v2792 = vunpack.c.l.b16 %v2084
  %v2793 = vunpack.c.h.b16 %v2084
  %v2794 = vunpack.c.l.b16 %v2085
  %v2795 = vunpack.c.h.b16 %v2085
  %v2796 = vunpack.c.l.b16 %v2086
  %v2797 = vunpack.c.h.b16 %v2086
  %v2798 = vunpack.c.l.b16 %v2087
  %v2799 = vunpack.c.h.b16 %v2087
  %v2800 = vunpack.c.l.b16 %v2088
  %v2801 = vunpack.c.h.b16 %v2088
  %v2802 = vunpack.c.l.b16 %v2089
  %v2803 = vunpack.c.h.b16 %v2089
  %v2804 = vunpack.c.l.b16 %v2090
  %v2805 = vunpack.c.h.b16 %v2090
  %v2806 = vunpack.c.l.b16 %v2091
  %v2807 = vunpack.c.h.b16 %v2091
  %v2808 = vunpack.c.l.b16 %v2092
  %v2809 = vunpack.c.h.b16 %v2092
  %v2810 = vunpack.c.l.b16 %v2093
  %v2811 = vunpack.c.h.b16 %v2093
  %v2812 = vunpack.c.l.b16 %v2094
  %v2813 = vunpack.c.h.b16 %v2094
  %v2814 = vunpack.c.l.b16 %v2095
  %v2815 = vunpack.c.h.b16 %v2095
  %v2816 = vunpack.c.l.b16 %v2096
  %v2817 = vunpack.c.h.b16 %v2096
  %v2818 = vunpack.c.l.b16 %v2097
  %v2819 = vunpack.c.h.b16 %v2097
  %v2820 = vunpack.c.l.b16 %v2098
  %v2821 = vunpack.c.h.b16 %v2098
  %v2822 = vunpack.c.l.b16 %v2099
  %v2823 = vunpack.c.h.b16 %v2099
  %v2824 = vunpack.c.l.b16 %v2100
  %v2825 = vunpack.c.h.b16 %v2100
  %v2826 = vunpack.c.l.b16 %v2101
  %v2827 = vunpack.c.h.b16 %v2101
  %v2828 = vunpack.c.l.b16 %v2102
  %v2829 = vunpack.c.h.b16 %v2102
  %v2830 = vunpack.c.l.b16 %v2103
  %v2831 = vunpack.c.h.b16 %v2103
  %v2832 = vunpack.c.l.b16 %v2104
  %v2833 = vunpack.c.h.b16 %v2104
  %v2834 = vunpack.c.l.b16 %v2105
  %v2835 = vunpack.c.h.b16 %v2105
  %v2836 = vunpack.c.l.b16 %v2106
  %v2837 = vunpack.c.h.b16 %v2106
  %v2838 = vunpack.c.l.b16 %v2107
  %v2839 = vunpack.c.h.b16 %v2107
  %v2840 = vunpack.c.l.b16 %v2108
  %v2841 = vunpack.c.h.b16 %v2108
  %v2842 = vunpack.c.l.b16 %v2109
  %v2843 = vunpack.c.h.b16 %v2109
  %v2844 = vunpack.c.l.b16 %v2110
  %v2845 = vunpack.c.h.b16 %v2110
  %v2846 = vunpack.c.l.b16 %v2111
  %v2847 = vunpack.c.h.b16 %v2111
  %v2848 = vunpack.c.l.b16 %v2112
  %v2849 = vunpack.c.h.b16 %v2112
  %v2850 = vunpack.c.l.b16 %v2113
  %v2851 = vunpack.c.h.b16 %v2113
  %v2852 = vunpack.c.l.b16 %v2114
  %v2853 = vunpack.c.h.b16 %v2114
  %v2854 = vunpack.c.l.b16 %v2115
  %v2855 = vunpack.c.h.b16 %v2115
  %v2856 = vunpack.c.l.b16 %v2116
  %v2857 = vunpack.c.h.b16 %v2116
  %v2858 = vunpack.c.l.b16 %v2117
  %v2859 = vunpack.c.h.b16 %v2117
  %v2860 = vunpack.c.l.b16 %v2118
  %v2861 = vunpack.c.h.b16 %v2118
  %v2862 = vunpack.c.l.b16 %v2119
  %v2863 = vunpack.c.h.b16 %v2119
  %v2864 = vunpack.c.l.b16 %v2120
  %v2865 = vunpack.c.h.b16 %v2120
  %v2866 = vunpack.c.l.b16 %v2121
  %v2867 = vunpack.c.h.b16 %v2121
  %v2868 = vunpack.c.l.b16 %v2122
  %v2869 = vunpack.c.h.b16 %v2122
  %v2870 = vunpack.c.l.b16 %v2123
  %v2871 = vunpack.c.h.b16 %v2123
  %v2872 = vunpack.c.l.b16 %v2124
  %v2873 = vunpack.c.h.b16 %v2124
  %v2874 = vunpack.c.l.b16 %v2125
  %v2875 = vunpack.c.h.b16 %v2125
  %v2876 = vunpack.c.l.b16 %v2126
  %v2877 = vunpack.c.h.b16 %v2126
  %v2878 = vunpack.c.l.b16 %v2127
  %v2879 = vunpack.c.h.b16 %v2127
  %v2880 = vunpack.c.l.b16 %v2128
  %v2881 = vunpack.c.h.b16 %v2128
  %v2882 = vunpack.c.l.b16 %v2129
  %v2883 = vunpack.c.h.b16 %v2129
  %v2884 = vunpack.c.l.b16 %v2130
  %v2885 = vunpack.c.h.b16 %v2130
  %v2886 = vunpack.c.l.b16 %v2131
  %v2887 = vunpack.c.h.b16 %v2131
  %v2888 = vunpack.c.l.b16 %v2132
  %v2889 = vunpack.c.h.b16 %v2132
  %v2890 = vunpack.c.l.b16 %v2133
  %v2891 = vunpack.c.h.b16 %v2133
  %v2892 = vunpack.c.l.b16 %v2134
  %v2893 = vunpack.c.h.b16 %v2134
  %v2894 = vunpack.c.l.b16 %v2135
  %v2895 = vunpack.c.h.b16 %v2135
  %v2896 = vunpack.c.l.b16 %v2136
  %v2897 = vunpack.c.h.b16 %v2136
  %v2898 = vunpack.c.l.b16 %v2137
  %v2899 = vunpack.c.h.b16 %v2137
  %v2900 = vunpack.c.l.b16 %v2138
  %v2901 = vunpack.c.h.b16 %v2138
  %v2902 = vunpack.c.l.b16 %v2139
  %v2903 = vunpack.c.h.b16 %v2139
  %v2904 = vunpack.c.l.b16 %v2140
  %v2905 = vunpack.c.h.b16 %v2140
  %v2906 = vunpack.c.l.b16 %v2141
  %v2907 = vunpack.c.h.b16 %v2141
  %v2908 = vunpack.c.l.b16 %v2142
  %v2909 = vunpack.c.h.b16 %v2142
  %v2910 = vunpack.c.l.b16 %v2143
  %v2911 = vunpack.c.h.b16 %v2143
  %v2912 = vunpack.c.l.b16 %v2144
  %v2913 = vunpack.c.h.b16 %v2144
  %v2914 = vunpack.c.l.b16 %v2145
  %v2915 = vunpack.c.h.b16 %v2145
  %v2916 = vunpack.c.l.b16 %v2146
  %v2917 = vunpack.c.h.b16 %v2146
  %v2918 = vunpack.c.l.b16 %v2147
  %v2919 = vunpack.c.h.b16 %v2147
  %v2920 = vunpack.c.l.b16 %v2148
  %v2921 = vunpack.c.h.b16 %v2148
  %v2922 = vunpack.c.l.b16 %v2149
  %v2923 = vunpack.c.h.b16 %v2149
  %v2924 = vunpack.c.l.b16 %v2150
  %v2925 = vunpack.c.h.b16 %v2150
  %v2926 = vunpack.c.l.b16 %v2151
  %v2927 = vunpack.c.h.b16 %v2151
  %v2928 = vunpack.c.l.b16 %v2152
  %v2929 = vunpack.c.h.b16 %v2152
  %v2930 = vunpack.c.l.b16 %v2153
  %v2931 = vunpack.c.h.b16 %v2153
  %v2932 = vunpack.c.l.b16 %v2154
  %v2933 = vunpack.c.h.b16 %v2154
  %v2934 = vunpack.c.l.b16 %v2155
  %v2935 = vunpack.c.h.b16 %v2155
  %v2936 = vunpack.c.l.b16 %v2156
  %v2937 = vunpack.c.h.b16 %v2156
  %v2938 = vunpack.c.l.b16 %v2157
  %v2939 = vunpack.c.h.b16 %v2157
  %v2940 = vunpack.c.l.b16 %v2158
  %v2941 = vunpack.c.h.b16 %v2158
  %v2942 = vunpack.c.l.b16 %v2159
  %v2943 = vunpack.c.h.b16 %v2159
  %v2944 = vunpack.c.l.b16 %v2160
  %v2945 = vunpack.c.h.b16 %v2160
  %v2946 = vunpack.c.l.b16 %v2161
  %v2947 = vunpack.c.h.b16 %v2161
  %v2948 = vunpack.c.l.b16 %v2162
  %v2949 = vunpack.c.h.b16 %v2162
  %v2950 = vunpack.c.l.b16 %v2163
  %v2951 = vunpack.c.h.b16 %v2163
  %v2952 = vunpack.c.l.b16 %v2164
  %v2953 = vunpack.c.h.b16 %v2164
  %v2954 = vunpack.c.l.b16 %v2165
  %v2955 = vunpack.c.h.b16 %v2165
  %v2956 = vunpack.c.l.b16 %v2166
  %v2957 = vunpack.c.h.b16 %v2166
  %v2958 = vunpack.c.l.b16 %v2167
  %v2959 = vunpack.c.h.b16 %v2167
  %v2960 = vunpack.c.l.b16 %v2168
  %v2961 = vunpack.c.h.b16 %v2168
  %v2962 = vunpack.c.l.b16 %v2169
  %v2963 = vunpack.c.h.b16 %v2169
  %v2964 = vunpack.c.l.b16 %v2170
  %v2965 = vunpack.c.h.b16 %v2170
  %v2966 = vunpack.c.l.b16 %v2171
  %v2967 = vunpack.c.h.b16 %v2171
  %v2968 = vunpack.c.l.b16 %v2172
  %v2969 = vunpack.c.h.b16 %v2172
  %v2970 = vunpack.c.l.b16 %v2173
  %v2971 = vunpack.c.h.b16 %v2173
  %v2972 = vunpack.c.l.b16 %v2174
  %v2973 = vunpack.c.h.b16 %v2174
  %v2974 = vunpack.c.l.b16 %v2175
  %v2975 = vunpack.c.h.b16 %v2175
  %v2976 = vunpack.c.l.b16 %v2176
  %v2977 = vunpack.c.h.b16 %v2176
  %v2978 = vunpack.c.l.b16 %v2177
  %v2979 = vunpack.c.h.b16 %v2177
  %v2980 = vunpack.c.l.b16 %v2178
  %v2981 = vunpack.c.h.b16 %v2178
  %v2982 = vunpack.c.l.b16 %v2179
  %v2983 = vunpack.c.h.b16 %v2179
  %v2984 = vunpack.c.l.b16 %v2180
  %v2985 = vunpack.c.h.b16 %v2180
  %v2986 = vunpack.c.l.b16 %v2181
  %v2987 = vunpack.c.h.b16 %v2181
  %v2988 = vunpack.c.l.b16 %v2182
  %v2989 = vunpack.c.h.b16 %v2182
  %v2990 = vunpack.c.l.b16 %v2183
  %v2991 = vunpack.c.h.b16 %v2183
  %v2992 = vunpack.c.l.b16 %v2184
  %v2993 = vunpack.c.h.b16 %v2184
  %v2994 = vunpack.c.l.b16 %v2185
  %v2995 = vunpack.c.h.b16 %v2185
  %v2996 = vpack.c.b16 %v2492, %v2484
  %v2997 = vpack.c.b16 %v2493, %v2485
  %v2998 = vpack.c.b16 %v2494, %v2486
  %v2999 = vpack.c.b16 %v2495, %v2487
  %v3000 = vpack.c.b16 %v2496, %v2488
  %v3001 = vpack.c.b16 %v2497, %v2489
  %v3002 = vpack.c.b16 %v2498, %v2490
  %v3003 = vpack.c.b16 %v2499, %v2491
  %v3004 = vpack.c.b16 %v2508, %v2500
  %v3005 = vpack.c.b16 %v2509, %v2501
  %v3006 = vpack.c.b16 %v2510, %v2502
  %v3007 = vpack.c.b16 %v2511, %v2503
  %v3008 = vpack.c.b16 %v2512, %v2504
  %v3009 = vpack.c.b16 %v2513, %v2505
  %v3010 = vpack.c.b16 %v2514, %v2506
  %v3011 = vpack.c.b16 %v2515, %v2507
  %v3012 = vpack.c.b16 %v2524, %v2516
  %v3013 = vpack.c.b16 %v2525, %v2517
  %v3014 = vpack.c.b16 %v2526, %v2518
  %v3015 = vpack.c.b16 %v2527, %v2519
  %v3016 = vpack.c.b16 %v2528, %v2520
  %v3017 = vpack.c.b16 %v2529, %v2521
  %v3018 = vpack.c.b16 %v2530, %v2522
  %v3019 = vpack.c.b16 %v2531, %v2523
  %v3020 = vpack.c.b16 %v2540, %v2532
  %v3021 = vpack.c.b16 %v2541, %v2533
  %v3022 = vpack.c.b16 %v2542, %v2534
  %v3023 = vpack.c.b16 %v2543, %v2535
  %v3024 = vpack.c.b16 %v2544, %v2536
  %v3025 = vpack.c.b16 %v2545, %v2537
  %v3026 = vpack.c.b16 %v2546, %v2538
  %v3027 = vpack.c.b16 %v2547, %v2539
  %v3028 = vpack.c.b16 %v2556, %v2548
  %v3029 = vpack.c.b16 %v2557, %v2549
  %v3030 = vpack.c.b16 %v2558, %v2550
  %v3031 = vpack.c.b16 %v2559, %v2551
  %v3032 = vpack.c.b16 %v2560, %v2552
  %v3033 = vpack.c.b16 %v2561, %v2553
  %v3034 = vpack.c.b16 %v2562, %v2554
  %v3035 = vpack.c.b16 %v2563, %v2555
  %v3036 = vpack.c.b16 %v2572, %v2564
  %v3037 = vpack.c.b16 %v2573, %v2565
  %v3038 = vpack.c.b16 %v2574, %v2566
  %v3039 = vpack.c.b16 %v2575, %v2567
  %v3040 = vpack.c.b16 %v2576, %v2568
  %v3041 = vpack.c.b16 %v2577, %v2569
  %v3042 = vpack.c.b16 %v2578, %v2570
  %v3043 = vpack.c.b16 %v2579, %v2571
  %v3044 = vpack.c.b16 %v2588, %v2580
  %v3045 = vpack.c.b16 %v2589, %v2581
  %v3046 = vpack.c.b16 %v2590, %v2582
  %v3047 = vpack.c.b16 %v2591, %v2583
  %v3048 = vpack.c.b16 %v2592, %v2584
  %v3049 = vpack.c.b16 %v2593, %v2585
  %v3050 = vpack.c.b16 %v2594, %v2586
  %v3051 = vpack.c.b16 %v2595, %v2587
  %v3052 = vpack.c.b16 %v2604, %v2596
  %v3053 = vpack.c.b16 %v2605, %v2597
  %v3054 = vpack.c.b16 %v2606, %v2598
  %v3055 = vpack.c.b16 %v2607, %v2599
  %v3056 = vpack.c.b16 %v2608, %v2600
  %v3057 = vpack.c.b16 %v2609, %v2601
  %v3058 = vpack.c.b16 %v2610, %v2602
  %v3059 = vpack.c.b16 %v2611, %v2603
  %v3060 = vpack.c.b16 %v2620, %v2612
  %v3061 = vpack.c.b16 %v2621, %v2613
  %v3062 = vpack.c.b16 %v2622, %v2614
  %v3063 = vpack.c.b16 %v2623, %v2615
  %v3064 = vpack.c.b16 %v2624, %v2616
  %v3065 = vpack.c.b16 %v2625, %v2617
  %v3066 = vpack.c.b16 %v2626, %v2618
  %v3067 = vpack.c.b16 %v2627, %v2619
  %v3068 = vpack.c.b16 %v2636, %v2628
  %v3069 = vpack.c.b16 %v2637, %v2629
  %v3070 = vpack.c.b16 %v2638, %v2630
  %v3071 = vpack.c.b16 %v2639, %v2631
  %v3072 = vpack.c.b16 %v2640, %v2632
  %v3073 = vpack.c.b16 %v2641, %v2633
  %v3074 = vpack.c.b16 %v2642, %v2634
  %v3075 = vpack.c.b16 %v2643, %v2635
  %v3076 = vpack.c.b16 %v2652, %v2644
  %v3077 = vpack.c.b16 %v2653, %v2645
  %v3078 = vpack.c.b16 %v2654, %v2646
  %v3079 = vpack.c.b16 %v2655, %v2647
  %v3080 = vpack.c.b16 %v2656, %v2648
  %v3081 = vpack.c.b16 %v2657, %v2649
  %v3082 = vpack.c.b16 %v2658, %v2650
  %v3083 = vpack.c.b16 %v2659, %v2651
  %v3084 = vpack.c.b16 %v2668, %v2660
  %v3085 = vpack.c.b16 %v2669, %v2661
  %v3086 = vpack.c.b16 %v2670, %v2662
  %v3087 = vpack.c.b16 %v2671, %v2663
  %v3088 = vpack.c.b16 %v2672, %v2664
  %v3089 = vpack.c.b16 %v2673, %v2665
  %v3090 = vpack.c.b16 %v2674, %v2666
  %v3091 = vpack.c.b16 %v2675, %v2667
  %v3092 = vpack.c.b16 %v2684, %v2676
  %v3093 = vpack.c.b16 %v2685, %v2677
  %v3094 = vpack.c.b16 %v2686, %v2678
  %v3095 = vpack.c.b16 %v2687, %v2679
  %v3096 = vpack.c.b16 %v2688, %v2680
  %v3097 = vpack.c.b16 %v2689, %v2681
  %v3098 = vpack.c.b16 %v2690, %v2682
  %v3099 = vpack.c.b16 %v2691, %v2683
  %v3100 = vpack.c.b16 %v2700, %v2692
  %v3101 = vpack.c.b16 %v2701, %v2693
  %v3102 = vpack.c.b16 %v2702, %v2694
  %v3103 = vpack.c.b16 %v2703, %v2695
  %v3104 = vpack.c.b16 %v2704, %v2696
  %v3105 = vpack.c.b16 %v2705, %v2697
  %v3106 = vpack.c.b16 %v2706, %v2698
  %v3107 = vpack.c.b16 %v2707, %v2699
  %v3108 = vpack.c.b16 %v2716, %v2708
  %v3109 = vpack.c.b16 %v2717, %v2709
  %v3110 = vpack.c.b16 %v2718, %v2710
  %v3111 = vpack.c.b16 %v2719, %v2711
  %v3112 = vpack.c.b16 %v2720, %v2712
  %v3113 = vpack.c.b16 %v2721, %v2713
  %v3114 = vpack.c.b16 %v2722, %v2714
  %v3115 = vpack.c.b16 %v2723, %v2715
  %v3116 = vpack.c.b16 %v2732, %v2724
  %v3117 = vpack.c.b16 %v2733, %v2725
  %v3118 = vpack.c.b16 %v2734, %v2726
  %v3119 = vpack.c.b16 %v2735, %v2727
  %v3120 = vpack.c.b16 %v2736, %v2728
  %v3121 = vpack.c.b16 %v2737, %v2729
  %v3122 = vpack.c.b16 %v2738, %v2730
  %v3123 = vpack.c.b16 %v2739, %v2731
  %v3124 = vpack.c.b16 %v2748, %v2740
  %v3125 = vpack.c.b16 %v2749, %v2741
  %v3126 = vpack.c.b16 %v2750, %v2742
  %v3127 = vpack.c.b16 %v2751, %v2743
  %v3128 = vpack.c.b16 %v2752, %v2744
  %v3129 = vpack.c.b16 %v2753, %v2745
  %v3130 = vpack.c.b16 %v2754, %v2746
  %v3131 = vpack.c.b16 %v2755, %v2747
  %v3132 = vpack.c.b16 %v2764, %v2756
  %v3133 = vpack.c.b16 %v2765, %v2757
  %v3134 = vpack.c.b16 %v2766, %v2758
  %v3135 = vpack.c.b16 %v2767, %v2759
  %v3136 = vpack.c.b16 %v2768, %v2760
  %v3137 = vpack.c.b16 %v2769, %v2761
  %v3138 = vpack.c.b16 %v2770, %v2762
  %v3139 = vpack.c.b16 %v2771, %v2763
  %v3140 = vpack.c.b16 %v2780, %v2772
  %v3141 = vpack.c.b16 %v2781, %v2773
  %v3142 = vpack.c.b16 %v2782, %v2774
  %v3143 = vpack.c.b16 %v2783, %v2775
  %v3144 = vpack.c.b16 %v2784, %v2776
  %v3145 = vpack.c.b16 %v2785, %v2777
  %v3146 = vpack.c.b16 %v2786, %v2778
  %v3147 = vpack.c.b16 %v2787, %v2779
  %v3148 = vpack.c.b16 %v2796, %v2788
  %v3149 = vpack.c.b16 %v2797, %v2789
  %v3150 = vpack.c.b16 %v2798, %v2790
  %v3151 = vpack.c.b16 %v2799, %v2791
  %v3152 = vpack.c.b16 %v2800, %v2792
  %v3153 = vpack.c.b16 %v2801, %v2793
  %v3154 = vpack.c.b16 %v2802, %v2794
  %v3155 = vpack.c.b16 %v2803, %v2795
  %v3156 = vpack.c.b16 %v2812, %v2804
  %v3157 = vpack.c.b16 %v2813, %v2805
  %v3158 = vpack.c.b16 %v2814, %v2806
  %v3159 = vpack.c.b16 %v2815, %v2807
  %v3160 = vpack.c.b16 %v2816, %v2808
  %v3161 = vpack.c.b16 %v2817, %v2809
  %v3162 = vpack.c.b16 %v2818, %v2810
  %v3163 = vpack.c.b16 %v2819, %v2811
  %v3164 = vpack.c.b16 %v2828, %v2820
  %v3165 = vpack.c.b16 %v2829, %v2821
  %v3166 = vpack.c.b16 %v2830, %v2822
  %v3167 = vpack.c.b16 %v2831, %v2823
  %v3168 = vpack.c.b16 %v2832, %v2824
  %v3169 = vpack.c.b16 %v2833, %v2825
  %v3170 = vpack.c.b16 %v2834, %v2826
  %v3171 = vpack.c.b16 %v2835, %v2827
  %v3172 = vpack.c.b16 %v2844, %v2836
  %v3173 = vpack.c.b16 %v2845, %v2837
  %v3174 = vpack.c.b16 %v2846, %v2838
  %v3175 = vpack.c.b16 %v2847, %v2839
  %v3176 = vpack.c.b16 %v2848, %v2840
  %v3177 = vpack.c.b16 %v2849, %v2841
  %v3178 = vpack.c.b16 %v2850, %v2842
  %v3179 = vpack.c.b16 %v2851, %v2843
  %v3180 = vpack.c.b16 %v2860, %v2852
  %v3181 = vpack.c.b16 %v2861, %v2853
  %v3182 = vpack.c.b16 %v2862, %v2854
  %v3183 = vpack.c.b16 %v2863, %v2855
  %v3184 = vpack.c.b16 %v2864, %v2856
  %v3185 = vpack.c.b16 %v2865, %v2857
  %v3186 = vpack.c.b16 %v2866, %v2858
  %v3187 = vpack.c.b16 %v2867, %v2859
  %v3188 = vpack.c.b16 %v2876, %v2868
  %v3189 = vpack.c.b16 %v2877, %v2869
  %v3190 = vpack.c.b16 %v2878, %v2870
  %v3191 = vpack.c.b16 %v2879, %v2871
  %v3192 = vpack.c.b16 %v2880, %v2872
  %v3193 = vpack.c.b16 %v2881, %v2873
  %v3194 = vpack.c.b16 %v2882, %v2874
  %v3195 = vpack.c.b16 %v2883, %v2875
  %v3196 = vpack.c.b16 %v2892, %v2884
  %v3197 = vpack.c.b16 %v2893, %v2885
  %v3198 = vpack.c.b16 %v2894, %v2886
  %v3199 = vpack.c.b16 %v2895, %v2887
  %v3200 = vpack.c.b16 %v2896, %v2888
  %v3201 = vpack.c.b16 %v2897, %v2889
  %v3202 = vpack.c.b16 %v2898, %v2890
  %v3203 = vpack.c.b16 %v2899, %v2891
  %v3204 = vpack.c.b16 %v2908, %v2900
  %v3205 = vpack.c.b16 %v2909, %v2901
  %v3206 = vpack.c.b16 %v2910, %v2902
  %v3207 = vpack.c.b16 %v2911, %v2903
  %v3208 = vpack.c.b16 %v2912, %v2904
  %v3209 = vpack.c.b16 %v2913, %v2905
  %v3210 = vpack.c.b16 %v2914, %v2906
  %v3211 = vpack.c.b16 %v2915, %v2907
  %v3212 = vpack.c.b16 %v2924, %v2916
  %v3213 = vpack.c.b16 %v2925, %v2917
  %v3214 = vpack.c.b16 %v2926, %v2918
  %v3215 = vpack.c.b16 %v2927, %v2919
  %v3216 = vpack.c.b16 %v2928, %v2920
  %v3217 = vpack.c.b16 %v2929, %v2921
  %v3218 = vpack.c.b16 %v2930, %v2922
  %v3219 = vpack.c.b16 %v2931, %v2923
  %v3220 = vpack.c.b16 %v2940, %v2932
  %v3221 = vpack.c.b16 %v2941, %v2933
  %v3222 = vpack.c.b16 %v2942, %v2934
  %v3223 = vpack.c.b16 %v2943, %v2935
  %v3224 = vpack.c.b16 %v2944, %v2936
  %v3225 = vpack.c.b16 %v2945, %v2937
  %v3226 = vpack.c.b16 %v2946, %v2938
  %v3227 = vpack.c.b16 %v2947, %v2939
  %v3228 = vpack.c.b16 %v2956, %v2948
  %v3229 = vpack.c.b16 %v2957, %v2949
  %v3230 = vpack.c.b16 %v2958, %v2950
  %v3231 = vpack.c.b16 %v2959, %v2951
  %v3232 = vpack.c.b16 %v2960, %v2952
  %v3233 = vpack.c.b16 %v2961, %v2953
  %v3234 = vpack.c.b16 %v2962, %v2954
  %v3235 = vpack.c.b16 %v2963, %v2955
  %v3236 = vpack.c.b16 %v2972, %v2964
  %v3237 = vpack.c.b16 %v2973, %v2965
  %v3238 = vpack.c.b16 %v2974, %v2966
  %v3239 = vpack.c.b16 %v2975, %v2967
  %v3240 = vpack.c.b16 %v2976, %v2968
  %v3241 = vpack.c.b16 %v2977, %v2969
  %v3242 = vpack.c.b16 %v2978, %v2970
  %v3243 = vpack.c.b16 %v2979, %v2971
  %v3244 = vpack.c.b16 %v2988, %v2980
  %v3245 = vpack.c.b16 %v2989, %v2981
  %v3246 = vpack.c.b16 %v2990, %v2982
  %v3247 = vpack.c.b16 %v2991, %v2983
  %v3248 = vpack.c.b16 %v2992, %v2984
  %v3249 = vpack.c.b16 %v2993, %v2985
  %v3250 = vpack.c.b16 %v2994, %v2986
  %v3251 = vpack.c.b16 %v2995, %v2987
  %3508 = vmatprep.subr.bf16.mxu0 %v2997
  %3509 = vmatpush1.bf16.msra.mxu0 %v2996
  %3510 = vmatprep.subr.bf16.mxu0 %v3005
  %3511 = vmatpush1.bf16.msra.mxu0 %v3004
  %3512 = vmatprep.subr.bf16.mxu0 %v3013
  %3513 = vmatpush1.bf16.msra.mxu0 %v3012
  %3514 = vmatprep.subr.bf16.mxu0 %v3021
  %3515 = vmatpush1.bf16.msra.mxu0 %v3020
  %3516 = vmatprep.subr.bf16.mxu0 %v3029
  %3517 = vmatpush1.bf16.msra.mxu0 %v3028
  %3518 = vmatprep.subr.bf16.mxu0 %v3037
  %3519 = vmatpush1.bf16.msra.mxu0 %v3036
  %3520 = vmatprep.subr.bf16.mxu0 %v3045
  %3521 = vmatpush1.bf16.msra.mxu0 %v3044
  %3522 = vmatprep.subr.bf16.mxu0 %v3053
  %3523 = vmatpush1.bf16.msra.mxu0 %v3052
  %3524 = vmatprep.subr.bf16.mxu0 %v3061
  %3525 = vmatpush1.bf16.msra.mxu0 %v3060
  %3526 = vmatprep.subr.bf16.mxu0 %v3069
  %3527 = vmatpush1.bf16.msra.mxu0 %v3068
  %3528 = vmatprep.subr.bf16.mxu0 %v3077
  %3529 = vmatpush1.bf16.msra.mxu0 %v3076
  %3530 = vmatprep.subr.bf16.mxu0 %v3085
  %3531 = vmatpush1.bf16.msra.mxu0 %v3084
  %3532 = vmatprep.subr.bf16.mxu0 %v3093
  %3533 = vmatpush1.bf16.msra.mxu0 %v3092
  %3534 = vmatprep.subr.bf16.mxu0 %v3101
  %3535 = vmatpush1.bf16.msra.mxu0 %v3100
  %3536 = vmatprep.subr.bf16.mxu0 %v3109
  %3537 = vmatpush1.bf16.msra.mxu0 %v3108
  %3538 = vmatprep.subr.bf16.mxu0 %v3117
  %3539 = vmatpush1.bf16.msra.mxu0 %v3116
  %3540 = vmatprep.mubr.bf16.mxu0 %v1927
  %3541 = vmatmul.mubr.bf16.gmra.mrb[0].mxu0 %v1926
  %v3542 = vpop.f32.mrb[0].mxu0
  %v3543 = vadd.f32 %v2191, %v3542
  %v3544 = vpop.f32.mrb[0].mxu0
  %v3545 = vadd.f32 %v2195, %v3544
  %v3546 = vpop.f32.mrb[0].mxu0
  %v3547 = vpop.f32.mrb[0].mxu0
  %3548 = vdwg.mxu0
  %3549 = vmatprep.subr.bf16.mxu0 %v3125
  %3550 = vmatpush1.bf16.msra.mxu0 %v3124
  %3551 = vmatprep.subr.bf16.mxu0 %v3133
  %3552 = vmatpush1.bf16.msra.mxu0 %v3132
  %3553 = vmatprep.subr.bf16.mxu0 %v3141
  %3554 = vmatpush1.bf16.msra.mxu0 %v3140
  %3555 = vmatprep.subr.bf16.mxu0 %v3149
  %3556 = vmatpush1.bf16.msra.mxu0 %v3148
  %3557 = vmatprep.subr.bf16.mxu0 %v3157
  %3558 = vmatpush1.bf16.msra.mxu0 %v3156
  %3559 = vmatprep.subr.bf16.mxu0 %v3165
  %3560 = vmatpush1.bf16.msra.mxu0 %v3164
  %3561 = vmatprep.subr.bf16.mxu0 %v3173
  %3562 = vmatpush1.bf16.msra.mxu0 %v3172
  %3563 = vmatprep.subr.bf16.mxu0 %v3181
  %3564 = vmatpush1.bf16.msra.mxu0 %v3180
  %3565 = vmatprep.subr.bf16.mxu0 %v3189
  %3566 = vmatpush1.bf16.msra.mxu0 %v3188
  %3567 = vmatprep.subr.bf16.mxu0 %v3197
  %3568 = vmatpush1.bf16.msra.mxu0 %v3196
  %3569 = vmatprep.subr.bf16.mxu0 %v3205
  %3570 = vmatpush1.bf16.msra.mxu0 %v3204
  %3571 = vmatprep.subr.bf16.mxu0 %v3213
  %3572 = vmatpush1.bf16.msra.mxu0 %v3212
  %3573 = vmatprep.subr.bf16.mxu0 %v3221
  %3574 = vmatpush1.bf16.msra.mxu0 %v3220
  %3575 = vmatprep.subr.bf16.mxu0 %v3229
  %3576 = vmatpush1.bf16.msra.mxu0 %v3228
  %3577 = vmatprep.subr.bf16.mxu0 %v3237
  %3578 = vmatpush1.bf16.msra.mxu0 %v3236
  %3579 = vmatprep.subr.bf16.mxu0 %v3245
  %3580 = vmatpush1.bf16.msra.mxu0 %v3244
  %3581 = vmatprep.mubr.bf16.mxu0 %v1929
  %3582 = vmatmul.mubr.bf16.gmra.mrb[0].mxu0 %v1928
  %v3583 = vpop.f32.mrb[0].mxu0
  %v3584 = vadd.f32 %v3543, %v3583
  %v3585 = vpop.f32.mrb[0].mxu0
  %v3586 = vadd.f32 %v3545, %v3585
  %v3587 = vpop.f32.mrb[0].mxu0
  %v3588 = vpop.f32.mrb[0].mxu0
  %3589 = vdwg.mxu0
  %3590 = vmatprep.subr.bf16.mxu0 %v2999
  %3591 = vmatpush1.bf16.msra.mxu0 %v2998
  %3592 = vmatprep.subr.bf16.mxu0 %v3007
  %3593 = vmatpush1.bf16.msra.mxu0 %v3006
  %3594 = vmatprep.subr.bf16.mxu0 %v3015
  %3595 = vmatpush1.bf16.msra.mxu0 %v3014
  %3596 = vmatprep.subr.bf16.mxu0 %v3023
  %3597 = vmatpush1.bf16.msra.mxu0 %v3022
  %3598 = vmatprep.subr.bf16.mxu0 %v3031
  %3599 = vmatpush1.bf16.msra.mxu0 %v3030
  %3600 = vmatprep.subr.bf16.mxu0 %v3039
  %3601 = vmatpush1.bf16.msra.mxu0 %v3038
  %3602 = vmatprep.subr.bf16.mxu0 %v3047
  %3603 = vmatpush1.bf16.msra.mxu0 %v3046
  %3604 = vmatprep.subr.bf16.mxu0 %v3055
  %3605 = vmatpush1.bf16.msra.mxu0 %v3054
  %3606 = vmatprep.subr.bf16.mxu0 %v3063
  %3607 = vmatpush1.bf16.msra.mxu0 %v3062
  %3608 = vmatprep.subr.bf16.mxu0 %v3071
  %3609 = vmatpush1.bf16.msra.mxu0 %v3070
  %3610 = vmatprep.subr.bf16.mxu0 %v3079
  %3611 = vmatpush1.bf16.msra.mxu0 %v3078
  %3612 = vmatprep.subr.bf16.mxu0 %v3087
  %3613 = vmatpush1.bf16.msra.mxu0 %v3086
  %3614 = vmatprep.subr.bf16.mxu0 %v3095
  %3615 = vmatpush1.bf16.msra.mxu0 %v3094
  %3616 = vmatprep.subr.bf16.mxu0 %v3103
  %3617 = vmatpush1.bf16.msra.mxu0 %v3102
  %3618 = vmatprep.subr.bf16.mxu0 %v3111
  %3619 = vmatpush1.bf16.msra.mxu0 %v3110
  %3620 = vmatprep.subr.bf16.mxu0 %v3119
  %3621 = vmatpush1.bf16.msra.mxu0 %v3118
  %3622 = vmatprep.mubr.bf16.mxu0 %v1927
  %3623 = vmatmul.mubr.bf16.gmra.mrb[0].mxu0 %v1926
  %v3624 = vpop.f32.mrb[0].mxu0
  %v3625 = vadd.f32 %v2199, %v3624
  %v3626 = vpop.f32.mrb[0].mxu0
  %v3627 = vadd.f32 %v2203, %v3626
  %v3628 = vpop.f32.mrb[0].mxu0
  %v3629 = vpop.f32.mrb[0].mxu0
  %3630 = vdwg.mxu0
  %3631 = vmatprep.subr.bf16.mxu0 %v3127
  %3632 = vmatpush1.bf16.msra.mxu0 %v3126
  %3633 = vmatprep.subr.bf16.mxu0 %v3135
  %3634 = vmatpush1.bf16.msra.mxu0 %v3134
  %3635 = vmatprep.subr.bf16.mxu0 %v3143
  %3636 = vmatpush1.bf16.msra.mxu0 %v3142
  %3637 = vmatprep.subr.bf16.mxu0 %v3151
  %3638 = vmatpush1.bf16.msra.mxu0 %v3150
  %3639 = vmatprep.subr.bf16.mxu0 %v3159
  %3640 = vmatpush1.bf16.msra.mxu0 %v3158
  %3641 = vmatprep.subr.bf16.mxu0 %v3167
  %3642 = vmatpush1.bf16.msra.mxu0 %v3166
  %3643 = vmatprep.subr.bf16.mxu0 %v3175
  %3644 = vmatpush1.bf16.msra.mxu0 %v3174
  %3645 = vmatprep.subr.bf16.mxu0 %v3183
  %3646 = vmatpush1.bf16.msra.mxu0 %v3182
  %3647 = vmatprep.subr.bf16.mxu0 %v3191
  %3648 = vmatpush1.bf16.msra.mxu0 %v3190
  %3649 = vmatprep.subr.bf16.mxu0 %v3199
  %3650 = vmatpush1.bf16.msra.mxu0 %v3198
  %3651 = vmatprep.subr.bf16.mxu0 %v3207
  %3652 = vmatpush1.bf16.msra.mxu0 %v3206
  %3653 = vmatprep.subr.bf16.mxu0 %v3215
  %3654 = vmatpush1.bf16.msra.mxu0 %v3214
  %3655 = vmatprep.subr.bf16.mxu0 %v3223
  %3656 = vmatpush1.bf16.msra.mxu0 %v3222
  %3657 = vmatprep.subr.bf16.mxu0 %v3231
  %3658 = vmatpush1.bf16.msra.mxu0 %v3230
  %3659 = vmatprep.subr.bf16.mxu0 %v3239
  %3660 = vmatpush1.bf16.msra.mxu0 %v3238
  %3661 = vmatprep.subr.bf16.mxu0 %v3247
  %3662 = vmatpush1.bf16.msra.mxu0 %v3246
  %3663 = vmatprep.mubr.bf16.mxu0 %v1929
  %3664 = vmatmul.mubr.bf16.gmra.mrb[0].mxu0 %v1928
  %v3665 = vpop.f32.mrb[0].mxu0
  %v3666 = vadd.f32 %v3625, %v3665
  %v3667 = vpop.f32.mrb[0].mxu0
  %v3668 = vadd.f32 %v3627, %v3667
  %v3669 = vpop.f32.mrb[0].mxu0
  %v3670 = vpop.f32.mrb[0].mxu0
  %3671 = vdwg.mxu0
  %3672 = vmatprep.subr.bf16.mxu0 %v3001
  %3673 = vmatpush1.bf16.msra.mxu0 %v3000
  %3674 = vmatprep.subr.bf16.mxu0 %v3009
  %3675 = vmatpush1.bf16.msra.mxu0 %v3008
  %3676 = vmatprep.subr.bf16.mxu0 %v3017
  %3677 = vmatpush1.bf16.msra.mxu0 %v3016
  %3678 = vmatprep.subr.bf16.mxu0 %v3025
  %3679 = vmatpush1.bf16.msra.mxu0 %v3024
  %3680 = vmatprep.subr.bf16.mxu0 %v3033
  %3681 = vmatpush1.bf16.msra.mxu0 %v3032
  %3682 = vmatprep.subr.bf16.mxu0 %v3041
  %3683 = vmatpush1.bf16.msra.mxu0 %v3040
  %3684 = vmatprep.subr.bf16.mxu0 %v3049
  %3685 = vmatpush1.bf16.msra.mxu0 %v3048
  %3686 = vmatprep.subr.bf16.mxu0 %v3057
  %3687 = vmatpush1.bf16.msra.mxu0 %v3056
  %3688 = vmatprep.subr.bf16.mxu0 %v3065
  %3689 = vmatpush1.bf16.msra.mxu0 %v3064
  %3690 = vmatprep.subr.bf16.mxu0 %v3073
  %3691 = vmatpush1.bf16.msra.mxu0 %v3072
  %3692 = vmatprep.subr.bf16.mxu0 %v3081
  %3693 = vmatpush1.bf16.msra.mxu0 %v3080
  %3694 = vmatprep.subr.bf16.mxu0 %v3089
  %3695 = vmatpush1.bf16.msra.mxu0 %v3088
  %3696 = vmatprep.subr.bf16.mxu0 %v3097
  %3697 = vmatpush1.bf16.msra.mxu0 %v3096
  %3698 = vmatprep.subr.bf16.mxu0 %v3105
  %3699 = vmatpush1.bf16.msra.mxu0 %v3104
  %3700 = vmatprep.subr.bf16.mxu0 %v3113
  %3701 = vmatpush1.bf16.msra.mxu0 %v3112
  %3702 = vmatprep.subr.bf16.mxu0 %v3121
  %3703 = vmatpush1.bf16.msra.mxu0 %v3120
  %3704 = vmatprep.mubr.bf16.mxu0 %v1927
  %3705 = vmatmul.mubr.bf16.gmra.mrb[0].mxu0 %v1926
  %v3706 = vpop.f32.mrb[0].mxu0
  %v3707 = vadd.f32 %v2207, %v3706
  %v3708 = vpop.f32.mrb[0].mxu0
  %v3709 = vadd.f32 %v2211, %v3708
  %v3710 = vpop.f32.mrb[0].mxu0
  %v3711 = vpop.f32.mrb[0].mxu0
  %3712 = vdwg.mxu0
  %3713 = vmatprep.subr.bf16.mxu0 %v3129
  %3714 = vmatpush1.bf16.msra.mxu0 %v3128
  %3715 = vmatprep.subr.bf16.mxu0 %v3137
  %3716 = vmatpush1.bf16.msra.mxu0 %v3136
  %3717 = vmatprep.subr.bf16.mxu0 %v3145
  %3718 = vmatpush1.bf16.msra.mxu0 %v3144
  %3719 = vmatprep.subr.bf16.mxu0 %v3153
  %3720 = vmatpush1.bf16.msra.mxu0 %v3152
  %3721 = vmatprep.subr.bf16.mxu0 %v3161
  %3722 = vmatpush1.bf16.msra.mxu0 %v3160
  %3723 = vmatprep.subr.bf16.mxu0 %v3169
  %3724 = vmatpush1.bf16.msra.mxu0 %v3168
  %3725 = vmatprep.subr.bf16.mxu0 %v3177
  %3726 = vmatpush1.bf16.msra.mxu0 %v3176
  %3727 = vmatprep.subr.bf16.mxu0 %v3185
  %3728 = vmatpush1.bf16.msra.mxu0 %v3184
  %3729 = vmatprep.subr.bf16.mxu0 %v3193
  %3730 = vmatpush1.bf16.msra.mxu0 %v3192
  %3731 = vmatprep.subr.bf16.mxu0 %v3201
  %3732 = vmatpush1.bf16.msra.mxu0 %v3200
  %3733 = vmatprep.subr.bf16.mxu0 %v3209
  %3734 = vmatpush1.bf16.msra.mxu0 %v3208
  %3735 = vmatprep.subr.bf16.mxu0 %v3217
  %3736 = vmatpush1.bf16.msra.mxu0 %v3216
  %3737 = vmatprep.subr.bf16.mxu0 %v3225
  %3738 = vmatpush1.bf16.msra.mxu0 %v3224
  %3739 = vmatprep.subr.bf16.mxu0 %v3233
  %3740 = vmatpush1.bf16.msra.mxu0 %v3232
  %3741 = vmatprep.subr.bf16.mxu0 %v3241
  %3742 = vmatpush1.bf16.msra.mxu0 %v3240
  %3743 = vmatprep.subr.bf16.mxu0 %v3249
  %3744 = vmatpush1.bf16.msra.mxu0 %v3248
  %3745 = vmatprep.mubr.bf16.mxu0 %v1929
  %3746 = vmatmul.mubr.bf16.gmra.mrb[0].mxu0 %v1928
  %v3747 = vpop.f32.mrb[0].mxu0
  %v3748 = vadd.f32 %v3707, %v3747
  %v3749 = vpop.f32.mrb[0].mxu0
  %v3750 = vadd.f32 %v3709, %v3749
  %v3751 = vpop.f32.mrb[0].mxu0
  %v3752 = vpop.f32.mrb[0].mxu0
  %3753 = vdwg.mxu0
  %3754 = vmatprep.subr.bf16.mxu0 %v3003
  %3755 = vmatpush1.bf16.msra.mxu0 %v3002
  %3756 = vmatprep.subr.bf16.mxu0 %v3011
  %3757 = vmatpush1.bf16.msra.mxu0 %v3010
  %3758 = vmatprep.subr.bf16.mxu0 %v3019
  %3759 = vmatpush1.bf16.msra.mxu0 %v3018
  %3760 = vmatprep.subr.bf16.mxu0 %v3027
  %3761 = vmatpush1.bf16.msra.mxu0 %v3026
  %3762 = vmatprep.subr.bf16.mxu0 %v3035
  %3763 = vmatpush1.bf16.msra.mxu0 %v3034
  %3764 = vmatprep.subr.bf16.mxu0 %v3043
  %3765 = vmatpush1.bf16.msra.mxu0 %v3042
  %3766 = vmatprep.subr.bf16.mxu0 %v3051
  %3767 = vmatpush1.bf16.msra.mxu0 %v3050
  %3768 = vmatprep.subr.bf16.mxu0 %v3059
  %3769 = vmatpush1.bf16.msra.mxu0 %v3058
  %3770 = vmatprep.subr.bf16.mxu0 %v3067
  %3771 = vmatpush1.bf16.msra.mxu0 %v3066
  %3772 = vmatprep.subr.bf16.mxu0 %v3075
  %3773 = vmatpush1.bf16.msra.mxu0 %v3074
  %3774 = vmatprep.subr.bf16.mxu0 %v3083
  %3775 = vmatpush1.bf16.msra.mxu0 %v3082
  %3776 = vmatprep.subr.bf16.mxu0 %v3091
  %3777 = vmatpush1.bf16.msra.mxu0 %v3090
  %3778 = vmatprep.subr.bf16.mxu0 %v3099
  %3779 = vmatpush1.bf16.msra.mxu0 %v3098
  %3780 = vmatprep.subr.bf16.mxu0 %v3107
  %3781 = vmatpush1.bf16.msra.mxu0 %v3106
  %3782 = vmatprep.subr.bf16.mxu0 %v3115
  %3783 = vmatpush1.bf16.msra.mxu0 %v3114
  %3784 = vmatprep.subr.bf16.mxu0 %v3123
  %3785 = vmatpush1.bf16.msra.mxu0 %v3122
  %3786 = vmatprep.mubr.bf16.mxu0 %v1927
  %3787 = vmatmul.mubr.bf16.gmra.mrb[0].mxu0 %v1926
  %v3788 = vpop.f32.mrb[0].mxu0
  %v3789 = vadd.f32 %v2215, %v3788
  %v3790 = vpop.f32.mrb[0].mxu0
  %v3791 = vadd.f32 %v2219, %v3790
  %v3792 = vpop.f32.mrb[0].mxu0
  %v3793 = vpop.f32.mrb[0].mxu0
  %3794 = vdwg.mxu0
  %3795 = vmatprep.subr.bf16.mxu0 %v3131
  %3796 = vmatpush1.bf16.msra.mxu0 %v3130
  %3797 = vmatprep.subr.bf16.mxu0 %v3139
  %3798 = vmatpush1.bf16.msra.mxu0 %v3138
  %3799 = vmatprep.subr.bf16.mxu0 %v3147
  %3800 = vmatpush1.bf16.msra.mxu0 %v3146
  %3801 = vmatprep.subr.bf16.mxu0 %v3155
  %3802 = vmatpush1.bf16.msra.mxu0 %v3154
  %3803 = vmatprep.subr.bf16.mxu0 %v3163
  %3804 = vmatpush1.bf16.msra.mxu0 %v3162
  %3805 = vmatprep.subr.bf16.mxu0 %v3171
  %3806 = vmatpush1.bf16.msra.mxu0 %v3170
  %3807 = vmatprep.subr.bf16.mxu0 %v3179
  %3808 = vmatpush1.bf16.msra.mxu0 %v3178
  %3809 = vmatprep.subr.bf16.mxu0 %v3187
  %3810 = vmatpush1.bf16.msra.mxu0 %v3186
  %3811 = vmatprep.subr.bf16.mxu0 %v3195
  %3812 = vmatpush1.bf16.msra.mxu0 %v3194
  %3813 = vmatprep.subr.bf16.mxu0 %v3203
  %3814 = vmatpush1.bf16.msra.mxu0 %v3202
  %3815 = vmatprep.subr.bf16.mxu0 %v3211
  %3816 = vmatpush1.bf16.msra.mxu0 %v3210
  %3817 = vmatprep.subr.bf16.mxu0 %v3219
  %3818 = vmatpush1.bf16.msra.mxu0 %v3218
  %3819 = vmatprep.subr.bf16.mxu0 %v3227
  %3820 = vmatpush1.bf16.msra.mxu0 %v3226
  %3821 = vmatprep.subr.bf16.mxu0 %v3235
  %3822 = vmatpush1.bf16.msra.mxu0 %v3234
  %3823 = vmatprep.subr.bf16.mxu0 %v3243
  %3824 = vmatpush1.bf16.msra.mxu0 %v3242
  %3825 = vmatprep.subr.bf16.mxu0 %v3251
  %3826 = vmatpush1.bf16.msra.mxu0 %v3250
  %3827 = vmatprep.mubr.bf16.mxu0 %v1929
  %3828 = vmatmul.mubr.bf16.gmra.mrb[0].mxu0 %v1928
  %v3829 = vpop.f32.mrb[0].mxu0
  %v3830 = vadd.f32 %v3789, %v3829
  %v3831 = vpop.f32.mrb[0].mxu0
  %v3832 = vadd.f32 %v3791, %v3831
  %v3833 = vpop.f32.mrb[0].mxu0
  %v3834 = vpop.f32.mrb[0].mxu0
  %3835 = vdwg.mxu0
  %v3836 = vxor.u32 %v3584, 2147483648
  %v3837 = vxor.u32 %v3586, 2147483648
  %v3838 = vxor.u32 %v3666, 2147483648
  %v3839 = vxor.u32 %v3668, 2147483648
  %v3840 = vxor.u32 %v3748, 2147483648
  %v3841 = vxor.u32 %v3750, 2147483648
  %v3842 = vxor.u32 %v3830, 2147483648
  %v3843 = vxor.u32 %v3832, 2147483648
  %v3844 = vmul.f32 %v3836, 1.442695
  %v3845 = vpow.pop %v3844
  %v3846 = vmul.f32 %v3837, 1.442695
  %v3847 = vpow.pop %v3846
  %v3848 = vmul.f32 %v3838, 1.442695
  %v3849 = vpow.pop %v3848
  %v3850 = vmul.f32 %v3839, 1.442695
  %v3851 = vpow.pop %v3850
  %v3852 = vmul.f32 %v3840, 1.442695
  %v3853 = vpow.pop %v3852
  %v3854 = vmul.f32 %v3841, 1.442695
  %v3855 = vpow.pop %v3854
  %v3856 = vmul.f32 %v3842, 1.442695
  %v3857 = vpow.pop %v3856
  %v3858 = vmul.f32 %v3843, 1.442695
  %v3859 = vpow.pop %v3858
  %v3860 = vadd.f32 %v3845, 1.0
  %v3861 = vadd.f32 %v3847, 1.0
  %v3862 = vadd.f32 %v3849, 1.0
  %v3863 = vadd.f32 %v3851, 1.0
  %v3864 = vadd.f32 %v3853, 1.0
  %v3865 = vadd.f32 %v3855, 1.0
  %v3866 = vadd.f32 %v3857, 1.0
  %v3867 = vadd.f32 %v3859, 1.0
  %v3868 = vrcp.pop %v3860
  %v3869 = vmul.f32 1.0, %v3868
  %v3870 = vrcp.pop %v3861
  %v3871 = vmul.f32 1.0, %v3870
  %v3872 = vrcp.pop %v3862
  %v3873 = vmul.f32 1.0, %v3872
  %v3874 = vrcp.pop %v3863
  %v3875 = vmul.f32 1.0, %v3874
  %v3876 = vrcp.pop %v3864
  %v3877 = vmul.f32 1.0, %v3876
  %v3878 = vrcp.pop %v3865
  %v3879 = vmul.f32 1.0, %v3878
  %v3880 = vrcp.pop %v3866
  %v3881 = vmul.f32 1.0, %v3880
  %v3882 = vrcp.pop %v3867
  %v3883 = vmul.f32 1.0, %v3882
  %v3892 = vcombine.low %v3869, %v3871
  %v3893 = vcombine.low %v3873, %v3875
  %v3895 = vunpack.c.l.s4 1983009808
  %v3896 = vunpack.c.0.s8 %v3895
  %v3897 = vlaneseq
  %v3898 = vshrl.u32 %v3897, 7
  %v3899 = vsub.s32 %v3896, %v3898
  %v3900 = vrot.slane %v3892, %v3899
  %v3902 = vunpack.c.l.s4 1983009808
  %v3903 = vunpack.c.0.s8 %v3902
  %v3904 = vlaneseq
  %v3905 = vshrl.u32 %v3904, 7
  %v3906 = vsub.s32 %v3903, %v3905
  %v3907 = vrot.slane %v3893, %v3906
  %v3908 = vcombine.low %v3900, %v3907
  %v3909 = vcombine.low %v3877, %v3879
  %v3910 = vcombine.low %v3881, %v3883
  %v3912 = vunpack.c.l.s4 1983009808
  %v3913 = vunpack.c.0.s8 %v3912
  %v3914 = vlaneseq
  %v3915 = vshrl.u32 %v3914, 7
  %v3916 = vsub.s32 %v3913, %v3915
  %v3917 = vrot.slane %v3909, %v3916
  %v3919 = vunpack.c.l.s4 1983009808
  %v3920 = vunpack.c.0.s8 %v3919
  %v3921 = vlaneseq
  %v3922 = vshrl.u32 %v3921, 7
  %v3923 = vsub.s32 %v3920, %v3922
  %v3924 = vrot.slane %v3910, %v3923
  %v3925 = vcombine.low %v3917, %v3924
  %3928 = vst [vmem:[%s17] sm:$0xff] %v3908
  %3929 = vst [vmem:[%s17 + $0x8] sm:$0xff] %v3925
  // Predicated region
  $region70: #{vae_forward.5} parent=0 // pred_check
    _
  $region71: #{vae_forward.5} parent=0 // pred_check_branch
    %3931 = sbr.rel (0) target = $region73
  $region72: #{vae_forward.5} parent=0 // pred_region
    _
  $region73: #{vae_forward.5} parent=0 // pred_fallthru
    _
  // Predicated region
  $region74: #{vae_forward.5} parent=0 // pred_check
    _
  $region75: #{vae_forward.5} parent=0 // pred_check_branch
    %3933 = sbr.rel (0) target = $region77
  $region76: #{vae_forward.5} parent=0 // pred_region
    _
  $region77: #{vae_forward.5} parent=0 // pred_fallthru
    _

</llo_original>
